<compile_context>
chip_gen: v5e
topology: v5e:2x2
jax: 0.10.0
libtpu: 0.0.40
codegen_flags: <defaults>
</compile_context>

<pallas_src>
import math
import jax
import jax.numpy as jnp
from jax.experimental import pallas as pl
from jax.experimental.pallas import tpu as pltpu


# ------------------------------ BN folding ---------------------------------- #

def _fold_bn(bn, eps=1e-5):
    scale = bn["gamma"] / jnp.sqrt(bn["var"] + eps)
    bias = bn["beta"] - bn["mean"] * scale
    return scale, bias


# ----------------- XLA-side prep for the strided first block ---------------- #
# relu(bn1(x)) phase-decimated into s*s slabs with ONE leading zero pad row/col
# (sufficient for a 3x3 / pad-1 conv when kh <= stride+1).  bf16, one small
# fused XLA op; every in-kernel tap window then becomes a contiguous slab read.

def _phase_prep(x, s1, b1, stride):
    n, h, w, cin = x.shape
    s = stride
    act = jnp.maximum(x * s1 + b1, 0.0).astype(jnp.bfloat16)
    ho, wo = h // s, w // s
    hop, wop = ho + 1, wo + 1
    slabs = []
    for a in range(s):
        for c in range(s):
            ph = act[:, a::s, c::s, :]                              # (n, ho, wo, cin)
            slabs.append(jnp.pad(ph, ((0, 0), (1, 0), (1, 0), (0, 0))))
    xph = jnp.stack(slabs, axis=1)                                  # (n, s*s, hop, wop, cin)
    return xph.reshape(n * s * s * hop, wop, cin)


def _tap_src(i, s):
    """3x3/pad-1 conv tap index -> (phase, start row) inside the padded phase slab."""
    j = i - 1
    r = j % s
    return r, (j - r) // s + 1


# ------------------------- fused BasicBlock kernel -------------------------- #

def _make_basic_block_kernel(*, BT, h, w, cin, cout, stride, equal_in_out):
    s = stride
    kh = kw = 3
    ho = (h + 2 - kh) // s + 1
    wo = (w + 2 - kw) // s + 1
    K1, K2 = kh * kw * cin, kh * kw * cout
    M = BT * ho * wo
    hp1, wp1 = h + 2, w + 2            # conv1 padded activation (stride-1 path)
    hp2, wp2 = ho + 2, wo + 2          # conv2 padded activation
    hop = ho + 1                       # strided phase-slab rows
    center = (1 * kw + 1) * cin        # centre-tap lane offset inside col1

    def kernel(*refs):
        it = iter(refs)
        x_ref = next(it)
        w1_ref = next(it)
        w2_ref = next(it)
        wsc_ref = None if equal_in_out else next(it)
        if s == 1:
            s1_ref, b1_ref = next(it), next(it)
        s2_ref, b2_ref = next(it), next(it)
        o_ref = next(it)
        buf1 = next(it) if s == 1 else None
        col1 = next(it)
        buf2 = next(it)
        col2 = next(it)

        # ---- prologue + conv1 im2col (taps packed into the K dimension) ------
        if s == 1:
            # zero only the pad border; the interior is fully overwritten below
            zc = jnp.zeros((BT * hp1, 1, cin), buf1.dtype)
            buf1[:, pl.ds(0, 1), :] = zc
            buf1[:, pl.ds(wp1 - 1, 1), :] = zc
            zr = jnp.zeros((1, wp1, cin), buf1.dtype)
            for b in range(BT):
                buf1[pl.ds(b * hp1, 1), :, :] = zr
                buf1[pl.ds(b * hp1 + hp1 - 1, 1), :, :] = zr
                xb = x_ref[pl.ds(b * h, h), :, :].astype(jnp.float32)
                act = jnp.maximum(xb * s1_ref[...] + b1_ref[...], 0.0)  # fused bn1+relu
                buf1[pl.ds(b * hp1 + 1, h), pl.ds(1, w), :] = act.astype(jnp.bfloat16)
            for b in range(BT):
                for ih in range(kh):
                    for iw in range(kw):
                        col1[pl.ds(b * ho, ho), :, pl.ds((ih * kw + iw) * cin, cin)] = \
                            buf1[pl.ds(b * hp1 + ih, ho), pl.ds(iw, wo), :]
        else:
            ss = s * s
            for b in range(BT):
                for ih in range(kh):
                    ra, r0 = _tap_src(ih, s)
                    for iw in range(kw):
                        ca, c0 = _tap_src(iw, s)
                        row0 = (b * ss + ra * s + ca) * hop + r0
                        col1[pl.ds(b * ho, ho), :, pl.ds((ih * kw + iw) * cin, cin)] = \
                            x_ref[pl.ds(row0, ho), pl.ds(c0, wo), :]

        a1 = col1[...].reshape(M, K1)                                   # bf16, (M, 9*cin)
        h1 = jnp.dot(a1, w1_ref[...], preferred_element_type=jnp.float32)
        h1 = jnp.maximum(h1 * s2_ref[...] + b2_ref[...], 0.0)           # fused bn2+relu
        # TODO(synk): F.dropout (dropRate>0, training=True) not implemented; with
        # dropRate=0.0 / eval mode it is the identity, which is what we model.
        h1 = h1.astype(jnp.bfloat16).reshape(BT * ho, wo, cout)

        # ---- conv2 (3x3 / stride1 / pad1): pad + im2col + one matmul ---------
        zc2 = jnp.zeros((BT * hp2, 1, cout), buf2.dtype)
        buf2[:, pl.ds(0, 1), :] = zc2
        buf2[:, pl.ds(wp2 - 1, 1), :] = zc2
        zr2 = jnp.zeros((1, wp2, cout), buf2.dtype)
        for b in range(BT):
            buf2[pl.ds(b * hp2, 1), :, :] = zr2
            buf2[pl.ds(b * hp2 + hp2 - 1, 1), :, :] = zr2
            buf2[pl.ds(b * hp2 + 1, ho), pl.ds(1, wo), :] = h1[b * ho:(b + 1) * ho]
        for b in range(BT):
            for ih in range(kh):
                for iw in range(kw):
                    col2[pl.ds(b * ho, ho), :, pl.ds((ih * kw + iw) * cout, cout)] = \
                        buf2[pl.ds(b * hp2 + ih, ho), pl.ds(iw, wo), :]
        a2 = col2[...].reshape(M, K2)                                   # bf16, (M, 9*cout)
        out = jnp.dot(a2, w2_ref[...], preferred_element_type=jnp.float32)

        # ---- shortcut + residual add (never leaves VMEM) ----------------------
        if equal_in_out:
            sc = x_ref[...].astype(jnp.float32).reshape(M, cin)          # raw x
        else:
            # 1x1 (strided) shortcut conv == centre tap of conv1's im2col matrix
            sc_lhs = col1[:, :, pl.ds(center, cin)].reshape(M, cin)
            sc = jnp.dot(sc_lhs, wsc_ref[...], preferred_element_type=jnp.float32)
        o_ref[...] = (out + sc).reshape(BT * ho, wo, cout)

    return kernel


def fused_basic_block(x, p, *, stride, equal_in_out):
    """One WideResNet BasicBlock forward as a single fused pallas_call."""
    n, h, w, cin = x.shape
    kh = kw = 3
    cout = p["conv1"].shape[-1]
    s = stride
    ho = (h + 2 - kh) // s + 1
    wo = (w + 2 - kw) // s + 1
    K1, K2 = kh * kw * cin, kh * kw * cout

    if s != 1 and equal_in_out:
        raise ValueError("identity shortcut with stride>1 has mismatched shapes "
                         "(same latent bug as the reference PyTorch module)")
    if s != 1:
        assert kh <= s + 1 and h % s == 0 and w % s == 0, "unsupported strided shape"

    s1, b1 = _fold_bn(p["bn1"])
    s2, b2 = _fold_bn(p["bn2"])

    # Batch tile: fold batch into the matmul M dim so each grid step carries a
    # full MXU M tile (>=128 rows when the batch allows); grid stays "parallel".
    BT = 1
    for d in range(1, n + 1):
        if n % d == 0:
            BT = d
            if d * ho * wo >= 128:
                break
    grid = (n // BT,)

    w1 = p["conv1"].reshape(K1, cout).astype(jnp.bfloat16)
    w2 = p["conv2"].reshape(K2, cout).astype(jnp.bfloat16)

    inputs, in_specs = [], []
    if s == 1:
        inputs.append(x.reshape(n * h, w, cin))                         # free reshape
        in_specs.append(pl.BlockSpec((BT * h, w, cin), lambda i: (i, 0, 0)))
    else:
        hop, wop = ho + 1, wo + 1
        inputs.append(_phase_prep(x, s1, b1, s))                        # bf16 phases
        in_specs.append(pl.BlockSpec((BT * s * s * hop, wop, cin),
                                     lambda i: (i, 0, 0)))

    inputs += [w1, w2]
    in_specs += [pl.BlockSpec((K1, cout), lambda i: (0, 0)),
                 pl.BlockSpec((K2, cout), lambda i: (0, 0))]
    if not equal_in_out:
        inputs.append(p["conv_sc"].reshape(cin, cout).astype(jnp.bfloat16))
        in_specs.append(pl.BlockSpec((cin, cout), lambda i: (0, 0)))
    if s == 1:
        inputs += [s1.reshape(1, cin).astype(jnp.float32),
                   b1.reshape(1, cin).astype(jnp.float32)]
        in_specs += [pl.BlockSpec((1, cin), lambda i: (0, 0))] * 2
    inputs += [s2.reshape(1, cout).astype(jnp.float32),
               b2.reshape(1, cout).astype(jnp.float32)]
    in_specs += [pl.BlockSpec((1, cout), lambda i: (0, 0))] * 2

    scratch = []
    if s == 1:
        scratch.append(pltpu.VMEM((BT * (h + 2), w + 2, cin), jnp.bfloat16))  # padded act
    scratch += [pltpu.VMEM((BT * ho, wo, K1), jnp.bfloat16),                  # conv1 im2col
                pltpu.VMEM((BT * (ho + 2), wo + 2, cout), jnp.bfloat16),      # padded h
                pltpu.VMEM((BT * ho, wo, K2), jnp.bfloat16)]                  # conv2 im2col

    kernel = _make_basic_block_kernel(BT=BT, h=h, w=w, cin=cin, cout=cout,
                                      stride=s, equal_in_out=equal_in_out)

    out = pl.pallas_call(
        kernel,
        out_shape=jax.ShapeDtypeStruct((n * ho, wo, cout), jnp.float32),
        grid=grid,
        in_specs=in_specs,
        out_specs=pl.BlockSpec((BT * ho, wo, cout), lambda i: (i, 0, 0)),
        scratch_shapes=scratch,
        compiler_params=pltpu.CompilerParams(dimension_semantics=("parallel",)),
    )(*inputs)
    return out.reshape(n, ho, wo, cout)


# ------------------------------- forward pass ------------------------------- #

def network_block_forward(x, layer_params, in_planes, out_planes, stride):
    for i, p in enumerate(layer_params):
        ip = in_planes if i == 0 else out_planes
        st = stride if i == 0 else 1
        x = fused_basic_block(x, p, stride=st, equal_in_out=(ip == out_planes))
    return x


# --------------------------- parameter construction ------------------------- #

def _bn_params(key, c):
    k1, k2, k3, k4 = jax.random.split(key, 4)
    return dict(gamma=jax.random.uniform(k1, (c,), jnp.float32, 0.5, 1.5),
                beta=0.1 * jax.random.normal(k2, (c,), jnp.float32),
                mean=0.1 * jax.random.normal(k3, (c,), jnp.float32),
                var=jax.random.uniform(k4, (c,), jnp.float32, 0.5, 1.5))


def init_basic_block_params(key, in_planes, out_planes):
    ks = jax.random.split(key, 5)
    p = {
        "bn1": _bn_params(ks[0], in_planes),
        "conv1": jax.random.normal(ks[1], (3, 3, in_planes, out_planes),
                                   jnp.float32) * math.sqrt(2.0 / (9 * out_planes)),
        "bn2": _bn_params(ks[2], out_planes),
        "conv2": jax.random.normal(ks[3], (3, 3, out_planes, out_planes),
                                   jnp.float32) * math.sqrt(2.0 / (9 * out_planes)),
    }
    if in_planes != out_planes:
        p["conv_sc"] = jax.random.normal(ks[4], (1, 1, in_planes, out_planes),
                                         jnp.float32) * math.sqrt(2.0 / out_planes)
    return p


def init_network_block_params(key, nb_layers, in_planes, out_planes):
    keys = jax.random.split(key, nb_layers)
    return [init_basic_block_params(keys[i],
                                    in_planes if i == 0 else out_planes,
                                    out_planes)
            for i in range(nb_layers)]


# ------------------------------ pure-JAX reference -------------------------- #
# Mirrors the kernel's bf16-operand / f32-accumulate convolutions so the check
# validates kernel structure (PyTorch forward semantics otherwise).

def ref_forward(x, layer_params, in_planes, out_planes, stride, eps=1e-5):
    def fold(bn):
        s = bn["gamma"] / jnp.sqrt(bn["var"] + eps)
        return s, bn["beta"] - bn["mean"] * s

    def conv(v, wgt, s, p):
        return jax.lax.conv_general_dilated(
            v.astype(jnp.bfloat16), wgt.astype(jnp.bfloat16), (s, s),
            ((p, p), (p, p)), dimension_numbers=("NHWC", "HWIO", "NHWC"),
            preferred_element_type=jnp.float32)

    for i, prm in enumerate(layer_params):
        ip = in_planes if i == 0 else out_planes
        st = stride if i == 0 else 1
        equal = ip == out_planes
        s1, b1 = fold(prm["bn1"])
        s2, b2 = fold(prm["bn2"])
        act = jnp.maximum(x * s1 + b1, 0.0).astype(jnp.bfloat16)
        out1 = conv(act, prm["conv1"], st, 1)
        act2 = jnp.maximum(out1 * s2 + b2, 0.0).astype(jnp.bfloat16)
        out2 = conv(act2, prm["conv2"], 1, 1)
        shortcut = x if equal else conv(act, prm["conv_sc"], st, 0)
        x = shortcut + out2
    return x


# ----------------------------------- main ----------------------------------- #

if __name__ == "__main__":
    nb_layers, in_planes, out_planes, stride = 2, 16, 32, 2
    N, H, W = 2, 16, 16

    key = jax.random.PRNGKey(0)
    k_x, k_p = jax.random.split(key)
    x = jax.random.normal(k_x, (N, H, W, in_planes), jnp.float32)   # NHWC
    params = init_network_block_params(k_p, nb_layers, in_planes, out_planes)

    fwd = jax.jit(lambda xx, pp: network_block_forward(
        xx, pp, in_planes, out_planes, stride))
    out = jax.block_until_ready(fwd(x, params))

    ref = ref_forward(x, params, in_planes, out_planes, stride)
    assert out.shape == (N, H // stride, W // stride, out_planes), out.shape
    err = float(jnp.max(jnp.abs(out - ref)))
    assert err < 2e-2, err

    print("KERNEL_OK")
</pallas_src>

<mosaic_0001>
module attributes {stable_mosaic.version = 11 : i64} {
  func.func @kernel(%arg0: i32, %arg1: memref<72x9x16xbf16, #tpu.memory_space<vmem>>, %arg2: memref<144x32xbf16, #tpu.memory_space<vmem>>, %arg3: memref<288x32xbf16, #tpu.memory_space<vmem>>, %arg4: memref<16x32xbf16, #tpu.memory_space<vmem>>, %arg5: memref<1x32xf32, #tpu.memory_space<vmem>>, %arg6: memref<1x32xf32, #tpu.memory_space<vmem>>, %arg7: memref<16x8x32xf32, #tpu.memory_space<vmem>>, %arg8: memref<16x8x144xbf16, #tpu.memory_space<vmem>>, %arg9: memref<20x10x32xbf16, #tpu.memory_space<vmem>>, %arg10: memref<16x8x288xbf16, #tpu.memory_space<vmem>>) attributes {dimension_semantics = [#tpu.dimension_semantics<parallel>], iteration_bounds = array<i64: 1>, scalar_prefetch = 0 : i64, scratch_operands = 3 : i64, tpu.core_type = #tpu.core_type<tc>, window_params = [{transform_indices = @transform_0, window_bounds = array<i64: 72, 9, 16>}, {pipeline_mode = #tpu.pipeline_mode<synchronous>, transform_indices = @transform_1, window_bounds = array<i64: 144, 32>}, {pipeline_mode = #tpu.pipeline_mode<synchronous>, transform_indices = @transform_2, window_bounds = array<i64: 288, 32>}, {pipeline_mode = #tpu.pipeline_mode<synchronous>, transform_indices = @transform_3, window_bounds = array<i64: 16, 32>}, {pipeline_mode = #tpu.pipeline_mode<synchronous>, transform_indices = @transform_4, window_bounds = array<i64: 1, 32>}, {pipeline_mode = #tpu.pipeline_mode<synchronous>, transform_indices = @transform_5, window_bounds = array<i64: 1, 32>}, {transform_indices = @transform_6, window_bounds = array<i64: 16, 8, 32>}]} {
    %c27 = arith.constant 27 : index
    %c0 = arith.constant 0 : index
    %c0_0 = arith.constant 0 : index
    %0 = vector.load %arg1[%c27, %c0, %c0_0] : memref<72x9x16xbf16, #tpu.memory_space<vmem>>, vector<8x8x16xbf16>
    %c0_1 = arith.constant 0 : index
    %c0_2 = arith.constant 0 : index
    %c0_3 = arith.constant 0 : index
    %1 = vector.load %arg8[%c0_1, %c0_2, %c0_3] : memref<16x8x144xbf16, #tpu.memory_space<vmem>>, vector<8x8x16xbf16>
    tpu.vector_store %arg8[%c0_1, %c0_2, %c0_3], %0 {strides = array<i32>} : memref<16x8x144xbf16, #tpu.memory_space<vmem>>, vector<8x8x16xbf16>,
    %c18 = arith.constant 18 : index
    %c1 = arith.constant 1 : index
    %c0_4 = arith.constant 0 : index
    %2 = vector.load %arg1[%c18, %c1, %c0_4] : memref<72x9x16xbf16, #tpu.memory_space<vmem>>, vector<8x8x16xbf16>
    %c0_5 = arith.constant 0 : index
    %c0_6 = arith.constant 0 : index
    %c16 = arith.constant 16 : index
    %3 = vector.load %arg8[%c0_5, %c0_6, %c16] : memref<16x8x144xbf16, #tpu.memory_space<vmem>>, vector<8x8x16xbf16>
    tpu.vector_store %arg8[%c0_5, %c0_6, %c16], %2 {strides = array<i32>} : memref<16x8x144xbf16, #tpu.memory_space<vmem>>, vector<8x8x16xbf16>,
    %c27_7 = arith.constant 27 : index
    %c1_8 = arith.constant 1 : index
    %c0_9 = arith.constant 0 : index
    %4 = vector.load %arg1[%c27_7, %c1_8, %c0_9] : memref<72x9x16xbf16, #tpu.memory_space<vmem>>, vector<8x8x16xbf16>
    %c0_10 = arith.constant 0 : index
    %c0_11 = arith.constant 0 : index
    %c32 = arith.constant 32 : index
    %5 = vector.load %arg8[%c0_10, %c0_11, %c32] : memref<16x8x144xbf16, #tpu.memory_space<vmem>>, vector<8x8x16xbf16>
    tpu.vector_store %arg8[%c0_10, %c0_11, %c32], %4 {strides = array<i32>} : memref<16x8x144xbf16, #tpu.memory_space<vmem>>, vector<8x8x16xbf16>,
    %c10 = arith.constant 10 : index
    %c0_12 = arith.constant 0 : index
    %c0_13 = arith.constant 0 : index
    %6 = vector.load %arg1[%c10, %c0_12, %c0_13] : memref<72x9x16xbf16, #tpu.memory_space<vmem>>, vector<8x8x16xbf16>
    %c0_14 = arith.constant 0 : index
    %c0_15 = arith.constant 0 : index
    %c48 = arith.constant 48 : index
    %7 = vector.load %arg8[%c0_14, %c0_15, %c48] : memref<16x8x144xbf16, #tpu.memory_space<vmem>>, vector<8x8x16xbf16>
    tpu.vector_store %arg8[%c0_14, %c0_15, %c48], %6 {strides = array<i32>} : memref<16x8x144xbf16, #tpu.memory_space<vmem>>, vector<8x8x16xbf16>,
    %c1_16 = arith.constant 1 : index
    %c1_17 = arith.constant 1 : index
    %c0_18 = arith.constant 0 : index
    %8 = vector.load %arg1[%c1_16, %c1_17, %c0_18] : memref<72x9x16xbf16, #tpu.memory_space<vmem>>, vector<8x8x16xbf16>
    %c0_19 = arith.constant 0 : index
    %c0_20 = arith.constant 0 : index
    %c64 = arith.constant 64 : index
    %9 = vector.load %arg8[%c0_19, %c0_20, %c64] : memref<16x8x144xbf16, #tpu.memory_space<vmem>>, vector<8x8x16xbf16>
    tpu.vector_store %arg8[%c0_19, %c0_20, %c64], %8 {strides = array<i32>} : memref<16x8x144xbf16, #tpu.memory_space<vmem>>, vector<8x8x16xbf16>,
    %c10_21 = arith.constant 10 : index
    %c1_22 = arith.constant 1 : index
    %c0_23 = arith.constant 0 : index
    %10 = vector.load %arg1[%c10_21, %c1_22, %c0_23] : memref<72x9x16xbf16, #tpu.memory_space<vmem>>, vector<8x8x16xbf16>
    %c0_24 = arith.constant 0 : index
    %c0_25 = arith.constant 0 : index
    %c80 = arith.constant 80 : index
    %11 = vector.load %arg8[%c0_24, %c0_25, %c80] : memref<16x8x144xbf16, #tpu.memory_space<vmem>>, vector<8x8x16xbf16>
    tpu.vector_store %arg8[%c0_24, %c0_25, %c80], %10 {strides = array<i32>} : memref<16x8x144xbf16, #tpu.memory_space<vmem>>, vector<8x8x16xbf16>,
    %c28 = arith.constant 28 : index
    %c0_26 = arith.constant 0 : index
    %c0_27 = arith.constant 0 : index
    %12 = vector.load %arg1[%c28, %c0_26, %c0_27] : memref<72x9x16xbf16, #tpu.memory_space<vmem>>, vector<8x8x16xbf16>
    %c0_28 = arith.constant 0 : index
    %c0_29 = arith.constant 0 : index
    %c96 = arith.constant 96 : index
    %13 = vector.load %arg8[%c0_28, %c0_29, %c96] : memref<16x8x144xbf16, #tpu.memory_space<vmem>>, vector<8x8x16xbf16>
    tpu.vector_store %arg8[%c0_28, %c0_29, %c96], %12 {strides = array<i32>} : memref<16x8x144xbf16, #tpu.memory_space<vmem>>, vector<8x8x16xbf16>,
    %c19 = arith.constant 19 : index
    %c1_30 = arith.constant 1 : index
    %c0_31 = arith.constant 0 : index
    %14 = vector.load %arg1[%c19, %c1_30, %c0_31] : memref<72x9x16xbf16, #tpu.memory_space<vmem>>, vector<8x8x16xbf16>
    %c0_32 = arith.constant 0 : index
    %c0_33 = arith.constant 0 : index
    %c112 = arith.constant 112 : index
    %15 = vector.load %arg8[%c0_32, %c0_33, %c112] : memref<16x8x144xbf16, #tpu.memory_space<vmem>>, vector<8x8x16xbf16>
    tpu.vector_store %arg8[%c0_32, %c0_33, %c112], %14 {strides = array<i32>} : memref<16x8x144xbf16, #tpu.memory_space<vmem>>, vector<8x8x16xbf16>,
    %c28_34 = arith.constant 28 : index
    %c1_35 = arith.constant 1 : index
    %c0_36 = arith.constant 0 : index
    %16 = vector.load %arg1[%c28_34, %c1_35, %c0_36] : memref<72x9x16xbf16, #tpu.memory_space<vmem>>, vector<8x8x16xbf16>
    %c0_37 = arith.constant 0 : index
    %c0_38 = arith.constant 0 : index
    %c128 = arith.constant 128 : index
    %17 = vector.load %arg8[%c0_37, %c0_38, %c128] : memref<16x8x144xbf16, #tpu.memory_space<vmem>>, vector<8x8x16xbf16>
    tpu.vector_store %arg8[%c0_37, %c0_38, %c128], %16 {strides = array<i32>} : memref<16x8x144xbf16, #tpu.memory_space<vmem>>, vector<8x8x16xbf16>,
    %c63 = arith.constant 63 : index
    %c0_39 = arith.constant 0 : index
    %c0_40 = arith.constant 0 : index
    %18 = vector.load %arg1[%c63, %c0_39, %c0_40] : memref<72x9x16xbf16, #tpu.memory_space<vmem>>, vector<8x8x16xbf16>
    %c8 = arith.constant 8 : index
    %c0_41 = arith.constant 0 : index
    %c0_42 = arith.constant 0 : index
    %19 = vector.load %arg8[%c8, %c0_41, %c0_42] : memref<16x8x144xbf16, #tpu.memory_space<vmem>>, vector<8x8x16xbf16>
    tpu.vector_store %arg8[%c8, %c0_41, %c0_42], %18 {strides = array<i32>} : memref<16x8x144xbf16, #tpu.memory_space<vmem>>, vector<8x8x16xbf16>,
    %c54 = arith.constant 54 : index
    %c1_43 = arith.constant 1 : index
    %c0_44 = arith.constant 0 : index
    %20 = vector.load %arg1[%c54, %c1_43, %c0_44] : memref<72x9x16xbf16, #tpu.memory_space<vmem>>, vector<8x8x16xbf16>
    %c8_45 = arith.constant 8 : index
    %c0_46 = arith.constant 0 : index
    %c16_47 = arith.constant 16 : index
    %21 = vector.load %arg8[%c8_45, %c0_46, %c16_47] : memref<16x8x144xbf16, #tpu.memory_space<vmem>>, vector<8x8x16xbf16>
    tpu.vector_store %arg8[%c8_45, %c0_46, %c16_47], %20 {strides = array<i32>} : memref<16x8x144xbf16, #tpu.memory_space<vmem>>, vector<8x8x16xbf16>,
    %c63_48 = arith.constant 63 : index
    %c1_49 = arith.constant 1 : index
    %c0_50 = arith.constant 0 : index
    %22 = vector.load %arg1[%c63_48, %c1_49, %c0_50] : memref<72x9x16xbf16, #tpu.memory_space<vmem>>, vector<8x8x16xbf16>
    %c8_51 = arith.constant 8 : index
    %c0_52 = arith.constant 0 : index
    %c32_53 = arith.constant 32 : index
    %23 = vector.load %arg8[%c8_51, %c0_52, %c32_53] : memref<16x8x144xbf16, #tpu.memory_space<vmem>>, vector<8x8x16xbf16>
    tpu.vector_store %arg8[%c8_51, %c0_52, %c32_53], %22 {strides = array<i32>} : memref<16x8x144xbf16, #tpu.memory_space<vmem>>, vector<8x8x16xbf16>,
    %c46 = arith.constant 46 : index
    %c0_54 = arith.constant 0 : index
    %c0_55 = arith.constant 0 : index
    %24 = vector.load %arg1[%c46, %c0_54, %c0_55] : memref<72x9x16xbf16, #tpu.memory_space<vmem>>, vector<8x8x16xbf16>
    %c8_56 = arith.constant 8 : index
    %c0_57 = arith.constant 0 : index
    %c48_58 = arith.constant 48 : index
    %25 = vector.load %arg8[%c8_56, %c0_57, %c48_58] : memref<16x8x144xbf16, #tpu.memory_space<vmem>>, vector<8x8x16xbf16>
    tpu.vector_store %arg8[%c8_56, %c0_57, %c48_58], %24 {strides = array<i32>} : memref<16x8x144xbf16, #tpu.memory_space<vmem>>, vector<8x8x16xbf16>,
    %c37 = arith.constant 37 : index
    %c1_59 = arith.constant 1 : index
    %c0_60 = arith.constant 0 : index
    %26 = vector.load %arg1[%c37, %c1_59, %c0_60] : memref<72x9x16xbf16, #tpu.memory_space<vmem>>, vector<8x8x16xbf16>
    %c8_61 = arith.constant 8 : index
    %c0_62 = arith.constant 0 : index
    %c64_63 = arith.constant 64 : index
    %27 = vector.load %arg8[%c8_61, %c0_62, %c64_63] : memref<16x8x144xbf16, #tpu.memory_space<vmem>>, vector<8x8x16xbf16>
    tpu.vector_store %arg8[%c8_61, %c0_62, %c64_63], %26 {strides = array<i32>} : memref<16x8x144xbf16, #tpu.memory_space<vmem>>, vector<8x8x16xbf16>,
    %c46_64 = arith.constant 46 : index
    %c1_65 = arith.constant 1 : index
    %c0_66 = arith.constant 0 : index
    %28 = vector.load %arg1[%c46_64, %c1_65, %c0_66] : memref<72x9x16xbf16, #tpu.memory_space<vmem>>, vector<8x8x16xbf16>
    %c8_67 = arith.constant 8 : index
    %c0_68 = arith.constant 0 : index
    %c80_69 = arith.constant 80 : index
    %29 = vector.load %arg8[%c8_67, %c0_68, %c80_69] : memref<16x8x144xbf16, #tpu.memory_space<vmem>>, vector<8x8x16xbf16>
    tpu.vector_store %arg8[%c8_67, %c0_68, %c80_69], %28 {strides = array<i32>} : memref<16x8x144xbf16, #tpu.memory_space<vmem>>, vector<8x8x16xbf16>,
    %c64_70 = arith.constant 64 : index
    %c0_71 = arith.constant 0 : index
    %c0_72 = arith.constant 0 : index
    %30 = vector.load %arg1[%c64_70, %c0_71, %c0_72] : memref<72x9x16xbf16, #tpu.memory_space<vmem>>, vector<8x8x16xbf16>
    %c8_73 = arith.constant 8 : index
    %c0_74 = arith.constant 0 : index
    %c96_75 = arith.constant 96 : index
    %31 = vector.load %arg8[%c8_73, %c0_74, %c96_75] : memref<16x8x144xbf16, #tpu.memory_space<vmem>>, vector<8x8x16xbf16>
    tpu.vector_store %arg8[%c8_73, %c0_74, %c96_75], %30 {strides = array<i32>} : memref<16x8x144xbf16, #tpu.memory_space<vmem>>, vector<8x8x16xbf16>,
    %c55 = arith.constant 55 : index
    %c1_76 = arith.constant 1 : index
    %c0_77 = arith.constant 0 : index
    %32 = vector.load %arg1[%c55, %c1_76, %c0_77] : memref<72x9x16xbf16, #tpu.memory_space<vmem>>, vector<8x8x16xbf16>
    %c8_78 = arith.constant 8 : index
    %c0_79 = arith.constant 0 : index
    %c112_80 = arith.constant 112 : index
    %33 = vector.load %arg8[%c8_78, %c0_79, %c112_80] : memref<16x8x144xbf16, #tpu.memory_space<vmem>>, vector<8x8x16xbf16>
    tpu.vector_store %arg8[%c8_78, %c0_79, %c112_80], %32 {strides = array<i32>} : memref<16x8x144xbf16, #tpu.memory_space<vmem>>, vector<8x8x16xbf16>,
    %c64_81 = arith.constant 64 : index
    %c1_82 = arith.constant 1 : index
    %c0_83 = arith.constant 0 : index
    %34 = vector.load %arg1[%c64_81, %c1_82, %c0_83] : memref<72x9x16xbf16, #tpu.memory_space<vmem>>, vector<8x8x16xbf16>
    %c8_84 = arith.constant 8 : index
    %c0_85 = arith.constant 0 : index
    %c128_86 = arith.constant 128 : index
    %35 = vector.load %arg8[%c8_84, %c0_85, %c128_86] : memref<16x8x144xbf16, #tpu.memory_space<vmem>>, vector<8x8x16xbf16>
    tpu.vector_store %arg8[%c8_84, %c0_85, %c128_86], %34 {strides = array<i32>} : memref<16x8x144xbf16, #tpu.memory_space<vmem>>, vector<8x8x16xbf16>,
    %c0_87 = arith.constant 0 : index
    %c0_88 = arith.constant 0 : index
    %c0_89 = arith.constant 0 : index
    %36 = vector.load %arg8[%c0_87, %c0_88, %c0_89] : memref<16x8x144xbf16, #tpu.memory_space<vmem>>, vector<16x8x144xbf16>
    %37 = vector.shape_cast %36 : vector<16x8x144xbf16> to vector<128x144xbf16>
    %c0_90 = arith.constant 0 : index
    %c0_91 = arith.constant 0 : index
    %38 = vector.load %arg2[%c0_90, %c0_91] : memref<144x32xbf16, #tpu.memory_space<vmem>>, vector<144x32xbf16>
    %cst = arith.constant dense<0.000000e+00> : vector<128x32xf32>
    %39 = tpu.matmul %37, %38, %cst {dimension_numbers = #tpu.dot_dimension_numbers<[1], [0], [0], [1], [0, 0, 1, 1], [], []>} : vector<128x144xbf16>, vector<144x32xbf16>, vector<128x32xf32> -> vector<128x32xf32>
    %c0_92 = arith.constant 0 : index
    %c0_93 = arith.constant 0 : index
    %40 = vector.load %arg5[%c0_92, %c0_93] : memref<1x32xf32, #tpu.memory_space<vmem>>, vector<1x32xf32>
    %41 = vector.broadcast %40 : vector<1x32xf32> to vector<128x32xf32>
    %42 = arith.mulf %39, %41 : vector<128x32xf32>
    %c0_94 = arith.constant 0 : index
    %c0_95 = arith.constant 0 : index
    %43 = vector.load %arg6[%c0_94, %c0_95] : memref<1x32xf32, #tpu.memory_space<vmem>>, vector<1x32xf32>
    %44 = vector.broadcast %43 : vector<1x32xf32> to vector<128x32xf32>
    %45 = arith.addf %42, %44 : vector<128x32xf32>
    %cst_96 = arith.constant 0.000000e+00 : f32
    %46 = vector.broadcast %cst_96 : f32 to vector<128x32xf32>
    %47 = arith.maximumf %45, %46 : vector<128x32xf32>
    %48 = arith.truncf %47 : vector<128x32xf32> to vector<128x32xbf16>
    %49 = vector.shape_cast %48 : vector<128x32xbf16> to vector<16x8x32xbf16>
    %cst_97 = arith.constant 0.000000e+00 : bf16
    %50 = vector.broadcast %cst_97 : bf16 to vector<20x1x32xbf16>
    %c0_98 = arith.constant 0 : index
    %c0_99 = arith.constant 0 : index
    %c0_100 = arith.constant 0 : index
    %51 = vector.load %arg9[%c0_98, %c0_99, %c0_100] : memref<20x10x32xbf16, #tpu.memory_space<vmem>>, vector<20x1x32xbf16>
    tpu.vector_store %arg9[%c0_98, %c0_99, %c0_100], %50 {strides = array<i32>} : memref<20x10x32xbf16, #tpu.memory_space<vmem>>, vector<20x1x32xbf16>,
    %c0_101 = arith.constant 0 : index
    %c9 = arith.constant 9 : index
    %c0_102 = arith.constant 0 : index
    %52 = vector.load %arg9[%c0_101, %c9, %c0_102] : memref<20x10x32xbf16, #tpu.memory_space<vmem>>, vector<20x1x32xbf16>
    tpu.vector_store %arg9[%c0_101, %c9, %c0_102], %50 {strides = array<i32>} : memref<20x10x32xbf16, #tpu.memory_space<vmem>>, vector<20x1x32xbf16>,
    %cst_103 = arith.constant 0.000000e+00 : bf16
    %53 = vector.broadcast %cst_103 : bf16 to vector<1x10x32xbf16>
    %c0_104 = arith.constant 0 : index
    %c0_105 = arith.constant 0 : index
    %c0_106 = arith.constant 0 : index
    %54 = vector.load %arg9[%c0_104, %c0_105, %c0_106] : memref<20x10x32xbf16, #tpu.memory_space<vmem>>, vector<1x10x32xbf16>
    tpu.vector_store %arg9[%c0_104, %c0_105, %c0_106], %53 {strides = array<i32>} : memref<20x10x32xbf16, #tpu.memory_space<vmem>>, vector<1x10x32xbf16>,
    %c9_107 = arith.constant 9 : index
    %c0_108 = arith.constant 0 : index
    %c0_109 = arith.constant 0 : index
    %55 = vector.load %arg9[%c9_107, %c0_108, %c0_109] : memref<20x10x32xbf16, #tpu.memory_space<vmem>>, vector<1x10x32xbf16>
    tpu.vector_store %arg9[%c9_107, %c0_108, %c0_109], %53 {strides = array<i32>} : memref<20x10x32xbf16, #tpu.memory_space<vmem>>, vector<1x10x32xbf16>,
    %56 = vector.extract_strided_slice %49 {offsets = [0, 0, 0], sizes = [8, 8, 32], strides = [1, 1, 1]} : vector<16x8x32xbf16> to vector<8x8x32xbf16>
    %c1_110 = arith.constant 1 : index
    %c1_111 = arith.constant 1 : index
    %c0_112 = arith.constant 0 : index
    %57 = vector.load %arg9[%c1_110, %c1_111, %c0_112] : memref<20x10x32xbf16, #tpu.memory_space<vmem>>, vector<8x8x32xbf16>
    tpu.vector_store %arg9[%c1_110, %c1_111, %c0_112], %56 {strides = array<i32>} : memref<20x10x32xbf16, #tpu.memory_space<vmem>>, vector<8x8x32xbf16>,
    %c10_113 = arith.constant 10 : index
    %c0_114 = arith.constant 0 : index
    %c0_115 = arith.constant 0 : index
    %58 = vector.load %arg9[%c10_113, %c0_114, %c0_115] : memref<20x10x32xbf16, #tpu.memory_space<vmem>>, vector<1x10x32xbf16>
    tpu.vector_store %arg9[%c10_113, %c0_114, %c0_115], %53 {strides = array<i32>} : memref<20x10x32xbf16, #tpu.memory_space<vmem>>, vector<1x10x32xbf16>,
    %c19_116 = arith.constant 19 : index
    %c0_117 = arith.constant 0 : index
    %c0_118 = arith.constant 0 : index
    %59 = vector.load %arg9[%c19_116, %c0_117, %c0_118] : memref<20x10x32xbf16, #tpu.memory_space<vmem>>, vector<1x10x32xbf16>
    tpu.vector_store %arg9[%c19_116, %c0_117, %c0_118], %53 {strides = array<i32>} : memref<20x10x32xbf16, #tpu.memory_space<vmem>>, vector<1x10x32xbf16>,
    %60 = vector.extract_strided_slice %49 {offsets = [8, 0, 0], sizes = [8, 8, 32], strides = [1, 1, 1]} : vector<16x8x32xbf16> to vector<8x8x32xbf16>
    %c11 = arith.constant 11 : index
    %c1_119 = arith.constant 1 : index
    %c0_120 = arith.constant 0 : index
    %61 = vector.load %arg9[%c11, %c1_119, %c0_120] : memref<20x10x32xbf16, #tpu.memory_space<vmem>>, vector<8x8x32xbf16>
    tpu.vector_store %arg9[%c11, %c1_119, %c0_120], %60 {strides = array<i32>} : memref<20x10x32xbf16, #tpu.memory_space<vmem>>, vector<8x8x32xbf16>,
    %c0_121 = arith.constant 0 : index
    %c0_122 = arith.constant 0 : index
    %c0_123 = arith.constant 0 : index
    %62 = vector.load %arg9[%c0_121, %c0_122, %c0_123] : memref<20x10x32xbf16, #tpu.memory_space<vmem>>, vector<8x8x32xbf16>
    %c0_124 = arith.constant 0 : index
    %c0_125 = arith.constant 0 : index
    %c0_126 = arith.constant 0 : index
    %63 = vector.load %arg10[%c0_124, %c0_125, %c0_126] : memref<16x8x288xbf16, #tpu.memory_space<vmem>>, vector<8x8x32xbf16>
    tpu.vector_store %arg10[%c0_124, %c0_125, %c0_126], %62 {strides = array<i32>} : memref<16x8x288xbf16, #tpu.memory_space<vmem>>, vector<8x8x32xbf16>,
    %c0_127 = arith.constant 0 : index
    %c1_128 = arith.constant 1 : index
    %c0_129 = arith.constant 0 : index
    %64 = vector.load %arg9[%c0_127, %c1_128, %c0_129] : memref<20x10x32xbf16, #tpu.memory_space<vmem>>, vector<8x8x32xbf16>
    %c0_130 = arith.constant 0 : index
    %c0_131 = arith.constant 0 : index
    %c32_132 = arith.constant 32 : index
    %65 = vector.load %arg10[%c0_130, %c0_131, %c32_132] : memref<16x8x288xbf16, #tpu.memory_space<vmem>>, vector<8x8x32xbf16>
    tpu.vector_store %arg10[%c0_130, %c0_131, %c32_132], %64 {strides = array<i32>} : memref<16x8x288xbf16, #tpu.memory_space<vmem>>, vector<8x8x32xbf16>,
    %c0_133 = arith.constant 0 : index
    %c2 = arith.constant 2 : index
    %c0_134 = arith.constant 0 : index
    %66 = vector.load %arg9[%c0_133, %c2, %c0_134] : memref<20x10x32xbf16, #tpu.memory_space<vmem>>, vector<8x8x32xbf16>
    %c0_135 = arith.constant 0 : index
    %c0_136 = arith.constant 0 : index
    %c64_137 = arith.constant 64 : index
    %67 = vector.load %arg10[%c0_135, %c0_136, %c64_137] : memref<16x8x288xbf16, #tpu.memory_space<vmem>>, vector<8x8x32xbf16>
    tpu.vector_store %arg10[%c0_135, %c0_136, %c64_137], %66 {strides = array<i32>} : memref<16x8x288xbf16, #tpu.memory_space<vmem>>, vector<8x8x32xbf16>,
    %c1_138 = arith.constant 1 : index
    %c0_139 = arith.constant 0 : index
    %c0_140 = arith.constant 0 : index
    %68 = vector.load %arg9[%c1_138, %c0_139, %c0_140] : memref<20x10x32xbf16, #tpu.memory_space<vmem>>, vector<8x8x32xbf16>
    %c0_141 = arith.constant 0 : index
    %c0_142 = arith.constant 0 : index
    %c96_143 = arith.constant 96 : index
    %69 = vector.load %arg10[%c0_141, %c0_142, %c96_143] : memref<16x8x288xbf16, #tpu.memory_space<vmem>>, vector<8x8x32xbf16>
    tpu.vector_store %arg10[%c0_141, %c0_142, %c96_143], %68 {strides = array<i32>} : memref<16x8x288xbf16, #tpu.memory_space<vmem>>, vector<8x8x32xbf16>,
    %c1_144 = arith.constant 1 : index
    %c1_145 = arith.constant 1 : index
    %c0_146 = arith.constant 0 : index
    %70 = vector.load %arg9[%c1_144, %c1_145, %c0_146] : memref<20x10x32xbf16, #tpu.memory_space<vmem>>, vector<8x8x32xbf16>
    %c0_147 = arith.constant 0 : index
    %c0_148 = arith.constant 0 : index
    %c128_149 = arith.constant 128 : index
    %71 = vector.load %arg10[%c0_147, %c0_148, %c128_149] : memref<16x8x288xbf16, #tpu.memory_space<vmem>>, vector<8x8x32xbf16>
    tpu.vector_store %arg10[%c0_147, %c0_148, %c128_149], %70 {strides = array<i32>} : memref<16x8x288xbf16, #tpu.memory_space<vmem>>, vector<8x8x32xbf16>,
    %c1_150 = arith.constant 1 : index
    %c2_151 = arith.constant 2 : index
    %c0_152 = arith.constant 0 : index
    %72 = vector.load %arg9[%c1_150, %c2_151, %c0_152] : memref<20x10x32xbf16, #tpu.memory_space<vmem>>, vector<8x8x32xbf16>
    %c0_153 = arith.constant 0 : index
    %c0_154 = arith.constant 0 : index
    %c160 = arith.constant 160 : index
    %73 = vector.load %arg10[%c0_153, %c0_154, %c160] : memref<16x8x288xbf16, #tpu.memory_space<vmem>>, vector<8x8x32xbf16>
    tpu.vector_store %arg10[%c0_153, %c0_154, %c160], %72 {strides = array<i32>} : memref<16x8x288xbf16, #tpu.memory_space<vmem>>, vector<8x8x32xbf16>,
    %c2_155 = arith.constant 2 : index
    %c0_156 = arith.constant 0 : index
    %c0_157 = arith.constant 0 : index
    %74 = vector.load %arg9[%c2_155, %c0_156, %c0_157] : memref<20x10x32xbf16, #tpu.memory_space<vmem>>, vector<8x8x32xbf16>
    %c0_158 = arith.constant 0 : index
    %c0_159 = arith.constant 0 : index
    %c192 = arith.constant 192 : index
    %75 = vector.load %arg10[%c0_158, %c0_159, %c192] : memref<16x8x288xbf16, #tpu.memory_space<vmem>>, vector<8x8x32xbf16>
    tpu.vector_store %arg10[%c0_158, %c0_159, %c192], %74 {strides = array<i32>} : memref<16x8x288xbf16, #tpu.memory_space<vmem>>, vector<8x8x32xbf16>,
    %c2_160 = arith.constant 2 : index
    %c1_161 = arith.constant 1 : index
    %c0_162 = arith.constant 0 : index
    %76 = vector.load %arg9[%c2_160, %c1_161, %c0_162] : memref<20x10x32xbf16, #tpu.memory_space<vmem>>, vector<8x8x32xbf16>
    %c0_163 = arith.constant 0 : index
    %c0_164 = arith.constant 0 : index
    %c224 = arith.constant 224 : index
    %77 = vector.load %arg10[%c0_163, %c0_164, %c224] : memref<16x8x288xbf16, #tpu.memory_space<vmem>>, vector<8x8x32xbf16>
    tpu.vector_store %arg10[%c0_163, %c0_164, %c224], %76 {strides = array<i32>} : memref<16x8x288xbf16, #tpu.memory_space<vmem>>, vector<8x8x32xbf16>,
    %c2_165 = arith.constant 2 : index
    %c2_166 = arith.constant 2 : index
    %c0_167 = arith.constant 0 : index
    %78 = vector.load %arg9[%c2_165, %c2_166, %c0_167] : memref<20x10x32xbf16, #tpu.memory_space<vmem>>, vector<8x8x32xbf16>
    %c0_168 = arith.constant 0 : index
    %c0_169 = arith.constant 0 : index
    %c256 = arith.constant 256 : index
    %79 = vector.load %arg10[%c0_168, %c0_169, %c256] : memref<16x8x288xbf16, #tpu.memory_space<vmem>>, vector<8x8x32xbf16>
    tpu.vector_store %arg10[%c0_168, %c0_169, %c256], %78 {strides = array<i32>} : memref<16x8x288xbf16, #tpu.memory_space<vmem>>, vector<8x8x32xbf16>,
    %c10_170 = arith.constant 10 : index
    %c0_171 = arith.constant 0 : index
    %c0_172 = arith.constant 0 : index
    %80 = vector.load %arg9[%c10_170, %c0_171, %c0_172] : memref<20x10x32xbf16, #tpu.memory_space<vmem>>, vector<8x8x32xbf16>
    %c8_173 = arith.constant 8 : index
    %c0_174 = arith.constant 0 : index
    %c0_175 = arith.constant 0 : index
    %81 = vector.load %arg10[%c8_173, %c0_174, %c0_175] : memref<16x8x288xbf16, #tpu.memory_space<vmem>>, vector<8x8x32xbf16>
    tpu.vector_store %arg10[%c8_173, %c0_174, %c0_175], %80 {strides = array<i32>} : memref<16x8x288xbf16, #tpu.memory_space<vmem>>, vector<8x8x32xbf16>,
    %c10_176 = arith.constant 10 : index
    %c1_177 = arith.constant 1 : index
    %c0_178 = arith.constant 0 : index
    %82 = vector.load %arg9[%c10_176, %c1_177, %c0_178] : memref<20x10x32xbf16, #tpu.memory_space<vmem>>, vector<8x8x32xbf16>
    %c8_179 = arith.constant 8 : index
    %c0_180 = arith.constant 0 : index
    %c32_181 = arith.constant 32 : index
    %83 = vector.load %arg10[%c8_179, %c0_180, %c32_181] : memref<16x8x288xbf16, #tpu.memory_space<vmem>>, vector<8x8x32xbf16>
    tpu.vector_store %arg10[%c8_179, %c0_180, %c32_181], %82 {strides = array<i32>} : memref<16x8x288xbf16, #tpu.memory_space<vmem>>, vector<8x8x32xbf16>,
    %c10_182 = arith.constant 10 : index
    %c2_183 = arith.constant 2 : index
    %c0_184 = arith.constant 0 : index
    %84 = vector.load %arg9[%c10_182, %c2_183, %c0_184] : memref<20x10x32xbf16, #tpu.memory_space<vmem>>, vector<8x8x32xbf16>
    %c8_185 = arith.constant 8 : index
    %c0_186 = arith.constant 0 : index
    %c64_187 = arith.constant 64 : index
    %85 = vector.load %arg10[%c8_185, %c0_186, %c64_187] : memref<16x8x288xbf16, #tpu.memory_space<vmem>>, vector<8x8x32xbf16>
    tpu.vector_store %arg10[%c8_185, %c0_186, %c64_187], %84 {strides = array<i32>} : memref<16x8x288xbf16, #tpu.memory_space<vmem>>, vector<8x8x32xbf16>,
    %c11_188 = arith.constant 11 : index
    %c0_189 = arith.constant 0 : index
    %c0_190 = arith.constant 0 : index
    %86 = vector.load %arg9[%c11_188, %c0_189, %c0_190] : memref<20x10x32xbf16, #tpu.memory_space<vmem>>, vector<8x8x32xbf16>
    %c8_191 = arith.constant 8 : index
    %c0_192 = arith.constant 0 : index
    %c96_193 = arith.constant 96 : index
    %87 = vector.load %arg10[%c8_191, %c0_192, %c96_193] : memref<16x8x288xbf16, #tpu.memory_space<vmem>>, vector<8x8x32xbf16>
    tpu.vector_store %arg10[%c8_191, %c0_192, %c96_193], %86 {strides = array<i32>} : memref<16x8x288xbf16, #tpu.memory_space<vmem>>, vector<8x8x32xbf16>,
    %c11_194 = arith.constant 11 : index
    %c1_195 = arith.constant 1 : index
    %c0_196 = arith.constant 0 : index
    %88 = vector.load %arg9[%c11_194, %c1_195, %c0_196] : memref<20x10x32xbf16, #tpu.memory_space<vmem>>, vector<8x8x32xbf16>
    %c8_197 = arith.constant 8 : index
    %c0_198 = arith.constant 0 : index
    %c128_199 = arith.constant 128 : index
    %89 = vector.load %arg10[%c8_197, %c0_198, %c128_199] : memref<16x8x288xbf16, #tpu.memory_space<vmem>>, vector<8x8x32xbf16>
    tpu.vector_store %arg10[%c8_197, %c0_198, %c128_199], %88 {strides = array<i32>} : memref<16x8x288xbf16, #tpu.memory_space<vmem>>, vector<8x8x32xbf16>,
    %c11_200 = arith.constant 11 : index
    %c2_201 = arith.constant 2 : index
    %c0_202 = arith.constant 0 : index
    %90 = vector.load %arg9[%c11_200, %c2_201, %c0_202] : memref<20x10x32xbf16, #tpu.memory_space<vmem>>, vector<8x8x32xbf16>
    %c8_203 = arith.constant 8 : index
    %c0_204 = arith.constant 0 : index
    %c160_205 = arith.constant 160 : index
    %91 = vector.load %arg10[%c8_203, %c0_204, %c160_205] : memref<16x8x288xbf16, #tpu.memory_space<vmem>>, vector<8x8x32xbf16>
    tpu.vector_store %arg10[%c8_203, %c0_204, %c160_205], %90 {strides = array<i32>} : memref<16x8x288xbf16, #tpu.memory_space<vmem>>, vector<8x8x32xbf16>,
    %c12 = arith.constant 12 : index
    %c0_206 = arith.constant 0 : index
    %c0_207 = arith.constant 0 : index
    %92 = vector.load %arg9[%c12, %c0_206, %c0_207] : memref<20x10x32xbf16, #tpu.memory_space<vmem>>, vector<8x8x32xbf16>
    %c8_208 = arith.constant 8 : index
    %c0_209 = arith.constant 0 : index
    %c192_210 = arith.constant 192 : index
    %93 = vector.load %arg10[%c8_208, %c0_209, %c192_210] : memref<16x8x288xbf16, #tpu.memory_space<vmem>>, vector<8x8x32xbf16>
    tpu.vector_store %arg10[%c8_208, %c0_209, %c192_210], %92 {strides = array<i32>} : memref<16x8x288xbf16, #tpu.memory_space<vmem>>, vector<8x8x32xbf16>,
    %c12_211 = arith.constant 12 : index
    %c1_212 = arith.constant 1 : index
    %c0_213 = arith.constant 0 : index
    %94 = vector.load %arg9[%c12_211, %c1_212, %c0_213] : memref<20x10x32xbf16, #tpu.memory_space<vmem>>, vector<8x8x32xbf16>
    %c8_214 = arith.constant 8 : index
    %c0_215 = arith.constant 0 : index
    %c224_216 = arith.constant 224 : index
    %95 = vector.load %arg10[%c8_214, %c0_215, %c224_216] : memref<16x8x288xbf16, #tpu.memory_space<vmem>>, vector<8x8x32xbf16>
    tpu.vector_store %arg10[%c8_214, %c0_215, %c224_216], %94 {strides = array<i32>} : memref<16x8x288xbf16, #tpu.memory_space<vmem>>, vector<8x8x32xbf16>,
    %c12_217 = arith.constant 12 : index
    %c2_218 = arith.constant 2 : index
    %c0_219 = arith.constant 0 : index
    %96 = vector.load %arg9[%c12_217, %c2_218, %c0_219] : memref<20x10x32xbf16, #tpu.memory_space<vmem>>, vector<8x8x32xbf16>
    %c8_220 = arith.constant 8 : index
    %c0_221 = arith.constant 0 : index
    %c256_222 = arith.constant 256 : index
    %97 = vector.load %arg10[%c8_220, %c0_221, %c256_222] : memref<16x8x288xbf16, #tpu.memory_space<vmem>>, vector<8x8x32xbf16>
    tpu.vector_store %arg10[%c8_220, %c0_221, %c256_222], %96 {strides = array<i32>} : memref<16x8x288xbf16, #tpu.memory_space<vmem>>, vector<8x8x32xbf16>,
    %c0_223 = arith.constant 0 : index
    %c0_224 = arith.constant 0 : index
    %c0_225 = arith.constant 0 : index
    %98 = vector.load %arg10[%c0_223, %c0_224, %c0_225] : memref<16x8x288xbf16, #tpu.memory_space<vmem>>, vector<16x8x288xbf16>
    %99 = vector.shape_cast %98 : vector<16x8x288xbf16> to vector<128x288xbf16>
    %c0_226 = arith.constant 0 : index
    %c0_227 = arith.constant 0 : index
    %100 = vector.load %arg3[%c0_226, %c0_227] : memref<288x32xbf16, #tpu.memory_space<vmem>>, vector<288x32xbf16>
    %cst_228 = arith.constant dense<0.000000e+00> : vector<128x32xf32>
    %101 = tpu.matmul %99, %100, %cst_228 {dimension_numbers = #tpu.dot_dimension_numbers<[1], [0], [0], [1], [0, 0, 1, 1], [], []>} : vector<128x288xbf16>, vector<288x32xbf16>, vector<128x32xf32> -> vector<128x32xf32>
    %c0_229 = arith.constant 0 : index
    %c0_230 = arith.constant 0 : index
    %c64_231 = arith.constant 64 : index
    %102 = vector.load %arg8[%c0_229, %c0_230, %c64_231] : memref<16x8x144xbf16, #tpu.memory_space<vmem>>, vector<16x8x16xbf16>
    %103 = vector.shape_cast %102 : vector<16x8x16xbf16> to vector<128x16xbf16>
    %c0_232 = arith.constant 0 : index
    %c0_233 = arith.constant 0 : index
    %104 = vector.load %arg4[%c0_232, %c0_233] : memref<16x32xbf16, #tpu.memory_space<vmem>>, vector<16x32xbf16>
    %cst_234 = arith.constant dense<0.000000e+00> : vector<128x32xf32>
    %105 = tpu.matmul %103, %104, %cst_234 {dimension_numbers = #tpu.dot_dimension_numbers<[1], [0], [0], [1], [0, 0, 1, 1], [], []>} : vector<128x16xbf16>, vector<16x32xbf16>, vector<128x32xf32> -> vector<128x32xf32>
    %106 = arith.addf %101, %105 : vector<128x32xf32>
    %107 = vector.shape_cast %106 : vector<128x32xf32> to vector<16x8x32xf32>
    %c0_235 = arith.constant 0 : index
    %c0_236 = arith.constant 0 : index
    %c0_237 = arith.constant 0 : index
    %108 = vector.load %arg7[%c0_235, %c0_236, %c0_237] : memref<16x8x32xf32, #tpu.memory_space<vmem>>, vector<16x8x32xf32>
    tpu.vector_store %arg7[%c0_235, %c0_236, %c0_237], %107 {strides = array<i32>} : memref<16x8x32xf32, #tpu.memory_space<vmem>>, vector<16x8x32xf32>,
    return
  }
  func.func @transform_0(%arg0: i32) -> (i32, i32, i32) {
    %c0_i32 = arith.constant 0 : i32
    %c0_i32_0 = arith.constant 0 : i32
    %c0_i32_1 = arith.constant 0 : i32
    return %arg0, %c0_i32, %c0_i32_0 : i32, i32, i32
  }
  func.func @transform_1(%arg0: i32) -> (i32, i32) {
    %c0_i32 = arith.constant 0 : i32
    %c0_i32_0 = arith.constant 0 : i32
    %c0_i32_1 = arith.constant 0 : i32
    return %c0_i32, %c0_i32_0 : i32, i32
  }
  func.func @transform_2(%arg0: i32) -> (i32, i32) {
    %c0_i32 = arith.constant 0 : i32
    %c0_i32_0 = arith.constant 0 : i32
    %c0_i32_1 = arith.constant 0 : i32
    return %c0_i32, %c0_i32_0 : i32, i32
  }
  func.func @transform_3(%arg0: i32) -> (i32, i32) {
    %c0_i32 = arith.constant 0 : i32
    %c0_i32_0 = arith.constant 0 : i32
    %c0_i32_1 = arith.constant 0 : i32
    return %c0_i32, %c0_i32_0 : i32, i32
  }
  func.func @transform_4(%arg0: i32) -> (i32, i32) {
    %c0_i32 = arith.constant 0 : i32
    %c0_i32_0 = arith.constant 0 : i32
    %c0_i32_1 = arith.constant 0 : i32
    return %c0_i32, %c0_i32_0 : i32, i32
  }
  func.func @transform_5(%arg0: i32) -> (i32, i32) {
    %c0_i32 = arith.constant 0 : i32
    %c0_i32_0 = arith.constant 0 : i32
    %c0_i32_1 = arith.constant 0 : i32
    return %c0_i32, %c0_i32_0 : i32, i32
  }
  func.func @transform_6(%arg0: i32) -> (i32, i32, i32) {
    %c0_i32 = arith.constant 0 : i32
    %c0_i32_0 = arith.constant 0 : i32
    %c0_i32_1 = arith.constant 0 : i32
    return %arg0, %c0_i32, %c0_i32_0 : i32, i32, i32
  }
}

module attributes {stable_mosaic.version = 11 : i64} {
  func.func @kernel(%arg0: i32, %arg1: memref<16x8x32xf32, #tpu.memory_space<vmem>>, %arg2: memref<288x32xbf16, #tpu.memory_space<vmem>>, %arg3: memref<288x32xbf16, #tpu.memory_space<vmem>>, %arg4: memref<1x32xf32, #tpu.memory_space<vmem>>, %arg5: memref<1x32xf32, #tpu.memory_space<vmem>>, %arg6: memref<1x32xf32, #tpu.memory_space<vmem>>, %arg7: memref<1x32xf32, #tpu.memory_space<vmem>>, %arg8: memref<16x8x32xf32, #tpu.memory_space<vmem>>, %arg9: memref<20x10x32xbf16, #tpu.memory_space<vmem>>, %arg10: memref<16x8x288xbf16, #tpu.memory_space<vmem>>, %arg11: memref<20x10x32xbf16, #tpu.memory_space<vmem>>, %arg12: memref<16x8x288xbf16, #tpu.memory_space<vmem>>) attributes {dimension_semantics = [#tpu.dimension_semantics<parallel>], iteration_bounds = array<i64: 1>, scalar_prefetch = 0 : i64, scratch_operands = 4 : i64, tpu.core_type = #tpu.core_type<tc>, window_params = [{transform_indices = @transform_0, window_bounds = array<i64: 16, 8, 32>}, {pipeline_mode = #tpu.pipeline_mode<synchronous>, transform_indices = @transform_1, window_bounds = array<i64: 288, 32>}, {pipeline_mode = #tpu.pipeline_mode<synchronous>, transform_indices = @transform_2, window_bounds = array<i64: 288, 32>}, {pipeline_mode = #tpu.pipeline_mode<synchronous>, transform_indices = @transform_3, window_bounds = array<i64: 1, 32>}, {pipeline_mode = #tpu.pipeline_mode<synchronous>, transform_indices = @transform_4, window_bounds = array<i64: 1, 32>}, {pipeline_mode = #tpu.pipeline_mode<synchronous>, transform_indices = @transform_5, window_bounds = array<i64: 1, 32>}, {pipeline_mode = #tpu.pipeline_mode<synchronous>, transform_indices = @transform_6, window_bounds = array<i64: 1, 32>}, {transform_indices = @transform_7, window_bounds = array<i64: 16, 8, 32>}]} {
    %cst = arith.constant 0.000000e+00 : bf16
    %0 = vector.broadcast %cst : bf16 to vector<20x1x32xbf16>
    %c0 = arith.constant 0 : index
    %c0_0 = arith.constant 0 : index
    %c0_1 = arith.constant 0 : index
    %1 = vector.load %arg9[%c0, %c0_0, %c0_1] : memref<20x10x32xbf16, #tpu.memory_space<vmem>>, vector<20x1x32xbf16>
    tpu.vector_store %arg9[%c0, %c0_0, %c0_1], %0 {strides = array<i32>} : memref<20x10x32xbf16, #tpu.memory_space<vmem>>, vector<20x1x32xbf16>,
    %c0_2 = arith.constant 0 : index
    %c9 = arith.constant 9 : index
    %c0_3 = arith.constant 0 : index
    %2 = vector.load %arg9[%c0_2, %c9, %c0_3] : memref<20x10x32xbf16, #tpu.memory_space<vmem>>, vector<20x1x32xbf16>
    tpu.vector_store %arg9[%c0_2, %c9, %c0_3], %0 {strides = array<i32>} : memref<20x10x32xbf16, #tpu.memory_space<vmem>>, vector<20x1x32xbf16>,
    %cst_4 = arith.constant 0.000000e+00 : bf16
    %3 = vector.broadcast %cst_4 : bf16 to vector<1x10x32xbf16>
    %c0_5 = arith.constant 0 : index
    %c0_6 = arith.constant 0 : index
    %c0_7 = arith.constant 0 : index
    %4 = vector.load %arg9[%c0_5, %c0_6, %c0_7] : memref<20x10x32xbf16, #tpu.memory_space<vmem>>, vector<1x10x32xbf16>
    tpu.vector_store %arg9[%c0_5, %c0_6, %c0_7], %3 {strides = array<i32>} : memref<20x10x32xbf16, #tpu.memory_space<vmem>>, vector<1x10x32xbf16>,
    %c9_8 = arith.constant 9 : index
    %c0_9 = arith.constant 0 : index
    %c0_10 = arith.constant 0 : index
    %5 = vector.load %arg9[%c9_8, %c0_9, %c0_10] : memref<20x10x32xbf16, #tpu.memory_space<vmem>>, vector<1x10x32xbf16>
    tpu.vector_store %arg9[%c9_8, %c0_9, %c0_10], %3 {strides = array<i32>} : memref<20x10x32xbf16, #tpu.memory_space<vmem>>, vector<1x10x32xbf16>,
    %c0_11 = arith.constant 0 : index
    %c0_12 = arith.constant 0 : index
    %c0_13 = arith.constant 0 : index
    %6 = vector.load %arg1[%c0_11, %c0_12, %c0_13] : memref<16x8x32xf32, #tpu.memory_space<vmem>>, vector<8x8x32xf32>
    %c0_14 = arith.constant 0 : index
    %c0_15 = arith.constant 0 : index
    %7 = vector.load %arg4[%c0_14, %c0_15] : memref<1x32xf32, #tpu.memory_space<vmem>>, vector<1x32xf32>
    %8 = vector.shape_cast %7 : vector<1x32xf32> to vector<1x1x32xf32>
    %9 = vector.broadcast %8 : vector<1x1x32xf32> to vector<8x8x32xf32>
    %10 = arith.mulf %6, %9 : vector<8x8x32xf32>
    %c0_16 = arith.constant 0 : index
    %c0_17 = arith.constant 0 : index
    %11 = vector.load %arg5[%c0_16, %c0_17] : memref<1x32xf32, #tpu.memory_space<vmem>>, vector<1x32xf32>
    %12 = vector.shape_cast %11 : vector<1x32xf32> to vector<1x1x32xf32>
    %13 = vector.broadcast %12 : vector<1x1x32xf32> to vector<8x8x32xf32>
    %14 = arith.addf %10, %13 : vector<8x8x32xf32>
    %cst_18 = arith.constant 0.000000e+00 : f32
    %15 = vector.broadcast %cst_18 : f32 to vector<8x8x32xf32>
    %16 = arith.maximumf %14, %15 : vector<8x8x32xf32>
    %17 = arith.truncf %16 : vector<8x8x32xf32> to vector<8x8x32xbf16>
    %c1 = arith.constant 1 : index
    %c1_19 = arith.constant 1 : index
    %c0_20 = arith.constant 0 : index
    %18 = vector.load %arg9[%c1, %c1_19, %c0_20] : memref<20x10x32xbf16, #tpu.memory_space<vmem>>, vector<8x8x32xbf16>
    tpu.vector_store %arg9[%c1, %c1_19, %c0_20], %17 {strides = array<i32>} : memref<20x10x32xbf16, #tpu.memory_space<vmem>>, vector<8x8x32xbf16>,
    %c10 = arith.constant 10 : index
    %c0_21 = arith.constant 0 : index
    %c0_22 = arith.constant 0 : index
    %19 = vector.load %arg9[%c10, %c0_21, %c0_22] : memref<20x10x32xbf16, #tpu.memory_space<vmem>>, vector<1x10x32xbf16>
    tpu.vector_store %arg9[%c10, %c0_21, %c0_22], %3 {strides = array<i32>} : memref<20x10x32xbf16, #tpu.memory_space<vmem>>, vector<1x10x32xbf16>,
    %c19 = arith.constant 19 : index
    %c0_23 = arith.constant 0 : index
    %c0_24 = arith.constant 0 : index
    %20 = vector.load %arg9[%c19, %c0_23, %c0_24] : memref<20x10x32xbf16, #tpu.memory_space<vmem>>, vector<1x10x32xbf16>
    tpu.vector_store %arg9[%c19, %c0_23, %c0_24], %3 {strides = array<i32>} : memref<20x10x32xbf16, #tpu.memory_space<vmem>>, vector<1x10x32xbf16>,
    %c8 = arith.constant 8 : index
    %c0_25 = arith.constant 0 : index
    %c0_26 = arith.constant 0 : index
    %21 = vector.load %arg1[%c8, %c0_25, %c0_26] : memref<16x8x32xf32, #tpu.memory_space<vmem>>, vector<8x8x32xf32>
    %c0_27 = arith.constant 0 : index
    %c0_28 = arith.constant 0 : index
    %22 = vector.load %arg4[%c0_27, %c0_28] : memref<1x32xf32, #tpu.memory_space<vmem>>, vector<1x32xf32>
    %23 = vector.shape_cast %22 : vector<1x32xf32> to vector<1x1x32xf32>
    %24 = vector.broadcast %23 : vector<1x1x32xf32> to vector<8x8x32xf32>
    %25 = arith.mulf %21, %24 : vector<8x8x32xf32>
    %c0_29 = arith.constant 0 : index
    %c0_30 = arith.constant 0 : index
    %26 = vector.load %arg5[%c0_29, %c0_30] : memref<1x32xf32, #tpu.memory_space<vmem>>, vector<1x32xf32>
    %27 = vector.shape_cast %26 : vector<1x32xf32> to vector<1x1x32xf32>
    %28 = vector.broadcast %27 : vector<1x1x32xf32> to vector<8x8x32xf32>
    %29 = arith.addf %25, %28 : vector<8x8x32xf32>
    %cst_31 = arith.constant 0.000000e+00 : f32
    %30 = vector.broadcast %cst_31 : f32 to vector<8x8x32xf32>
    %31 = arith.maximumf %29, %30 : vector<8x8x32xf32>
    %32 = arith.truncf %31 : vector<8x8x32xf32> to vector<8x8x32xbf16>
    %c11 = arith.constant 11 : index
    %c1_32 = arith.constant 1 : index
    %c0_33 = arith.constant 0 : index
    %33 = vector.load %arg9[%c11, %c1_32, %c0_33] : memref<20x10x32xbf16, #tpu.memory_space<vmem>>, vector<8x8x32xbf16>
    tpu.vector_store %arg9[%c11, %c1_32, %c0_33], %32 {strides = array<i32>} : memref<20x10x32xbf16, #tpu.memory_space<vmem>>, vector<8x8x32xbf16>,
    %c0_34 = arith.constant 0 : index
    %c0_35 = arith.constant 0 : index
    %c0_36 = arith.constant 0 : index
    %34 = vector.load %arg9[%c0_34, %c0_35, %c0_36] : memref<20x10x32xbf16, #tpu.memory_space<vmem>>, vector<8x8x32xbf16>
    %c0_37 = arith.constant 0 : index
    %c0_38 = arith.constant 0 : index
    %c0_39 = arith.constant 0 : index
    %35 = vector.load %arg10[%c0_37, %c0_38, %c0_39] : memref<16x8x288xbf16, #tpu.memory_space<vmem>>, vector<8x8x32xbf16>
    tpu.vector_store %arg10[%c0_37, %c0_38, %c0_39], %34 {strides = array<i32>} : memref<16x8x288xbf16, #tpu.memory_space<vmem>>, vector<8x8x32xbf16>,
    %c0_40 = arith.constant 0 : index
    %c1_41 = arith.constant 1 : index
    %c0_42 = arith.constant 0 : index
    %36 = vector.load %arg9[%c0_40, %c1_41, %c0_42] : memref<20x10x32xbf16, #tpu.memory_space<vmem>>, vector<8x8x32xbf16>
    %c0_43 = arith.constant 0 : index
    %c0_44 = arith.constant 0 : index
    %c32 = arith.constant 32 : index
    %37 = vector.load %arg10[%c0_43, %c0_44, %c32] : memref<16x8x288xbf16, #tpu.memory_space<vmem>>, vector<8x8x32xbf16>
    tpu.vector_store %arg10[%c0_43, %c0_44, %c32], %36 {strides = array<i32>} : memref<16x8x288xbf16, #tpu.memory_space<vmem>>, vector<8x8x32xbf16>,
    %c0_45 = arith.constant 0 : index
    %c2 = arith.constant 2 : index
    %c0_46 = arith.constant 0 : index
    %38 = vector.load %arg9[%c0_45, %c2, %c0_46] : memref<20x10x32xbf16, #tpu.memory_space<vmem>>, vector<8x8x32xbf16>
    %c0_47 = arith.constant 0 : index
    %c0_48 = arith.constant 0 : index
    %c64 = arith.constant 64 : index
    %39 = vector.load %arg10[%c0_47, %c0_48, %c64] : memref<16x8x288xbf16, #tpu.memory_space<vmem>>, vector<8x8x32xbf16>
    tpu.vector_store %arg10[%c0_47, %c0_48, %c64], %38 {strides = array<i32>} : memref<16x8x288xbf16, #tpu.memory_space<vmem>>, vector<8x8x32xbf16>,
    %c1_49 = arith.constant 1 : index
    %c0_50 = arith.constant 0 : index
    %c0_51 = arith.constant 0 : index
    %40 = vector.load %arg9[%c1_49, %c0_50, %c0_51] : memref<20x10x32xbf16, #tpu.memory_space<vmem>>, vector<8x8x32xbf16>
    %c0_52 = arith.constant 0 : index
    %c0_53 = arith.constant 0 : index
    %c96 = arith.constant 96 : index
    %41 = vector.load %arg10[%c0_52, %c0_53, %c96] : memref<16x8x288xbf16, #tpu.memory_space<vmem>>, vector<8x8x32xbf16>
    tpu.vector_store %arg10[%c0_52, %c0_53, %c96], %40 {strides = array<i32>} : memref<16x8x288xbf16, #tpu.memory_space<vmem>>, vector<8x8x32xbf16>,
    %c1_54 = arith.constant 1 : index
    %c1_55 = arith.constant 1 : index
    %c0_56 = arith.constant 0 : index
    %42 = vector.load %arg9[%c1_54, %c1_55, %c0_56] : memref<20x10x32xbf16, #tpu.memory_space<vmem>>, vector<8x8x32xbf16>
    %c0_57 = arith.constant 0 : index
    %c0_58 = arith.constant 0 : index
    %c128 = arith.constant 128 : index
    %43 = vector.load %arg10[%c0_57, %c0_58, %c128] : memref<16x8x288xbf16, #tpu.memory_space<vmem>>, vector<8x8x32xbf16>
    tpu.vector_store %arg10[%c0_57, %c0_58, %c128], %42 {strides = array<i32>} : memref<16x8x288xbf16, #tpu.memory_space<vmem>>, vector<8x8x32xbf16>,
    %c1_59 = arith.constant 1 : index
    %c2_60 = arith.constant 2 : index
    %c0_61 = arith.constant 0 : index
    %44 = vector.load %arg9[%c1_59, %c2_60, %c0_61] : memref<20x10x32xbf16, #tpu.memory_space<vmem>>, vector<8x8x32xbf16>
    %c0_62 = arith.constant 0 : index
    %c0_63 = arith.constant 0 : index
    %c160 = arith.constant 160 : index
    %45 = vector.load %arg10[%c0_62, %c0_63, %c160] : memref<16x8x288xbf16, #tpu.memory_space<vmem>>, vector<8x8x32xbf16>
    tpu.vector_store %arg10[%c0_62, %c0_63, %c160], %44 {strides = array<i32>} : memref<16x8x288xbf16, #tpu.memory_space<vmem>>, vector<8x8x32xbf16>,
    %c2_64 = arith.constant 2 : index
    %c0_65 = arith.constant 0 : index
    %c0_66 = arith.constant 0 : index
    %46 = vector.load %arg9[%c2_64, %c0_65, %c0_66] : memref<20x10x32xbf16, #tpu.memory_space<vmem>>, vector<8x8x32xbf16>
    %c0_67 = arith.constant 0 : index
    %c0_68 = arith.constant 0 : index
    %c192 = arith.constant 192 : index
    %47 = vector.load %arg10[%c0_67, %c0_68, %c192] : memref<16x8x288xbf16, #tpu.memory_space<vmem>>, vector<8x8x32xbf16>
    tpu.vector_store %arg10[%c0_67, %c0_68, %c192], %46 {strides = array<i32>} : memref<16x8x288xbf16, #tpu.memory_space<vmem>>, vector<8x8x32xbf16>,
    %c2_69 = arith.constant 2 : index
    %c1_70 = arith.constant 1 : index
    %c0_71 = arith.constant 0 : index
    %48 = vector.load %arg9[%c2_69, %c1_70, %c0_71] : memref<20x10x32xbf16, #tpu.memory_space<vmem>>, vector<8x8x32xbf16>
    %c0_72 = arith.constant 0 : index
    %c0_73 = arith.constant 0 : index
    %c224 = arith.constant 224 : index
    %49 = vector.load %arg10[%c0_72, %c0_73, %c224] : memref<16x8x288xbf16, #tpu.memory_space<vmem>>, vector<8x8x32xbf16>
    tpu.vector_store %arg10[%c0_72, %c0_73, %c224], %48 {strides = array<i32>} : memref<16x8x288xbf16, #tpu.memory_space<vmem>>, vector<8x8x32xbf16>,
    %c2_74 = arith.constant 2 : index
    %c2_75 = arith.constant 2 : index
    %c0_76 = arith.constant 0 : index
    %50 = vector.load %arg9[%c2_74, %c2_75, %c0_76] : memref<20x10x32xbf16, #tpu.memory_space<vmem>>, vector<8x8x32xbf16>
    %c0_77 = arith.constant 0 : index
    %c0_78 = arith.constant 0 : index
    %c256 = arith.constant 256 : index
    %51 = vector.load %arg10[%c0_77, %c0_78, %c256] : memref<16x8x288xbf16, #tpu.memory_space<vmem>>, vector<8x8x32xbf16>
    tpu.vector_store %arg10[%c0_77, %c0_78, %c256], %50 {strides = array<i32>} : memref<16x8x288xbf16, #tpu.memory_space<vmem>>, vector<8x8x32xbf16>,
    %c10_79 = arith.constant 10 : index
    %c0_80 = arith.constant 0 : index
    %c0_81 = arith.constant 0 : index
    %52 = vector.load %arg9[%c10_79, %c0_80, %c0_81] : memref<20x10x32xbf16, #tpu.memory_space<vmem>>, vector<8x8x32xbf16>
    %c8_82 = arith.constant 8 : index
    %c0_83 = arith.constant 0 : index
    %c0_84 = arith.constant 0 : index
    %53 = vector.load %arg10[%c8_82, %c0_83, %c0_84] : memref<16x8x288xbf16, #tpu.memory_space<vmem>>, vector<8x8x32xbf16>
    tpu.vector_store %arg10[%c8_82, %c0_83, %c0_84], %52 {strides = array<i32>} : memref<16x8x288xbf16, #tpu.memory_space<vmem>>, vector<8x8x32xbf16>,
    %c10_85 = arith.constant 10 : index
    %c1_86 = arith.constant 1 : index
    %c0_87 = arith.constant 0 : index
    %54 = vector.load %arg9[%c10_85, %c1_86, %c0_87] : memref<20x10x32xbf16, #tpu.memory_space<vmem>>, vector<8x8x32xbf16>
    %c8_88 = arith.constant 8 : index
    %c0_89 = arith.constant 0 : index
    %c32_90 = arith.constant 32 : index
    %55 = vector.load %arg10[%c8_88, %c0_89, %c32_90] : memref<16x8x288xbf16, #tpu.memory_space<vmem>>, vector<8x8x32xbf16>
    tpu.vector_store %arg10[%c8_88, %c0_89, %c32_90], %54 {strides = array<i32>} : memref<16x8x288xbf16, #tpu.memory_space<vmem>>, vector<8x8x32xbf16>,
    %c10_91 = arith.constant 10 : index
    %c2_92 = arith.constant 2 : index
    %c0_93 = arith.constant 0 : index
    %56 = vector.load %arg9[%c10_91, %c2_92, %c0_93] : memref<20x10x32xbf16, #tpu.memory_space<vmem>>, vector<8x8x32xbf16>
    %c8_94 = arith.constant 8 : index
    %c0_95 = arith.constant 0 : index
    %c64_96 = arith.constant 64 : index
    %57 = vector.load %arg10[%c8_94, %c0_95, %c64_96] : memref<16x8x288xbf16, #tpu.memory_space<vmem>>, vector<8x8x32xbf16>
    tpu.vector_store %arg10[%c8_94, %c0_95, %c64_96], %56 {strides = array<i32>} : memref<16x8x288xbf16, #tpu.memory_space<vmem>>, vector<8x8x32xbf16>,
    %c11_97 = arith.constant 11 : index
    %c0_98 = arith.constant 0 : index
    %c0_99 = arith.constant 0 : index
    %58 = vector.load %arg9[%c11_97, %c0_98, %c0_99] : memref<20x10x32xbf16, #tpu.memory_space<vmem>>, vector<8x8x32xbf16>
    %c8_100 = arith.constant 8 : index
    %c0_101 = arith.constant 0 : index
    %c96_102 = arith.constant 96 : index
    %59 = vector.load %arg10[%c8_100, %c0_101, %c96_102] : memref<16x8x288xbf16, #tpu.memory_space<vmem>>, vector<8x8x32xbf16>
    tpu.vector_store %arg10[%c8_100, %c0_101, %c96_102], %58 {strides = array<i32>} : memref<16x8x288xbf16, #tpu.memory_space<vmem>>, vector<8x8x32xbf16>,
    %c11_103 = arith.constant 11 : index
    %c1_104 = arith.constant 1 : index
    %c0_105 = arith.constant 0 : index
    %60 = vector.load %arg9[%c11_103, %c1_104, %c0_105] : memref<20x10x32xbf16, #tpu.memory_space<vmem>>, vector<8x8x32xbf16>
    %c8_106 = arith.constant 8 : index
    %c0_107 = arith.constant 0 : index
    %c128_108 = arith.constant 128 : index
    %61 = vector.load %arg10[%c8_106, %c0_107, %c128_108] : memref<16x8x288xbf16, #tpu.memory_space<vmem>>, vector<8x8x32xbf16>
    tpu.vector_store %arg10[%c8_106, %c0_107, %c128_108], %60 {strides = array<i32>} : memref<16x8x288xbf16, #tpu.memory_space<vmem>>, vector<8x8x32xbf16>,
    %c11_109 = arith.constant 11 : index
    %c2_110 = arith.constant 2 : index
    %c0_111 = arith.constant 0 : index
    %62 = vector.load %arg9[%c11_109, %c2_110, %c0_111] : memref<20x10x32xbf16, #tpu.memory_space<vmem>>, vector<8x8x32xbf16>
    %c8_112 = arith.constant 8 : index
    %c0_113 = arith.constant 0 : index
    %c160_114 = arith.constant 160 : index
    %63 = vector.load %arg10[%c8_112, %c0_113, %c160_114] : memref<16x8x288xbf16, #tpu.memory_space<vmem>>, vector<8x8x32xbf16>
    tpu.vector_store %arg10[%c8_112, %c0_113, %c160_114], %62 {strides = array<i32>} : memref<16x8x288xbf16, #tpu.memory_space<vmem>>, vector<8x8x32xbf16>,
    %c12 = arith.constant 12 : index
    %c0_115 = arith.constant 0 : index
    %c0_116 = arith.constant 0 : index
    %64 = vector.load %arg9[%c12, %c0_115, %c0_116] : memref<20x10x32xbf16, #tpu.memory_space<vmem>>, vector<8x8x32xbf16>
    %c8_117 = arith.constant 8 : index
    %c0_118 = arith.constant 0 : index
    %c192_119 = arith.constant 192 : index
    %65 = vector.load %arg10[%c8_117, %c0_118, %c192_119] : memref<16x8x288xbf16, #tpu.memory_space<vmem>>, vector<8x8x32xbf16>
    tpu.vector_store %arg10[%c8_117, %c0_118, %c192_119], %64 {strides = array<i32>} : memref<16x8x288xbf16, #tpu.memory_space<vmem>>, vector<8x8x32xbf16>,
    %c12_120 = arith.constant 12 : index
    %c1_121 = arith.constant 1 : index
    %c0_122 = arith.constant 0 : index
    %66 = vector.load %arg9[%c12_120, %c1_121, %c0_122] : memref<20x10x32xbf16, #tpu.memory_space<vmem>>, vector<8x8x32xbf16>
    %c8_123 = arith.constant 8 : index
    %c0_124 = arith.constant 0 : index
    %c224_125 = arith.constant 224 : index
    %67 = vector.load %arg10[%c8_123, %c0_124, %c224_125] : memref<16x8x288xbf16, #tpu.memory_space<vmem>>, vector<8x8x32xbf16>
    tpu.vector_store %arg10[%c8_123, %c0_124, %c224_125], %66 {strides = array<i32>} : memref<16x8x288xbf16, #tpu.memory_space<vmem>>, vector<8x8x32xbf16>,
    %c12_126 = arith.constant 12 : index
    %c2_127 = arith.constant 2 : index
    %c0_128 = arith.constant 0 : index
    %68 = vector.load %arg9[%c12_126, %c2_127, %c0_128] : memref<20x10x32xbf16, #tpu.memory_space<vmem>>, vector<8x8x32xbf16>
    %c8_129 = arith.constant 8 : index
    %c0_130 = arith.constant 0 : index
    %c256_131 = arith.constant 256 : index
    %69 = vector.load %arg10[%c8_129, %c0_130, %c256_131] : memref<16x8x288xbf16, #tpu.memory_space<vmem>>, vector<8x8x32xbf16>
    tpu.vector_store %arg10[%c8_129, %c0_130, %c256_131], %68 {strides = array<i32>} : memref<16x8x288xbf16, #tpu.memory_space<vmem>>, vector<8x8x32xbf16>,
    %c0_132 = arith.constant 0 : index
    %c0_133 = arith.constant 0 : index
    %c0_134 = arith.constant 0 : index
    %70 = vector.load %arg10[%c0_132, %c0_133, %c0_134] : memref<16x8x288xbf16, #tpu.memory_space<vmem>>, vector<16x8x288xbf16>
    %71 = vector.shape_cast %70 : vector<16x8x288xbf16> to vector<128x288xbf16>
    %c0_135 = arith.constant 0 : index
    %c0_136 = arith.constant 0 : index
    %72 = vector.load %arg2[%c0_135, %c0_136] : memref<288x32xbf16, #tpu.memory_space<vmem>>, vector<288x32xbf16>
    %cst_137 = arith.constant dense<0.000000e+00> : vector<128x32xf32>
    %73 = tpu.matmul %71, %72, %cst_137 {dimension_numbers = #tpu.dot_dimension_numbers<[1], [0], [0], [1], [0, 0, 1, 1], [], []>} : vector<128x288xbf16>, vector<288x32xbf16>, vector<128x32xf32> -> vector<128x32xf32>
    %c0_138 = arith.constant 0 : index
    %c0_139 = arith.constant 0 : index
    %74 = vector.load %arg6[%c0_138, %c0_139] : memref<1x32xf32, #tpu.memory_space<vmem>>, vector<1x32xf32>
    %75 = vector.broadcast %74 : vector<1x32xf32> to vector<128x32xf32>
    %76 = arith.mulf %73, %75 : vector<128x32xf32>
    %c0_140 = arith.constant 0 : index
    %c0_141 = arith.constant 0 : index
    %77 = vector.load %arg7[%c0_140, %c0_141] : memref<1x32xf32, #tpu.memory_space<vmem>>, vector<1x32xf32>
    %78 = vector.broadcast %77 : vector<1x32xf32> to vector<128x32xf32>
    %79 = arith.addf %76, %78 : vector<128x32xf32>
    %cst_142 = arith.constant 0.000000e+00 : f32
    %80 = vector.broadcast %cst_142 : f32 to vector<128x32xf32>
    %81 = arith.maximumf %79, %80 : vector<128x32xf32>
    %82 = arith.truncf %81 : vector<128x32xf32> to vector<128x32xbf16>
    %83 = vector.shape_cast %82 : vector<128x32xbf16> to vector<16x8x32xbf16>
    %cst_143 = arith.constant 0.000000e+00 : bf16
    %84 = vector.broadcast %cst_143 : bf16 to vector<20x1x32xbf16>
    %c0_144 = arith.constant 0 : index
    %c0_145 = arith.constant 0 : index
    %c0_146 = arith.constant 0 : index
    %85 = vector.load %arg11[%c0_144, %c0_145, %c0_146] : memref<20x10x32xbf16, #tpu.memory_space<vmem>>, vector<20x1x32xbf16>
    tpu.vector_store %arg11[%c0_144, %c0_145, %c0_146], %84 {strides = array<i32>} : memref<20x10x32xbf16, #tpu.memory_space<vmem>>, vector<20x1x32xbf16>,
    %c0_147 = arith.constant 0 : index
    %c9_148 = arith.constant 9 : index
    %c0_149 = arith.constant 0 : index
    %86 = vector.load %arg11[%c0_147, %c9_148, %c0_149] : memref<20x10x32xbf16, #tpu.memory_space<vmem>>, vector<20x1x32xbf16>
    tpu.vector_store %arg11[%c0_147, %c9_148, %c0_149], %84 {strides = array<i32>} : memref<20x10x32xbf16, #tpu.memory_space<vmem>>, vector<20x1x32xbf16>,
    %cst_150 = arith.constant 0.000000e+00 : bf16
    %87 = vector.broadcast %cst_150 : bf16 to vector<1x10x32xbf16>
    %c0_151 = arith.constant 0 : index
    %c0_152 = arith.constant 0 : index
    %c0_153 = arith.constant 0 : index
    %88 = vector.load %arg11[%c0_151, %c0_152, %c0_153] : memref<20x10x32xbf16, #tpu.memory_space<vmem>>, vector<1x10x32xbf16>
    tpu.vector_store %arg11[%c0_151, %c0_152, %c0_153], %87 {strides = array<i32>} : memref<20x10x32xbf16, #tpu.memory_space<vmem>>, vector<1x10x32xbf16>,
    %c9_154 = arith.constant 9 : index
    %c0_155 = arith.constant 0 : index
    %c0_156 = arith.constant 0 : index
    %89 = vector.load %arg11[%c9_154, %c0_155, %c0_156] : memref<20x10x32xbf16, #tpu.memory_space<vmem>>, vector<1x10x32xbf16>
    tpu.vector_store %arg11[%c9_154, %c0_155, %c0_156], %87 {strides = array<i32>} : memref<20x10x32xbf16, #tpu.memory_space<vmem>>, vector<1x10x32xbf16>,
    %90 = vector.extract_strided_slice %83 {offsets = [0, 0, 0], sizes = [8, 8, 32], strides = [1, 1, 1]} : vector<16x8x32xbf16> to vector<8x8x32xbf16>
    %c1_157 = arith.constant 1 : index
    %c1_158 = arith.constant 1 : index
    %c0_159 = arith.constant 0 : index
    %91 = vector.load %arg11[%c1_157, %c1_158, %c0_159] : memref<20x10x32xbf16, #tpu.memory_space<vmem>>, vector<8x8x32xbf16>
    tpu.vector_store %arg11[%c1_157, %c1_158, %c0_159], %90 {strides = array<i32>} : memref<20x10x32xbf16, #tpu.memory_space<vmem>>, vector<8x8x32xbf16>,
    %c10_160 = arith.constant 10 : index
    %c0_161 = arith.constant 0 : index
    %c0_162 = arith.constant 0 : index
    %92 = vector.load %arg11[%c10_160, %c0_161, %c0_162] : memref<20x10x32xbf16, #tpu.memory_space<vmem>>, vector<1x10x32xbf16>
    tpu.vector_store %arg11[%c10_160, %c0_161, %c0_162], %87 {strides = array<i32>} : memref<20x10x32xbf16, #tpu.memory_space<vmem>>, vector<1x10x32xbf16>,
    %c19_163 = arith.constant 19 : index
    %c0_164 = arith.constant 0 : index
    %c0_165 = arith.constant 0 : index
    %93 = vector.load %arg11[%c19_163, %c0_164, %c0_165] : memref<20x10x32xbf16, #tpu.memory_space<vmem>>, vector<1x10x32xbf16>
    tpu.vector_store %arg11[%c19_163, %c0_164, %c0_165], %87 {strides = array<i32>} : memref<20x10x32xbf16, #tpu.memory_space<vmem>>, vector<1x10x32xbf16>,
    %94 = vector.extract_strided_slice %83 {offsets = [8, 0, 0], sizes = [8, 8, 32], strides = [1, 1, 1]} : vector<16x8x32xbf16> to vector<8x8x32xbf16>
    %c11_166 = arith.constant 11 : index
    %c1_167 = arith.constant 1 : index
    %c0_168 = arith.constant 0 : index
    %95 = vector.load %arg11[%c11_166, %c1_167, %c0_168] : memref<20x10x32xbf16, #tpu.memory_space<vmem>>, vector<8x8x32xbf16>
    tpu.vector_store %arg11[%c11_166, %c1_167, %c0_168], %94 {strides = array<i32>} : memref<20x10x32xbf16, #tpu.memory_space<vmem>>, vector<8x8x32xbf16>,
    %c0_169 = arith.constant 0 : index
    %c0_170 = arith.constant 0 : index
    %c0_171 = arith.constant 0 : index
    %96 = vector.load %arg11[%c0_169, %c0_170, %c0_171] : memref<20x10x32xbf16, #tpu.memory_space<vmem>>, vector<8x8x32xbf16>
    %c0_172 = arith.constant 0 : index
    %c0_173 = arith.constant 0 : index
    %c0_174 = arith.constant 0 : index
    %97 = vector.load %arg12[%c0_172, %c0_173, %c0_174] : memref<16x8x288xbf16, #tpu.memory_space<vmem>>, vector<8x8x32xbf16>
    tpu.vector_store %arg12[%c0_172, %c0_173, %c0_174], %96 {strides = array<i32>} : memref<16x8x288xbf16, #tpu.memory_space<vmem>>, vector<8x8x32xbf16>,
    %c0_175 = arith.constant 0 : index
    %c1_176 = arith.constant 1 : index
    %c0_177 = arith.constant 0 : index
    %98 = vector.load %arg11[%c0_175, %c1_176, %c0_177] : memref<20x10x32xbf16, #tpu.memory_space<vmem>>, vector<8x8x32xbf16>
    %c0_178 = arith.constant 0 : index
    %c0_179 = arith.constant 0 : index
    %c32_180 = arith.constant 32 : index
    %99 = vector.load %arg12[%c0_178, %c0_179, %c32_180] : memref<16x8x288xbf16, #tpu.memory_space<vmem>>, vector<8x8x32xbf16>
    tpu.vector_store %arg12[%c0_178, %c0_179, %c32_180], %98 {strides = array<i32>} : memref<16x8x288xbf16, #tpu.memory_space<vmem>>, vector<8x8x32xbf16>,
    %c0_181 = arith.constant 0 : index
    %c2_182 = arith.constant 2 : index
    %c0_183 = arith.constant 0 : index
    %100 = vector.load %arg11[%c0_181, %c2_182, %c0_183] : memref<20x10x32xbf16, #tpu.memory_space<vmem>>, vector<8x8x32xbf16>
    %c0_184 = arith.constant 0 : index
    %c0_185 = arith.constant 0 : index
    %c64_186 = arith.constant 64 : index
    %101 = vector.load %arg12[%c0_184, %c0_185, %c64_186] : memref<16x8x288xbf16, #tpu.memory_space<vmem>>, vector<8x8x32xbf16>
    tpu.vector_store %arg12[%c0_184, %c0_185, %c64_186], %100 {strides = array<i32>} : memref<16x8x288xbf16, #tpu.memory_space<vmem>>, vector<8x8x32xbf16>,
    %c1_187 = arith.constant 1 : index
    %c0_188 = arith.constant 0 : index
    %c0_189 = arith.constant 0 : index
    %102 = vector.load %arg11[%c1_187, %c0_188, %c0_189] : memref<20x10x32xbf16, #tpu.memory_space<vmem>>, vector<8x8x32xbf16>
    %c0_190 = arith.constant 0 : index
    %c0_191 = arith.constant 0 : index
    %c96_192 = arith.constant 96 : index
    %103 = vector.load %arg12[%c0_190, %c0_191, %c96_192] : memref<16x8x288xbf16, #tpu.memory_space<vmem>>, vector<8x8x32xbf16>
    tpu.vector_store %arg12[%c0_190, %c0_191, %c96_192], %102 {strides = array<i32>} : memref<16x8x288xbf16, #tpu.memory_space<vmem>>, vector<8x8x32xbf16>,
    %c1_193 = arith.constant 1 : index
    %c1_194 = arith.constant 1 : index
    %c0_195 = arith.constant 0 : index
    %104 = vector.load %arg11[%c1_193, %c1_194, %c0_195] : memref<20x10x32xbf16, #tpu.memory_space<vmem>>, vector<8x8x32xbf16>
    %c0_196 = arith.constant 0 : index
    %c0_197 = arith.constant 0 : index
    %c128_198 = arith.constant 128 : index
    %105 = vector.load %arg12[%c0_196, %c0_197, %c128_198] : memref<16x8x288xbf16, #tpu.memory_space<vmem>>, vector<8x8x32xbf16>
    tpu.vector_store %arg12[%c0_196, %c0_197, %c128_198], %104 {strides = array<i32>} : memref<16x8x288xbf16, #tpu.memory_space<vmem>>, vector<8x8x32xbf16>,
    %c1_199 = arith.constant 1 : index
    %c2_200 = arith.constant 2 : index
    %c0_201 = arith.constant 0 : index
    %106 = vector.load %arg11[%c1_199, %c2_200, %c0_201] : memref<20x10x32xbf16, #tpu.memory_space<vmem>>, vector<8x8x32xbf16>
    %c0_202 = arith.constant 0 : index
    %c0_203 = arith.constant 0 : index
    %c160_204 = arith.constant 160 : index
    %107 = vector.load %arg12[%c0_202, %c0_203, %c160_204] : memref<16x8x288xbf16, #tpu.memory_space<vmem>>, vector<8x8x32xbf16>
    tpu.vector_store %arg12[%c0_202, %c0_203, %c160_204], %106 {strides = array<i32>} : memref<16x8x288xbf16, #tpu.memory_space<vmem>>, vector<8x8x32xbf16>,
    %c2_205 = arith.constant 2 : index
    %c0_206 = arith.constant 0 : index
    %c0_207 = arith.constant 0 : index
    %108 = vector.load %arg11[%c2_205, %c0_206, %c0_207] : memref<20x10x32xbf16, #tpu.memory_space<vmem>>, vector<8x8x32xbf16>
    %c0_208 = arith.constant 0 : index
    %c0_209 = arith.constant 0 : index
    %c192_210 = arith.constant 192 : index
    %109 = vector.load %arg12[%c0_208, %c0_209, %c192_210] : memref<16x8x288xbf16, #tpu.memory_space<vmem>>, vector<8x8x32xbf16>
    tpu.vector_store %arg12[%c0_208, %c0_209, %c192_210], %108 {strides = array<i32>} : memref<16x8x288xbf16, #tpu.memory_space<vmem>>, vector<8x8x32xbf16>,
    %c2_211 = arith.constant 2 : index
    %c1_212 = arith.constant 1 : index
    %c0_213 = arith.constant 0 : index
    %110 = vector.load %arg11[%c2_211, %c1_212, %c0_213] : memref<20x10x32xbf16, #tpu.memory_space<vmem>>, vector<8x8x32xbf16>
    %c0_214 = arith.constant 0 : index
    %c0_215 = arith.constant 0 : index
    %c224_216 = arith.constant 224 : index
    %111 = vector.load %arg12[%c0_214, %c0_215, %c224_216] : memref<16x8x288xbf16, #tpu.memory_space<vmem>>, vector<8x8x32xbf16>
    tpu.vector_store %arg12[%c0_214, %c0_215, %c224_216], %110 {strides = array<i32>} : memref<16x8x288xbf16, #tpu.memory_space<vmem>>, vector<8x8x32xbf16>,
    %c2_217 = arith.constant 2 : index
    %c2_218 = arith.constant 2 : index
    %c0_219 = arith.constant 0 : index
    %112 = vector.load %arg11[%c2_217, %c2_218, %c0_219] : memref<20x10x32xbf16, #tpu.memory_space<vmem>>, vector<8x8x32xbf16>
    %c0_220 = arith.constant 0 : index
    %c0_221 = arith.constant 0 : index
    %c256_222 = arith.constant 256 : index
    %113 = vector.load %arg12[%c0_220, %c0_221, %c256_222] : memref<16x8x288xbf16, #tpu.memory_space<vmem>>, vector<8x8x32xbf16>
    tpu.vector_store %arg12[%c0_220, %c0_221, %c256_222], %112 {strides = array<i32>} : memref<16x8x288xbf16, #tpu.memory_space<vmem>>, vector<8x8x32xbf16>,
    %c10_223 = arith.constant 10 : index
    %c0_224 = arith.constant 0 : index
    %c0_225 = arith.constant 0 : index
    %114 = vector.load %arg11[%c10_223, %c0_224, %c0_225] : memref<20x10x32xbf16, #tpu.memory_space<vmem>>, vector<8x8x32xbf16>
    %c8_226 = arith.constant 8 : index
    %c0_227 = arith.constant 0 : index
    %c0_228 = arith.constant 0 : index
    %115 = vector.load %arg12[%c8_226, %c0_227, %c0_228] : memref<16x8x288xbf16, #tpu.memory_space<vmem>>, vector<8x8x32xbf16>
    tpu.vector_store %arg12[%c8_226, %c0_227, %c0_228], %114 {strides = array<i32>} : memref<16x8x288xbf16, #tpu.memory_space<vmem>>, vector<8x8x32xbf16>,
    %c10_229 = arith.constant 10 : index
    %c1_230 = arith.constant 1 : index
    %c0_231 = arith.constant 0 : index
    %116 = vector.load %arg11[%c10_229, %c1_230, %c0_231] : memref<20x10x32xbf16, #tpu.memory_space<vmem>>, vector<8x8x32xbf16>
    %c8_232 = arith.constant 8 : index
    %c0_233 = arith.constant 0 : index
    %c32_234 = arith.constant 32 : index
    %117 = vector.load %arg12[%c8_232, %c0_233, %c32_234] : memref<16x8x288xbf16, #tpu.memory_space<vmem>>, vector<8x8x32xbf16>
    tpu.vector_store %arg12[%c8_232, %c0_233, %c32_234], %116 {strides = array<i32>} : memref<16x8x288xbf16, #tpu.memory_space<vmem>>, vector<8x8x32xbf16>,
    %c10_235 = arith.constant 10 : index
    %c2_236 = arith.constant 2 : index
    %c0_237 = arith.constant 0 : index
    %118 = vector.load %arg11[%c10_235, %c2_236, %c0_237] : memref<20x10x32xbf16, #tpu.memory_space<vmem>>, vector<8x8x32xbf16>
    %c8_238 = arith.constant 8 : index
    %c0_239 = arith.constant 0 : index
    %c64_240 = arith.constant 64 : index
    %119 = vector.load %arg12[%c8_238, %c0_239, %c64_240] : memref<16x8x288xbf16, #tpu.memory_space<vmem>>, vector<8x8x32xbf16>
    tpu.vector_store %arg12[%c8_238, %c0_239, %c64_240], %118 {strides = array<i32>} : memref<16x8x288xbf16, #tpu.memory_space<vmem>>, vector<8x8x32xbf16>,
    %c11_241 = arith.constant 11 : index
    %c0_242 = arith.constant 0 : index
    %c0_243 = arith.constant 0 : index
    %120 = vector.load %arg11[%c11_241, %c0_242, %c0_243] : memref<20x10x32xbf16, #tpu.memory_space<vmem>>, vector<8x8x32xbf16>
    %c8_244 = arith.constant 8 : index
    %c0_245 = arith.constant 0 : index
    %c96_246 = arith.constant 96 : index
    %121 = vector.load %arg12[%c8_244, %c0_245, %c96_246] : memref<16x8x288xbf16, #tpu.memory_space<vmem>>, vector<8x8x32xbf16>
    tpu.vector_store %arg12[%c8_244, %c0_245, %c96_246], %120 {strides = array<i32>} : memref<16x8x288xbf16, #tpu.memory_space<vmem>>, vector<8x8x32xbf16>,
    %c11_247 = arith.constant 11 : index
    %c1_248 = arith.constant 1 : index
    %c0_249 = arith.constant 0 : index
    %122 = vector.load %arg11[%c11_247, %c1_248, %c0_249] : memref<20x10x32xbf16, #tpu.memory_space<vmem>>, vector<8x8x32xbf16>
    %c8_250 = arith.constant 8 : index
    %c0_251 = arith.constant 0 : index
    %c128_252 = arith.constant 128 : index
    %123 = vector.load %arg12[%c8_250, %c0_251, %c128_252] : memref<16x8x288xbf16, #tpu.memory_space<vmem>>, vector<8x8x32xbf16>
    tpu.vector_store %arg12[%c8_250, %c0_251, %c128_252], %122 {strides = array<i32>} : memref<16x8x288xbf16, #tpu.memory_space<vmem>>, vector<8x8x32xbf16>,
    %c11_253 = arith.constant 11 : index
    %c2_254 = arith.constant 2 : index
    %c0_255 = arith.constant 0 : index
    %124 = vector.load %arg11[%c11_253, %c2_254, %c0_255] : memref<20x10x32xbf16, #tpu.memory_space<vmem>>, vector<8x8x32xbf16>
    %c8_256 = arith.constant 8 : index
    %c0_257 = arith.constant 0 : index
    %c160_258 = arith.constant 160 : index
    %125 = vector.load %arg12[%c8_256, %c0_257, %c160_258] : memref<16x8x288xbf16, #tpu.memory_space<vmem>>, vector<8x8x32xbf16>
    tpu.vector_store %arg12[%c8_256, %c0_257, %c160_258], %124 {strides = array<i32>} : memref<16x8x288xbf16, #tpu.memory_space<vmem>>, vector<8x8x32xbf16>,
    %c12_259 = arith.constant 12 : index
    %c0_260 = arith.constant 0 : index
    %c0_261 = arith.constant 0 : index
    %126 = vector.load %arg11[%c12_259, %c0_260, %c0_261] : memref<20x10x32xbf16, #tpu.memory_space<vmem>>, vector<8x8x32xbf16>
    %c8_262 = arith.constant 8 : index
    %c0_263 = arith.constant 0 : index
    %c192_264 = arith.constant 192 : index
    %127 = vector.load %arg12[%c8_262, %c0_263, %c192_264] : memref<16x8x288xbf16, #tpu.memory_space<vmem>>, vector<8x8x32xbf16>
    tpu.vector_store %arg12[%c8_262, %c0_263, %c192_264], %126 {strides = array<i32>} : memref<16x8x288xbf16, #tpu.memory_space<vmem>>, vector<8x8x32xbf16>,
    %c12_265 = arith.constant 12 : index
    %c1_266 = arith.constant 1 : index
    %c0_267 = arith.constant 0 : index
    %128 = vector.load %arg11[%c12_265, %c1_266, %c0_267] : memref<20x10x32xbf16, #tpu.memory_space<vmem>>, vector<8x8x32xbf16>
    %c8_268 = arith.constant 8 : index
    %c0_269 = arith.constant 0 : index
    %c224_270 = arith.constant 224 : index
    %129 = vector.load %arg12[%c8_268, %c0_269, %c224_270] : memref<16x8x288xbf16, #tpu.memory_space<vmem>>, vector<8x8x32xbf16>
    tpu.vector_store %arg12[%c8_268, %c0_269, %c224_270], %128 {strides = array<i32>} : memref<16x8x288xbf16, #tpu.memory_space<vmem>>, vector<8x8x32xbf16>,
    %c12_271 = arith.constant 12 : index
    %c2_272 = arith.constant 2 : index
    %c0_273 = arith.constant 0 : index
    %130 = vector.load %arg11[%c12_271, %c2_272, %c0_273] : memref<20x10x32xbf16, #tpu.memory_space<vmem>>, vector<8x8x32xbf16>
    %c8_274 = arith.constant 8 : index
    %c0_275 = arith.constant 0 : index
    %c256_276 = arith.constant 256 : index
    %131 = vector.load %arg12[%c8_274, %c0_275, %c256_276] : memref<16x8x288xbf16, #tpu.memory_space<vmem>>, vector<8x8x32xbf16>
    tpu.vector_store %arg12[%c8_274, %c0_275, %c256_276], %130 {strides = array<i32>} : memref<16x8x288xbf16, #tpu.memory_space<vmem>>, vector<8x8x32xbf16>,
    %c0_277 = arith.constant 0 : index
    %c0_278 = arith.constant 0 : index
    %c0_279 = arith.constant 0 : index
    %132 = vector.load %arg12[%c0_277, %c0_278, %c0_279] : memref<16x8x288xbf16, #tpu.memory_space<vmem>>, vector<16x8x288xbf16>
    %133 = vector.shape_cast %132 : vector<16x8x288xbf16> to vector<128x288xbf16>
    %c0_280 = arith.constant 0 : index
    %c0_281 = arith.constant 0 : index
    %134 = vector.load %arg3[%c0_280, %c0_281] : memref<288x32xbf16, #tpu.memory_space<vmem>>, vector<288x32xbf16>
    %cst_282 = arith.constant dense<0.000000e+00> : vector<128x32xf32>
    %135 = tpu.matmul %133, %134, %cst_282 {dimension_numbers = #tpu.dot_dimension_numbers<[1], [0], [0], [1], [0, 0, 1, 1], [], []>} : vector<128x288xbf16>, vector<288x32xbf16>, vector<128x32xf32> -> vector<128x32xf32>
    %c0_283 = arith.constant 0 : index
    %c0_284 = arith.constant 0 : index
    %c0_285 = arith.constant 0 : index
    %136 = vector.load %arg1[%c0_283, %c0_284, %c0_285] : memref<16x8x32xf32, #tpu.memory_space<vmem>>, vector<16x8x32xf32>
    %137 = vector.shape_cast %136 : vector<16x8x32xf32> to vector<128x32xf32>
    %138 = arith.addf %135, %137 : vector<128x32xf32>
    %139 = vector.shape_cast %138 : vector<128x32xf32> to vector<16x8x32xf32>
    %c0_286 = arith.constant 0 : index
    %c0_287 = arith.constant 0 : index
    %c0_288 = arith.constant 0 : index
    %140 = vector.load %arg8[%c0_286, %c0_287, %c0_288] : memref<16x8x32xf32, #tpu.memory_space<vmem>>, vector<16x8x32xf32>
    tpu.vector_store %arg8[%c0_286, %c0_287, %c0_288], %139 {strides = array<i32>} : memref<16x8x32xf32, #tpu.memory_space<vmem>>, vector<16x8x32xf32>,
    return
  }
  func.func @transform_0(%arg0: i32) -> (i32, i32, i32) {
    %c0_i32 = arith.constant 0 : i32
    %c0_i32_0 = arith.constant 0 : i32
    %c0_i32_1 = arith.constant 0 : i32
    return %arg0, %c0_i32, %c0_i32_0 : i32, i32, i32
  }
  func.func @transform_1(%arg0: i32) -> (i32, i32) {
    %c0_i32 = arith.constant 0 : i32
    %c0_i32_0 = arith.constant 0 : i32
    %c0_i32_1 = arith.constant 0 : i32
    return %c0_i32, %c0_i32_0 : i32, i32
  }
  func.func @transform_2(%arg0: i32) -> (i32, i32) {
    %c0_i32 = arith.constant 0 : i32
    %c0_i32_0 = arith.constant 0 : i32
    %c0_i32_1 = arith.constant 0 : i32
    return %c0_i32, %c0_i32_0 : i32, i32
  }
  func.func @transform_3(%arg0: i32) -> (i32, i32) {
    %c0_i32 = arith.constant 0 : i32
    %c0_i32_0 = arith.constant 0 : i32
    %c0_i32_1 = arith.constant 0 : i32
    return %c0_i32, %c0_i32_0 : i32, i32
  }
  func.func @transform_4(%arg0: i32) -> (i32, i32) {
    %c0_i32 = arith.constant 0 : i32
    %c0_i32_0 = arith.constant 0 : i32
    %c0_i32_1 = arith.constant 0 : i32
    return %c0_i32, %c0_i32_0 : i32, i32
  }
  func.func @transform_5(%arg0: i32) -> (i32, i32) {
    %c0_i32 = arith.constant 0 : i32
    %c0_i32_0 = arith.constant 0 : i32
    %c0_i32_1 = arith.constant 0 : i32
    return %c0_i32, %c0_i32_0 : i32, i32
  }
  func.func @transform_6(%arg0: i32) -> (i32, i32) {
    %c0_i32 = arith.constant 0 : i32
    %c0_i32_0 = arith.constant 0 : i32
    %c0_i32_1 = arith.constant 0 : i32
    return %c0_i32, %c0_i32_0 : i32, i32
  }
  func.func @transform_7(%arg0: i32) -> (i32, i32, i32) {
    %c0_i32 = arith.constant 0 : i32
    %c0_i32_0 = arith.constant 0 : i32
    %c0_i32_1 = arith.constant 0 : i32
    return %arg0, %c0_i32, %c0_i32_0 : i32, i32, i32
  }
}

</mosaic_0001>

<llo_original>
// kernel: _lambda_.2
$region0: #{_lambda_.2}
  #allocation0 [shape = 'u32[]', space=smem, size = 0x4, offset = 0x4, fixed_abs, tag = 'smem constant byte address 0x4 - core index']
  #allocation1 [shape = 'u32[72,128]{1,0:T(1,128)}', space=vmem, size = 0x9000, scoped, tag = 'internal scratch']
  #allocation2 [shape = 'bf16[16,8,144]{2,1,0:T(8,128)(2,1)}', space=vmem, size = 0x10000, scoped, tag = 'scratch operand']
  #allocation3 [shape = 'bf16[20,10,32]{2,1,0:T(8,128)(2,1)}', space=vmem, size = 0x14000, scoped, tag = 'scratch operand']
  #allocation4 [shape = 'bf16[16,8,288]{2,1,0:T(8,128)(2,1)}', space=vmem, size = 0x18000, scoped, tag = 'scratch operand']
  %s0 = inlined_call_operand.vmem [shape: bf16[72,9,16], index: 0, kind: input, shape index: {}]
  %s1 = inlined_call_operand.vmem [shape: bf16[144,32], index: 1, kind: input, shape index: {}]
  %s2 = inlined_call_operand.vmem [shape: bf16[288,32], index: 2, kind: input, shape index: {}]
  %s3 = inlined_call_operand.vmem [shape: bf16[16,32], index: 3, kind: input, shape index: {}]
  %s4 = inlined_call_operand.vmem [shape: f32[1,32], index: 4, kind: input, shape index: {}]
  %s5 = inlined_call_operand.vmem [shape: f32[1,32], index: 5, kind: input, shape index: {}]
  %s6 = inlined_call_operand.vmem [shape: f32[16,8,32], index: 6, kind: output, shape index: {}]
  %s7 = sld [smem:[#allocation0]]
  $region34: #{_lambda_.2} parent=0
    _
  %s9 = ssub.s32 1, %s7
  %s10 = scalar_select 0, %s9, %s7
  // Predicated region
  $region2: #{_lambda_.2} parent=0 // pred_check
    _
  $region3: #{_lambda_.2} parent=0 // pred_check_branch
    %12 = sbr.rel (0) target = $region5
  $region4: #{_lambda_.2} parent=0 // pred_region
    _
  $region5: #{_lambda_.2} parent=0 // pred_fallthru
    _
  // Predicated region
  $region6: #{_lambda_.2} parent=0 // pred_check
    _
  $region7: #{_lambda_.2} parent=0 // pred_check_branch
    %14 = sbr.rel (0) target = $region9
  $region8: #{_lambda_.2} parent=0 // pred_region
    _
  $region9: #{_lambda_.2} parent=0 // pred_fallthru
    _
  // Predicated region
  $region10: #{_lambda_.2} parent=0 // pred_check
    _
  $region11: #{_lambda_.2} parent=0 // pred_check_branch
    %16 = sbr.rel (0) target = $region13
  $region12: #{_lambda_.2} parent=0 // pred_region
    _
  $region13: #{_lambda_.2} parent=0 // pred_fallthru
    _
  // Predicated region
  $region14: #{_lambda_.2} parent=0 // pred_check
    _
  $region15: #{_lambda_.2} parent=0 // pred_check_branch
    %18 = sbr.rel (0) target = $region17
  $region16: #{_lambda_.2} parent=0 // pred_region
    _
  $region17: #{_lambda_.2} parent=0 // pred_fallthru
    _
  // Predicated region
  $region18: #{_lambda_.2} parent=0 // pred_check
    _
  $region19: #{_lambda_.2} parent=0 // pred_check_branch
    %20 = sbr.rel (0) target = $region21
  $region20: #{_lambda_.2} parent=0 // pred_region
    _
  $region21: #{_lambda_.2} parent=0 // pred_fallthru
    _
  // Predicated region
  $region22: #{_lambda_.2} parent=0 // pred_check
    _
  $region23: #{_lambda_.2} parent=0 // pred_check_branch
    %22 = sbr.rel (0) target = $region25
  $region24: #{_lambda_.2} parent=0 // pred_region
    _
  $region25: #{_lambda_.2} parent=0 // pred_fallthru
    _
  %s24 = scalar_lea.vmem %s0, 216
  %v25 = vld [vmem:[%s24] sm:$0xf]
  %v26 = vld [vmem:[%s24 + $0x8] sm:$0xf]
  %v27 = vld [vmem:[%s24 + $0x10] sm:$0xf]
  %v28 = vld [vmem:[%s24 + $0x18] sm:$0xf]
  %v29 = vld [vmem:[%s24 + $0x20] sm:$0xf]
  %v30 = vld [vmem:[%s24 + $0x28] sm:$0xf]
  %v31 = vld [vmem:[%s24 + $0x30] sm:$0xf]
  %v32 = vld [vmem:[%s24 + $0x38] sm:$0xf]
  %vm33 = vcmask 125952
  %34 = vst.msk [vmem:[#allocation2] sm:$0xf] %vm33, %v25
  %35 = vst.msk [vmem:[#allocation2 + $0x8] sm:$0xf] %vm33, %v26
  %36 = vst.msk [vmem:[#allocation2 + $0x10] sm:$0xf] %vm33, %v27
  %37 = vst.msk [vmem:[#allocation2 + $0x18] sm:$0xf] %vm33, %v28
  %38 = vst.msk [vmem:[#allocation2 + $0x20] sm:$0xf] %vm33, %v29
  %39 = vst.msk [vmem:[#allocation2 + $0x28] sm:$0xf] %vm33, %v30
  %40 = vst.msk [vmem:[#allocation2 + $0x30] sm:$0xf] %vm33, %v31
  %41 = vst.msk [vmem:[#allocation2 + $0x38] sm:$0xf] %vm33, %v32
  %s42 = scalar_lea.vmem %s0, 144
  %v43 = vld [vmem:[%s42] sm:$0xf]
  %v44 = vld [vmem:[%s42 + $0x4] sm:$0x1]
  %v45 = vld [vmem:[%s42 + $0x8] sm:$0xf]
  %v46 = vld [vmem:[%s42 + $0xc] sm:$0x1]
  %v47 = vld [vmem:[%s42 + $0x10] sm:$0xf]
  %v48 = vld [vmem:[%s42 + $0x14] sm:$0x1]
  %v49 = vld [vmem:[%s42 + $0x18] sm:$0xf]
  %v50 = vld [vmem:[%s42 + $0x1c] sm:$0x1]
  %v51 = vld [vmem:[%s42 + $0x20] sm:$0xf]
  %v52 = vld [vmem:[%s42 + $0x24] sm:$0x1]
  %v53 = vld [vmem:[%s42 + $0x28] sm:$0xf]
  %v54 = vld [vmem:[%s42 + $0x2c] sm:$0x1]
  %v55 = vld [vmem:[%s42 + $0x30] sm:$0xf]
  %v56 = vld [vmem:[%s42 + $0x34] sm:$0x1]
  %v57 = vld [vmem:[%s42 + $0x38] sm:$0xf]
  %v58 = vld [vmem:[%s42 + $0x3c] sm:$0x1]
  %vm59 = vsmask.f32 3328
  %vm60 = vsmask.f32 7440
  %vm61 = vmor %vm59, %vm60
  %v63 = vshrl.u32 %v43, 16
  %v65 = vrot.slane %v63, 4
  %v66 = vshll.u32 %v43, 16
  %v68 = vrot.slane %v66, 5
  %v69 = vor.u32 %v65, %v68
  %v70 = vrot.slane %v69, 4
  %v72 = vshll.u32 %v44, 16
  %v74 = vrot.slane %v72, 5
  %v75 = vsel %vm61, %v70, %v74
  %v77 = vshrl.u32 %v45, 16
  %v79 = vrot.slane %v77, 4
  %v80 = vshll.u32 %v45, 16
  %v82 = vrot.slane %v80, 5
  %v83 = vor.u32 %v79, %v82
  %v84 = vrot.slane %v83, 4
  %v86 = vshll.u32 %v46, 16
  %v88 = vrot.slane %v86, 5
  %v89 = vsel %vm61, %v84, %v88
  %v91 = vshrl.u32 %v47, 16
  %v93 = vrot.slane %v91, 4
  %v94 = vshll.u32 %v47, 16
  %v96 = vrot.slane %v94, 5
  %v97 = vor.u32 %v93, %v96
  %v98 = vrot.slane %v97, 4
  %v100 = vshll.u32 %v48, 16
  %v102 = vrot.slane %v100, 5
  %v103 = vsel %vm61, %v98, %v102
  %v105 = vshrl.u32 %v49, 16
  %v107 = vrot.slane %v105, 4
  %v108 = vshll.u32 %v49, 16
  %v110 = vrot.slane %v108, 5
  %v111 = vor.u32 %v107, %v110
  %v112 = vrot.slane %v111, 4
  %v114 = vshll.u32 %v50, 16
  %v116 = vrot.slane %v114, 5
  %v117 = vsel %vm61, %v112, %v116
  %v119 = vshrl.u32 %v51, 16
  %v121 = vrot.slane %v119, 4
  %v122 = vshll.u32 %v51, 16
  %v124 = vrot.slane %v122, 5
  %v125 = vor.u32 %v121, %v124
  %v126 = vrot.slane %v125, 4
  %v128 = vshll.u32 %v52, 16
  %v130 = vrot.slane %v128, 5
  %v131 = vsel %vm61, %v126, %v130
  %v133 = vshrl.u32 %v53, 16
  %v135 = vrot.slane %v133, 4
  %v136 = vshll.u32 %v53, 16
  %v138 = vrot.slane %v136, 5
  %v139 = vor.u32 %v135, %v138
  %v140 = vrot.slane %v139, 4
  %v142 = vshll.u32 %v54, 16
  %v144 = vrot.slane %v142, 5
  %v145 = vsel %vm61, %v140, %v144
  %v147 = vshrl.u32 %v55, 16
  %v149 = vrot.slane %v147, 4
  %v150 = vshll.u32 %v55, 16
  %v152 = vrot.slane %v150, 5
  %v153 = vor.u32 %v149, %v152
  %v154 = vrot.slane %v153, 4
  %v156 = vshll.u32 %v56, 16
  %v158 = vrot.slane %v156, 5
  %v159 = vsel %vm61, %v154, %v158
  %v161 = vshrl.u32 %v57, 16
  %v163 = vrot.slane %v161, 4
  %v164 = vshll.u32 %v57, 16
  %v166 = vrot.slane %v164, 5
  %v167 = vor.u32 %v163, %v166
  %v168 = vrot.slane %v167, 4
  %v170 = vshll.u32 %v58, 16
  %v172 = vrot.slane %v170, 5
  %v173 = vsel %vm61, %v168, %v172
  %174 = vrot.lane.b32.xlu0 %v75, 16
  %v175 = vpop.permute.xlu0 %174
  %176 = vrot.lane.b32.xlu0 %v89, 16
  %v177 = vpop.permute.xlu0 %176
  %178 = vrot.lane.b32.xlu0 %v103, 16
  %v179 = vpop.permute.xlu0 %178
  %180 = vrot.lane.b32.xlu0 %v117, 16
  %v181 = vpop.permute.xlu0 %180
  %182 = vrot.lane.b32.xlu0 %v131, 16
  %v183 = vpop.permute.xlu0 %182
  %184 = vrot.lane.b32.xlu0 %v145, 16
  %v185 = vpop.permute.xlu0 %184
  %186 = vrot.lane.b32.xlu0 %v159, 16
  %v187 = vpop.permute.xlu0 %186
  %188 = vrot.lane.b32.xlu0 %v173, 16
  %v189 = vpop.permute.xlu0 %188
  %vm198 = vcmask 257152
  %199 = vst.msk [vmem:[#allocation2] sm:$0xf] %vm198, %v175
  %200 = vst.msk [vmem:[#allocation2 + $0x8] sm:$0xf] %vm198, %v177
  %201 = vst.msk [vmem:[#allocation2 + $0x10] sm:$0xf] %vm198, %v179
  %202 = vst.msk [vmem:[#allocation2 + $0x18] sm:$0xf] %vm198, %v181
  %203 = vst.msk [vmem:[#allocation2 + $0x20] sm:$0xf] %vm198, %v183
  %204 = vst.msk [vmem:[#allocation2 + $0x28] sm:$0xf] %vm198, %v185
  %205 = vst.msk [vmem:[#allocation2 + $0x30] sm:$0xf] %vm198, %v187
  %206 = vst.msk [vmem:[#allocation2 + $0x38] sm:$0xf] %vm198, %v189
  %v207 = vld [vmem:[%s24] sm:$0xf]
  %v208 = vld [vmem:[%s24 + $0x4] sm:$0x1]
  %v209 = vld [vmem:[%s24 + $0x8] sm:$0xf]
  %v210 = vld [vmem:[%s24 + $0xc] sm:$0x1]
  %v211 = vld [vmem:[%s24 + $0x10] sm:$0xf]
  %v212 = vld [vmem:[%s24 + $0x14] sm:$0x1]
  %v213 = vld [vmem:[%s24 + $0x18] sm:$0xf]
  %v214 = vld [vmem:[%s24 + $0x1c] sm:$0x1]
  %v215 = vld [vmem:[%s24 + $0x20] sm:$0xf]
  %v216 = vld [vmem:[%s24 + $0x24] sm:$0x1]
  %v217 = vld [vmem:[%s24 + $0x28] sm:$0xf]
  %v218 = vld [vmem:[%s24 + $0x2c] sm:$0x1]
  %v219 = vld [vmem:[%s24 + $0x30] sm:$0xf]
  %v220 = vld [vmem:[%s24 + $0x34] sm:$0x1]
  %v221 = vld [vmem:[%s24 + $0x38] sm:$0xf]
  %v222 = vld [vmem:[%s24 + $0x3c] sm:$0x1]
  %v224 = vshrl.u32 %v207, 16
  %v226 = vrot.slane %v224, 4
  %v227 = vshll.u32 %v207, 16
  %v229 = vrot.slane %v227, 5
  %v230 = vor.u32 %v226, %v229
  %v231 = vrot.slane %v230, 4
  %v233 = vshll.u32 %v208, 16
  %v235 = vrot.slane %v233, 5
  %v236 = vsel %vm61, %v231, %v235
  %v238 = vshrl.u32 %v209, 16
  %v240 = vrot.slane %v238, 4
  %v241 = vshll.u32 %v209, 16
  %v243 = vrot.slane %v241, 5
  %v244 = vor.u32 %v240, %v243
  %v245 = vrot.slane %v244, 4
  %v247 = vshll.u32 %v210, 16
  %v249 = vrot.slane %v247, 5
  %v250 = vsel %vm61, %v245, %v249
  %v252 = vshrl.u32 %v211, 16
  %v254 = vrot.slane %v252, 4
  %v255 = vshll.u32 %v211, 16
  %v257 = vrot.slane %v255, 5
  %v258 = vor.u32 %v254, %v257
  %v259 = vrot.slane %v258, 4
  %v261 = vshll.u32 %v212, 16
  %v263 = vrot.slane %v261, 5
  %v264 = vsel %vm61, %v259, %v263
  %v266 = vshrl.u32 %v213, 16
  %v268 = vrot.slane %v266, 4
  %v269 = vshll.u32 %v213, 16
  %v271 = vrot.slane %v269, 5
  %v272 = vor.u32 %v268, %v271
  %v273 = vrot.slane %v272, 4
  %v275 = vshll.u32 %v214, 16
  %v277 = vrot.slane %v275, 5
  %v278 = vsel %vm61, %v273, %v277
  %v280 = vshrl.u32 %v215, 16
  %v282 = vrot.slane %v280, 4
  %v283 = vshll.u32 %v215, 16
  %v285 = vrot.slane %v283, 5
  %v286 = vor.u32 %v282, %v285
  %v287 = vrot.slane %v286, 4
  %v289 = vshll.u32 %v216, 16
  %v291 = vrot.slane %v289, 5
  %v292 = vsel %vm61, %v287, %v291
  %v294 = vshrl.u32 %v217, 16
  %v296 = vrot.slane %v294, 4
  %v297 = vshll.u32 %v217, 16
  %v299 = vrot.slane %v297, 5
  %v300 = vor.u32 %v296, %v299
  %v301 = vrot.slane %v300, 4
  %v303 = vshll.u32 %v218, 16
  %v305 = vrot.slane %v303, 5
  %v306 = vsel %vm61, %v301, %v305
  %v308 = vshrl.u32 %v219, 16
  %v310 = vrot.slane %v308, 4
  %v311 = vshll.u32 %v219, 16
  %v313 = vrot.slane %v311, 5
  %v314 = vor.u32 %v310, %v313
  %v315 = vrot.slane %v314, 4
  %v317 = vshll.u32 %v220, 16
  %v319 = vrot.slane %v317, 5
  %v320 = vsel %vm61, %v315, %v319
  %v322 = vshrl.u32 %v221, 16
  %v324 = vrot.slane %v322, 4
  %v325 = vshll.u32 %v221, 16
  %v327 = vrot.slane %v325, 5
  %v328 = vor.u32 %v324, %v327
  %v329 = vrot.slane %v328, 4
  %v331 = vshll.u32 %v222, 16
  %v333 = vrot.slane %v331, 5
  %v334 = vsel %vm61, %v329, %v333
  %335 = vrot.lane.b32.xlu0 %v236, 32
  %v336 = vpop.permute.xlu0 %335
  %337 = vrot.lane.b32.xlu0 %v250, 32
  %v338 = vpop.permute.xlu0 %337
  %339 = vrot.lane.b32.xlu0 %v264, 32
  %v340 = vpop.permute.xlu0 %339
  %341 = vrot.lane.b32.xlu0 %v278, 32
  %v342 = vpop.permute.xlu0 %341
  %343 = vrot.lane.b32.xlu0 %v292, 32
  %v344 = vpop.permute.xlu0 %343
  %345 = vrot.lane.b32.xlu0 %v306, 32
  %v346 = vpop.permute.xlu0 %345
  %347 = vrot.lane.b32.xlu0 %v320, 32
  %v348 = vpop.permute.xlu0 %347
  %349 = vrot.lane.b32.xlu0 %v334, 32
  %v350 = vpop.permute.xlu0 %349
  %vm359 = vcmask 388352
  %360 = vst.msk [vmem:[#allocation2] sm:$0xf] %vm359, %v336
  %361 = vst.msk [vmem:[#allocation2 + $0x8] sm:$0xf] %vm359, %v338
  %362 = vst.msk [vmem:[#allocation2 + $0x10] sm:$0xf] %vm359, %v340
  %363 = vst.msk [vmem:[#allocation2 + $0x18] sm:$0xf] %vm359, %v342
  %364 = vst.msk [vmem:[#allocation2 + $0x20] sm:$0xf] %vm359, %v344
  %365 = vst.msk [vmem:[#allocation2 + $0x28] sm:$0xf] %vm359, %v346
  %366 = vst.msk [vmem:[#allocation2 + $0x30] sm:$0xf] %vm359, %v348
  %367 = vst.msk [vmem:[#allocation2 + $0x38] sm:$0xf] %vm359, %v350
  %s368 = scalar_lea.vmem %s0, 80
  %v369 = vld [vmem:[%s368] sm:$0xf]
  %v370 = vld [vmem:[%s368 + $0x8] sm:$0xf]
  %v371 = vld [vmem:[%s368 + $0x10] sm:$0xf]
  %v372 = vld [vmem:[%s368 + $0x18] sm:$0xf]
  %v373 = vld [vmem:[%s368 + $0x20] sm:$0xf]
  %v374 = vld [vmem:[%s368 + $0x28] sm:$0xf]
  %v375 = vld [vmem:[%s368 + $0x30] sm:$0xf]
  %v376 = vld [vmem:[%s368 + $0x38] sm:$0xf]
  %385 = vrot.lane.b32.xlu0 %v369, 48
  %v386 = vpop.permute.xlu0 %385
  %387 = vrot.lane.b32.xlu0 %v370, 48
  %v388 = vpop.permute.xlu0 %387
  %389 = vrot.lane.b32.xlu0 %v371, 48
  %v390 = vpop.permute.xlu0 %389
  %391 = vrot.lane.b32.xlu0 %v372, 48
  %v392 = vpop.permute.xlu0 %391
  %393 = vrot.lane.b32.xlu0 %v373, 48
  %v394 = vpop.permute.xlu0 %393
  %395 = vrot.lane.b32.xlu0 %v374, 48
  %v396 = vpop.permute.xlu0 %395
  %397 = vrot.lane.b32.xlu0 %v375, 48
  %v398 = vpop.permute.xlu0 %397
  %399 = vrot.lane.b32.xlu0 %v376, 48
  %v400 = vpop.permute.xlu0 %399
  %vm409 = vcmask 519552
  %410 = vst.msk [vmem:[#allocation2] sm:$0xf] %vm409, %v386
  %411 = vst.msk [vmem:[#allocation2 + $0x8] sm:$0xf] %vm409, %v388
  %412 = vst.msk [vmem:[#allocation2 + $0x10] sm:$0xf] %vm409, %v390
  %413 = vst.msk [vmem:[#allocation2 + $0x18] sm:$0xf] %vm409, %v392
  %414 = vst.msk [vmem:[#allocation2 + $0x20] sm:$0xf] %vm409, %v394
  %415 = vst.msk [vmem:[#allocation2 + $0x28] sm:$0xf] %vm409, %v396
  %416 = vst.msk [vmem:[#allocation2 + $0x30] sm:$0xf] %vm409, %v398
  %417 = vst.msk [vmem:[#allocation2 + $0x38] sm:$0xf] %vm409, %v400
  %s418 = scalar_lea.vmem %s0, 8
  %v419 = vld [vmem:[%s418] sm:$0xf]
  %v420 = vld [vmem:[%s418 + $0x4] sm:$0x1]
  %v421 = vld [vmem:[%s418 + $0x8] sm:$0xf]
  %v422 = vld [vmem:[%s418 + $0xc] sm:$0x1]
  %v423 = vld [vmem:[%s418 + $0x10] sm:$0xf]
  %v424 = vld [vmem:[%s418 + $0x14] sm:$0x1]
  %v425 = vld [vmem:[%s418 + $0x18] sm:$0xf]
  %v426 = vld [vmem:[%s418 + $0x1c] sm:$0x1]
  %v427 = vld [vmem:[%s418 + $0x20] sm:$0xf]
  %v428 = vld [vmem:[%s418 + $0x24] sm:$0x1]
  %v429 = vld [vmem:[%s418 + $0x28] sm:$0xf]
  %v430 = vld [vmem:[%s418 + $0x2c] sm:$0x1]
  %v431 = vld [vmem:[%s418 + $0x30] sm:$0xf]
  %v432 = vld [vmem:[%s418 + $0x34] sm:$0x1]
  %v433 = vld [vmem:[%s418 + $0x38] sm:$0xf]
  %v434 = vld [vmem:[%s418 + $0x3c] sm:$0x1]
  %v436 = vshrl.u32 %v419, 16
  %v438 = vrot.slane %v436, 4
  %v439 = vshll.u32 %v419, 16
  %v441 = vrot.slane %v439, 5
  %v442 = vor.u32 %v438, %v441
  %v443 = vrot.slane %v442, 4
  %v445 = vshll.u32 %v420, 16
  %v447 = vrot.slane %v445, 5
  %v448 = vsel %vm61, %v443, %v447
  %v450 = vshrl.u32 %v421, 16
  %v452 = vrot.slane %v450, 4
  %v453 = vshll.u32 %v421, 16
  %v455 = vrot.slane %v453, 5
  %v456 = vor.u32 %v452, %v455
  %v457 = vrot.slane %v456, 4
  %v459 = vshll.u32 %v422, 16
  %v461 = vrot.slane %v459, 5
  %v462 = vsel %vm61, %v457, %v461
  %v464 = vshrl.u32 %v423, 16
  %v466 = vrot.slane %v464, 4
  %v467 = vshll.u32 %v423, 16
  %v469 = vrot.slane %v467, 5
  %v470 = vor.u32 %v466, %v469
  %v471 = vrot.slane %v470, 4
  %v473 = vshll.u32 %v424, 16
  %v475 = vrot.slane %v473, 5
  %v476 = vsel %vm61, %v471, %v475
  %v478 = vshrl.u32 %v425, 16
  %v480 = vrot.slane %v478, 4
  %v481 = vshll.u32 %v425, 16
  %v483 = vrot.slane %v481, 5
  %v484 = vor.u32 %v480, %v483
  %v485 = vrot.slane %v484, 4
  %v487 = vshll.u32 %v426, 16
  %v489 = vrot.slane %v487, 5
  %v490 = vsel %vm61, %v485, %v489
  %v492 = vshrl.u32 %v427, 16
  %v494 = vrot.slane %v492, 4
  %v495 = vshll.u32 %v427, 16
  %v497 = vrot.slane %v495, 5
  %v498 = vor.u32 %v494, %v497
  %v499 = vrot.slane %v498, 4
  %v501 = vshll.u32 %v428, 16
  %v503 = vrot.slane %v501, 5
  %v504 = vsel %vm61, %v499, %v503
  %v506 = vshrl.u32 %v429, 16
  %v508 = vrot.slane %v506, 4
  %v509 = vshll.u32 %v429, 16
  %v511 = vrot.slane %v509, 5
  %v512 = vor.u32 %v508, %v511
  %v513 = vrot.slane %v512, 4
  %v515 = vshll.u32 %v430, 16
  %v517 = vrot.slane %v515, 5
  %v518 = vsel %vm61, %v513, %v517
  %v520 = vshrl.u32 %v431, 16
  %v522 = vrot.slane %v520, 4
  %v523 = vshll.u32 %v431, 16
  %v525 = vrot.slane %v523, 5
  %v526 = vor.u32 %v522, %v525
  %v527 = vrot.slane %v526, 4
  %v529 = vshll.u32 %v432, 16
  %v531 = vrot.slane %v529, 5
  %v532 = vsel %vm61, %v527, %v531
  %v534 = vshrl.u32 %v433, 16
  %v536 = vrot.slane %v534, 4
  %v537 = vshll.u32 %v433, 16
  %v539 = vrot.slane %v537, 5
  %v540 = vor.u32 %v536, %v539
  %v541 = vrot.slane %v540, 4
  %v543 = vshll.u32 %v434, 16
  %v545 = vrot.slane %v543, 5
  %v546 = vsel %vm61, %v541, %v545
  %547 = vrot.lane.b32.xlu0 %v448, 64
  %v548 = vpop.permute.xlu0 %547
  %549 = vrot.lane.b32.xlu0 %v462, 64
  %v550 = vpop.permute.xlu0 %549
  %551 = vrot.lane.b32.xlu0 %v476, 64
  %v552 = vpop.permute.xlu0 %551
  %553 = vrot.lane.b32.xlu0 %v490, 64
  %v554 = vpop.permute.xlu0 %553
  %555 = vrot.lane.b32.xlu0 %v504, 64
  %v556 = vpop.permute.xlu0 %555
  %557 = vrot.lane.b32.xlu0 %v518, 64
  %v558 = vpop.permute.xlu0 %557
  %559 = vrot.lane.b32.xlu0 %v532, 64
  %v560 = vpop.permute.xlu0 %559
  %561 = vrot.lane.b32.xlu0 %v546, 64
  %v562 = vpop.permute.xlu0 %561
  %vm571 = vcmask 650752
  %572 = vst.msk [vmem:[#allocation2] sm:$0xf] %vm571, %v548
  %573 = vst.msk [vmem:[#allocation2 + $0x8] sm:$0xf] %vm571, %v550
  %574 = vst.msk [vmem:[#allocation2 + $0x10] sm:$0xf] %vm571, %v552
  %575 = vst.msk [vmem:[#allocation2 + $0x18] sm:$0xf] %vm571, %v554
  %576 = vst.msk [vmem:[#allocation2 + $0x20] sm:$0xf] %vm571, %v556
  %577 = vst.msk [vmem:[#allocation2 + $0x28] sm:$0xf] %vm571, %v558
  %578 = vst.msk [vmem:[#allocation2 + $0x30] sm:$0xf] %vm571, %v560
  %579 = vst.msk [vmem:[#allocation2 + $0x38] sm:$0xf] %vm571, %v562
  %v580 = vld [vmem:[%s368] sm:$0xf]
  %v581 = vld [vmem:[%s368 + $0x4] sm:$0x1]
  %v582 = vld [vmem:[%s368 + $0x8] sm:$0xf]
  %v583 = vld [vmem:[%s368 + $0xc] sm:$0x1]
  %v584 = vld [vmem:[%s368 + $0x10] sm:$0xf]
  %v585 = vld [vmem:[%s368 + $0x14] sm:$0x1]
  %v586 = vld [vmem:[%s368 + $0x18] sm:$0xf]
  %v587 = vld [vmem:[%s368 + $0x1c] sm:$0x1]
  %v588 = vld [vmem:[%s368 + $0x20] sm:$0xf]
  %v589 = vld [vmem:[%s368 + $0x24] sm:$0x1]
  %v590 = vld [vmem:[%s368 + $0x28] sm:$0xf]
  %v591 = vld [vmem:[%s368 + $0x2c] sm:$0x1]
  %v592 = vld [vmem:[%s368 + $0x30] sm:$0xf]
  %v593 = vld [vmem:[%s368 + $0x34] sm:$0x1]
  %v594 = vld [vmem:[%s368 + $0x38] sm:$0xf]
  %v595 = vld [vmem:[%s368 + $0x3c] sm:$0x1]
  %v597 = vshrl.u32 %v580, 16
  %v599 = vrot.slane %v597, 4
  %v600 = vshll.u32 %v580, 16
  %v602 = vrot.slane %v600, 5
  %v603 = vor.u32 %v599, %v602
  %v604 = vrot.slane %v603, 4
  %v606 = vshll.u32 %v581, 16
  %v608 = vrot.slane %v606, 5
  %v609 = vsel %vm61, %v604, %v608
  %v611 = vshrl.u32 %v582, 16
  %v613 = vrot.slane %v611, 4
  %v614 = vshll.u32 %v582, 16
  %v616 = vrot.slane %v614, 5
  %v617 = vor.u32 %v613, %v616
  %v618 = vrot.slane %v617, 4
  %v620 = vshll.u32 %v583, 16
  %v622 = vrot.slane %v620, 5
  %v623 = vsel %vm61, %v618, %v622
  %v625 = vshrl.u32 %v584, 16
  %v627 = vrot.slane %v625, 4
  %v628 = vshll.u32 %v584, 16
  %v630 = vrot.slane %v628, 5
  %v631 = vor.u32 %v627, %v630
  %v632 = vrot.slane %v631, 4
  %v634 = vshll.u32 %v585, 16
  %v636 = vrot.slane %v634, 5
  %v637 = vsel %vm61, %v632, %v636
  %v639 = vshrl.u32 %v586, 16
  %v641 = vrot.slane %v639, 4
  %v642 = vshll.u32 %v586, 16
  %v644 = vrot.slane %v642, 5
  %v645 = vor.u32 %v641, %v644
  %v646 = vrot.slane %v645, 4
  %v648 = vshll.u32 %v587, 16
  %v650 = vrot.slane %v648, 5
  %v651 = vsel %vm61, %v646, %v650
  %v653 = vshrl.u32 %v588, 16
  %v655 = vrot.slane %v653, 4
  %v656 = vshll.u32 %v588, 16
  %v658 = vrot.slane %v656, 5
  %v659 = vor.u32 %v655, %v658
  %v660 = vrot.slane %v659, 4
  %v662 = vshll.u32 %v589, 16
  %v664 = vrot.slane %v662, 5
  %v665 = vsel %vm61, %v660, %v664
  %v667 = vshrl.u32 %v590, 16
  %v669 = vrot.slane %v667, 4
  %v670 = vshll.u32 %v590, 16
  %v672 = vrot.slane %v670, 5
  %v673 = vor.u32 %v669, %v672
  %v674 = vrot.slane %v673, 4
  %v676 = vshll.u32 %v591, 16
  %v678 = vrot.slane %v676, 5
  %v679 = vsel %vm61, %v674, %v678
  %v681 = vshrl.u32 %v592, 16
  %v683 = vrot.slane %v681, 4
  %v684 = vshll.u32 %v592, 16
  %v686 = vrot.slane %v684, 5
  %v687 = vor.u32 %v683, %v686
  %v688 = vrot.slane %v687, 4
  %v690 = vshll.u32 %v593, 16
  %v692 = vrot.slane %v690, 5
  %v693 = vsel %vm61, %v688, %v692
  %v695 = vshrl.u32 %v594, 16
  %v697 = vrot.slane %v695, 4
  %v698 = vshll.u32 %v594, 16
  %v700 = vrot.slane %v698, 5
  %v701 = vor.u32 %v697, %v700
  %v702 = vrot.slane %v701, 4
  %v704 = vshll.u32 %v595, 16
  %v706 = vrot.slane %v704, 5
  %v707 = vsel %vm61, %v702, %v706
  %708 = vrot.lane.b32.xlu0 %v609, 80
  %v709 = vpop.permute.xlu0 %708
  %710 = vrot.lane.b32.xlu0 %v623, 80
  %v711 = vpop.permute.xlu0 %710
  %712 = vrot.lane.b32.xlu0 %v637, 80
  %v713 = vpop.permute.xlu0 %712
  %714 = vrot.lane.b32.xlu0 %v651, 80
  %v715 = vpop.permute.xlu0 %714
  %716 = vrot.lane.b32.xlu0 %v665, 80
  %v717 = vpop.permute.xlu0 %716
  %718 = vrot.lane.b32.xlu0 %v679, 80
  %v719 = vpop.permute.xlu0 %718
  %720 = vrot.lane.b32.xlu0 %v693, 80
  %v721 = vpop.permute.xlu0 %720
  %722 = vrot.lane.b32.xlu0 %v707, 80
  %v723 = vpop.permute.xlu0 %722
  %vm732 = vcmask 781952
  %733 = vst.msk [vmem:[#allocation2] sm:$0xf] %vm732, %v709
  %734 = vst.msk [vmem:[#allocation2 + $0x8] sm:$0xf] %vm732, %v711
  %735 = vst.msk [vmem:[#allocation2 + $0x10] sm:$0xf] %vm732, %v713
  %736 = vst.msk [vmem:[#allocation2 + $0x18] sm:$0xf] %vm732, %v715
  %737 = vst.msk [vmem:[#allocation2 + $0x20] sm:$0xf] %vm732, %v717
  %738 = vst.msk [vmem:[#allocation2 + $0x28] sm:$0xf] %vm732, %v719
  %739 = vst.msk [vmem:[#allocation2 + $0x30] sm:$0xf] %vm732, %v721
  %740 = vst.msk [vmem:[#allocation2 + $0x38] sm:$0xf] %vm732, %v723
  %s741 = scalar_lea.vmem %s0, 224
  %v742 = vld [vmem:[%s741] sm:$0xf]
  %v743 = vld [vmem:[%s741 + $0x8] sm:$0xf]
  %v744 = vld [vmem:[%s741 + $0x10] sm:$0xf]
  %v745 = vld [vmem:[%s741 + $0x18] sm:$0xf]
  %v746 = vld [vmem:[%s741 + $0x20] sm:$0xf]
  %v747 = vld [vmem:[%s741 + $0x28] sm:$0xf]
  %v748 = vld [vmem:[%s741 + $0x30] sm:$0xf]
  %v749 = vld [vmem:[%s741 + $0x38] sm:$0xf]
  %758 = vrot.lane.b32.xlu0 %v742, 96
  %v759 = vpop.permute.xlu0 %758
  %760 = vrot.lane.b32.xlu0 %v743, 96
  %v761 = vpop.permute.xlu0 %760
  %762 = vrot.lane.b32.xlu0 %v744, 96
  %v763 = vpop.permute.xlu0 %762
  %764 = vrot.lane.b32.xlu0 %v745, 96
  %v765 = vpop.permute.xlu0 %764
  %766 = vrot.lane.b32.xlu0 %v746, 96
  %v767 = vpop.permute.xlu0 %766
  %768 = vrot.lane.b32.xlu0 %v747, 96
  %v769 = vpop.permute.xlu0 %768
  %770 = vrot.lane.b32.xlu0 %v748, 96
  %v771 = vpop.permute.xlu0 %770
  %772 = vrot.lane.b32.xlu0 %v749, 96
  %v773 = vpop.permute.xlu0 %772
  %vm782 = vcmask 913152
  %783 = vst.msk [vmem:[#allocation2] sm:$0xf] %vm782, %v759
  %784 = vst.msk [vmem:[#allocation2 + $0x8] sm:$0xf] %vm782, %v761
  %785 = vst.msk [vmem:[#allocation2 + $0x10] sm:$0xf] %vm782, %v763
  %786 = vst.msk [vmem:[#allocation2 + $0x18] sm:$0xf] %vm782, %v765
  %787 = vst.msk [vmem:[#allocation2 + $0x20] sm:$0xf] %vm782, %v767
  %788 = vst.msk [vmem:[#allocation2 + $0x28] sm:$0xf] %vm782, %v769
  %789 = vst.msk [vmem:[#allocation2 + $0x30] sm:$0xf] %vm782, %v771
  %790 = vst.msk [vmem:[#allocation2 + $0x38] sm:$0xf] %vm782, %v773
  %s791 = scalar_lea.vmem %s0, 152
  %v792 = vld [vmem:[%s791] sm:$0xf]
  %v793 = vld [vmem:[%s791 + $0x4] sm:$0x1]
  %v794 = vld [vmem:[%s791 + $0x8] sm:$0xf]
  %v795 = vld [vmem:[%s791 + $0xc] sm:$0x1]
  %v796 = vld [vmem:[%s791 + $0x10] sm:$0xf]
  %v797 = vld [vmem:[%s791 + $0x14] sm:$0x1]
  %v798 = vld [vmem:[%s791 + $0x18] sm:$0xf]
  %v799 = vld [vmem:[%s791 + $0x1c] sm:$0x1]
  %v800 = vld [vmem:[%s791 + $0x20] sm:$0xf]
  %v801 = vld [vmem:[%s791 + $0x24] sm:$0x1]
  %v802 = vld [vmem:[%s791 + $0x28] sm:$0xf]
  %v803 = vld [vmem:[%s791 + $0x2c] sm:$0x1]
  %v804 = vld [vmem:[%s791 + $0x30] sm:$0xf]
  %v805 = vld [vmem:[%s791 + $0x34] sm:$0x1]
  %v806 = vld [vmem:[%s791 + $0x38] sm:$0xf]
  %v807 = vld [vmem:[%s791 + $0x3c] sm:$0x1]
  %v809 = vshrl.u32 %v792, 16
  %v811 = vrot.slane %v809, 4
  %v812 = vshll.u32 %v792, 16
  %v814 = vrot.slane %v812, 5
  %v815 = vor.u32 %v811, %v814
  %v816 = vrot.slane %v815, 4
  %v818 = vshll.u32 %v793, 16
  %v820 = vrot.slane %v818, 5
  %v821 = vsel %vm61, %v816, %v820
  %v823 = vshrl.u32 %v794, 16
  %v825 = vrot.slane %v823, 4
  %v826 = vshll.u32 %v794, 16
  %v828 = vrot.slane %v826, 5
  %v829 = vor.u32 %v825, %v828
  %v830 = vrot.slane %v829, 4
  %v832 = vshll.u32 %v795, 16
  %v834 = vrot.slane %v832, 5
  %v835 = vsel %vm61, %v830, %v834
  %v837 = vshrl.u32 %v796, 16
  %v839 = vrot.slane %v837, 4
  %v840 = vshll.u32 %v796, 16
  %v842 = vrot.slane %v840, 5
  %v843 = vor.u32 %v839, %v842
  %v844 = vrot.slane %v843, 4
  %v846 = vshll.u32 %v797, 16
  %v848 = vrot.slane %v846, 5
  %v849 = vsel %vm61, %v844, %v848
  %v851 = vshrl.u32 %v798, 16
  %v853 = vrot.slane %v851, 4
  %v854 = vshll.u32 %v798, 16
  %v856 = vrot.slane %v854, 5
  %v857 = vor.u32 %v853, %v856
  %v858 = vrot.slane %v857, 4
  %v860 = vshll.u32 %v799, 16
  %v862 = vrot.slane %v860, 5
  %v863 = vsel %vm61, %v858, %v862
  %v865 = vshrl.u32 %v800, 16
  %v867 = vrot.slane %v865, 4
  %v868 = vshll.u32 %v800, 16
  %v870 = vrot.slane %v868, 5
  %v871 = vor.u32 %v867, %v870
  %v872 = vrot.slane %v871, 4
  %v874 = vshll.u32 %v801, 16
  %v876 = vrot.slane %v874, 5
  %v877 = vsel %vm61, %v872, %v876
  %v879 = vshrl.u32 %v802, 16
  %v881 = vrot.slane %v879, 4
  %v882 = vshll.u32 %v802, 16
  %v884 = vrot.slane %v882, 5
  %v885 = vor.u32 %v881, %v884
  %v886 = vrot.slane %v885, 4
  %v888 = vshll.u32 %v803, 16
  %v890 = vrot.slane %v888, 5
  %v891 = vsel %vm61, %v886, %v890
  %v893 = vshrl.u32 %v804, 16
  %v895 = vrot.slane %v893, 4
  %v896 = vshll.u32 %v804, 16
  %v898 = vrot.slane %v896, 5
  %v899 = vor.u32 %v895, %v898
  %v900 = vrot.slane %v899, 4
  %v902 = vshll.u32 %v805, 16
  %v904 = vrot.slane %v902, 5
  %v905 = vsel %vm61, %v900, %v904
  %v907 = vshrl.u32 %v806, 16
  %v909 = vrot.slane %v907, 4
  %v910 = vshll.u32 %v806, 16
  %v912 = vrot.slane %v910, 5
  %v913 = vor.u32 %v909, %v912
  %v914 = vrot.slane %v913, 4
  %v916 = vshll.u32 %v807, 16
  %v918 = vrot.slane %v916, 5
  %v919 = vsel %vm61, %v914, %v918
  %920 = vrot.lane.b32.xlu0 %v821, 112
  %v921 = vpop.permute.xlu0 %920
  %922 = vrot.lane.b32.xlu0 %v835, 112
  %v923 = vpop.permute.xlu0 %922
  %924 = vrot.lane.b32.xlu0 %v849, 112
  %v925 = vpop.permute.xlu0 %924
  %926 = vrot.lane.b32.xlu0 %v863, 112
  %v927 = vpop.permute.xlu0 %926
  %928 = vrot.lane.b32.xlu0 %v877, 112
  %v929 = vpop.permute.xlu0 %928
  %930 = vrot.lane.b32.xlu0 %v891, 112
  %v931 = vpop.permute.xlu0 %930
  %932 = vrot.lane.b32.xlu0 %v905, 112
  %v933 = vpop.permute.xlu0 %932
  %934 = vrot.lane.b32.xlu0 %v919, 112
  %v935 = vpop.permute.xlu0 %934
  %vm944 = vcmask 1044352
  %945 = vst.msk [vmem:[#allocation2] sm:$0xf] %vm944, %v921
  %946 = vst.msk [vmem:[#allocation2 + $0x8] sm:$0xf] %vm944, %v923
  %947 = vst.msk [vmem:[#allocation2 + $0x10] sm:$0xf] %vm944, %v925
  %948 = vst.msk [vmem:[#allocation2 + $0x18] sm:$0xf] %vm944, %v927
  %949 = vst.msk [vmem:[#allocation2 + $0x20] sm:$0xf] %vm944, %v929
  %950 = vst.msk [vmem:[#allocation2 + $0x28] sm:$0xf] %vm944, %v931
  %951 = vst.msk [vmem:[#allocation2 + $0x30] sm:$0xf] %vm944, %v933
  %952 = vst.msk [vmem:[#allocation2 + $0x38] sm:$0xf] %vm944, %v935
  %v953 = vld [vmem:[%s741] sm:$0xf]
  %v954 = vld [vmem:[%s741 + $0x4] sm:$0x1]
  %v955 = vld [vmem:[%s741 + $0x8] sm:$0xf]
  %v956 = vld [vmem:[%s741 + $0xc] sm:$0x1]
  %v957 = vld [vmem:[%s741 + $0x10] sm:$0xf]
  %v958 = vld [vmem:[%s741 + $0x14] sm:$0x1]
  %v959 = vld [vmem:[%s741 + $0x18] sm:$0xf]
  %v960 = vld [vmem:[%s741 + $0x1c] sm:$0x1]
  %v961 = vld [vmem:[%s741 + $0x20] sm:$0xf]
  %v962 = vld [vmem:[%s741 + $0x24] sm:$0x1]
  %v963 = vld [vmem:[%s741 + $0x28] sm:$0xf]
  %v964 = vld [vmem:[%s741 + $0x2c] sm:$0x1]
  %v965 = vld [vmem:[%s741 + $0x30] sm:$0xf]
  %v966 = vld [vmem:[%s741 + $0x34] sm:$0x1]
  %v967 = vld [vmem:[%s741 + $0x38] sm:$0xf]
  %v968 = vld [vmem:[%s741 + $0x3c] sm:$0x1]
  %v970 = vshrl.u32 %v953, 16
  %v972 = vrot.slane %v970, 4
  %v973 = vshll.u32 %v953, 16
  %v975 = vrot.slane %v973, 5
  %v976 = vor.u32 %v972, %v975
  %v977 = vrot.slane %v976, 4
  %v979 = vshll.u32 %v954, 16
  %v981 = vrot.slane %v979, 5
  %v982 = vsel %vm61, %v977, %v981
  %v984 = vshrl.u32 %v955, 16
  %v986 = vrot.slane %v984, 4
  %v987 = vshll.u32 %v955, 16
  %v989 = vrot.slane %v987, 5
  %v990 = vor.u32 %v986, %v989
  %v991 = vrot.slane %v990, 4
  %v993 = vshll.u32 %v956, 16
  %v995 = vrot.slane %v993, 5
  %v996 = vsel %vm61, %v991, %v995
  %v998 = vshrl.u32 %v957, 16
  %v1000 = vrot.slane %v998, 4
  %v1001 = vshll.u32 %v957, 16
  %v1003 = vrot.slane %v1001, 5
  %v1004 = vor.u32 %v1000, %v1003
  %v1005 = vrot.slane %v1004, 4
  %v1007 = vshll.u32 %v958, 16
  %v1009 = vrot.slane %v1007, 5
  %v1010 = vsel %vm61, %v1005, %v1009
  %v1012 = vshrl.u32 %v959, 16
  %v1014 = vrot.slane %v1012, 4
  %v1015 = vshll.u32 %v959, 16
  %v1017 = vrot.slane %v1015, 5
  %v1018 = vor.u32 %v1014, %v1017
  %v1019 = vrot.slane %v1018, 4
  %v1021 = vshll.u32 %v960, 16
  %v1023 = vrot.slane %v1021, 5
  %v1024 = vsel %vm61, %v1019, %v1023
  %v1026 = vshrl.u32 %v961, 16
  %v1028 = vrot.slane %v1026, 4
  %v1029 = vshll.u32 %v961, 16
  %v1031 = vrot.slane %v1029, 5
  %v1032 = vor.u32 %v1028, %v1031
  %v1033 = vrot.slane %v1032, 4
  %v1035 = vshll.u32 %v962, 16
  %v1037 = vrot.slane %v1035, 5
  %v1038 = vsel %vm61, %v1033, %v1037
  %v1040 = vshrl.u32 %v963, 16
  %v1042 = vrot.slane %v1040, 4
  %v1043 = vshll.u32 %v963, 16
  %v1045 = vrot.slane %v1043, 5
  %v1046 = vor.u32 %v1042, %v1045
  %v1047 = vrot.slane %v1046, 4
  %v1049 = vshll.u32 %v964, 16
  %v1051 = vrot.slane %v1049, 5
  %v1052 = vsel %vm61, %v1047, %v1051
  %v1054 = vshrl.u32 %v965, 16
  %v1056 = vrot.slane %v1054, 4
  %v1057 = vshll.u32 %v965, 16
  %v1059 = vrot.slane %v1057, 5
  %v1060 = vor.u32 %v1056, %v1059
  %v1061 = vrot.slane %v1060, 4
  %v1063 = vshll.u32 %v966, 16
  %v1065 = vrot.slane %v1063, 5
  %v1066 = vsel %vm61, %v1061, %v1065
  %v1068 = vshrl.u32 %v967, 16
  %v1070 = vrot.slane %v1068, 4
  %v1071 = vshll.u32 %v967, 16
  %v1073 = vrot.slane %v1071, 5
  %v1074 = vor.u32 %v1070, %v1073
  %v1075 = vrot.slane %v1074, 4
  %v1077 = vshll.u32 %v968, 16
  %v1079 = vrot.slane %v1077, 5
  %v1080 = vsel %vm61, %v1075, %v1079
  %1089 = vst.msk [vmem:[#allocation2 + $0x4] sm:$0xf] %vm33, %v982
  %1090 = vst.msk [vmem:[#allocation2 + $0xc] sm:$0xf] %vm33, %v996
  %1091 = vst.msk [vmem:[#allocation2 + $0x14] sm:$0xf] %vm33, %v1010
  %1092 = vst.msk [vmem:[#allocation2 + $0x1c] sm:$0xf] %vm33, %v1024
  %1093 = vst.msk [vmem:[#allocation2 + $0x24] sm:$0xf] %vm33, %v1038
  %1094 = vst.msk [vmem:[#allocation2 + $0x2c] sm:$0xf] %vm33, %v1052
  %1095 = vst.msk [vmem:[#allocation2 + $0x34] sm:$0xf] %vm33, %v1066
  %1096 = vst.msk [vmem:[#allocation2 + $0x3c] sm:$0xf] %vm33, %v1080
  %s1097 = scalar_lea.vmem %s0, 504
  %v1098 = vld [vmem:[%s1097] sm:$0xf]
  %v1099 = vld [vmem:[%s1097 + $0x8] sm:$0xf]
  %v1100 = vld [vmem:[%s1097 + $0x10] sm:$0xf]
  %v1101 = vld [vmem:[%s1097 + $0x18] sm:$0xf]
  %v1102 = vld [vmem:[%s1097 + $0x20] sm:$0xf]
  %v1103 = vld [vmem:[%s1097 + $0x28] sm:$0xf]
  %v1104 = vld [vmem:[%s1097 + $0x30] sm:$0xf]
  %v1105 = vld [vmem:[%s1097 + $0x38] sm:$0xf]
  %s1106 = scalar_lea.vmem [#allocation2], 64
  %1107 = vst.msk [vmem:[%s1106] sm:$0xf] %vm33, %v1098
  %1108 = vst.msk [vmem:[%s1106 + $0x8] sm:$0xf] %vm33, %v1099
  %1109 = vst.msk [vmem:[%s1106 + $0x10] sm:$0xf] %vm33, %v1100
  %1110 = vst.msk [vmem:[%s1106 + $0x18] sm:$0xf] %vm33, %v1101
  %1111 = vst.msk [vmem:[%s1106 + $0x20] sm:$0xf] %vm33, %v1102
  %1112 = vst.msk [vmem:[%s1106 + $0x28] sm:$0xf] %vm33, %v1103
  %1113 = vst.msk [vmem:[%s1106 + $0x30] sm:$0xf] %vm33, %v1104
  %1114 = vst.msk [vmem:[%s1106 + $0x38] sm:$0xf] %vm33, %v1105
  %s1115 = scalar_lea.vmem %s0, 432
  %v1116 = vld [vmem:[%s1115] sm:$0xf]
  %v1117 = vld [vmem:[%s1115 + $0x4] sm:$0x1]
  %v1118 = vld [vmem:[%s1115 + $0x8] sm:$0xf]
  %v1119 = vld [vmem:[%s1115 + $0xc] sm:$0x1]
  %v1120 = vld [vmem:[%s1115 + $0x10] sm:$0xf]
  %v1121 = vld [vmem:[%s1115 + $0x14] sm:$0x1]
  %v1122 = vld [vmem:[%s1115 + $0x18] sm:$0xf]
  %v1123 = vld [vmem:[%s1115 + $0x1c] sm:$0x1]
  %v1124 = vld [vmem:[%s1115 + $0x20] sm:$0xf]
  %v1125 = vld [vmem:[%s1115 + $0x24] sm:$0x1]
  %v1126 = vld [vmem:[%s1115 + $0x28] sm:$0xf]
  %v1127 = vld [vmem:[%s1115 + $0x2c] sm:$0x1]
  %v1128 = vld [vmem:[%s1115 + $0x30] sm:$0xf]
  %v1129 = vld [vmem:[%s1115 + $0x34] sm:$0x1]
  %v1130 = vld [vmem:[%s1115 + $0x38] sm:$0xf]
  %v1131 = vld [vmem:[%s1115 + $0x3c] sm:$0x1]
  %v1133 = vshrl.u32 %v1116, 16
  %v1135 = vrot.slane %v1133, 4
  %v1136 = vshll.u32 %v1116, 16
  %v1138 = vrot.slane %v1136, 5
  %v1139 = vor.u32 %v1135, %v1138
  %v1140 = vrot.slane %v1139, 4
  %v1142 = vshll.u32 %v1117, 16
  %v1144 = vrot.slane %v1142, 5
  %v1145 = vsel %vm61, %v1140, %v1144
  %v1147 = vshrl.u32 %v1118, 16
  %v1149 = vrot.slane %v1147, 4
  %v1150 = vshll.u32 %v1118, 16
  %v1152 = vrot.slane %v1150, 5
  %v1153 = vor.u32 %v1149, %v1152
  %v1154 = vrot.slane %v1153, 4
  %v1156 = vshll.u32 %v1119, 16
  %v1158 = vrot.slane %v1156, 5
  %v1159 = vsel %vm61, %v1154, %v1158
  %v1161 = vshrl.u32 %v1120, 16
  %v1163 = vrot.slane %v1161, 4
  %v1164 = vshll.u32 %v1120, 16
  %v1166 = vrot.slane %v1164, 5
  %v1167 = vor.u32 %v1163, %v1166
  %v1168 = vrot.slane %v1167, 4
  %v1170 = vshll.u32 %v1121, 16
  %v1172 = vrot.slane %v1170, 5
  %v1173 = vsel %vm61, %v1168, %v1172
  %v1175 = vshrl.u32 %v1122, 16
  %v1177 = vrot.slane %v1175, 4
  %v1178 = vshll.u32 %v1122, 16
  %v1180 = vrot.slane %v1178, 5
  %v1181 = vor.u32 %v1177, %v1180
  %v1182 = vrot.slane %v1181, 4
  %v1184 = vshll.u32 %v1123, 16
  %v1186 = vrot.slane %v1184, 5
  %v1187 = vsel %vm61, %v1182, %v1186
  %v1189 = vshrl.u32 %v1124, 16
  %v1191 = vrot.slane %v1189, 4
  %v1192 = vshll.u32 %v1124, 16
  %v1194 = vrot.slane %v1192, 5
  %v1195 = vor.u32 %v1191, %v1194
  %v1196 = vrot.slane %v1195, 4
  %v1198 = vshll.u32 %v1125, 16
  %v1200 = vrot.slane %v1198, 5
  %v1201 = vsel %vm61, %v1196, %v1200
  %v1203 = vshrl.u32 %v1126, 16
  %v1205 = vrot.slane %v1203, 4
  %v1206 = vshll.u32 %v1126, 16
  %v1208 = vrot.slane %v1206, 5
  %v1209 = vor.u32 %v1205, %v1208
  %v1210 = vrot.slane %v1209, 4
  %v1212 = vshll.u32 %v1127, 16
  %v1214 = vrot.slane %v1212, 5
  %v1215 = vsel %vm61, %v1210, %v1214
  %v1217 = vshrl.u32 %v1128, 16
  %v1219 = vrot.slane %v1217, 4
  %v1220 = vshll.u32 %v1128, 16
  %v1222 = vrot.slane %v1220, 5
  %v1223 = vor.u32 %v1219, %v1222
  %v1224 = vrot.slane %v1223, 4
  %v1226 = vshll.u32 %v1129, 16
  %v1228 = vrot.slane %v1226, 5
  %v1229 = vsel %vm61, %v1224, %v1228
  %v1231 = vshrl.u32 %v1130, 16
  %v1233 = vrot.slane %v1231, 4
  %v1234 = vshll.u32 %v1130, 16
  %v1236 = vrot.slane %v1234, 5
  %v1237 = vor.u32 %v1233, %v1236
  %v1238 = vrot.slane %v1237, 4
  %v1240 = vshll.u32 %v1131, 16
  %v1242 = vrot.slane %v1240, 5
  %v1243 = vsel %vm61, %v1238, %v1242
  %1244 = vrot.lane.b32.xlu0 %v1145, 16
  %v1245 = vpop.permute.xlu0 %1244
  %1246 = vrot.lane.b32.xlu0 %v1159, 16
  %v1247 = vpop.permute.xlu0 %1246
  %1248 = vrot.lane.b32.xlu0 %v1173, 16
  %v1249 = vpop.permute.xlu0 %1248
  %1250 = vrot.lane.b32.xlu0 %v1187, 16
  %v1251 = vpop.permute.xlu0 %1250
  %1252 = vrot.lane.b32.xlu0 %v1201, 16
  %v1253 = vpop.permute.xlu0 %1252
  %1254 = vrot.lane.b32.xlu0 %v1215, 16
  %v1255 = vpop.permute.xlu0 %1254
  %1256 = vrot.lane.b32.xlu0 %v1229, 16
  %v1257 = vpop.permute.xlu0 %1256
  %1258 = vrot.lane.b32.xlu0 %v1243, 16
  %v1259 = vpop.permute.xlu0 %1258
  %1268 = vst.msk [vmem:[%s1106] sm:$0xf] %vm198, %v1245
  %1269 = vst.msk [vmem:[%s1106 + $0x8] sm:$0xf] %vm198, %v1247
  %1270 = vst.msk [vmem:[%s1106 + $0x10] sm:$0xf] %vm198, %v1249
  %1271 = vst.msk [vmem:[%s1106 + $0x18] sm:$0xf] %vm198, %v1251
  %1272 = vst.msk [vmem:[%s1106 + $0x20] sm:$0xf] %vm198, %v1253
  %1273 = vst.msk [vmem:[%s1106 + $0x28] sm:$0xf] %vm198, %v1255
  %1274 = vst.msk [vmem:[%s1106 + $0x30] sm:$0xf] %vm198, %v1257
  %1275 = vst.msk [vmem:[%s1106 + $0x38] sm:$0xf] %vm198, %v1259
  %v1276 = vld [vmem:[%s1097] sm:$0xf]
  %v1277 = vld [vmem:[%s1097 + $0x4] sm:$0x1]
  %v1278 = vld [vmem:[%s1097 + $0x8] sm:$0xf]
  %v1279 = vld [vmem:[%s1097 + $0xc] sm:$0x1]
  %v1280 = vld [vmem:[%s1097 + $0x10] sm:$0xf]
  %v1281 = vld [vmem:[%s1097 + $0x14] sm:$0x1]
  %v1282 = vld [vmem:[%s1097 + $0x18] sm:$0xf]
  %v1283 = vld [vmem:[%s1097 + $0x1c] sm:$0x1]
  %v1284 = vld [vmem:[%s1097 + $0x20] sm:$0xf]
  %v1285 = vld [vmem:[%s1097 + $0x24] sm:$0x1]
  %v1286 = vld [vmem:[%s1097 + $0x28] sm:$0xf]
  %v1287 = vld [vmem:[%s1097 + $0x2c] sm:$0x1]
  %v1288 = vld [vmem:[%s1097 + $0x30] sm:$0xf]
  %v1289 = vld [vmem:[%s1097 + $0x34] sm:$0x1]
  %v1290 = vld [vmem:[%s1097 + $0x38] sm:$0xf]
  %v1291 = vld [vmem:[%s1097 + $0x3c] sm:$0x1]
  %v1293 = vshrl.u32 %v1276, 16
  %v1295 = vrot.slane %v1293, 4
  %v1296 = vshll.u32 %v1276, 16
  %v1298 = vrot.slane %v1296, 5
  %v1299 = vor.u32 %v1295, %v1298
  %v1300 = vrot.slane %v1299, 4
  %v1302 = vshll.u32 %v1277, 16
  %v1304 = vrot.slane %v1302, 5
  %v1305 = vsel %vm61, %v1300, %v1304
  %v1307 = vshrl.u32 %v1278, 16
  %v1309 = vrot.slane %v1307, 4
  %v1310 = vshll.u32 %v1278, 16
  %v1312 = vrot.slane %v1310, 5
  %v1313 = vor.u32 %v1309, %v1312
  %v1314 = vrot.slane %v1313, 4
  %v1316 = vshll.u32 %v1279, 16
  %v1318 = vrot.slane %v1316, 5
  %v1319 = vsel %vm61, %v1314, %v1318
  %v1321 = vshrl.u32 %v1280, 16
  %v1323 = vrot.slane %v1321, 4
  %v1324 = vshll.u32 %v1280, 16
  %v1326 = vrot.slane %v1324, 5
  %v1327 = vor.u32 %v1323, %v1326
  %v1328 = vrot.slane %v1327, 4
  %v1330 = vshll.u32 %v1281, 16
  %v1332 = vrot.slane %v1330, 5
  %v1333 = vsel %vm61, %v1328, %v1332
  %v1335 = vshrl.u32 %v1282, 16
  %v1337 = vrot.slane %v1335, 4
  %v1338 = vshll.u32 %v1282, 16
  %v1340 = vrot.slane %v1338, 5
  %v1341 = vor.u32 %v1337, %v1340
  %v1342 = vrot.slane %v1341, 4
  %v1344 = vshll.u32 %v1283, 16
  %v1346 = vrot.slane %v1344, 5
  %v1347 = vsel %vm61, %v1342, %v1346
  %v1349 = vshrl.u32 %v1284, 16
  %v1351 = vrot.slane %v1349, 4
  %v1352 = vshll.u32 %v1284, 16
  %v1354 = vrot.slane %v1352, 5
  %v1355 = vor.u32 %v1351, %v1354
  %v1356 = vrot.slane %v1355, 4
  %v1358 = vshll.u32 %v1285, 16
  %v1360 = vrot.slane %v1358, 5
  %v1361 = vsel %vm61, %v1356, %v1360
  %v1363 = vshrl.u32 %v1286, 16
  %v1365 = vrot.slane %v1363, 4
  %v1366 = vshll.u32 %v1286, 16
  %v1368 = vrot.slane %v1366, 5
  %v1369 = vor.u32 %v1365, %v1368
  %v1370 = vrot.slane %v1369, 4
  %v1372 = vshll.u32 %v1287, 16
  %v1374 = vrot.slane %v1372, 5
  %v1375 = vsel %vm61, %v1370, %v1374
  %v1377 = vshrl.u32 %v1288, 16
  %v1379 = vrot.slane %v1377, 4
  %v1380 = vshll.u32 %v1288, 16
  %v1382 = vrot.slane %v1380, 5
  %v1383 = vor.u32 %v1379, %v1382
  %v1384 = vrot.slane %v1383, 4
  %v1386 = vshll.u32 %v1289, 16
  %v1388 = vrot.slane %v1386, 5
  %v1389 = vsel %vm61, %v1384, %v1388
  %v1391 = vshrl.u32 %v1290, 16
  %v1393 = vrot.slane %v1391, 4
  %v1394 = vshll.u32 %v1290, 16
  %v1396 = vrot.slane %v1394, 5
  %v1397 = vor.u32 %v1393, %v1396
  %v1398 = vrot.slane %v1397, 4
  %v1400 = vshll.u32 %v1291, 16
  %v1402 = vrot.slane %v1400, 5
  %v1403 = vsel %vm61, %v1398, %v1402
  %1404 = vrot.lane.b32.xlu0 %v1305, 32
  %v1405 = vpop.permute.xlu0 %1404
  %1406 = vrot.lane.b32.xlu0 %v1319, 32
  %v1407 = vpop.permute.xlu0 %1406
  %1408 = vrot.lane.b32.xlu0 %v1333, 32
  %v1409 = vpop.permute.xlu0 %1408
  %1410 = vrot.lane.b32.xlu0 %v1347, 32
  %v1411 = vpop.permute.xlu0 %1410
  %1412 = vrot.lane.b32.xlu0 %v1361, 32
  %v1413 = vpop.permute.xlu0 %1412
  %1414 = vrot.lane.b32.xlu0 %v1375, 32
  %v1415 = vpop.permute.xlu0 %1414
  %1416 = vrot.lane.b32.xlu0 %v1389, 32
  %v1417 = vpop.permute.xlu0 %1416
  %1418 = vrot.lane.b32.xlu0 %v1403, 32
  %v1419 = vpop.permute.xlu0 %1418
  %1428 = vst.msk [vmem:[%s1106] sm:$0xf] %vm359, %v1405
  %1429 = vst.msk [vmem:[%s1106 + $0x8] sm:$0xf] %vm359, %v1407
  %1430 = vst.msk [vmem:[%s1106 + $0x10] sm:$0xf] %vm359, %v1409
  %1431 = vst.msk [vmem:[%s1106 + $0x18] sm:$0xf] %vm359, %v1411
  %1432 = vst.msk [vmem:[%s1106 + $0x20] sm:$0xf] %vm359, %v1413
  %1433 = vst.msk [vmem:[%s1106 + $0x28] sm:$0xf] %vm359, %v1415
  %1434 = vst.msk [vmem:[%s1106 + $0x30] sm:$0xf] %vm359, %v1417
  %1435 = vst.msk [vmem:[%s1106 + $0x38] sm:$0xf] %vm359, %v1419
  %s1436 = scalar_lea.vmem %s0, 368
  %v1437 = vld [vmem:[%s1436] sm:$0xf]
  %v1438 = vld [vmem:[%s1436 + $0x8] sm:$0xf]
  %v1439 = vld [vmem:[%s1436 + $0x10] sm:$0xf]
  %v1440 = vld [vmem:[%s1436 + $0x18] sm:$0xf]
  %v1441 = vld [vmem:[%s1436 + $0x20] sm:$0xf]
  %v1442 = vld [vmem:[%s1436 + $0x28] sm:$0xf]
  %v1443 = vld [vmem:[%s1436 + $0x30] sm:$0xf]
  %v1444 = vld [vmem:[%s1436 + $0x38] sm:$0xf]
  %1453 = vrot.lane.b32.xlu0 %v1437, 48
  %v1454 = vpop.permute.xlu0 %1453
  %1455 = vrot.lane.b32.xlu0 %v1438, 48
  %v1456 = vpop.permute.xlu0 %1455
  %1457 = vrot.lane.b32.xlu0 %v1439, 48
  %v1458 = vpop.permute.xlu0 %1457
  %1459 = vrot.lane.b32.xlu0 %v1440, 48
  %v1460 = vpop.permute.xlu0 %1459
  %1461 = vrot.lane.b32.xlu0 %v1441, 48
  %v1462 = vpop.permute.xlu0 %1461
  %1463 = vrot.lane.b32.xlu0 %v1442, 48
  %v1464 = vpop.permute.xlu0 %1463
  %1465 = vrot.lane.b32.xlu0 %v1443, 48
  %v1466 = vpop.permute.xlu0 %1465
  %1467 = vrot.lane.b32.xlu0 %v1444, 48
  %v1468 = vpop.permute.xlu0 %1467
  %1477 = vst.msk [vmem:[%s1106] sm:$0xf] %vm409, %v1454
  %1478 = vst.msk [vmem:[%s1106 + $0x8] sm:$0xf] %vm409, %v1456
  %1479 = vst.msk [vmem:[%s1106 + $0x10] sm:$0xf] %vm409, %v1458
  %1480 = vst.msk [vmem:[%s1106 + $0x18] sm:$0xf] %vm409, %v1460
  %1481 = vst.msk [vmem:[%s1106 + $0x20] sm:$0xf] %vm409, %v1462
  %1482 = vst.msk [vmem:[%s1106 + $0x28] sm:$0xf] %vm409, %v1464
  %1483 = vst.msk [vmem:[%s1106 + $0x30] sm:$0xf] %vm409, %v1466
  %1484 = vst.msk [vmem:[%s1106 + $0x38] sm:$0xf] %vm409, %v1468
  %s1485 = scalar_lea.vmem %s0, 296
  %v1486 = vld [vmem:[%s1485] sm:$0xf]
  %v1487 = vld [vmem:[%s1485 + $0x4] sm:$0x1]
  %v1488 = vld [vmem:[%s1485 + $0x8] sm:$0xf]
  %v1489 = vld [vmem:[%s1485 + $0xc] sm:$0x1]
  %v1490 = vld [vmem:[%s1485 + $0x10] sm:$0xf]
  %v1491 = vld [vmem:[%s1485 + $0x14] sm:$0x1]
  %v1492 = vld [vmem:[%s1485 + $0x18] sm:$0xf]
  %v1493 = vld [vmem:[%s1485 + $0x1c] sm:$0x1]
  %v1494 = vld [vmem:[%s1485 + $0x20] sm:$0xf]
  %v1495 = vld [vmem:[%s1485 + $0x24] sm:$0x1]
  %v1496 = vld [vmem:[%s1485 + $0x28] sm:$0xf]
  %v1497 = vld [vmem:[%s1485 + $0x2c] sm:$0x1]
  %v1498 = vld [vmem:[%s1485 + $0x30] sm:$0xf]
  %v1499 = vld [vmem:[%s1485 + $0x34] sm:$0x1]
  %v1500 = vld [vmem:[%s1485 + $0x38] sm:$0xf]
  %v1501 = vld [vmem:[%s1485 + $0x3c] sm:$0x1]
  %v1503 = vshrl.u32 %v1486, 16
  %v1505 = vrot.slane %v1503, 4
  %v1506 = vshll.u32 %v1486, 16
  %v1508 = vrot.slane %v1506, 5
  %v1509 = vor.u32 %v1505, %v1508
  %v1510 = vrot.slane %v1509, 4
  %v1512 = vshll.u32 %v1487, 16
  %v1514 = vrot.slane %v1512, 5
  %v1515 = vsel %vm61, %v1510, %v1514
  %v1517 = vshrl.u32 %v1488, 16
  %v1519 = vrot.slane %v1517, 4
  %v1520 = vshll.u32 %v1488, 16
  %v1522 = vrot.slane %v1520, 5
  %v1523 = vor.u32 %v1519, %v1522
  %v1524 = vrot.slane %v1523, 4
  %v1526 = vshll.u32 %v1489, 16
  %v1528 = vrot.slane %v1526, 5
  %v1529 = vsel %vm61, %v1524, %v1528
  %v1531 = vshrl.u32 %v1490, 16
  %v1533 = vrot.slane %v1531, 4
  %v1534 = vshll.u32 %v1490, 16
  %v1536 = vrot.slane %v1534, 5
  %v1537 = vor.u32 %v1533, %v1536
  %v1538 = vrot.slane %v1537, 4
  %v1540 = vshll.u32 %v1491, 16
  %v1542 = vrot.slane %v1540, 5
  %v1543 = vsel %vm61, %v1538, %v1542
  %v1545 = vshrl.u32 %v1492, 16
  %v1547 = vrot.slane %v1545, 4
  %v1548 = vshll.u32 %v1492, 16
  %v1550 = vrot.slane %v1548, 5
  %v1551 = vor.u32 %v1547, %v1550
  %v1552 = vrot.slane %v1551, 4
  %v1554 = vshll.u32 %v1493, 16
  %v1556 = vrot.slane %v1554, 5
  %v1557 = vsel %vm61, %v1552, %v1556
  %v1559 = vshrl.u32 %v1494, 16
  %v1561 = vrot.slane %v1559, 4
  %v1562 = vshll.u32 %v1494, 16
  %v1564 = vrot.slane %v1562, 5
  %v1565 = vor.u32 %v1561, %v1564
  %v1566 = vrot.slane %v1565, 4
  %v1568 = vshll.u32 %v1495, 16
  %v1570 = vrot.slane %v1568, 5
  %v1571 = vsel %vm61, %v1566, %v1570
  %v1573 = vshrl.u32 %v1496, 16
  %v1575 = vrot.slane %v1573, 4
  %v1576 = vshll.u32 %v1496, 16
  %v1578 = vrot.slane %v1576, 5
  %v1579 = vor.u32 %v1575, %v1578
  %v1580 = vrot.slane %v1579, 4
  %v1582 = vshll.u32 %v1497, 16
  %v1584 = vrot.slane %v1582, 5
  %v1585 = vsel %vm61, %v1580, %v1584
  %v1587 = vshrl.u32 %v1498, 16
  %v1589 = vrot.slane %v1587, 4
  %v1590 = vshll.u32 %v1498, 16
  %v1592 = vrot.slane %v1590, 5
  %v1593 = vor.u32 %v1589, %v1592
  %v1594 = vrot.slane %v1593, 4
  %v1596 = vshll.u32 %v1499, 16
  %v1598 = vrot.slane %v1596, 5
  %v1599 = vsel %vm61, %v1594, %v1598
  %v1601 = vshrl.u32 %v1500, 16
  %v1603 = vrot.slane %v1601, 4
  %v1604 = vshll.u32 %v1500, 16
  %v1606 = vrot.slane %v1604, 5
  %v1607 = vor.u32 %v1603, %v1606
  %v1608 = vrot.slane %v1607, 4
  %v1610 = vshll.u32 %v1501, 16
  %v1612 = vrot.slane %v1610, 5
  %v1613 = vsel %vm61, %v1608, %v1612
  %1614 = vrot.lane.b32.xlu0 %v1515, 64
  %v1615 = vpop.permute.xlu0 %1614
  %1616 = vrot.lane.b32.xlu0 %v1529, 64
  %v1617 = vpop.permute.xlu0 %1616
  %1618 = vrot.lane.b32.xlu0 %v1543, 64
  %v1619 = vpop.permute.xlu0 %1618
  %1620 = vrot.lane.b32.xlu0 %v1557, 64
  %v1621 = vpop.permute.xlu0 %1620
  %1622 = vrot.lane.b32.xlu0 %v1571, 64
  %v1623 = vpop.permute.xlu0 %1622
  %1624 = vrot.lane.b32.xlu0 %v1585, 64
  %v1625 = vpop.permute.xlu0 %1624
  %1626 = vrot.lane.b32.xlu0 %v1599, 64
  %v1627 = vpop.permute.xlu0 %1626
  %1628 = vrot.lane.b32.xlu0 %v1613, 64
  %v1629 = vpop.permute.xlu0 %1628
  %1638 = vst.msk [vmem:[%s1106] sm:$0xf] %vm571, %v1615
  %1639 = vst.msk [vmem:[%s1106 + $0x8] sm:$0xf] %vm571, %v1617
  %1640 = vst.msk [vmem:[%s1106 + $0x10] sm:$0xf] %vm571, %v1619
  %1641 = vst.msk [vmem:[%s1106 + $0x18] sm:$0xf] %vm571, %v1621
  %1642 = vst.msk [vmem:[%s1106 + $0x20] sm:$0xf] %vm571, %v1623
  %1643 = vst.msk [vmem:[%s1106 + $0x28] sm:$0xf] %vm571, %v1625
  %1644 = vst.msk [vmem:[%s1106 + $0x30] sm:$0xf] %vm571, %v1627
  %1645 = vst.msk [vmem:[%s1106 + $0x38] sm:$0xf] %vm571, %v1629
  %v1646 = vld [vmem:[%s1436] sm:$0xf]
  %v1647 = vld [vmem:[%s1436 + $0x4] sm:$0x1]
  %v1648 = vld [vmem:[%s1436 + $0x8] sm:$0xf]
  %v1649 = vld [vmem:[%s1436 + $0xc] sm:$0x1]
  %v1650 = vld [vmem:[%s1436 + $0x10] sm:$0xf]
  %v1651 = vld [vmem:[%s1436 + $0x14] sm:$0x1]
  %v1652 = vld [vmem:[%s1436 + $0x18] sm:$0xf]
  %v1653 = vld [vmem:[%s1436 + $0x1c] sm:$0x1]
  %v1654 = vld [vmem:[%s1436 + $0x20] sm:$0xf]
  %v1655 = vld [vmem:[%s1436 + $0x24] sm:$0x1]
  %v1656 = vld [vmem:[%s1436 + $0x28] sm:$0xf]
  %v1657 = vld [vmem:[%s1436 + $0x2c] sm:$0x1]
  %v1658 = vld [vmem:[%s1436 + $0x30] sm:$0xf]
  %v1659 = vld [vmem:[%s1436 + $0x34] sm:$0x1]
  %v1660 = vld [vmem:[%s1436 + $0x38] sm:$0xf]
  %v1661 = vld [vmem:[%s1436 + $0x3c] sm:$0x1]
  %v1663 = vshrl.u32 %v1646, 16
  %v1665 = vrot.slane %v1663, 4
  %v1666 = vshll.u32 %v1646, 16
  %v1668 = vrot.slane %v1666, 5
  %v1669 = vor.u32 %v1665, %v1668
  %v1670 = vrot.slane %v1669, 4
  %v1672 = vshll.u32 %v1647, 16
  %v1674 = vrot.slane %v1672, 5
  %v1675 = vsel %vm61, %v1670, %v1674
  %v1677 = vshrl.u32 %v1648, 16
  %v1679 = vrot.slane %v1677, 4
  %v1680 = vshll.u32 %v1648, 16
  %v1682 = vrot.slane %v1680, 5
  %v1683 = vor.u32 %v1679, %v1682
  %v1684 = vrot.slane %v1683, 4
  %v1686 = vshll.u32 %v1649, 16
  %v1688 = vrot.slane %v1686, 5
  %v1689 = vsel %vm61, %v1684, %v1688
  %v1691 = vshrl.u32 %v1650, 16
  %v1693 = vrot.slane %v1691, 4
  %v1694 = vshll.u32 %v1650, 16
  %v1696 = vrot.slane %v1694, 5
  %v1697 = vor.u32 %v1693, %v1696
  %v1698 = vrot.slane %v1697, 4
  %v1700 = vshll.u32 %v1651, 16
  %v1702 = vrot.slane %v1700, 5
  %v1703 = vsel %vm61, %v1698, %v1702
  %v1705 = vshrl.u32 %v1652, 16
  %v1707 = vrot.slane %v1705, 4
  %v1708 = vshll.u32 %v1652, 16
  %v1710 = vrot.slane %v1708, 5
  %v1711 = vor.u32 %v1707, %v1710
  %v1712 = vrot.slane %v1711, 4
  %v1714 = vshll.u32 %v1653, 16
  %v1716 = vrot.slane %v1714, 5
  %v1717 = vsel %vm61, %v1712, %v1716
  %v1719 = vshrl.u32 %v1654, 16
  %v1721 = vrot.slane %v1719, 4
  %v1722 = vshll.u32 %v1654, 16
  %v1724 = vrot.slane %v1722, 5
  %v1725 = vor.u32 %v1721, %v1724
  %v1726 = vrot.slane %v1725, 4
  %v1728 = vshll.u32 %v1655, 16
  %v1730 = vrot.slane %v1728, 5
  %v1731 = vsel %vm61, %v1726, %v1730
  %v1733 = vshrl.u32 %v1656, 16
  %v1735 = vrot.slane %v1733, 4
  %v1736 = vshll.u32 %v1656, 16
  %v1738 = vrot.slane %v1736, 5
  %v1739 = vor.u32 %v1735, %v1738
  %v1740 = vrot.slane %v1739, 4
  %v1742 = vshll.u32 %v1657, 16
  %v1744 = vrot.slane %v1742, 5
  %v1745 = vsel %vm61, %v1740, %v1744
  %v1747 = vshrl.u32 %v1658, 16
  %v1749 = vrot.slane %v1747, 4
  %v1750 = vshll.u32 %v1658, 16
  %v1752 = vrot.slane %v1750, 5
  %v1753 = vor.u32 %v1749, %v1752
  %v1754 = vrot.slane %v1753, 4
  %v1756 = vshll.u32 %v1659, 16
  %v1758 = vrot.slane %v1756, 5
  %v1759 = vsel %vm61, %v1754, %v1758
  %v1761 = vshrl.u32 %v1660, 16
  %v1763 = vrot.slane %v1761, 4
  %v1764 = vshll.u32 %v1660, 16
  %v1766 = vrot.slane %v1764, 5
  %v1767 = vor.u32 %v1763, %v1766
  %v1768 = vrot.slane %v1767, 4
  %v1770 = vshll.u32 %v1661, 16
  %v1772 = vrot.slane %v1770, 5
  %v1773 = vsel %vm61, %v1768, %v1772
  %1774 = vrot.lane.b32.xlu0 %v1675, 80
  %v1775 = vpop.permute.xlu0 %1774
  %1776 = vrot.lane.b32.xlu0 %v1689, 80
  %v1777 = vpop.permute.xlu0 %1776
  %1778 = vrot.lane.b32.xlu0 %v1703, 80
  %v1779 = vpop.permute.xlu0 %1778
  %1780 = vrot.lane.b32.xlu0 %v1717, 80
  %v1781 = vpop.permute.xlu0 %1780
  %1782 = vrot.lane.b32.xlu0 %v1731, 80
  %v1783 = vpop.permute.xlu0 %1782
  %1784 = vrot.lane.b32.xlu0 %v1745, 80
  %v1785 = vpop.permute.xlu0 %1784
  %1786 = vrot.lane.b32.xlu0 %v1759, 80
  %v1787 = vpop.permute.xlu0 %1786
  %1788 = vrot.lane.b32.xlu0 %v1773, 80
  %v1789 = vpop.permute.xlu0 %1788
  %1798 = vst.msk [vmem:[%s1106] sm:$0xf] %vm732, %v1775
  %1799 = vst.msk [vmem:[%s1106 + $0x8] sm:$0xf] %vm732, %v1777
  %1800 = vst.msk [vmem:[%s1106 + $0x10] sm:$0xf] %vm732, %v1779
  %1801 = vst.msk [vmem:[%s1106 + $0x18] sm:$0xf] %vm732, %v1781
  %1802 = vst.msk [vmem:[%s1106 + $0x20] sm:$0xf] %vm732, %v1783
  %1803 = vst.msk [vmem:[%s1106 + $0x28] sm:$0xf] %vm732, %v1785
  %1804 = vst.msk [vmem:[%s1106 + $0x30] sm:$0xf] %vm732, %v1787
  %1805 = vst.msk [vmem:[%s1106 + $0x38] sm:$0xf] %vm732, %v1789
  %s1806 = scalar_lea.vmem %s0, 512
  %v1807 = vld [vmem:[%s1806] sm:$0xf]
  %v1808 = vld [vmem:[%s1806 + $0x8] sm:$0xf]
  %v1809 = vld [vmem:[%s1806 + $0x10] sm:$0xf]
  %v1810 = vld [vmem:[%s1806 + $0x18] sm:$0xf]
  %v1811 = vld [vmem:[%s1806 + $0x20] sm:$0xf]
  %v1812 = vld [vmem:[%s1806 + $0x28] sm:$0xf]
  %v1813 = vld [vmem:[%s1806 + $0x30] sm:$0xf]
  %v1814 = vld [vmem:[%s1806 + $0x38] sm:$0xf]
  %1823 = vrot.lane.b32.xlu0 %v1807, 96
  %v1824 = vpop.permute.xlu0 %1823
  %1825 = vrot.lane.b32.xlu0 %v1808, 96
  %v1826 = vpop.permute.xlu0 %1825
  %1827 = vrot.lane.b32.xlu0 %v1809, 96
  %v1828 = vpop.permute.xlu0 %1827
  %1829 = vrot.lane.b32.xlu0 %v1810, 96
  %v1830 = vpop.permute.xlu0 %1829
  %1831 = vrot.lane.b32.xlu0 %v1811, 96
  %v1832 = vpop.permute.xlu0 %1831
  %1833 = vrot.lane.b32.xlu0 %v1812, 96
  %v1834 = vpop.permute.xlu0 %1833
  %1835 = vrot.lane.b32.xlu0 %v1813, 96
  %v1836 = vpop.permute.xlu0 %1835
  %1837 = vrot.lane.b32.xlu0 %v1814, 96
  %v1838 = vpop.permute.xlu0 %1837
  %1847 = vst.msk [vmem:[%s1106] sm:$0xf] %vm782, %v1824
  %1848 = vst.msk [vmem:[%s1106 + $0x8] sm:$0xf] %vm782, %v1826
  %1849 = vst.msk [vmem:[%s1106 + $0x10] sm:$0xf] %vm782, %v1828
  %1850 = vst.msk [vmem:[%s1106 + $0x18] sm:$0xf] %vm782, %v1830
  %1851 = vst.msk [vmem:[%s1106 + $0x20] sm:$0xf] %vm782, %v1832
  %1852 = vst.msk [vmem:[%s1106 + $0x28] sm:$0xf] %vm782, %v1834
  %1853 = vst.msk [vmem:[%s1106 + $0x30] sm:$0xf] %vm782, %v1836
  %1854 = vst.msk [vmem:[%s1106 + $0x38] sm:$0xf] %vm782, %v1838
  %s1855 = scalar_lea.vmem %s0, 440
  %v1856 = vld [vmem:[%s1855] sm:$0xf]
  %v1857 = vld [vmem:[%s1855 + $0x4] sm:$0x1]
  %v1858 = vld [vmem:[%s1855 + $0x8] sm:$0xf]
  %v1859 = vld [vmem:[%s1855 + $0xc] sm:$0x1]
  %v1860 = vld [vmem:[%s1855 + $0x10] sm:$0xf]
  %v1861 = vld [vmem:[%s1855 + $0x14] sm:$0x1]
  %v1862 = vld [vmem:[%s1855 + $0x18] sm:$0xf]
  %v1863 = vld [vmem:[%s1855 + $0x1c] sm:$0x1]
  %v1864 = vld [vmem:[%s1855 + $0x20] sm:$0xf]
  %v1865 = vld [vmem:[%s1855 + $0x24] sm:$0x1]
  %v1866 = vld [vmem:[%s1855 + $0x28] sm:$0xf]
  %v1867 = vld [vmem:[%s1855 + $0x2c] sm:$0x1]
  %v1868 = vld [vmem:[%s1855 + $0x30] sm:$0xf]
  %v1869 = vld [vmem:[%s1855 + $0x34] sm:$0x1]
  %v1870 = vld [vmem:[%s1855 + $0x38] sm:$0xf]
  %v1871 = vld [vmem:[%s1855 + $0x3c] sm:$0x1]
  %v1873 = vshrl.u32 %v1856, 16
  %v1875 = vrot.slane %v1873, 4
  %v1876 = vshll.u32 %v1856, 16
  %v1878 = vrot.slane %v1876, 5
  %v1879 = vor.u32 %v1875, %v1878
  %v1880 = vrot.slane %v1879, 4
  %v1882 = vshll.u32 %v1857, 16
  %v1884 = vrot.slane %v1882, 5
  %v1885 = vsel %vm61, %v1880, %v1884
  %v1887 = vshrl.u32 %v1858, 16
  %v1889 = vrot.slane %v1887, 4
  %v1890 = vshll.u32 %v1858, 16
  %v1892 = vrot.slane %v1890, 5
  %v1893 = vor.u32 %v1889, %v1892
  %v1894 = vrot.slane %v1893, 4
  %v1896 = vshll.u32 %v1859, 16
  %v1898 = vrot.slane %v1896, 5
  %v1899 = vsel %vm61, %v1894, %v1898
  %v1901 = vshrl.u32 %v1860, 16
  %v1903 = vrot.slane %v1901, 4
  %v1904 = vshll.u32 %v1860, 16
  %v1906 = vrot.slane %v1904, 5
  %v1907 = vor.u32 %v1903, %v1906
  %v1908 = vrot.slane %v1907, 4
  %v1910 = vshll.u32 %v1861, 16
  %v1912 = vrot.slane %v1910, 5
  %v1913 = vsel %vm61, %v1908, %v1912
  %v1915 = vshrl.u32 %v1862, 16
  %v1917 = vrot.slane %v1915, 4
  %v1918 = vshll.u32 %v1862, 16
  %v1920 = vrot.slane %v1918, 5
  %v1921 = vor.u32 %v1917, %v1920
  %v1922 = vrot.slane %v1921, 4
  %v1924 = vshll.u32 %v1863, 16
  %v1926 = vrot.slane %v1924, 5
  %v1927 = vsel %vm61, %v1922, %v1926
  %v1929 = vshrl.u32 %v1864, 16
  %v1931 = vrot.slane %v1929, 4
  %v1932 = vshll.u32 %v1864, 16
  %v1934 = vrot.slane %v1932, 5
  %v1935 = vor.u32 %v1931, %v1934
  %v1936 = vrot.slane %v1935, 4
  %v1938 = vshll.u32 %v1865, 16
  %v1940 = vrot.slane %v1938, 5
  %v1941 = vsel %vm61, %v1936, %v1940
  %v1943 = vshrl.u32 %v1866, 16
  %v1945 = vrot.slane %v1943, 4
  %v1946 = vshll.u32 %v1866, 16
  %v1948 = vrot.slane %v1946, 5
  %v1949 = vor.u32 %v1945, %v1948
  %v1950 = vrot.slane %v1949, 4
  %v1952 = vshll.u32 %v1867, 16
  %v1954 = vrot.slane %v1952, 5
  %v1955 = vsel %vm61, %v1950, %v1954
  %v1957 = vshrl.u32 %v1868, 16
  %v1959 = vrot.slane %v1957, 4
  %v1960 = vshll.u32 %v1868, 16
  %v1962 = vrot.slane %v1960, 5
  %v1963 = vor.u32 %v1959, %v1962
  %v1964 = vrot.slane %v1963, 4
  %v1966 = vshll.u32 %v1869, 16
  %v1968 = vrot.slane %v1966, 5
  %v1969 = vsel %vm61, %v1964, %v1968
  %v1971 = vshrl.u32 %v1870, 16
  %v1973 = vrot.slane %v1971, 4
  %v1974 = vshll.u32 %v1870, 16
  %v1976 = vrot.slane %v1974, 5
  %v1977 = vor.u32 %v1973, %v1976
  %v1978 = vrot.slane %v1977, 4
  %v1980 = vshll.u32 %v1871, 16
  %v1982 = vrot.slane %v1980, 5
  %v1983 = vsel %vm61, %v1978, %v1982
  %1984 = vrot.lane.b32.xlu0 %v1885, 112
  %v1985 = vpop.permute.xlu0 %1984
  %1986 = vrot.lane.b32.xlu0 %v1899, 112
  %v1987 = vpop.permute.xlu0 %1986
  %1988 = vrot.lane.b32.xlu0 %v1913, 112
  %v1989 = vpop.permute.xlu0 %1988
  %1990 = vrot.lane.b32.xlu0 %v1927, 112
  %v1991 = vpop.permute.xlu0 %1990
  %1992 = vrot.lane.b32.xlu0 %v1941, 112
  %v1993 = vpop.permute.xlu0 %1992
  %1994 = vrot.lane.b32.xlu0 %v1955, 112
  %v1995 = vpop.permute.xlu0 %1994
  %1996 = vrot.lane.b32.xlu0 %v1969, 112
  %v1997 = vpop.permute.xlu0 %1996
  %1998 = vrot.lane.b32.xlu0 %v1983, 112
  %v1999 = vpop.permute.xlu0 %1998
  %2008 = vst.msk [vmem:[%s1106] sm:$0xf] %vm944, %v1985
  %2009 = vst.msk [vmem:[%s1106 + $0x8] sm:$0xf] %vm944, %v1987
  %2010 = vst.msk [vmem:[%s1106 + $0x10] sm:$0xf] %vm944, %v1989
  %2011 = vst.msk [vmem:[%s1106 + $0x18] sm:$0xf] %vm944, %v1991
  %2012 = vst.msk [vmem:[%s1106 + $0x20] sm:$0xf] %vm944, %v1993
  %2013 = vst.msk [vmem:[%s1106 + $0x28] sm:$0xf] %vm944, %v1995
  %2014 = vst.msk [vmem:[%s1106 + $0x30] sm:$0xf] %vm944, %v1997
  %2015 = vst.msk [vmem:[%s1106 + $0x38] sm:$0xf] %vm944, %v1999
  %v2016 = vld [vmem:[%s1806] sm:$0xf]
  %v2017 = vld [vmem:[%s1806 + $0x4] sm:$0x1]
  %v2018 = vld [vmem:[%s1806 + $0x8] sm:$0xf]
  %v2019 = vld [vmem:[%s1806 + $0xc] sm:$0x1]
  %v2020 = vld [vmem:[%s1806 + $0x10] sm:$0xf]
  %v2021 = vld [vmem:[%s1806 + $0x14] sm:$0x1]
  %v2022 = vld [vmem:[%s1806 + $0x18] sm:$0xf]
  %v2023 = vld [vmem:[%s1806 + $0x1c] sm:$0x1]
  %v2024 = vld [vmem:[%s1806 + $0x20] sm:$0xf]
  %v2025 = vld [vmem:[%s1806 + $0x24] sm:$0x1]
  %v2026 = vld [vmem:[%s1806 + $0x28] sm:$0xf]
  %v2027 = vld [vmem:[%s1806 + $0x2c] sm:$0x1]
  %v2028 = vld [vmem:[%s1806 + $0x30] sm:$0xf]
  %v2029 = vld [vmem:[%s1806 + $0x34] sm:$0x1]
  %v2030 = vld [vmem:[%s1806 + $0x38] sm:$0xf]
  %v2031 = vld [vmem:[%s1806 + $0x3c] sm:$0x1]
  %v2033 = vshrl.u32 %v2016, 16
  %v2035 = vrot.slane %v2033, 4
  %v2036 = vshll.u32 %v2016, 16
  %v2038 = vrot.slane %v2036, 5
  %v2039 = vor.u32 %v2035, %v2038
  %v2040 = vrot.slane %v2039, 4
  %v2042 = vshll.u32 %v2017, 16
  %v2044 = vrot.slane %v2042, 5
  %v2045 = vsel %vm61, %v2040, %v2044
  %v2047 = vshrl.u32 %v2018, 16
  %v2049 = vrot.slane %v2047, 4
  %v2050 = vshll.u32 %v2018, 16
  %v2052 = vrot.slane %v2050, 5
  %v2053 = vor.u32 %v2049, %v2052
  %v2054 = vrot.slane %v2053, 4
  %v2056 = vshll.u32 %v2019, 16
  %v2058 = vrot.slane %v2056, 5
  %v2059 = vsel %vm61, %v2054, %v2058
  %v2061 = vshrl.u32 %v2020, 16
  %v2063 = vrot.slane %v2061, 4
  %v2064 = vshll.u32 %v2020, 16
  %v2066 = vrot.slane %v2064, 5
  %v2067 = vor.u32 %v2063, %v2066
  %v2068 = vrot.slane %v2067, 4
  %v2070 = vshll.u32 %v2021, 16
  %v2072 = vrot.slane %v2070, 5
  %v2073 = vsel %vm61, %v2068, %v2072
  %v2075 = vshrl.u32 %v2022, 16
  %v2077 = vrot.slane %v2075, 4
  %v2078 = vshll.u32 %v2022, 16
  %v2080 = vrot.slane %v2078, 5
  %v2081 = vor.u32 %v2077, %v2080
  %v2082 = vrot.slane %v2081, 4
  %v2084 = vshll.u32 %v2023, 16
  %v2086 = vrot.slane %v2084, 5
  %v2087 = vsel %vm61, %v2082, %v2086
  %v2089 = vshrl.u32 %v2024, 16
  %v2091 = vrot.slane %v2089, 4
  %v2092 = vshll.u32 %v2024, 16
  %v2094 = vrot.slane %v2092, 5
  %v2095 = vor.u32 %v2091, %v2094
  %v2096 = vrot.slane %v2095, 4
  %v2098 = vshll.u32 %v2025, 16
  %v2100 = vrot.slane %v2098, 5
  %v2101 = vsel %vm61, %v2096, %v2100
  %v2103 = vshrl.u32 %v2026, 16
  %v2105 = vrot.slane %v2103, 4
  %v2106 = vshll.u32 %v2026, 16
  %v2108 = vrot.slane %v2106, 5
  %v2109 = vor.u32 %v2105, %v2108
  %v2110 = vrot.slane %v2109, 4
  %v2112 = vshll.u32 %v2027, 16
  %v2114 = vrot.slane %v2112, 5
  %v2115 = vsel %vm61, %v2110, %v2114
  %v2117 = vshrl.u32 %v2028, 16
  %v2119 = vrot.slane %v2117, 4
  %v2120 = vshll.u32 %v2028, 16
  %v2122 = vrot.slane %v2120, 5
  %v2123 = vor.u32 %v2119, %v2122
  %v2124 = vrot.slane %v2123, 4
  %v2126 = vshll.u32 %v2029, 16
  %v2128 = vrot.slane %v2126, 5
  %v2129 = vsel %vm61, %v2124, %v2128
  %v2131 = vshrl.u32 %v2030, 16
  %v2133 = vrot.slane %v2131, 4
  %v2134 = vshll.u32 %v2030, 16
  %v2136 = vrot.slane %v2134, 5
  %v2137 = vor.u32 %v2133, %v2136
  %v2138 = vrot.slane %v2137, 4
  %v2140 = vshll.u32 %v2031, 16
  %v2142 = vrot.slane %v2140, 5
  %v2143 = vsel %vm61, %v2138, %v2142
  %2152 = vst.msk [vmem:[%s1106 + $0x4] sm:$0xf] %vm33, %v2045
  %2153 = vst.msk [vmem:[%s1106 + $0xc] sm:$0xf] %vm33, %v2059
  %2154 = vst.msk [vmem:[%s1106 + $0x14] sm:$0xf] %vm33, %v2073
  %2155 = vst.msk [vmem:[%s1106 + $0x1c] sm:$0xf] %vm33, %v2087
  %2156 = vst.msk [vmem:[%s1106 + $0x24] sm:$0xf] %vm33, %v2101
  %2157 = vst.msk [vmem:[%s1106 + $0x2c] sm:$0xf] %vm33, %v2115
  %2158 = vst.msk [vmem:[%s1106 + $0x34] sm:$0xf] %vm33, %v2129
  %2159 = vst.msk [vmem:[%s1106 + $0x3c] sm:$0xf] %vm33, %v2143
  %v2160 = vld [vmem:[#allocation2] sm:$0xff]
  %v2161 = vld [vmem:[#allocation2 + $0x8] sm:$0xff]
  %v2162 = vld [vmem:[#allocation2 + $0x10] sm:$0xff]
  %v2163 = vld [vmem:[#allocation2 + $0x18] sm:$0xff]
  %v2164 = vld [vmem:[#allocation2 + $0x20] sm:$0xff]
  %v2165 = vld [vmem:[#allocation2 + $0x28] sm:$0xff]
  %v2166 = vld [vmem:[#allocation2 + $0x30] sm:$0xff]
  %v2167 = vld [vmem:[#allocation2 + $0x38] sm:$0xff]
  %v2168 = vld [vmem:[#allocation2 + $0x40] sm:$0xff]
  %v2169 = vld [vmem:[#allocation2 + $0x48] sm:$0xff]
  %v2170 = vld [vmem:[#allocation2 + $0x50] sm:$0xff]
  %v2171 = vld [vmem:[#allocation2 + $0x58] sm:$0xff]
  %v2172 = vld [vmem:[#allocation2 + $0x60] sm:$0xff]
  %v2173 = vld [vmem:[#allocation2 + $0x68] sm:$0xff]
  %v2174 = vld [vmem:[#allocation2 + $0x70] sm:$0xff]
  %v2175 = vld [vmem:[#allocation2 + $0x78] sm:$0xff]
  %v2176 = vld [vmem:[%s1] sm:$0xf]
  %v2177 = vld [vmem:[%s1 + $0x4] sm:$0xf]
  %v2178 = vld [vmem:[%s1 + $0x8] sm:$0xf]
  %v2179 = vld [vmem:[%s1 + $0xc] sm:$0xf]
  %v2180 = vld [vmem:[%s1 + $0x10] sm:$0xf]
  %v2181 = vld [vmem:[%s1 + $0x14] sm:$0xf]
  %v2182 = vld [vmem:[%s1 + $0x18] sm:$0xf]
  %v2183 = vld [vmem:[%s1 + $0x1c] sm:$0xf]
  %v2184 = vld [vmem:[%s1 + $0x20] sm:$0xf]
  %v2185 = vld [vmem:[%s1 + $0x24] sm:$0xf]
  %v2186 = vld [vmem:[%s1 + $0x28] sm:$0xf]
  %v2187 = vld [vmem:[%s1 + $0x2c] sm:$0xf]
  %v2188 = vld [vmem:[%s1 + $0x30] sm:$0xf]
  %v2189 = vld [vmem:[%s1 + $0x34] sm:$0xf]
  %v2190 = vld [vmem:[%s1 + $0x38] sm:$0xf]
  %v2191 = vld [vmem:[%s1 + $0x3c] sm:$0xf]
  %v2192 = vld [vmem:[%s1 + $0x40] sm:$0xf]
  %v2193 = vld [vmem:[%s1 + $0x44] sm:$0xf]
  %v2210 = vunpack.c.l.b16 %v2160
  %v2211 = vunpack.c.h.b16 %v2160
  %v2212 = vunpack.c.l.b16 %v2161
  %v2213 = vunpack.c.h.b16 %v2161
  %v2214 = vunpack.c.l.b16 %v2162
  %v2215 = vunpack.c.h.b16 %v2162
  %v2216 = vunpack.c.l.b16 %v2163
  %v2217 = vunpack.c.h.b16 %v2163
  %v2218 = vunpack.c.l.b16 %v2164
  %v2219 = vunpack.c.h.b16 %v2164
  %v2220 = vunpack.c.l.b16 %v2165
  %v2221 = vunpack.c.h.b16 %v2165
  %v2222 = vunpack.c.l.b16 %v2166
  %v2223 = vunpack.c.h.b16 %v2166
  %v2224 = vunpack.c.l.b16 %v2167
  %v2225 = vunpack.c.h.b16 %v2167
  %v2226 = vunpack.c.l.b16 %v2168
  %v2227 = vunpack.c.h.b16 %v2168
  %v2228 = vunpack.c.l.b16 %v2169
  %v2229 = vunpack.c.h.b16 %v2169
  %v2230 = vunpack.c.l.b16 %v2170
  %v2231 = vunpack.c.h.b16 %v2170
  %v2232 = vunpack.c.l.b16 %v2171
  %v2233 = vunpack.c.h.b16 %v2171
  %v2234 = vunpack.c.l.b16 %v2172
  %v2235 = vunpack.c.h.b16 %v2172
  %v2236 = vunpack.c.l.b16 %v2173
  %v2237 = vunpack.c.h.b16 %v2173
  %v2238 = vunpack.c.l.b16 %v2174
  %v2239 = vunpack.c.h.b16 %v2174
  %v2240 = vunpack.c.l.b16 %v2175
  %v2241 = vunpack.c.h.b16 %v2175
  %v2242 = vpack.c.b16 %v2212, %v2210
  %v2243 = vpack.c.b16 %v2213, %v2211
  %v2244 = vpack.c.b16 %v2216, %v2214
  %v2245 = vpack.c.b16 %v2217, %v2215
  %v2246 = vpack.c.b16 %v2220, %v2218
  %v2247 = vpack.c.b16 %v2221, %v2219
  %v2248 = vpack.c.b16 %v2224, %v2222
  %v2249 = vpack.c.b16 %v2225, %v2223
  %v2250 = vpack.c.b16 %v2228, %v2226
  %v2251 = vpack.c.b16 %v2229, %v2227
  %v2252 = vpack.c.b16 %v2232, %v2230
  %v2253 = vpack.c.b16 %v2233, %v2231
  %v2254 = vpack.c.b16 %v2236, %v2234
  %v2255 = vpack.c.b16 %v2237, %v2235
  %v2256 = vpack.c.b16 %v2240, %v2238
  %v2257 = vpack.c.b16 %v2241, %v2239
  %v2284 = vunpack.c.l.b16 %v2176
  %v2285 = vunpack.c.l.b16 %v2177
  %v2286 = vunpack.c.l.b16 %v2178
  %v2287 = vunpack.c.l.b16 %v2179
  %v2288 = vunpack.c.l.b16 %v2180
  %v2289 = vunpack.c.l.b16 %v2181
  %v2290 = vunpack.c.l.b16 %v2182
  %v2291 = vunpack.c.l.b16 %v2183
  %v2292 = vunpack.c.l.b16 %v2184
  %v2293 = vunpack.c.l.b16 %v2185
  %v2294 = vunpack.c.l.b16 %v2186
  %v2295 = vunpack.c.l.b16 %v2187
  %v2296 = vunpack.c.l.b16 %v2188
  %v2297 = vunpack.c.l.b16 %v2189
  %v2298 = vunpack.c.l.b16 %v2190
  %v2299 = vunpack.c.l.b16 %v2191
  %v2300 = vunpack.c.l.b16 %v2192
  %v2301 = vunpack.c.l.b16 %v2193
  %v2302 = vpack.c.b16 %v2285, %v2284
  %v2303 = vpack.c.b16 %v2287, %v2286
  %v2304 = vpack.c.b16 %v2289, %v2288
  %v2305 = vpack.c.b16 %v2291, %v2290
  %v2306 = vpack.c.b16 %v2293, %v2292
  %v2307 = vpack.c.b16 %v2295, %v2294
  %v2308 = vpack.c.b16 %v2297, %v2296
  %v2309 = vpack.c.b16 %v2299, %v2298
  %v2310 = vpack.c.b16 %v2301, %v2300
  %vm2320 = vcmask 130048
  %v2322 = vsel %vm2320, %v2243, 0
  %v2325 = vsel %vm2320, %v2245, 0
  %v2328 = vsel %vm2320, %v2247, 0
  %v2331 = vsel %vm2320, %v2249, 0
  %v2334 = vsel %vm2320, %v2251, 0
  %v2337 = vsel %vm2320, %v2253, 0
  %v2340 = vsel %vm2320, %v2255, 0
  %v2343 = vsel %vm2320, %v2257, 0
  %2345 = vmatpush.bf16.msra.mxu0 %v2309
  %2346 = vmatpush.bf16.msra.mxu0 %v2308
  %2347 = vmatpush.bf16.msra.mxu0 %v2307
  %2348 = vmatpush.bf16.msra.mxu0 %v2306
  %2349 = vmatpush.bf16.msra.mxu0 %v2305
  %2350 = vmatpush.bf16.msra.mxu0 %v2304
  %2351 = vmatpush.bf16.msra.mxu0 %v2303
  %2352 = vmatpush.bf16.msra.mxu0 %v2302
  %2353 = vmatmul.bf16.gmra.mxu0 %v2242
  %v2354 = vpop.f32.mrf.mxu0
  %v2355 = vadd.f32 0.0, %v2354
  %v2356 = vpop.f32.mrf.mxu0
  %v2357 = vadd.f32 0.0, %v2356
  %2358 = vmatmul.bf16.gmra.mxu0 %v2244
  %v2359 = vpop.f32.mrf.mxu0
  %v2360 = vadd.f32 0.0, %v2359
  %v2361 = vpop.f32.mrf.mxu0
  %v2362 = vadd.f32 0.0, %v2361
  %2363 = vmatmul.bf16.gmra.mxu0 %v2246
  %v2364 = vpop.f32.mrf.mxu0
  %v2365 = vadd.f32 0.0, %v2364
  %v2366 = vpop.f32.mrf.mxu0
  %v2367 = vadd.f32 0.0, %v2366
  %2368 = vmatmul.bf16.gmra.mxu0 %v2248
  %v2369 = vpop.f32.mrf.mxu0
  %v2370 = vadd.f32 0.0, %v2369
  %v2371 = vpop.f32.mrf.mxu0
  %v2372 = vadd.f32 0.0, %v2371
  %2373 = vmatmul.bf16.gmra.mxu0 %v2250
  %v2374 = vpop.f32.mrf.mxu0
  %v2375 = vadd.f32 0.0, %v2374
  %v2376 = vpop.f32.mrf.mxu0
  %v2377 = vadd.f32 0.0, %v2376
  %2378 = vmatmul.bf16.gmra.mxu0 %v2252
  %v2379 = vpop.f32.mrf.mxu0
  %v2380 = vadd.f32 0.0, %v2379
  %v2381 = vpop.f32.mrf.mxu0
  %v2382 = vadd.f32 0.0, %v2381
  %2383 = vmatmul.bf16.gmra.mxu0 %v2254
  %v2384 = vpop.f32.mrf.mxu0
  %v2385 = vadd.f32 0.0, %v2384
  %v2386 = vpop.f32.mrf.mxu0
  %v2387 = vadd.f32 0.0, %v2386
  %2388 = vmatmul.bf16.gmra.mxu0 %v2256
  %v2389 = vpop.f32.mrf.mxu0
  %v2390 = vadd.f32 0.0, %v2389
  %v2391 = vpop.f32.mrf.mxu0
  %v2392 = vadd.f32 0.0, %v2391
  %2393 = vdwg.mxu0
  %2394 = vmatpush.bf16.msra.mxu0 0
  %2395 = vmatpush.bf16.msra.mxu0 0
  %2396 = vmatpush.bf16.msra.mxu0 0
  %2397 = vmatpush.bf16.msra.mxu0 0
  %2398 = vmatpush.bf16.msra.mxu0 0
  %2399 = vmatpush.bf16.msra.mxu0 0
  %2400 = vmatpush.bf16.msra.mxu0 0
  %2401 = vmatpush.bf16.msra.mxu0 %v2310
  %2402 = vmatmul.bf16.gmra.mxu0 %v2322
  %v2403 = vpop.f32.mrf.mxu0
  %v2404 = vadd.f32 %v2355, %v2403
  %v2405 = vpop.f32.mrf.mxu0
  %v2406 = vadd.f32 %v2357, %v2405
  %2407 = vmatmul.bf16.gmra.mxu0 %v2325
  %v2408 = vpop.f32.mrf.mxu0
  %v2409 = vadd.f32 %v2360, %v2408
  %v2410 = vpop.f32.mrf.mxu0
  %v2411 = vadd.f32 %v2362, %v2410
  %2412 = vmatmul.bf16.gmra.mxu0 %v2328
  %v2413 = vpop.f32.mrf.mxu0
  %v2414 = vadd.f32 %v2365, %v2413
  %v2415 = vpop.f32.mrf.mxu0
  %v2416 = vadd.f32 %v2367, %v2415
  %2417 = vmatmul.bf16.gmra.mxu0 %v2331
  %v2418 = vpop.f32.mrf.mxu0
  %v2419 = vadd.f32 %v2370, %v2418
  %v2420 = vpop.f32.mrf.mxu0
  %v2421 = vadd.f32 %v2372, %v2420
  %2422 = vmatmul.bf16.gmra.mxu0 %v2334
  %v2423 = vpop.f32.mrf.mxu0
  %v2424 = vadd.f32 %v2375, %v2423
  %v2425 = vpop.f32.mrf.mxu0
  %v2426 = vadd.f32 %v2377, %v2425
  %2427 = vmatmul.bf16.gmra.mxu0 %v2337
  %v2428 = vpop.f32.mrf.mxu0
  %v2429 = vadd.f32 %v2380, %v2428
  %v2430 = vpop.f32.mrf.mxu0
  %v2431 = vadd.f32 %v2382, %v2430
  %2432 = vmatmul.bf16.gmra.mxu0 %v2340
  %v2433 = vpop.f32.mrf.mxu0
  %v2434 = vadd.f32 %v2385, %v2433
  %v2435 = vpop.f32.mrf.mxu0
  %v2436 = vadd.f32 %v2387, %v2435
  %2437 = vmatmul.bf16.gmra.mxu0 %v2343
  %v2438 = vpop.f32.mrf.mxu0
  %v2439 = vadd.f32 %v2390, %v2438
  %v2440 = vpop.f32.mrf.mxu0
  %v2441 = vadd.f32 %v2392, %v2440
  %2442 = vdwg.mxu0
  %v2443 = vld [vmem:[%s4] sm:$0x1]
  %v2445 = vperm.slane %v2443, 0
  %v2447 = vmul.f32 %v2404, %v2445
  %v2448 = vmul.f32 %v2406, %v2445
  %v2449 = vmul.f32 %v2409, %v2445
  %v2450 = vmul.f32 %v2411, %v2445
  %v2451 = vmul.f32 %v2414, %v2445
  %v2452 = vmul.f32 %v2416, %v2445
  %v2453 = vmul.f32 %v2419, %v2445
  %v2454 = vmul.f32 %v2421, %v2445
  %v2455 = vmul.f32 %v2424, %v2445
  %v2456 = vmul.f32 %v2426, %v2445
  %v2457 = vmul.f32 %v2429, %v2445
  %v2458 = vmul.f32 %v2431, %v2445
  %v2459 = vmul.f32 %v2434, %v2445
  %v2460 = vmul.f32 %v2436, %v2445
  %v2461 = vmul.f32 %v2439, %v2445
  %v2462 = vmul.f32 %v2441, %v2445
  %v2463 = vld [vmem:[%s5] sm:$0x1]
  %v2465 = vperm.slane %v2463, 0
  %v2467 = vadd.f32 %v2447, %v2465
  %v2468 = vadd.f32 %v2448, %v2465
  %v2469 = vadd.f32 %v2449, %v2465
  %v2470 = vadd.f32 %v2450, %v2465
  %v2471 = vadd.f32 %v2451, %v2465
  %v2472 = vadd.f32 %v2452, %v2465
  %v2473 = vadd.f32 %v2453, %v2465
  %v2474 = vadd.f32 %v2454, %v2465
  %v2475 = vadd.f32 %v2455, %v2465
  %v2476 = vadd.f32 %v2456, %v2465
  %v2477 = vadd.f32 %v2457, %v2465
  %v2478 = vadd.f32 %v2458, %v2465
  %v2479 = vadd.f32 %v2459, %v2465
  %v2480 = vadd.f32 %v2460, %v2465
  %v2481 = vadd.f32 %v2461, %v2465
  %v2482 = vadd.f32 %v2462, %v2465
  %v2483 = vmax.f32 %v2467, 0.0
  %v2484 = vmax.f32 %v2468, 0.0
  %v2485 = vmax.f32 %v2469, 0.0
  %v2486 = vmax.f32 %v2470, 0.0
  %v2487 = vmax.f32 %v2471, 0.0
  %v2488 = vmax.f32 %v2472, 0.0
  %v2489 = vmax.f32 %v2473, 0.0
  %v2490 = vmax.f32 %v2474, 0.0
  %v2491 = vmax.f32 %v2475, 0.0
  %v2492 = vmax.f32 %v2476, 0.0
  %v2493 = vmax.f32 %v2477, 0.0
  %v2494 = vmax.f32 %v2478, 0.0
  %v2495 = vmax.f32 %v2479, 0.0
  %v2496 = vmax.f32 %v2480, 0.0
  %v2497 = vmax.f32 %v2481, 0.0
  %v2498 = vmax.f32 %v2482, 0.0
  %v2499 = vpack.c.bf16 %v2483, %v2483
  %v2500 = vpack.c.bf16 %v2484, %v2484
  %v2501 = vpack.c.bf16 %v2485, %v2485
  %v2502 = vpack.c.bf16 %v2486, %v2486
  %v2503 = vpack.c.bf16 %v2487, %v2487
  %v2504 = vpack.c.bf16 %v2488, %v2488
  %v2505 = vpack.c.bf16 %v2489, %v2489
  %v2506 = vpack.c.bf16 %v2490, %v2490
  %v2507 = vpack.c.bf16 %v2491, %v2491
  %v2508 = vpack.c.bf16 %v2492, %v2492
  %v2509 = vpack.c.bf16 %v2493, %v2493
  %v2510 = vpack.c.bf16 %v2494, %v2494
  %v2511 = vpack.c.bf16 %v2495, %v2495
  %v2512 = vpack.c.bf16 %v2496, %v2496
  %v2513 = vpack.c.bf16 %v2497, %v2497
  %v2514 = vpack.c.bf16 %v2498, %v2498
  %vm2515 = vcmask 253952
  %vm2516 = vsmask.f32 256
  %vm2517 = vmand %vm2515, %vm2516
  %v2518 = vld [vmem:[#allocation3] sm:$0x1]
  %v2519 = vsel %vm2517, 0, %v2518
  %2520 = vst [vmem:[#allocation3] sm:$0x1] %v2519
  %v2521 = vld [vmem:[#allocation3 + $0x8] sm:$0x1]
  %v2522 = vsel %vm2517, 0, %v2521
  %2523 = vst [vmem:[#allocation3 + $0x8] sm:$0x1] %v2522
  %v2524 = vld [vmem:[#allocation3 + $0x10] sm:$0x1]
  %v2525 = vsel %vm2517, 0, %v2524
  %2526 = vst [vmem:[#allocation3 + $0x10] sm:$0x1] %v2525
  %v2527 = vld [vmem:[#allocation3 + $0x18] sm:$0x1]
  %v2528 = vsel %vm2517, 0, %v2527
  %2529 = vst [vmem:[#allocation3 + $0x18] sm:$0x1] %v2528
  %v2530 = vld [vmem:[#allocation3 + $0x20] sm:$0x1]
  %v2531 = vsel %vm2517, 0, %v2530
  %2532 = vst [vmem:[#allocation3 + $0x20] sm:$0x1] %v2531
  %v2533 = vld [vmem:[#allocation3 + $0x28] sm:$0x1]
  %v2534 = vsel %vm2517, 0, %v2533
  %2535 = vst [vmem:[#allocation3 + $0x28] sm:$0x1] %v2534
  %v2536 = vld [vmem:[#allocation3 + $0x30] sm:$0x1]
  %v2537 = vsel %vm2517, 0, %v2536
  %2538 = vst [vmem:[#allocation3 + $0x30] sm:$0x1] %v2537
  %v2539 = vld [vmem:[#allocation3 + $0x38] sm:$0x1]
  %v2540 = vsel %vm2517, 0, %v2539
  %2541 = vst [vmem:[#allocation3 + $0x38] sm:$0x1] %v2540
  %v2542 = vld [vmem:[#allocation3 + $0x40] sm:$0x1]
  %v2543 = vsel %vm2517, 0, %v2542
  %2544 = vst [vmem:[#allocation3 + $0x40] sm:$0x1] %v2543
  %v2545 = vld [vmem:[#allocation3 + $0x48] sm:$0x1]
  %v2546 = vsel %vm2517, 0, %v2545
  %2547 = vst [vmem:[#allocation3 + $0x48] sm:$0x1] %v2546
  %v2548 = vld [vmem:[#allocation3 + $0x50] sm:$0x1]
  %v2549 = vsel %vm2517, 0, %v2548
  %2550 = vst [vmem:[#allocation3 + $0x50] sm:$0x1] %v2549
  %v2551 = vld [vmem:[#allocation3 + $0x58] sm:$0x1]
  %v2552 = vsel %vm2517, 0, %v2551
  %2553 = vst [vmem:[#allocation3 + $0x58] sm:$0x1] %v2552
  %v2554 = vld [vmem:[#allocation3 + $0x60] sm:$0x1]
  %v2555 = vsel %vm2517, 0, %v2554
  %2556 = vst [vmem:[#allocation3 + $0x60] sm:$0x1] %v2555
  %v2557 = vld [vmem:[#allocation3 + $0x68] sm:$0x1]
  %v2558 = vsel %vm2517, 0, %v2557
  %2559 = vst [vmem:[#allocation3 + $0x68] sm:$0x1] %v2558
  %v2560 = vld [vmem:[#allocation3 + $0x70] sm:$0x1]
  %v2561 = vsel %vm2517, 0, %v2560
  %2562 = vst [vmem:[#allocation3 + $0x70] sm:$0x1] %v2561
  %v2563 = vld [vmem:[#allocation3 + $0x78] sm:$0x1]
  %v2564 = vsel %vm2517, 0, %v2563
  %2565 = vst [vmem:[#allocation3 + $0x78] sm:$0x1] %v2564
  %v2566 = vld [vmem:[#allocation3 + $0x80] sm:$0x1]
  %v2567 = vsel %vm2517, 0, %v2566
  %2568 = vst [vmem:[#allocation3 + $0x80] sm:$0x1] %v2567
  %v2569 = vld [vmem:[#allocation3 + $0x88] sm:$0x1]
  %v2570 = vsel %vm2517, 0, %v2569
  %2571 = vst [vmem:[#allocation3 + $0x88] sm:$0x1] %v2570
  %v2572 = vld [vmem:[#allocation3 + $0x90] sm:$0x1]
  %v2573 = vsel %vm2517, 0, %v2572
  %2574 = vst [vmem:[#allocation3 + $0x90] sm:$0x1] %v2573
  %v2575 = vld [vmem:[#allocation3 + $0x98] sm:$0x1]
  %v2576 = vsel %vm2517, 0, %v2575
  %2577 = vst [vmem:[#allocation3 + $0x98] sm:$0x1] %v2576
  %vm2578 = vsmask.f32 7938
  %vm2579 = vmand %vm2515, %vm2578
  %v2580 = vld [vmem:[#allocation3 + $0x4] sm:$0x1]
  %v2581 = vsel %vm2579, 0, %v2580
  %2582 = vst [vmem:[#allocation3 + $0x4] sm:$0x1] %v2581
  %v2583 = vld [vmem:[#allocation3 + $0xc] sm:$0x1]
  %v2584 = vsel %vm2579, 0, %v2583
  %2585 = vst [vmem:[#allocation3 + $0xc] sm:$0x1] %v2584
  %v2586 = vld [vmem:[#allocation3 + $0x14] sm:$0x1]
  %v2587 = vsel %vm2579, 0, %v2586
  %2588 = vst [vmem:[#allocation3 + $0x14] sm:$0x1] %v2587
  %v2589 = vld [vmem:[#allocation3 + $0x1c] sm:$0x1]
  %v2590 = vsel %vm2579, 0, %v2589
  %2591 = vst [vmem:[#allocation3 + $0x1c] sm:$0x1] %v2590
  %v2592 = vld [vmem:[#allocation3 + $0x24] sm:$0x1]
  %v2593 = vsel %vm2579, 0, %v2592
  %2594 = vst [vmem:[#allocation3 + $0x24] sm:$0x1] %v2593
  %v2595 = vld [vmem:[#allocation3 + $0x2c] sm:$0x1]
  %v2596 = vsel %vm2579, 0, %v2595
  %2597 = vst [vmem:[#allocation3 + $0x2c] sm:$0x1] %v2596
  %v2598 = vld [vmem:[#allocation3 + $0x34] sm:$0x1]
  %v2599 = vsel %vm2579, 0, %v2598
  %2600 = vst [vmem:[#allocation3 + $0x34] sm:$0x1] %v2599
  %v2601 = vld [vmem:[#allocation3 + $0x3c] sm:$0x1]
  %v2602 = vsel %vm2579, 0, %v2601
  %2603 = vst [vmem:[#allocation3 + $0x3c] sm:$0x1] %v2602
  %v2604 = vld [vmem:[#allocation3 + $0x44] sm:$0x1]
  %v2605 = vsel %vm2579, 0, %v2604
  %2606 = vst [vmem:[#allocation3 + $0x44] sm:$0x1] %v2605
  %v2607 = vld [vmem:[#allocation3 + $0x4c] sm:$0x1]
  %v2608 = vsel %vm2579, 0, %v2607
  %2609 = vst [vmem:[#allocation3 + $0x4c] sm:$0x1] %v2608
  %v2610 = vld [vmem:[#allocation3 + $0x54] sm:$0x1]
  %v2611 = vsel %vm2579, 0, %v2610
  %2612 = vst [vmem:[#allocation3 + $0x54] sm:$0x1] %v2611
  %v2613 = vld [vmem:[#allocation3 + $0x5c] sm:$0x1]
  %v2614 = vsel %vm2579, 0, %v2613
  %2615 = vst [vmem:[#allocation3 + $0x5c] sm:$0x1] %v2614
  %v2616 = vld [vmem:[#allocation3 + $0x64] sm:$0x1]
  %v2617 = vsel %vm2579, 0, %v2616
  %2618 = vst [vmem:[#allocation3 + $0x64] sm:$0x1] %v2617
  %v2619 = vld [vmem:[#allocation3 + $0x6c] sm:$0x1]
  %v2620 = vsel %vm2579, 0, %v2619
  %2621 = vst [vmem:[#allocation3 + $0x6c] sm:$0x1] %v2620
  %v2622 = vld [vmem:[#allocation3 + $0x74] sm:$0x1]
  %v2623 = vsel %vm2579, 0, %v2622
  %2624 = vst [vmem:[#allocation3 + $0x74] sm:$0x1] %v2623
  %v2625 = vld [vmem:[#allocation3 + $0x7c] sm:$0x1]
  %v2626 = vsel %vm2579, 0, %v2625
  %2627 = vst [vmem:[#allocation3 + $0x7c] sm:$0x1] %v2626
  %v2628 = vld [vmem:[#allocation3 + $0x84] sm:$0x1]
  %v2629 = vsel %vm2579, 0, %v2628
  %2630 = vst [vmem:[#allocation3 + $0x84] sm:$0x1] %v2629
  %v2631 = vld [vmem:[#allocation3 + $0x8c] sm:$0x1]
  %v2632 = vsel %vm2579, 0, %v2631
  %2633 = vst [vmem:[#allocation3 + $0x8c] sm:$0x1] %v2632
  %v2634 = vld [vmem:[#allocation3 + $0x94] sm:$0x1]
  %v2635 = vsel %vm2579, 0, %v2634
  %2636 = vst [vmem:[#allocation3 + $0x94] sm:$0x1] %v2635
  %v2637 = vld [vmem:[#allocation3 + $0x9c] sm:$0x1]
  %v2638 = vsel %vm2579, 0, %v2637
  %2639 = vst [vmem:[#allocation3 + $0x9c] sm:$0x1] %v2638
  %vm2640 = vcmask 257024
  %2641 = vst.msk [vmem:[#allocation3] sm:$0xf] %vm2640, 0
  %vm2642 = vcmask 253952
  %2643 = vst.msk [vmem:[#allocation3 + $0x4] sm:$0x1] %vm2642, 0
  %s2644 = scalar_lea.vmem [#allocation3], 72
  %2645 = vst.msk [vmem:[%s2644] sm:$0xf] %vm2640, 0
  %2646 = vst.msk [vmem:[%s2644 + $0x4] sm:$0x1] %vm2642, 0
  %v2648 = vshrl.u32 %v2499, 16
  %v2650 = vrot.slane %v2648, 7
  %v2651 = vshll.u32 %v2499, 16
  %v2653 = vor.u32 %v2650, %v2651
  %v2654 = vrot.slane %v2650, 4
  %v2656 = vshrl.u32 %v2500, 16
  %v2658 = vrot.slane %v2656, 7
  %v2659 = vshll.u32 %v2500, 16
  %v2661 = vor.u32 %v2658, %v2659
  %v2662 = vrot.slane %v2658, 4
  %v2664 = vshrl.u32 %v2501, 16
  %v2666 = vrot.slane %v2664, 7
  %v2667 = vshll.u32 %v2501, 16
  %v2669 = vor.u32 %v2666, %v2667
  %v2670 = vrot.slane %v2666, 4
  %v2672 = vshrl.u32 %v2502, 16
  %v2674 = vrot.slane %v2672, 7
  %v2675 = vshll.u32 %v2502, 16
  %v2677 = vor.u32 %v2674, %v2675
  %v2678 = vrot.slane %v2674, 4
  %v2680 = vshrl.u32 %v2503, 16
  %v2682 = vrot.slane %v2680, 7
  %v2683 = vshll.u32 %v2503, 16
  %v2685 = vor.u32 %v2682, %v2683
  %v2686 = vrot.slane %v2682, 4
  %v2688 = vshrl.u32 %v2504, 16
  %v2690 = vrot.slane %v2688, 7
  %v2691 = vshll.u32 %v2504, 16
  %v2693 = vor.u32 %v2690, %v2691
  %v2694 = vrot.slane %v2690, 4
  %v2696 = vshrl.u32 %v2505, 16
  %v2698 = vrot.slane %v2696, 7
  %v2699 = vshll.u32 %v2505, 16
  %v2701 = vor.u32 %v2698, %v2699
  %v2702 = vrot.slane %v2698, 4
  %v2704 = vshrl.u32 %v2506, 16
  %v2706 = vrot.slane %v2704, 7
  %v2707 = vshll.u32 %v2506, 16
  %v2709 = vor.u32 %v2706, %v2707
  %v2710 = vrot.slane %v2706, 4
  %s2727 = scalar_lea.vmem [#allocation3], 8
  %vm2728 = vcmask 257024
  %vm2729 = vmand %vm2728, %vm2578
  %v2730 = vld [vmem:[%s2727] sm:$0xf]
  %v2731 = vsel %vm2729, %v2653, %v2730
  %2732 = vst [vmem:[%s2727] sm:$0xf] %v2731
  %v2733 = vld [vmem:[%s2727 + $0x4] sm:$0x1]
  %v2734 = vsel %vm2517, %v2654, %v2733
  %2735 = vst [vmem:[%s2727 + $0x4] sm:$0x1] %v2734
  %v2736 = vld [vmem:[%s2727 + $0x8] sm:$0xf]
  %v2737 = vsel %vm2729, %v2661, %v2736
  %2738 = vst [vmem:[%s2727 + $0x8] sm:$0xf] %v2737
  %v2739 = vld [vmem:[%s2727 + $0xc] sm:$0x1]
  %v2740 = vsel %vm2517, %v2662, %v2739
  %2741 = vst [vmem:[%s2727 + $0xc] sm:$0x1] %v2740
  %v2742 = vld [vmem:[%s2727 + $0x10] sm:$0xf]
  %v2743 = vsel %vm2729, %v2669, %v2742
  %2744 = vst [vmem:[%s2727 + $0x10] sm:$0xf] %v2743
  %v2745 = vld [vmem:[%s2727 + $0x14] sm:$0x1]
  %v2746 = vsel %vm2517, %v2670, %v2745
  %2747 = vst [vmem:[%s2727 + $0x14] sm:$0x1] %v2746
  %v2748 = vld [vmem:[%s2727 + $0x18] sm:$0xf]
  %v2749 = vsel %vm2729, %v2677, %v2748
  %2750 = vst [vmem:[%s2727 + $0x18] sm:$0xf] %v2749
  %v2751 = vld [vmem:[%s2727 + $0x1c] sm:$0x1]
  %v2752 = vsel %vm2517, %v2678, %v2751
  %2753 = vst [vmem:[%s2727 + $0x1c] sm:$0x1] %v2752
  %v2754 = vld [vmem:[%s2727 + $0x20] sm:$0xf]
  %v2755 = vsel %vm2729, %v2685, %v2754
  %2756 = vst [vmem:[%s2727 + $0x20] sm:$0xf] %v2755
  %v2757 = vld [vmem:[%s2727 + $0x24] sm:$0x1]
  %v2758 = vsel %vm2517, %v2686, %v2757
  %2759 = vst [vmem:[%s2727 + $0x24] sm:$0x1] %v2758
  %v2760 = vld [vmem:[%s2727 + $0x28] sm:$0xf]
  %v2761 = vsel %vm2729, %v2693, %v2760
  %2762 = vst [vmem:[%s2727 + $0x28] sm:$0xf] %v2761
  %v2763 = vld [vmem:[%s2727 + $0x2c] sm:$0x1]
  %v2764 = vsel %vm2517, %v2694, %v2763
  %2765 = vst [vmem:[%s2727 + $0x2c] sm:$0x1] %v2764
  %v2766 = vld [vmem:[%s2727 + $0x30] sm:$0xf]
  %v2767 = vsel %vm2729, %v2701, %v2766
  %2768 = vst [vmem:[%s2727 + $0x30] sm:$0xf] %v2767
  %v2769 = vld [vmem:[%s2727 + $0x34] sm:$0x1]
  %v2770 = vsel %vm2517, %v2702, %v2769
  %2771 = vst [vmem:[%s2727 + $0x34] sm:$0x1] %v2770
  %v2772 = vld [vmem:[%s2727 + $0x38] sm:$0xf]
  %v2773 = vsel %vm2729, %v2709, %v2772
  %2774 = vst [vmem:[%s2727 + $0x38] sm:$0xf] %v2773
  %v2775 = vld [vmem:[%s2727 + $0x3c] sm:$0x1]
  %v2776 = vsel %vm2517, %v2710, %v2775
  %2777 = vst [vmem:[%s2727 + $0x3c] sm:$0x1] %v2776
  %s2778 = scalar_lea.vmem [#allocation3], 80
  %2779 = vst.msk [vmem:[%s2778] sm:$0xf] %vm2640, 0
  %2780 = vst.msk [vmem:[%s2778 + $0x4] sm:$0x1] %vm2642, 0
  %s2781 = scalar_lea.vmem [#allocation3], 152
  %2782 = vst.msk [vmem:[%s2781] sm:$0xf] %vm2640, 0
  %2783 = vst.msk [vmem:[%s2781 + $0x4] sm:$0x1] %vm2642, 0
  %v2785 = vshrl.u32 %v2507, 16
  %v2787 = vrot.slane %v2785, 7
  %v2788 = vshll.u32 %v2507, 16
  %v2790 = vor.u32 %v2787, %v2788
  %v2791 = vrot.slane %v2787, 4
  %v2793 = vshrl.u32 %v2508, 16
  %v2795 = vrot.slane %v2793, 7
  %v2796 = vshll.u32 %v2508, 16
  %v2798 = vor.u32 %v2795, %v2796
  %v2799 = vrot.slane %v2795, 4
  %v2801 = vshrl.u32 %v2509, 16
  %v2803 = vrot.slane %v2801, 7
  %v2804 = vshll.u32 %v2509, 16
  %v2806 = vor.u32 %v2803, %v2804
  %v2807 = vrot.slane %v2803, 4
  %v2809 = vshrl.u32 %v2510, 16
  %v2811 = vrot.slane %v2809, 7
  %v2812 = vshll.u32 %v2510, 16
  %v2814 = vor.u32 %v2811, %v2812
  %v2815 = vrot.slane %v2811, 4
  %v2817 = vshrl.u32 %v2511, 16
  %v2819 = vrot.slane %v2817, 7
  %v2820 = vshll.u32 %v2511, 16
  %v2822 = vor.u32 %v2819, %v2820
  %v2823 = vrot.slane %v2819, 4
  %v2825 = vshrl.u32 %v2512, 16
  %v2827 = vrot.slane %v2825, 7
  %v2828 = vshll.u32 %v2512, 16
  %v2830 = vor.u32 %v2827, %v2828
  %v2831 = vrot.slane %v2827, 4
  %v2833 = vshrl.u32 %v2513, 16
  %v2835 = vrot.slane %v2833, 7
  %v2836 = vshll.u32 %v2513, 16
  %v2838 = vor.u32 %v2835, %v2836
  %v2839 = vrot.slane %v2835, 4
  %v2841 = vshrl.u32 %v2514, 16
  %v2843 = vrot.slane %v2841, 7
  %v2844 = vshll.u32 %v2514, 16
  %v2846 = vor.u32 %v2843, %v2844
  %v2847 = vrot.slane %v2843, 4
  %s2864 = scalar_lea.vmem [#allocation3], 88
  %v2865 = vld [vmem:[%s2864] sm:$0xf]
  %v2866 = vsel %vm2729, %v2790, %v2865
  %2867 = vst [vmem:[%s2864] sm:$0xf] %v2866
  %v2868 = vld [vmem:[%s2864 + $0x4] sm:$0x1]
  %v2869 = vsel %vm2517, %v2791, %v2868
  %2870 = vst [vmem:[%s2864 + $0x4] sm:$0x1] %v2869
  %v2871 = vld [vmem:[%s2864 + $0x8] sm:$0xf]
  %v2872 = vsel %vm2729, %v2798, %v2871
  %2873 = vst [vmem:[%s2864 + $0x8] sm:$0xf] %v2872
  %v2874 = vld [vmem:[%s2864 + $0xc] sm:$0x1]
  %v2875 = vsel %vm2517, %v2799, %v2874
  %2876 = vst [vmem:[%s2864 + $0xc] sm:$0x1] %v2875
  %v2877 = vld [vmem:[%s2864 + $0x10] sm:$0xf]
  %v2878 = vsel %vm2729, %v2806, %v2877
  %2879 = vst [vmem:[%s2864 + $0x10] sm:$0xf] %v2878
  %v2880 = vld [vmem:[%s2864 + $0x14] sm:$0x1]
  %v2881 = vsel %vm2517, %v2807, %v2880
  %2882 = vst [vmem:[%s2864 + $0x14] sm:$0x1] %v2881
  %v2883 = vld [vmem:[%s2864 + $0x18] sm:$0xf]
  %v2884 = vsel %vm2729, %v2814, %v2883
  %2885 = vst [vmem:[%s2864 + $0x18] sm:$0xf] %v2884
  %v2886 = vld [vmem:[%s2864 + $0x1c] sm:$0x1]
  %v2887 = vsel %vm2517, %v2815, %v2886
  %2888 = vst [vmem:[%s2864 + $0x1c] sm:$0x1] %v2887
  %v2889 = vld [vmem:[%s2864 + $0x20] sm:$0xf]
  %v2890 = vsel %vm2729, %v2822, %v2889
  %2891 = vst [vmem:[%s2864 + $0x20] sm:$0xf] %v2890
  %v2892 = vld [vmem:[%s2864 + $0x24] sm:$0x1]
  %v2893 = vsel %vm2517, %v2823, %v2892
  %2894 = vst [vmem:[%s2864 + $0x24] sm:$0x1] %v2893
  %v2895 = vld [vmem:[%s2864 + $0x28] sm:$0xf]
  %v2896 = vsel %vm2729, %v2830, %v2895
  %2897 = vst [vmem:[%s2864 + $0x28] sm:$0xf] %v2896
  %v2898 = vld [vmem:[%s2864 + $0x2c] sm:$0x1]
  %v2899 = vsel %vm2517, %v2831, %v2898
  %2900 = vst [vmem:[%s2864 + $0x2c] sm:$0x1] %v2899
  %v2901 = vld [vmem:[%s2864 + $0x30] sm:$0xf]
  %v2902 = vsel %vm2729, %v2838, %v2901
  %2903 = vst [vmem:[%s2864 + $0x30] sm:$0xf] %v2902
  %v2904 = vld [vmem:[%s2864 + $0x34] sm:$0x1]
  %v2905 = vsel %vm2517, %v2839, %v2904
  %2906 = vst [vmem:[%s2864 + $0x34] sm:$0x1] %v2905
  %v2907 = vld [vmem:[%s2864 + $0x38] sm:$0xf]
  %v2908 = vsel %vm2729, %v2846, %v2907
  %2909 = vst [vmem:[%s2864 + $0x38] sm:$0xf] %v2908
  %v2910 = vld [vmem:[%s2864 + $0x3c] sm:$0x1]
  %v2911 = vsel %vm2517, %v2847, %v2910
  %2912 = vst [vmem:[%s2864 + $0x3c] sm:$0x1] %v2911
  %v2913 = vld [vmem:[#allocation3] sm:$0xf]
  %v2914 = vld [vmem:[#allocation3 + $0x8] sm:$0xf]
  %v2915 = vld [vmem:[#allocation3 + $0x10] sm:$0xf]
  %v2916 = vld [vmem:[#allocation3 + $0x18] sm:$0xf]
  %v2917 = vld [vmem:[#allocation3 + $0x20] sm:$0xf]
  %v2918 = vld [vmem:[#allocation3 + $0x28] sm:$0xf]
  %v2919 = vld [vmem:[#allocation3 + $0x30] sm:$0xf]
  %v2920 = vld [vmem:[#allocation3 + $0x38] sm:$0xf]
  %2921 = vst.msk [vmem:[#allocation4] sm:$0xf] %vm2640, %v2913
  %2922 = vst.msk [vmem:[#allocation4 + $0xc] sm:$0xf] %vm2640, %v2914
  %2923 = vst.msk [vmem:[#allocation4 + $0x18] sm:$0xf] %vm2640, %v2915
  %2924 = vst.msk [vmem:[#allocation4 + $0x24] sm:$0xf] %vm2640, %v2916
  %2925 = vst.msk [vmem:[#allocation4 + $0x30] sm:$0xf] %vm2640, %v2917
  %2926 = vst.msk [vmem:[#allocation4 + $0x3c] sm:$0xf] %vm2640, %v2918
  %2927 = vst.msk [vmem:[#allocation4 + $0x48] sm:$0xf] %vm2640, %v2919
  %2928 = vst.msk [vmem:[#allocation4 + $0x54] sm:$0xf] %vm2640, %v2920
  %v2929 = vld [vmem:[#allocation3] sm:$0xf]
  %v2930 = vld [vmem:[#allocation3 + $0x4] sm:$0x1]
  %v2931 = vld [vmem:[#allocation3 + $0x8] sm:$0xf]
  %v2932 = vld [vmem:[#allocation3 + $0xc] sm:$0x1]
  %v2933 = vld [vmem:[#allocation3 + $0x10] sm:$0xf]
  %v2934 = vld [vmem:[#allocation3 + $0x14] sm:$0x1]
  %v2935 = vld [vmem:[#allocation3 + $0x18] sm:$0xf]
  %v2936 = vld [vmem:[#allocation3 + $0x1c] sm:$0x1]
  %v2937 = vld [vmem:[#allocation3 + $0x20] sm:$0xf]
  %v2938 = vld [vmem:[#allocation3 + $0x24] sm:$0x1]
  %v2939 = vld [vmem:[#allocation3 + $0x28] sm:$0xf]
  %v2940 = vld [vmem:[#allocation3 + $0x2c] sm:$0x1]
  %v2941 = vld [vmem:[#allocation3 + $0x30] sm:$0xf]
  %v2942 = vld [vmem:[#allocation3 + $0x34] sm:$0x1]
  %v2943 = vld [vmem:[#allocation3 + $0x38] sm:$0xf]
  %v2944 = vld [vmem:[#allocation3 + $0x3c] sm:$0x1]
  %v2946 = vshrl.u32 %v2929, 16
  %v2948 = vrot.slane %v2946, 4
  %v2949 = vshll.u32 %v2929, 16
  %v2951 = vrot.slane %v2949, 5
  %v2952 = vor.u32 %v2948, %v2951
  %v2953 = vrot.slane %v2952, 4
  %v2955 = vshll.u32 %v2930, 16
  %v2957 = vrot.slane %v2955, 5
  %v2958 = vsel %vm61, %v2953, %v2957
  %v2960 = vshrl.u32 %v2931, 16
  %v2962 = vrot.slane %v2960, 4
  %v2963 = vshll.u32 %v2931, 16
  %v2965 = vrot.slane %v2963, 5
  %v2966 = vor.u32 %v2962, %v2965
  %v2967 = vrot.slane %v2966, 4
  %v2969 = vshll.u32 %v2932, 16
  %v2971 = vrot.slane %v2969, 5
  %v2972 = vsel %vm61, %v2967, %v2971
  %v2974 = vshrl.u32 %v2933, 16
  %v2976 = vrot.slane %v2974, 4
  %v2977 = vshll.u32 %v2933, 16
  %v2979 = vrot.slane %v2977, 5
  %v2980 = vor.u32 %v2976, %v2979
  %v2981 = vrot.slane %v2980, 4
  %v2983 = vshll.u32 %v2934, 16
  %v2985 = vrot.slane %v2983, 5
  %v2986 = vsel %vm61, %v2981, %v2985
  %v2988 = vshrl.u32 %v2935, 16
  %v2990 = vrot.slane %v2988, 4
  %v2991 = vshll.u32 %v2935, 16
  %v2993 = vrot.slane %v2991, 5
  %v2994 = vor.u32 %v2990, %v2993
  %v2995 = vrot.slane %v2994, 4
  %v2997 = vshll.u32 %v2936, 16
  %v2999 = vrot.slane %v2997, 5
  %v3000 = vsel %vm61, %v2995, %v2999
  %v3002 = vshrl.u32 %v2937, 16
  %v3004 = vrot.slane %v3002, 4
  %v3005 = vshll.u32 %v2937, 16
  %v3007 = vrot.slane %v3005, 5
  %v3008 = vor.u32 %v3004, %v3007
  %v3009 = vrot.slane %v3008, 4
  %v3011 = vshll.u32 %v2938, 16
  %v3013 = vrot.slane %v3011, 5
  %v3014 = vsel %vm61, %v3009, %v3013
  %v3016 = vshrl.u32 %v2939, 16
  %v3018 = vrot.slane %v3016, 4
  %v3019 = vshll.u32 %v2939, 16
  %v3021 = vrot.slane %v3019, 5
  %v3022 = vor.u32 %v3018, %v3021
  %v3023 = vrot.slane %v3022, 4
  %v3025 = vshll.u32 %v2940, 16
  %v3027 = vrot.slane %v3025, 5
  %v3028 = vsel %vm61, %v3023, %v3027
  %v3030 = vshrl.u32 %v2941, 16
  %v3032 = vrot.slane %v3030, 4
  %v3033 = vshll.u32 %v2941, 16
  %v3035 = vrot.slane %v3033, 5
  %v3036 = vor.u32 %v3032, %v3035
  %v3037 = vrot.slane %v3036, 4
  %v3039 = vshll.u32 %v2942, 16
  %v3041 = vrot.slane %v3039, 5
  %v3042 = vsel %vm61, %v3037, %v3041
  %v3044 = vshrl.u32 %v2943, 16
  %v3046 = vrot.slane %v3044, 4
  %v3047 = vshll.u32 %v2943, 16
  %v3049 = vrot.slane %v3047, 5
  %v3050 = vor.u32 %v3046, %v3049
  %v3051 = vrot.slane %v3050, 4
  %v3053 = vshll.u32 %v2944, 16
  %v3055 = vrot.slane %v3053, 5
  %v3056 = vsel %vm61, %v3051, %v3055
  %3057 = vrot.lane.b32.xlu0 %v2958, 32
  %v3058 = vpop.permute.xlu0 %3057
  %3059 = vrot.lane.b32.xlu0 %v2972, 32
  %v3060 = vpop.permute.xlu0 %3059
  %3061 = vrot.lane.b32.xlu0 %v2986, 32
  %v3062 = vpop.permute.xlu0 %3061
  %3063 = vrot.lane.b32.xlu0 %v3000, 32
  %v3064 = vpop.permute.xlu0 %3063
  %3065 = vrot.lane.b32.xlu0 %v3014, 32
  %v3066 = vpop.permute.xlu0 %3065
  %3067 = vrot.lane.b32.xlu0 %v3028, 32
  %v3068 = vpop.permute.xlu0 %3067
  %3069 = vrot.lane.b32.xlu0 %v3042, 32
  %v3070 = vpop.permute.xlu0 %3069
  %3071 = vrot.lane.b32.xlu0 %v3056, 32
  %v3072 = vpop.permute.xlu0 %3071
  %vm3081 = vcmask 519424
  %3082 = vst.msk [vmem:[#allocation4] sm:$0xf] %vm3081, %v3058
  %3083 = vst.msk [vmem:[#allocation4 + $0xc] sm:$0xf] %vm3081, %v3060
  %3084 = vst.msk [vmem:[#allocation4 + $0x18] sm:$0xf] %vm3081, %v3062
  %3085 = vst.msk [vmem:[#allocation4 + $0x24] sm:$0xf] %vm3081, %v3064
  %3086 = vst.msk [vmem:[#allocation4 + $0x30] sm:$0xf] %vm3081, %v3066
  %3087 = vst.msk [vmem:[#allocation4 + $0x3c] sm:$0xf] %vm3081, %v3068
  %3088 = vst.msk [vmem:[#allocation4 + $0x48] sm:$0xf] %vm3081, %v3070
  %3089 = vst.msk [vmem:[#allocation4 + $0x54] sm:$0xf] %vm3081, %v3072
  %v3090 = vld [vmem:[#allocation3] sm:$0xe]
  %v3091 = vld [vmem:[#allocation3 + $0x4] sm:$0x1]
  %v3092 = vld [vmem:[#allocation3 + $0x8] sm:$0xe]
  %v3093 = vld [vmem:[#allocation3 + $0xc] sm:$0x1]
  %v3094 = vld [vmem:[#allocation3 + $0x10] sm:$0xe]
  %v3095 = vld [vmem:[#allocation3 + $0x14] sm:$0x1]
  %v3096 = vld [vmem:[#allocation3 + $0x18] sm:$0xe]
  %v3097 = vld [vmem:[#allocation3 + $0x1c] sm:$0x1]
  %v3098 = vld [vmem:[#allocation3 + $0x20] sm:$0xe]
  %v3099 = vld [vmem:[#allocation3 + $0x24] sm:$0x1]
  %v3100 = vld [vmem:[#allocation3 + $0x28] sm:$0xe]
  %v3101 = vld [vmem:[#allocation3 + $0x2c] sm:$0x1]
  %v3102 = vld [vmem:[#allocation3 + $0x30] sm:$0xe]
  %v3103 = vld [vmem:[#allocation3 + $0x34] sm:$0x1]
  %v3104 = vld [vmem:[#allocation3 + $0x38] sm:$0xe]
  %v3105 = vld [vmem:[#allocation3 + $0x3c] sm:$0x1]
  %vm3122 = vcmask 1042432
  %vm3123 = vcmask 1046532
  %vm3124 = vmor %vm3122, %vm3123
  %v3125 = vrot.slane %v3090, 5
  %v3126 = vrot.slane %v3125, 4
  %v3127 = vrot.slane %v3091, 5
  %v3128 = vsel %vm3124, %v3126, %v3127
  %v3129 = vrot.slane %v3092, 5
  %v3130 = vrot.slane %v3129, 4
  %v3131 = vrot.slane %v3093, 5
  %v3132 = vsel %vm3124, %v3130, %v3131
  %v3133 = vrot.slane %v3094, 5
  %v3134 = vrot.slane %v3133, 4
  %v3135 = vrot.slane %v3095, 5
  %v3136 = vsel %vm3124, %v3134, %v3135
  %v3137 = vrot.slane %v3096, 5
  %v3138 = vrot.slane %v3137, 4
  %v3139 = vrot.slane %v3097, 5
  %v3140 = vsel %vm3124, %v3138, %v3139
  %v3141 = vrot.slane %v3098, 5
  %v3142 = vrot.slane %v3141, 4
  %v3143 = vrot.slane %v3099, 5
  %v3144 = vsel %vm3124, %v3142, %v3143
  %v3145 = vrot.slane %v3100, 5
  %v3146 = vrot.slane %v3145, 4
  %v3147 = vrot.slane %v3101, 5
  %v3148 = vsel %vm3124, %v3146, %v3147
  %v3149 = vrot.slane %v3102, 5
  %v3150 = vrot.slane %v3149, 4
  %v3151 = vrot.slane %v3103, 5
  %v3152 = vsel %vm3124, %v3150, %v3151
  %v3153 = vrot.slane %v3104, 5
  %v3154 = vrot.slane %v3153, 4
  %v3155 = vrot.slane %v3105, 5
  %v3156 = vsel %vm3124, %v3154, %v3155
  %3157 = vrot.lane.b32.xlu0 %v3128, 64
  %v3158 = vpop.permute.xlu0 %3157
  %3159 = vrot.lane.b32.xlu0 %v3132, 64
  %v3160 = vpop.permute.xlu0 %3159
  %3161 = vrot.lane.b32.xlu0 %v3136, 64
  %v3162 = vpop.permute.xlu0 %3161
  %3163 = vrot.lane.b32.xlu0 %v3140, 64
  %v3164 = vpop.permute.xlu0 %3163
  %3165 = vrot.lane.b32.xlu0 %v3144, 64
  %v3166 = vpop.permute.xlu0 %3165
  %3167 = vrot.lane.b32.xlu0 %v3148, 64
  %v3168 = vpop.permute.xlu0 %3167
  %3169 = vrot.lane.b32.xlu0 %v3152, 64
  %v3170 = vpop.permute.xlu0 %3169
  %3171 = vrot.lane.b32.xlu0 %v3156, 64
  %v3172 = vpop.permute.xlu0 %3171
  %vm3181 = vcmask 781824
  %3182 = vst.msk [vmem:[#allocation4] sm:$0xf] %vm3181, %v3158
  %3183 = vst.msk [vmem:[#allocation4 + $0xc] sm:$0xf] %vm3181, %v3160
  %3184 = vst.msk [vmem:[#allocation4 + $0x18] sm:$0xf] %vm3181, %v3162
  %3185 = vst.msk [vmem:[#allocation4 + $0x24] sm:$0xf] %vm3181, %v3164
  %3186 = vst.msk [vmem:[#allocation4 + $0x30] sm:$0xf] %vm3181, %v3166
  %3187 = vst.msk [vmem:[#allocation4 + $0x3c] sm:$0xf] %vm3181, %v3168
  %3188 = vst.msk [vmem:[#allocation4 + $0x48] sm:$0xf] %vm3181, %v3170
  %3189 = vst.msk [vmem:[#allocation4 + $0x54] sm:$0xf] %vm3181, %v3172
  %v3190 = vld [vmem:[%s2727] sm:$0xf]
  %v3191 = vld [vmem:[%s2727 + $0x8] sm:$0xf]
  %v3192 = vld [vmem:[%s2727 + $0x10] sm:$0xf]
  %v3193 = vld [vmem:[%s2727 + $0x18] sm:$0xf]
  %v3194 = vld [vmem:[%s2727 + $0x20] sm:$0xf]
  %v3195 = vld [vmem:[%s2727 + $0x28] sm:$0xf]
  %v3196 = vld [vmem:[%s2727 + $0x30] sm:$0xf]
  %v3197 = vld [vmem:[%s2727 + $0x38] sm:$0xf]
  %3206 = vrot.lane.b32.xlu0 %v3190, 96
  %v3207 = vpop.permute.xlu0 %3206
  %3208 = vrot.lane.b32.xlu0 %v3191, 96
  %v3209 = vpop.permute.xlu0 %3208
  %3210 = vrot.lane.b32.xlu0 %v3192, 96
  %v3211 = vpop.permute.xlu0 %3210
  %3212 = vrot.lane.b32.xlu0 %v3193, 96
  %v3213 = vpop.permute.xlu0 %3212
  %3214 = vrot.lane.b32.xlu0 %v3194, 96
  %v3215 = vpop.permute.xlu0 %3214
  %3216 = vrot.lane.b32.xlu0 %v3195, 96
  %v3217 = vpop.permute.xlu0 %3216
  %3218 = vrot.lane.b32.xlu0 %v3196, 96
  %v3219 = vpop.permute.xlu0 %3218
  %3220 = vrot.lane.b32.xlu0 %v3197, 96
  %v3221 = vpop.permute.xlu0 %3220
  %vm3230 = vcmask 1044224
  %3231 = vst.msk [vmem:[#allocation4] sm:$0xf] %vm3230, %v3207
  %3232 = vst.msk [vmem:[#allocation4 + $0xc] sm:$0xf] %vm3230, %v3209
  %3233 = vst.msk [vmem:[#allocation4 + $0x18] sm:$0xf] %vm3230, %v3211
  %3234 = vst.msk [vmem:[#allocation4 + $0x24] sm:$0xf] %vm3230, %v3213
  %3235 = vst.msk [vmem:[#allocation4 + $0x30] sm:$0xf] %vm3230, %v3215
  %3236 = vst.msk [vmem:[#allocation4 + $0x3c] sm:$0xf] %vm3230, %v3217
  %3237 = vst.msk [vmem:[#allocation4 + $0x48] sm:$0xf] %vm3230, %v3219
  %3238 = vst.msk [vmem:[#allocation4 + $0x54] sm:$0xf] %vm3230, %v3221
  %v3239 = vld [vmem:[%s2727] sm:$0xf]
  %v3240 = vld [vmem:[%s2727 + $0x4] sm:$0x1]
  %v3241 = vld [vmem:[%s2727 + $0x8] sm:$0xf]
  %v3242 = vld [vmem:[%s2727 + $0xc] sm:$0x1]
  %v3243 = vld [vmem:[%s2727 + $0x10] sm:$0xf]
  %v3244 = vld [vmem:[%s2727 + $0x14] sm:$0x1]
  %v3245 = vld [vmem:[%s2727 + $0x18] sm:$0xf]
  %v3246 = vld [vmem:[%s2727 + $0x1c] sm:$0x1]
  %v3247 = vld [vmem:[%s2727 + $0x20] sm:$0xf]
  %v3248 = vld [vmem:[%s2727 + $0x24] sm:$0x1]
  %v3249 = vld [vmem:[%s2727 + $0x28] sm:$0xf]
  %v3250 = vld [vmem:[%s2727 + $0x2c] sm:$0x1]
  %v3251 = vld [vmem:[%s2727 + $0x30] sm:$0xf]
  %v3252 = vld [vmem:[%s2727 + $0x34] sm:$0x1]
  %v3253 = vld [vmem:[%s2727 + $0x38] sm:$0xf]
  %v3254 = vld [vmem:[%s2727 + $0x3c] sm:$0x1]
  %v3256 = vshrl.u32 %v3239, 16
  %v3258 = vrot.slane %v3256, 4
  %v3259 = vshll.u32 %v3239, 16
  %v3261 = vrot.slane %v3259, 5
  %v3262 = vor.u32 %v3258, %v3261
  %v3263 = vrot.slane %v3262, 4
  %v3265 = vshll.u32 %v3240, 16
  %v3267 = vrot.slane %v3265, 5
  %v3268 = vsel %vm61, %v3263, %v3267
  %v3270 = vshrl.u32 %v3241, 16
  %v3272 = vrot.slane %v3270, 4
  %v3273 = vshll.u32 %v3241, 16
  %v3275 = vrot.slane %v3273, 5
  %v3276 = vor.u32 %v3272, %v3275
  %v3277 = vrot.slane %v3276, 4
  %v3279 = vshll.u32 %v3242, 16
  %v3281 = vrot.slane %v3279, 5
  %v3282 = vsel %vm61, %v3277, %v3281
  %v3284 = vshrl.u32 %v3243, 16
  %v3286 = vrot.slane %v3284, 4
  %v3287 = vshll.u32 %v3243, 16
  %v3289 = vrot.slane %v3287, 5
  %v3290 = vor.u32 %v3286, %v3289
  %v3291 = vrot.slane %v3290, 4
  %v3293 = vshll.u32 %v3244, 16
  %v3295 = vrot.slane %v3293, 5
  %v3296 = vsel %vm61, %v3291, %v3295
  %v3298 = vshrl.u32 %v3245, 16
  %v3300 = vrot.slane %v3298, 4
  %v3301 = vshll.u32 %v3245, 16
  %v3303 = vrot.slane %v3301, 5
  %v3304 = vor.u32 %v3300, %v3303
  %v3305 = vrot.slane %v3304, 4
  %v3307 = vshll.u32 %v3246, 16
  %v3309 = vrot.slane %v3307, 5
  %v3310 = vsel %vm61, %v3305, %v3309
  %v3312 = vshrl.u32 %v3247, 16
  %v3314 = vrot.slane %v3312, 4
  %v3315 = vshll.u32 %v3247, 16
  %v3317 = vrot.slane %v3315, 5
  %v3318 = vor.u32 %v3314, %v3317
  %v3319 = vrot.slane %v3318, 4
  %v3321 = vshll.u32 %v3248, 16
  %v3323 = vrot.slane %v3321, 5
  %v3324 = vsel %vm61, %v3319, %v3323
  %v3326 = vshrl.u32 %v3249, 16
  %v3328 = vrot.slane %v3326, 4
  %v3329 = vshll.u32 %v3249, 16
  %v3331 = vrot.slane %v3329, 5
  %v3332 = vor.u32 %v3328, %v3331
  %v3333 = vrot.slane %v3332, 4
  %v3335 = vshll.u32 %v3250, 16
  %v3337 = vrot.slane %v3335, 5
  %v3338 = vsel %vm61, %v3333, %v3337
  %v3340 = vshrl.u32 %v3251, 16
  %v3342 = vrot.slane %v3340, 4
  %v3343 = vshll.u32 %v3251, 16
  %v3345 = vrot.slane %v3343, 5
  %v3346 = vor.u32 %v3342, %v3345
  %v3347 = vrot.slane %v3346, 4
  %v3349 = vshll.u32 %v3252, 16
  %v3351 = vrot.slane %v3349, 5
  %v3352 = vsel %vm61, %v3347, %v3351
  %v3354 = vshrl.u32 %v3253, 16
  %v3356 = vrot.slane %v3354, 4
  %v3357 = vshll.u32 %v3253, 16
  %v3359 = vrot.slane %v3357, 5
  %v3360 = vor.u32 %v3356, %v3359
  %v3361 = vrot.slane %v3360, 4
  %v3363 = vshll.u32 %v3254, 16
  %v3365 = vrot.slane %v3363, 5
  %v3366 = vsel %vm61, %v3361, %v3365
  %3375 = vst.msk [vmem:[#allocation4 + $0x4] sm:$0xf] %vm2640, %v3268
  %3376 = vst.msk [vmem:[#allocation4 + $0x10] sm:$0xf] %vm2640, %v3282
  %3377 = vst.msk [vmem:[#allocation4 + $0x1c] sm:$0xf] %vm2640, %v3296
  %3378 = vst.msk [vmem:[#allocation4 + $0x28] sm:$0xf] %vm2640, %v3310
  %3379 = vst.msk [vmem:[#allocation4 + $0x34] sm:$0xf] %vm2640, %v3324
  %3380 = vst.msk [vmem:[#allocation4 + $0x40] sm:$0xf] %vm2640, %v3338
  %3381 = vst.msk [vmem:[#allocation4 + $0x4c] sm:$0xf] %vm2640, %v3352
  %3382 = vst.msk [vmem:[#allocation4 + $0x58] sm:$0xf] %vm2640, %v3366
  %v3383 = vld [vmem:[%s2727] sm:$0xe]
  %v3384 = vld [vmem:[%s2727 + $0x4] sm:$0x1]
  %v3385 = vld [vmem:[%s2727 + $0x8] sm:$0xe]
  %v3386 = vld [vmem:[%s2727 + $0xc] sm:$0x1]
  %v3387 = vld [vmem:[%s2727 + $0x10] sm:$0xe]
  %v3388 = vld [vmem:[%s2727 + $0x14] sm:$0x1]
  %v3389 = vld [vmem:[%s2727 + $0x18] sm:$0xe]
  %v3390 = vld [vmem:[%s2727 + $0x1c] sm:$0x1]
  %v3391 = vld [vmem:[%s2727 + $0x20] sm:$0xe]
  %v3392 = vld [vmem:[%s2727 + $0x24] sm:$0x1]
  %v3393 = vld [vmem:[%s2727 + $0x28] sm:$0xe]
  %v3394 = vld [vmem:[%s2727 + $0x2c] sm:$0x1]
  %v3395 = vld [vmem:[%s2727 + $0x30] sm:$0xe]
  %v3396 = vld [vmem:[%s2727 + $0x34] sm:$0x1]
  %v3397 = vld [vmem:[%s2727 + $0x38] sm:$0xe]
  %v3398 = vld [vmem:[%s2727 + $0x3c] sm:$0x1]
  %v3415 = vrot.slane %v3383, 5
  %v3416 = vrot.slane %v3415, 4
  %v3417 = vrot.slane %v3384, 5
  %v3418 = vsel %vm3124, %v3416, %v3417
  %v3419 = vrot.slane %v3385, 5
  %v3420 = vrot.slane %v3419, 4
  %v3421 = vrot.slane %v3386, 5
  %v3422 = vsel %vm3124, %v3420, %v3421
  %v3423 = vrot.slane %v3387, 5
  %v3424 = vrot.slane %v3423, 4
  %v3425 = vrot.slane %v3388, 5
  %v3426 = vsel %vm3124, %v3424, %v3425
  %v3427 = vrot.slane %v3389, 5
  %v3428 = vrot.slane %v3427, 4
  %v3429 = vrot.slane %v3390, 5
  %v3430 = vsel %vm3124, %v3428, %v3429
  %v3431 = vrot.slane %v3391, 5
  %v3432 = vrot.slane %v3431, 4
  %v3433 = vrot.slane %v3392, 5
  %v3434 = vsel %vm3124, %v3432, %v3433
  %v3435 = vrot.slane %v3393, 5
  %v3436 = vrot.slane %v3435, 4
  %v3437 = vrot.slane %v3394, 5
  %v3438 = vsel %vm3124, %v3436, %v3437
  %v3439 = vrot.slane %v3395, 5
  %v3440 = vrot.slane %v3439, 4
  %v3441 = vrot.slane %v3396, 5
  %v3442 = vsel %vm3124, %v3440, %v3441
  %v3443 = vrot.slane %v3397, 5
  %v3444 = vrot.slane %v3443, 4
  %v3445 = vrot.slane %v3398, 5
  %v3446 = vsel %vm3124, %v3444, %v3445
  %3447 = vrot.lane.b32.xlu0 %v3418, 32
  %v3448 = vpop.permute.xlu0 %3447
  %3449 = vrot.lane.b32.xlu0 %v3422, 32
  %v3450 = vpop.permute.xlu0 %3449
  %3451 = vrot.lane.b32.xlu0 %v3426, 32
  %v3452 = vpop.permute.xlu0 %3451
  %3453 = vrot.lane.b32.xlu0 %v3430, 32
  %v3454 = vpop.permute.xlu0 %3453
  %3455 = vrot.lane.b32.xlu0 %v3434, 32
  %v3456 = vpop.permute.xlu0 %3455
  %3457 = vrot.lane.b32.xlu0 %v3438, 32
  %v3458 = vpop.permute.xlu0 %3457
  %3459 = vrot.lane.b32.xlu0 %v3442, 32
  %v3460 = vpop.permute.xlu0 %3459
  %3461 = vrot.lane.b32.xlu0 %v3446, 32
  %v3462 = vpop.permute.xlu0 %3461
  %3471 = vst.msk [vmem:[#allocation4 + $0x4] sm:$0xf] %vm3081, %v3448
  %3472 = vst.msk [vmem:[#allocation4 + $0x10] sm:$0xf] %vm3081, %v3450
  %3473 = vst.msk [vmem:[#allocation4 + $0x1c] sm:$0xf] %vm3081, %v3452
  %3474 = vst.msk [vmem:[#allocation4 + $0x28] sm:$0xf] %vm3081, %v3454
  %3475 = vst.msk [vmem:[#allocation4 + $0x34] sm:$0xf] %vm3081, %v3456
  %3476 = vst.msk [vmem:[#allocation4 + $0x40] sm:$0xf] %vm3081, %v3458
  %3477 = vst.msk [vmem:[#allocation4 + $0x4c] sm:$0xf] %vm3081, %v3460
  %3478 = vst.msk [vmem:[#allocation4 + $0x58] sm:$0xf] %vm3081, %v3462
  %s3479 = scalar_lea.vmem [#allocation3], 16
  %v3480 = vld [vmem:[%s3479] sm:$0xf]
  %v3481 = vld [vmem:[%s3479 + $0x8] sm:$0xf]
  %v3482 = vld [vmem:[%s3479 + $0x10] sm:$0xf]
  %v3483 = vld [vmem:[%s3479 + $0x18] sm:$0xf]
  %v3484 = vld [vmem:[%s3479 + $0x20] sm:$0xf]
  %v3485 = vld [vmem:[%s3479 + $0x28] sm:$0xf]
  %v3486 = vld [vmem:[%s3479 + $0x30] sm:$0xf]
  %v3487 = vld [vmem:[%s3479 + $0x38] sm:$0xf]
  %3496 = vrot.lane.b32.xlu0 %v3480, 64
  %v3497 = vpop.permute.xlu0 %3496
  %3498 = vrot.lane.b32.xlu0 %v3481, 64
  %v3499 = vpop.permute.xlu0 %3498
  %3500 = vrot.lane.b32.xlu0 %v3482, 64
  %v3501 = vpop.permute.xlu0 %3500
  %3502 = vrot.lane.b32.xlu0 %v3483, 64
  %v3503 = vpop.permute.xlu0 %3502
  %3504 = vrot.lane.b32.xlu0 %v3484, 64
  %v3505 = vpop.permute.xlu0 %3504
  %3506 = vrot.lane.b32.xlu0 %v3485, 64
  %v3507 = vpop.permute.xlu0 %3506
  %3508 = vrot.lane.b32.xlu0 %v3486, 64
  %v3509 = vpop.permute.xlu0 %3508
  %3510 = vrot.lane.b32.xlu0 %v3487, 64
  %v3511 = vpop.permute.xlu0 %3510
  %3520 = vst.msk [vmem:[#allocation4 + $0x4] sm:$0xf] %vm3181, %v3497
  %3521 = vst.msk [vmem:[#allocation4 + $0x10] sm:$0xf] %vm3181, %v3499
  %3522 = vst.msk [vmem:[#allocation4 + $0x1c] sm:$0xf] %vm3181, %v3501
  %3523 = vst.msk [vmem:[#allocation4 + $0x28] sm:$0xf] %vm3181, %v3503
  %3524 = vst.msk [vmem:[#allocation4 + $0x34] sm:$0xf] %vm3181, %v3505
  %3525 = vst.msk [vmem:[#allocation4 + $0x40] sm:$0xf] %vm3181, %v3507
  %3526 = vst.msk [vmem:[#allocation4 + $0x4c] sm:$0xf] %vm3181, %v3509
  %3527 = vst.msk [vmem:[#allocation4 + $0x58] sm:$0xf] %vm3181, %v3511
  %v3528 = vld [vmem:[%s3479] sm:$0xf]
  %v3529 = vld [vmem:[%s3479 + $0x4] sm:$0x1]
  %v3530 = vld [vmem:[%s3479 + $0x8] sm:$0xf]
  %v3531 = vld [vmem:[%s3479 + $0xc] sm:$0x1]
  %v3532 = vld [vmem:[%s3479 + $0x10] sm:$0xf]
  %v3533 = vld [vmem:[%s3479 + $0x14] sm:$0x1]
  %v3534 = vld [vmem:[%s3479 + $0x18] sm:$0xf]
  %v3535 = vld [vmem:[%s3479 + $0x1c] sm:$0x1]
  %v3536 = vld [vmem:[%s3479 + $0x20] sm:$0xf]
  %v3537 = vld [vmem:[%s3479 + $0x24] sm:$0x1]
  %v3538 = vld [vmem:[%s3479 + $0x28] sm:$0xf]
  %v3539 = vld [vmem:[%s3479 + $0x2c] sm:$0x1]
  %v3540 = vld [vmem:[%s3479 + $0x30] sm:$0xf]
  %v3541 = vld [vmem:[%s3479 + $0x34] sm:$0x1]
  %v3542 = vld [vmem:[%s3479 + $0x38] sm:$0xf]
  %v3543 = vld [vmem:[%s3479 + $0x3c] sm:$0x1]
  %v3545 = vshrl.u32 %v3528, 16
  %v3547 = vrot.slane %v3545, 4
  %v3548 = vshll.u32 %v3528, 16
  %v3550 = vrot.slane %v3548, 5
  %v3551 = vor.u32 %v3547, %v3550
  %v3552 = vrot.slane %v3551, 4
  %v3554 = vshll.u32 %v3529, 16
  %v3556 = vrot.slane %v3554, 5
  %v3557 = vsel %vm61, %v3552, %v3556
  %v3559 = vshrl.u32 %v3530, 16
  %v3561 = vrot.slane %v3559, 4
  %v3562 = vshll.u32 %v3530, 16
  %v3564 = vrot.slane %v3562, 5
  %v3565 = vor.u32 %v3561, %v3564
  %v3566 = vrot.slane %v3565, 4
  %v3568 = vshll.u32 %v3531, 16
  %v3570 = vrot.slane %v3568, 5
  %v3571 = vsel %vm61, %v3566, %v3570
  %v3573 = vshrl.u32 %v3532, 16
  %v3575 = vrot.slane %v3573, 4
  %v3576 = vshll.u32 %v3532, 16
  %v3578 = vrot.slane %v3576, 5
  %v3579 = vor.u32 %v3575, %v3578
  %v3580 = vrot.slane %v3579, 4
  %v3582 = vshll.u32 %v3533, 16
  %v3584 = vrot.slane %v3582, 5
  %v3585 = vsel %vm61, %v3580, %v3584
  %v3587 = vshrl.u32 %v3534, 16
  %v3589 = vrot.slane %v3587, 4
  %v3590 = vshll.u32 %v3534, 16
  %v3592 = vrot.slane %v3590, 5
  %v3593 = vor.u32 %v3589, %v3592
  %v3594 = vrot.slane %v3593, 4
  %v3596 = vshll.u32 %v3535, 16
  %v3598 = vrot.slane %v3596, 5
  %v3599 = vsel %vm61, %v3594, %v3598
  %v3601 = vshrl.u32 %v3536, 16
  %v3603 = vrot.slane %v3601, 4
  %v3604 = vshll.u32 %v3536, 16
  %v3606 = vrot.slane %v3604, 5
  %v3607 = vor.u32 %v3603, %v3606
  %v3608 = vrot.slane %v3607, 4
  %v3610 = vshll.u32 %v3537, 16
  %v3612 = vrot.slane %v3610, 5
  %v3613 = vsel %vm61, %v3608, %v3612
  %v3615 = vshrl.u32 %v3538, 16
  %v3617 = vrot.slane %v3615, 4
  %v3618 = vshll.u32 %v3538, 16
  %v3620 = vrot.slane %v3618, 5
  %v3621 = vor.u32 %v3617, %v3620
  %v3622 = vrot.slane %v3621, 4
  %v3624 = vshll.u32 %v3539, 16
  %v3626 = vrot.slane %v3624, 5
  %v3627 = vsel %vm61, %v3622, %v3626
  %v3629 = vshrl.u32 %v3540, 16
  %v3631 = vrot.slane %v3629, 4
  %v3632 = vshll.u32 %v3540, 16
  %v3634 = vrot.slane %v3632, 5
  %v3635 = vor.u32 %v3631, %v3634
  %v3636 = vrot.slane %v3635, 4
  %v3638 = vshll.u32 %v3541, 16
  %v3640 = vrot.slane %v3638, 5
  %v3641 = vsel %vm61, %v3636, %v3640
  %v3643 = vshrl.u32 %v3542, 16
  %v3645 = vrot.slane %v3643, 4
  %v3646 = vshll.u32 %v3542, 16
  %v3648 = vrot.slane %v3646, 5
  %v3649 = vor.u32 %v3645, %v3648
  %v3650 = vrot.slane %v3649, 4
  %v3652 = vshll.u32 %v3543, 16
  %v3654 = vrot.slane %v3652, 5
  %v3655 = vsel %vm61, %v3650, %v3654
  %3656 = vrot.lane.b32.xlu0 %v3557, 96
  %v3657 = vpop.permute.xlu0 %3656
  %3658 = vrot.lane.b32.xlu0 %v3571, 96
  %v3659 = vpop.permute.xlu0 %3658
  %3660 = vrot.lane.b32.xlu0 %v3585, 96
  %v3661 = vpop.permute.xlu0 %3660
  %3662 = vrot.lane.b32.xlu0 %v3599, 96
  %v3663 = vpop.permute.xlu0 %3662
  %3664 = vrot.lane.b32.xlu0 %v3613, 96
  %v3665 = vpop.permute.xlu0 %3664
  %3666 = vrot.lane.b32.xlu0 %v3627, 96
  %v3667 = vpop.permute.xlu0 %3666
  %3668 = vrot.lane.b32.xlu0 %v3641, 96
  %v3669 = vpop.permute.xlu0 %3668
  %3670 = vrot.lane.b32.xlu0 %v3655, 96
  %v3671 = vpop.permute.xlu0 %3670
  %3680 = vst.msk [vmem:[#allocation4 + $0x4] sm:$0xf] %vm3230, %v3657
  %3681 = vst.msk [vmem:[#allocation4 + $0x10] sm:$0xf] %vm3230, %v3659
  %3682 = vst.msk [vmem:[#allocation4 + $0x1c] sm:$0xf] %vm3230, %v3661
  %3683 = vst.msk [vmem:[#allocation4 + $0x28] sm:$0xf] %vm3230, %v3663
  %3684 = vst.msk [vmem:[#allocation4 + $0x34] sm:$0xf] %vm3230, %v3665
  %3685 = vst.msk [vmem:[#allocation4 + $0x40] sm:$0xf] %vm3230, %v3667
  %3686 = vst.msk [vmem:[#allocation4 + $0x4c] sm:$0xf] %vm3230, %v3669
  %3687 = vst.msk [vmem:[#allocation4 + $0x58] sm:$0xf] %vm3230, %v3671
  %v3688 = vld [vmem:[%s3479] sm:$0xe]
  %v3689 = vld [vmem:[%s3479 + $0x4] sm:$0x1]
  %v3690 = vld [vmem:[%s3479 + $0x8] sm:$0xe]
  %v3691 = vld [vmem:[%s3479 + $0xc] sm:$0x1]
  %v3692 = vld [vmem:[%s3479 + $0x10] sm:$0xe]
  %v3693 = vld [vmem:[%s3479 + $0x14] sm:$0x1]
  %v3694 = vld [vmem:[%s3479 + $0x18] sm:$0xe]
  %v3695 = vld [vmem:[%s3479 + $0x1c] sm:$0x1]
  %v3696 = vld [vmem:[%s3479 + $0x20] sm:$0xe]
  %v3697 = vld [vmem:[%s3479 + $0x24] sm:$0x1]
  %v3698 = vld [vmem:[%s3479 + $0x28] sm:$0xe]
  %v3699 = vld [vmem:[%s3479 + $0x2c] sm:$0x1]
  %v3700 = vld [vmem:[%s3479 + $0x30] sm:$0xe]
  %v3701 = vld [vmem:[%s3479 + $0x34] sm:$0x1]
  %v3702 = vld [vmem:[%s3479 + $0x38] sm:$0xe]
  %v3703 = vld [vmem:[%s3479 + $0x3c] sm:$0x1]
  %v3720 = vrot.slane %v3688, 5
  %v3721 = vrot.slane %v3720, 4
  %v3722 = vrot.slane %v3689, 5
  %v3723 = vsel %vm3124, %v3721, %v3722
  %v3724 = vrot.slane %v3690, 5
  %v3725 = vrot.slane %v3724, 4
  %v3726 = vrot.slane %v3691, 5
  %v3727 = vsel %vm3124, %v3725, %v3726
  %v3728 = vrot.slane %v3692, 5
  %v3729 = vrot.slane %v3728, 4
  %v3730 = vrot.slane %v3693, 5
  %v3731 = vsel %vm3124, %v3729, %v3730
  %v3732 = vrot.slane %v3694, 5
  %v3733 = vrot.slane %v3732, 4
  %v3734 = vrot.slane %v3695, 5
  %v3735 = vsel %vm3124, %v3733, %v3734
  %v3736 = vrot.slane %v3696, 5
  %v3737 = vrot.slane %v3736, 4
  %v3738 = vrot.slane %v3697, 5
  %v3739 = vsel %vm3124, %v3737, %v3738
  %v3740 = vrot.slane %v3698, 5
  %v3741 = vrot.slane %v3740, 4
  %v3742 = vrot.slane %v3699, 5
  %v3743 = vsel %vm3124, %v3741, %v3742
  %v3744 = vrot.slane %v3700, 5
  %v3745 = vrot.slane %v3744, 4
  %v3746 = vrot.slane %v3701, 5
  %v3747 = vsel %vm3124, %v3745, %v3746
  %v3748 = vrot.slane %v3702, 5
  %v3749 = vrot.slane %v3748, 4
  %v3750 = vrot.slane %v3703, 5
  %v3751 = vsel %vm3124, %v3749, %v3750
  %3760 = vst.msk [vmem:[#allocation4 + $0x8] sm:$0xf] %vm2640, %v3723
  %3761 = vst.msk [vmem:[#allocation4 + $0x14] sm:$0xf] %vm2640, %v3727
  %3762 = vst.msk [vmem:[#allocation4 + $0x20] sm:$0xf] %vm2640, %v3731
  %3763 = vst.msk [vmem:[#allocation4 + $0x2c] sm:$0xf] %vm2640, %v3735
  %3764 = vst.msk [vmem:[#allocation4 + $0x38] sm:$0xf] %vm2640, %v3739
  %3765 = vst.msk [vmem:[#allocation4 + $0x44] sm:$0xf] %vm2640, %v3743
  %3766 = vst.msk [vmem:[#allocation4 + $0x50] sm:$0xf] %vm2640, %v3747
  %3767 = vst.msk [vmem:[#allocation4 + $0x5c] sm:$0xf] %vm2640, %v3751
  %v3768 = vld [vmem:[%s2778] sm:$0xf]
  %v3769 = vld [vmem:[%s2778 + $0x8] sm:$0xf]
  %v3770 = vld [vmem:[%s2778 + $0x10] sm:$0xf]
  %v3771 = vld [vmem:[%s2778 + $0x18] sm:$0xf]
  %v3772 = vld [vmem:[%s2778 + $0x20] sm:$0xf]
  %v3773 = vld [vmem:[%s2778 + $0x28] sm:$0xf]
  %v3774 = vld [vmem:[%s2778 + $0x30] sm:$0xf]
  %v3775 = vld [vmem:[%s2778 + $0x38] sm:$0xf]
  %s3776 = scalar_lea.vmem [#allocation4], 96
  %3777 = vst.msk [vmem:[%s3776] sm:$0xf] %vm2640, %v3768
  %3778 = vst.msk [vmem:[%s3776 + $0xc] sm:$0xf] %vm2640, %v3769
  %3779 = vst.msk [vmem:[%s3776 + $0x18] sm:$0xf] %vm2640, %v3770
  %3780 = vst.msk [vmem:[%s3776 + $0x24] sm:$0xf] %vm2640, %v3771
  %3781 = vst.msk [vmem:[%s3776 + $0x30] sm:$0xf] %vm2640, %v3772
  %3782 = vst.msk [vmem:[%s3776 + $0x3c] sm:$0xf] %vm2640, %v3773
  %3783 = vst.msk [vmem:[%s3776 + $0x48] sm:$0xf] %vm2640, %v3774
  %3784 = vst.msk [vmem:[%s3776 + $0x54] sm:$0xf] %vm2640, %v3775
  %v3785 = vld [vmem:[%s2778] sm:$0xf]
  %v3786 = vld [vmem:[%s2778 + $0x4] sm:$0x1]
  %v3787 = vld [vmem:[%s2778 + $0x8] sm:$0xf]
  %v3788 = vld [vmem:[%s2778 + $0xc] sm:$0x1]
  %v3789 = vld [vmem:[%s2778 + $0x10] sm:$0xf]
  %v3790 = vld [vmem:[%s2778 + $0x14] sm:$0x1]
  %v3791 = vld [vmem:[%s2778 + $0x18] sm:$0xf]
  %v3792 = vld [vmem:[%s2778 + $0x1c] sm:$0x1]
  %v3793 = vld [vmem:[%s2778 + $0x20] sm:$0xf]
  %v3794 = vld [vmem:[%s2778 + $0x24] sm:$0x1]
  %v3795 = vld [vmem:[%s2778 + $0x28] sm:$0xf]
  %v3796 = vld [vmem:[%s2778 + $0x2c] sm:$0x1]
  %v3797 = vld [vmem:[%s2778 + $0x30] sm:$0xf]
  %v3798 = vld [vmem:[%s2778 + $0x34] sm:$0x1]
  %v3799 = vld [vmem:[%s2778 + $0x38] sm:$0xf]
  %v3800 = vld [vmem:[%s2778 + $0x3c] sm:$0x1]
  %v3802 = vshrl.u32 %v3785, 16
  %v3804 = vrot.slane %v3802, 4
  %v3805 = vshll.u32 %v3785, 16
  %v3807 = vrot.slane %v3805, 5
  %v3808 = vor.u32 %v3804, %v3807
  %v3809 = vrot.slane %v3808, 4
  %v3811 = vshll.u32 %v3786, 16
  %v3813 = vrot.slane %v3811, 5
  %v3814 = vsel %vm61, %v3809, %v3813
  %v3816 = vshrl.u32 %v3787, 16
  %v3818 = vrot.slane %v3816, 4
  %v3819 = vshll.u32 %v3787, 16
  %v3821 = vrot.slane %v3819, 5
  %v3822 = vor.u32 %v3818, %v3821
  %v3823 = vrot.slane %v3822, 4
  %v3825 = vshll.u32 %v3788, 16
  %v3827 = vrot.slane %v3825, 5
  %v3828 = vsel %vm61, %v3823, %v3827
  %v3830 = vshrl.u32 %v3789, 16
  %v3832 = vrot.slane %v3830, 4
  %v3833 = vshll.u32 %v3789, 16
  %v3835 = vrot.slane %v3833, 5
  %v3836 = vor.u32 %v3832, %v3835
  %v3837 = vrot.slane %v3836, 4
  %v3839 = vshll.u32 %v3790, 16
  %v3841 = vrot.slane %v3839, 5
  %v3842 = vsel %vm61, %v3837, %v3841
  %v3844 = vshrl.u32 %v3791, 16
  %v3846 = vrot.slane %v3844, 4
  %v3847 = vshll.u32 %v3791, 16
  %v3849 = vrot.slane %v3847, 5
  %v3850 = vor.u32 %v3846, %v3849
  %v3851 = vrot.slane %v3850, 4
  %v3853 = vshll.u32 %v3792, 16
  %v3855 = vrot.slane %v3853, 5
  %v3856 = vsel %vm61, %v3851, %v3855
  %v3858 = vshrl.u32 %v3793, 16
  %v3860 = vrot.slane %v3858, 4
  %v3861 = vshll.u32 %v3793, 16
  %v3863 = vrot.slane %v3861, 5
  %v3864 = vor.u32 %v3860, %v3863
  %v3865 = vrot.slane %v3864, 4
  %v3867 = vshll.u32 %v3794, 16
  %v3869 = vrot.slane %v3867, 5
  %v3870 = vsel %vm61, %v3865, %v3869
  %v3872 = vshrl.u32 %v3795, 16
  %v3874 = vrot.slane %v3872, 4
  %v3875 = vshll.u32 %v3795, 16
  %v3877 = vrot.slane %v3875, 5
  %v3878 = vor.u32 %v3874, %v3877
  %v3879 = vrot.slane %v3878, 4
  %v3881 = vshll.u32 %v3796, 16
  %v3883 = vrot.slane %v3881, 5
  %v3884 = vsel %vm61, %v3879, %v3883
  %v3886 = vshrl.u32 %v3797, 16
  %v3888 = vrot.slane %v3886, 4
  %v3889 = vshll.u32 %v3797, 16
  %v3891 = vrot.slane %v3889, 5
  %v3892 = vor.u32 %v3888, %v3891
  %v3893 = vrot.slane %v3892, 4
  %v3895 = vshll.u32 %v3798, 16
  %v3897 = vrot.slane %v3895, 5
  %v3898 = vsel %vm61, %v3893, %v3897
  %v3900 = vshrl.u32 %v3799, 16
  %v3902 = vrot.slane %v3900, 4
  %v3903 = vshll.u32 %v3799, 16
  %v3905 = vrot.slane %v3903, 5
  %v3906 = vor.u32 %v3902, %v3905
  %v3907 = vrot.slane %v3906, 4
  %v3909 = vshll.u32 %v3800, 16
  %v3911 = vrot.slane %v3909, 5
  %v3912 = vsel %vm61, %v3907, %v3911
  %3913 = vrot.lane.b32.xlu0 %v3814, 32
  %v3914 = vpop.permute.xlu0 %3913
  %3915 = vrot.lane.b32.xlu0 %v3828, 32
  %v3916 = vpop.permute.xlu0 %3915
  %3917 = vrot.lane.b32.xlu0 %v3842, 32
  %v3918 = vpop.permute.xlu0 %3917
  %3919 = vrot.lane.b32.xlu0 %v3856, 32
  %v3920 = vpop.permute.xlu0 %3919
  %3921 = vrot.lane.b32.xlu0 %v3870, 32
  %v3922 = vpop.permute.xlu0 %3921
  %3923 = vrot.lane.b32.xlu0 %v3884, 32
  %v3924 = vpop.permute.xlu0 %3923
  %3925 = vrot.lane.b32.xlu0 %v3898, 32
  %v3926 = vpop.permute.xlu0 %3925
  %3927 = vrot.lane.b32.xlu0 %v3912, 32
  %v3928 = vpop.permute.xlu0 %3927
  %3937 = vst.msk [vmem:[%s3776] sm:$0xf] %vm3081, %v3914
  %3938 = vst.msk [vmem:[%s3776 + $0xc] sm:$0xf] %vm3081, %v3916
  %3939 = vst.msk [vmem:[%s3776 + $0x18] sm:$0xf] %vm3081, %v3918
  %3940 = vst.msk [vmem:[%s3776 + $0x24] sm:$0xf] %vm3081, %v3920
  %3941 = vst.msk [vmem:[%s3776 + $0x30] sm:$0xf] %vm3081, %v3922
  %3942 = vst.msk [vmem:[%s3776 + $0x3c] sm:$0xf] %vm3081, %v3924
  %3943 = vst.msk [vmem:[%s3776 + $0x48] sm:$0xf] %vm3081, %v3926
  %3944 = vst.msk [vmem:[%s3776 + $0x54] sm:$0xf] %vm3081, %v3928
  %v3945 = vld [vmem:[%s2778] sm:$0xe]
  %v3946 = vld [vmem:[%s2778 + $0x4] sm:$0x1]
  %v3947 = vld [vmem:[%s2778 + $0x8] sm:$0xe]
  %v3948 = vld [vmem:[%s2778 + $0xc] sm:$0x1]
  %v3949 = vld [vmem:[%s2778 + $0x10] sm:$0xe]
  %v3950 = vld [vmem:[%s2778 + $0x14] sm:$0x1]
  %v3951 = vld [vmem:[%s2778 + $0x18] sm:$0xe]
  %v3952 = vld [vmem:[%s2778 + $0x1c] sm:$0x1]
  %v3953 = vld [vmem:[%s2778 + $0x20] sm:$0xe]
  %v3954 = vld [vmem:[%s2778 + $0x24] sm:$0x1]
  %v3955 = vld [vmem:[%s2778 + $0x28] sm:$0xe]
  %v3956 = vld [vmem:[%s2778 + $0x2c] sm:$0x1]
  %v3957 = vld [vmem:[%s2778 + $0x30] sm:$0xe]
  %v3958 = vld [vmem:[%s2778 + $0x34] sm:$0x1]
  %v3959 = vld [vmem:[%s2778 + $0x38] sm:$0xe]
  %v3960 = vld [vmem:[%s2778 + $0x3c] sm:$0x1]
  %v3977 = vrot.slane %v3945, 5
  %v3978 = vrot.slane %v3977, 4
  %v3979 = vrot.slane %v3946, 5
  %v3980 = vsel %vm3124, %v3978, %v3979
  %v3981 = vrot.slane %v3947, 5
  %v3982 = vrot.slane %v3981, 4
  %v3983 = vrot.slane %v3948, 5
  %v3984 = vsel %vm3124, %v3982, %v3983
  %v3985 = vrot.slane %v3949, 5
  %v3986 = vrot.slane %v3985, 4
  %v3987 = vrot.slane %v3950, 5
  %v3988 = vsel %vm3124, %v3986, %v3987
  %v3989 = vrot.slane %v3951, 5
  %v3990 = vrot.slane %v3989, 4
  %v3991 = vrot.slane %v3952, 5
  %v3992 = vsel %vm3124, %v3990, %v3991
  %v3993 = vrot.slane %v3953, 5
  %v3994 = vrot.slane %v3993, 4
  %v3995 = vrot.slane %v3954, 5
  %v3996 = vsel %vm3124, %v3994, %v3995
  %v3997 = vrot.slane %v3955, 5
  %v3998 = vrot.slane %v3997, 4
  %v3999 = vrot.slane %v3956, 5
  %v4000 = vsel %vm3124, %v3998, %v3999
  %v4001 = vrot.slane %v3957, 5
  %v4002 = vrot.slane %v4001, 4
  %v4003 = vrot.slane %v3958, 5
  %v4004 = vsel %vm3124, %v4002, %v4003
  %v4005 = vrot.slane %v3959, 5
  %v4006 = vrot.slane %v4005, 4
  %v4007 = vrot.slane %v3960, 5
  %v4008 = vsel %vm3124, %v4006, %v4007
  %4009 = vrot.lane.b32.xlu0 %v3980, 64
  %v4010 = vpop.permute.xlu0 %4009
  %4011 = vrot.lane.b32.xlu0 %v3984, 64
  %v4012 = vpop.permute.xlu0 %4011
  %4013 = vrot.lane.b32.xlu0 %v3988, 64
  %v4014 = vpop.permute.xlu0 %4013
  %4015 = vrot.lane.b32.xlu0 %v3992, 64
  %v4016 = vpop.permute.xlu0 %4015
  %4017 = vrot.lane.b32.xlu0 %v3996, 64
  %v4018 = vpop.permute.xlu0 %4017
  %4019 = vrot.lane.b32.xlu0 %v4000, 64
  %v4020 = vpop.permute.xlu0 %4019
  %4021 = vrot.lane.b32.xlu0 %v4004, 64
  %v4022 = vpop.permute.xlu0 %4021
  %4023 = vrot.lane.b32.xlu0 %v4008, 64
  %v4024 = vpop.permute.xlu0 %4023
  %4033 = vst.msk [vmem:[%s3776] sm:$0xf] %vm3181, %v4010
  %4034 = vst.msk [vmem:[%s3776 + $0xc] sm:$0xf] %vm3181, %v4012
  %4035 = vst.msk [vmem:[%s3776 + $0x18] sm:$0xf] %vm3181, %v4014
  %4036 = vst.msk [vmem:[%s3776 + $0x24] sm:$0xf] %vm3181, %v4016
  %4037 = vst.msk [vmem:[%s3776 + $0x30] sm:$0xf] %vm3181, %v4018
  %4038 = vst.msk [vmem:[%s3776 + $0x3c] sm:$0xf] %vm3181, %v4020
  %4039 = vst.msk [vmem:[%s3776 + $0x48] sm:$0xf] %vm3181, %v4022
  %4040 = vst.msk [vmem:[%s3776 + $0x54] sm:$0xf] %vm3181, %v4024
  %v4041 = vld [vmem:[%s2864] sm:$0xf]
  %v4042 = vld [vmem:[%s2864 + $0x8] sm:$0xf]
  %v4043 = vld [vmem:[%s2864 + $0x10] sm:$0xf]
  %v4044 = vld [vmem:[%s2864 + $0x18] sm:$0xf]
  %v4045 = vld [vmem:[%s2864 + $0x20] sm:$0xf]
  %v4046 = vld [vmem:[%s2864 + $0x28] sm:$0xf]
  %v4047 = vld [vmem:[%s2864 + $0x30] sm:$0xf]
  %v4048 = vld [vmem:[%s2864 + $0x38] sm:$0xf]
  %4057 = vrot.lane.b32.xlu0 %v4041, 96
  %v4058 = vpop.permute.xlu0 %4057
  %4059 = vrot.lane.b32.xlu0 %v4042, 96
  %v4060 = vpop.permute.xlu0 %4059
  %4061 = vrot.lane.b32.xlu0 %v4043, 96
  %v4062 = vpop.permute.xlu0 %4061
  %4063 = vrot.lane.b32.xlu0 %v4044, 96
  %v4064 = vpop.permute.xlu0 %4063
  %4065 = vrot.lane.b32.xlu0 %v4045, 96
  %v4066 = vpop.permute.xlu0 %4065
  %4067 = vrot.lane.b32.xlu0 %v4046, 96
  %v4068 = vpop.permute.xlu0 %4067
  %4069 = vrot.lane.b32.xlu0 %v4047, 96
  %v4070 = vpop.permute.xlu0 %4069
  %4071 = vrot.lane.b32.xlu0 %v4048, 96
  %v4072 = vpop.permute.xlu0 %4071
  %4081 = vst.msk [vmem:[%s3776] sm:$0xf] %vm3230, %v4058
  %4082 = vst.msk [vmem:[%s3776 + $0xc] sm:$0xf] %vm3230, %v4060
  %4083 = vst.msk [vmem:[%s3776 + $0x18] sm:$0xf] %vm3230, %v4062
  %4084 = vst.msk [vmem:[%s3776 + $0x24] sm:$0xf] %vm3230, %v4064
  %4085 = vst.msk [vmem:[%s3776 + $0x30] sm:$0xf] %vm3230, %v4066
  %4086 = vst.msk [vmem:[%s3776 + $0x3c] sm:$0xf] %vm3230, %v4068
  %4087 = vst.msk [vmem:[%s3776 + $0x48] sm:$0xf] %vm3230, %v4070
  %4088 = vst.msk [vmem:[%s3776 + $0x54] sm:$0xf] %vm3230, %v4072
  %v4089 = vld [vmem:[%s2864] sm:$0xf]
  %v4090 = vld [vmem:[%s2864 + $0x4] sm:$0x1]
  %v4091 = vld [vmem:[%s2864 + $0x8] sm:$0xf]
  %v4092 = vld [vmem:[%s2864 + $0xc] sm:$0x1]
  %v4093 = vld [vmem:[%s2864 + $0x10] sm:$0xf]
  %v4094 = vld [vmem:[%s2864 + $0x14] sm:$0x1]
  %v4095 = vld [vmem:[%s2864 + $0x18] sm:$0xf]
  %v4096 = vld [vmem:[%s2864 + $0x1c] sm:$0x1]
  %v4097 = vld [vmem:[%s2864 + $0x20] sm:$0xf]
  %v4098 = vld [vmem:[%s2864 + $0x24] sm:$0x1]
  %v4099 = vld [vmem:[%s2864 + $0x28] sm:$0xf]
  %v4100 = vld [vmem:[%s2864 + $0x2c] sm:$0x1]
  %v4101 = vld [vmem:[%s2864 + $0x30] sm:$0xf]
  %v4102 = vld [vmem:[%s2864 + $0x34] sm:$0x1]
  %v4103 = vld [vmem:[%s2864 + $0x38] sm:$0xf]
  %v4104 = vld [vmem:[%s2864 + $0x3c] sm:$0x1]
  %v4106 = vshrl.u32 %v4089, 16
  %v4108 = vrot.slane %v4106, 4
  %v4109 = vshll.u32 %v4089, 16
  %v4111 = vrot.slane %v4109, 5
  %v4112 = vor.u32 %v4108, %v4111
  %v4113 = vrot.slane %v4112, 4
  %v4115 = vshll.u32 %v4090, 16
  %v4117 = vrot.slane %v4115, 5
  %v4118 = vsel %vm61, %v4113, %v4117
  %v4120 = vshrl.u32 %v4091, 16
  %v4122 = vrot.slane %v4120, 4
  %v4123 = vshll.u32 %v4091, 16
  %v4125 = vrot.slane %v4123, 5
  %v4126 = vor.u32 %v4122, %v4125
  %v4127 = vrot.slane %v4126, 4
  %v4129 = vshll.u32 %v4092, 16
  %v4131 = vrot.slane %v4129, 5
  %v4132 = vsel %vm61, %v4127, %v4131
  %v4134 = vshrl.u32 %v4093, 16
  %v4136 = vrot.slane %v4134, 4
  %v4137 = vshll.u32 %v4093, 16
  %v4139 = vrot.slane %v4137, 5
  %v4140 = vor.u32 %v4136, %v4139
  %v4141 = vrot.slane %v4140, 4
  %v4143 = vshll.u32 %v4094, 16
  %v4145 = vrot.slane %v4143, 5
  %v4146 = vsel %vm61, %v4141, %v4145
  %v4148 = vshrl.u32 %v4095, 16
  %v4150 = vrot.slane %v4148, 4
  %v4151 = vshll.u32 %v4095, 16
  %v4153 = vrot.slane %v4151, 5
  %v4154 = vor.u32 %v4150, %v4153
  %v4155 = vrot.slane %v4154, 4
  %v4157 = vshll.u32 %v4096, 16
  %v4159 = vrot.slane %v4157, 5
  %v4160 = vsel %vm61, %v4155, %v4159
  %v4162 = vshrl.u32 %v4097, 16
  %v4164 = vrot.slane %v4162, 4
  %v4165 = vshll.u32 %v4097, 16
  %v4167 = vrot.slane %v4165, 5
  %v4168 = vor.u32 %v4164, %v4167
  %v4169 = vrot.slane %v4168, 4
  %v4171 = vshll.u32 %v4098, 16
  %v4173 = vrot.slane %v4171, 5
  %v4174 = vsel %vm61, %v4169, %v4173
  %v4176 = vshrl.u32 %v4099, 16
  %v4178 = vrot.slane %v4176, 4
  %v4179 = vshll.u32 %v4099, 16
  %v4181 = vrot.slane %v4179, 5
  %v4182 = vor.u32 %v4178, %v4181
  %v4183 = vrot.slane %v4182, 4
  %v4185 = vshll.u32 %v4100, 16
  %v4187 = vrot.slane %v4185, 5
  %v4188 = vsel %vm61, %v4183, %v4187
  %v4190 = vshrl.u32 %v4101, 16
  %v4192 = vrot.slane %v4190, 4
  %v4193 = vshll.u32 %v4101, 16
  %v4195 = vrot.slane %v4193, 5
  %v4196 = vor.u32 %v4192, %v4195
  %v4197 = vrot.slane %v4196, 4
  %v4199 = vshll.u32 %v4102, 16
  %v4201 = vrot.slane %v4199, 5
  %v4202 = vsel %vm61, %v4197, %v4201
  %v4204 = vshrl.u32 %v4103, 16
  %v4206 = vrot.slane %v4204, 4
  %v4207 = vshll.u32 %v4103, 16
  %v4209 = vrot.slane %v4207, 5
  %v4210 = vor.u32 %v4206, %v4209
  %v4211 = vrot.slane %v4210, 4
  %v4213 = vshll.u32 %v4104, 16
  %v4215 = vrot.slane %v4213, 5
  %v4216 = vsel %vm61, %v4211, %v4215
  %4225 = vst.msk [vmem:[%s3776 + $0x4] sm:$0xf] %vm2640, %v4118
  %4226 = vst.msk [vmem:[%s3776 + $0x10] sm:$0xf] %vm2640, %v4132
  %4227 = vst.msk [vmem:[%s3776 + $0x1c] sm:$0xf] %vm2640, %v4146
  %4228 = vst.msk [vmem:[%s3776 + $0x28] sm:$0xf] %vm2640, %v4160
  %4229 = vst.msk [vmem:[%s3776 + $0x34] sm:$0xf] %vm2640, %v4174
  %4230 = vst.msk [vmem:[%s3776 + $0x40] sm:$0xf] %vm2640, %v4188
  %4231 = vst.msk [vmem:[%s3776 + $0x4c] sm:$0xf] %vm2640, %v4202
  %4232 = vst.msk [vmem:[%s3776 + $0x58] sm:$0xf] %vm2640, %v4216
  %v4233 = vld [vmem:[%s2864] sm:$0xe]
  %v4234 = vld [vmem:[%s2864 + $0x4] sm:$0x1]
  %v4235 = vld [vmem:[%s2864 + $0x8] sm:$0xe]
  %v4236 = vld [vmem:[%s2864 + $0xc] sm:$0x1]
  %v4237 = vld [vmem:[%s2864 + $0x10] sm:$0xe]
  %v4238 = vld [vmem:[%s2864 + $0x14] sm:$0x1]
  %v4239 = vld [vmem:[%s2864 + $0x18] sm:$0xe]
  %v4240 = vld [vmem:[%s2864 + $0x1c] sm:$0x1]
  %v4241 = vld [vmem:[%s2864 + $0x20] sm:$0xe]
  %v4242 = vld [vmem:[%s2864 + $0x24] sm:$0x1]
  %v4243 = vld [vmem:[%s2864 + $0x28] sm:$0xe]
  %v4244 = vld [vmem:[%s2864 + $0x2c] sm:$0x1]
  %v4245 = vld [vmem:[%s2864 + $0x30] sm:$0xe]
  %v4246 = vld [vmem:[%s2864 + $0x34] sm:$0x1]
  %v4247 = vld [vmem:[%s2864 + $0x38] sm:$0xe]
  %v4248 = vld [vmem:[%s2864 + $0x3c] sm:$0x1]
  %v4265 = vrot.slane %v4233, 5
  %v4266 = vrot.slane %v4265, 4
  %v4267 = vrot.slane %v4234, 5
  %v4268 = vsel %vm3124, %v4266, %v4267
  %v4269 = vrot.slane %v4235, 5
  %v4270 = vrot.slane %v4269, 4
  %v4271 = vrot.slane %v4236, 5
  %v4272 = vsel %vm3124, %v4270, %v4271
  %v4273 = vrot.slane %v4237, 5
  %v4274 = vrot.slane %v4273, 4
  %v4275 = vrot.slane %v4238, 5
  %v4276 = vsel %vm3124, %v4274, %v4275
  %v4277 = vrot.slane %v4239, 5
  %v4278 = vrot.slane %v4277, 4
  %v4279 = vrot.slane %v4240, 5
  %v4280 = vsel %vm3124, %v4278, %v4279
  %v4281 = vrot.slane %v4241, 5
  %v4282 = vrot.slane %v4281, 4
  %v4283 = vrot.slane %v4242, 5
  %v4284 = vsel %vm3124, %v4282, %v4283
  %v4285 = vrot.slane %v4243, 5
  %v4286 = vrot.slane %v4285, 4
  %v4287 = vrot.slane %v4244, 5
  %v4288 = vsel %vm3124, %v4286, %v4287
  %v4289 = vrot.slane %v4245, 5
  %v4290 = vrot.slane %v4289, 4
  %v4291 = vrot.slane %v4246, 5
  %v4292 = vsel %vm3124, %v4290, %v4291
  %v4293 = vrot.slane %v4247, 5
  %v4294 = vrot.slane %v4293, 4
  %v4295 = vrot.slane %v4248, 5
  %v4296 = vsel %vm3124, %v4294, %v4295
  %4297 = vrot.lane.b32.xlu0 %v4268, 32
  %v4298 = vpop.permute.xlu0 %4297
  %4299 = vrot.lane.b32.xlu0 %v4272, 32
  %v4300 = vpop.permute.xlu0 %4299
  %4301 = vrot.lane.b32.xlu0 %v4276, 32
  %v4302 = vpop.permute.xlu0 %4301
  %4303 = vrot.lane.b32.xlu0 %v4280, 32
  %v4304 = vpop.permute.xlu0 %4303
  %4305 = vrot.lane.b32.xlu0 %v4284, 32
  %v4306 = vpop.permute.xlu0 %4305
  %4307 = vrot.lane.b32.xlu0 %v4288, 32
  %v4308 = vpop.permute.xlu0 %4307
  %4309 = vrot.lane.b32.xlu0 %v4292, 32
  %v4310 = vpop.permute.xlu0 %4309
  %4311 = vrot.lane.b32.xlu0 %v4296, 32
  %v4312 = vpop.permute.xlu0 %4311
  %4321 = vst.msk [vmem:[%s3776 + $0x4] sm:$0xf] %vm3081, %v4298
  %4322 = vst.msk [vmem:[%s3776 + $0x10] sm:$0xf] %vm3081, %v4300
  %4323 = vst.msk [vmem:[%s3776 + $0x1c] sm:$0xf] %vm3081, %v4302
  %4324 = vst.msk [vmem:[%s3776 + $0x28] sm:$0xf] %vm3081, %v4304
  %4325 = vst.msk [vmem:[%s3776 + $0x34] sm:$0xf] %vm3081, %v4306
  %4326 = vst.msk [vmem:[%s3776 + $0x40] sm:$0xf] %vm3081, %v4308
  %4327 = vst.msk [vmem:[%s3776 + $0x4c] sm:$0xf] %vm3081, %v4310
  %4328 = vst.msk [vmem:[%s3776 + $0x58] sm:$0xf] %vm3081, %v4312
  %s4329 = scalar_lea.vmem [#allocation3], 96
  %v4330 = vld [vmem:[%s4329] sm:$0xf]
  %v4331 = vld [vmem:[%s4329 + $0x8] sm:$0xf]
  %v4332 = vld [vmem:[%s4329 + $0x10] sm:$0xf]
  %v4333 = vld [vmem:[%s4329 + $0x18] sm:$0xf]
  %v4334 = vld [vmem:[%s4329 + $0x20] sm:$0xf]
  %v4335 = vld [vmem:[%s4329 + $0x28] sm:$0xf]
  %v4336 = vld [vmem:[%s4329 + $0x30] sm:$0xf]
  %v4337 = vld [vmem:[%s4329 + $0x38] sm:$0xf]
  %4346 = vrot.lane.b32.xlu0 %v4330, 64
  %v4347 = vpop.permute.xlu0 %4346
  %4348 = vrot.lane.b32.xlu0 %v4331, 64
  %v4349 = vpop.permute.xlu0 %4348
  %4350 = vrot.lane.b32.xlu0 %v4332, 64
  %v4351 = vpop.permute.xlu0 %4350
  %4352 = vrot.lane.b32.xlu0 %v4333, 64
  %v4353 = vpop.permute.xlu0 %4352
  %4354 = vrot.lane.b32.xlu0 %v4334, 64
  %v4355 = vpop.permute.xlu0 %4354
  %4356 = vrot.lane.b32.xlu0 %v4335, 64
  %v4357 = vpop.permute.xlu0 %4356
  %4358 = vrot.lane.b32.xlu0 %v4336, 64
  %v4359 = vpop.permute.xlu0 %4358
  %4360 = vrot.lane.b32.xlu0 %v4337, 64
  %v4361 = vpop.permute.xlu0 %4360
  %4370 = vst.msk [vmem:[%s3776 + $0x4] sm:$0xf] %vm3181, %v4347
  %4371 = vst.msk [vmem:[%s3776 + $0x10] sm:$0xf] %vm3181, %v4349
  %4372 = vst.msk [vmem:[%s3776 + $0x1c] sm:$0xf] %vm3181, %v4351
  %4373 = vst.msk [vmem:[%s3776 + $0x28] sm:$0xf] %vm3181, %v4353
  %4374 = vst.msk [vmem:[%s3776 + $0x34] sm:$0xf] %vm3181, %v4355
  %4375 = vst.msk [vmem:[%s3776 + $0x40] sm:$0xf] %vm3181, %v4357
  %4376 = vst.msk [vmem:[%s3776 + $0x4c] sm:$0xf] %vm3181, %v4359
  %4377 = vst.msk [vmem:[%s3776 + $0x58] sm:$0xf] %vm3181, %v4361
  %v4378 = vld [vmem:[%s4329] sm:$0xf]
  %v4379 = vld [vmem:[%s4329 + $0x4] sm:$0x1]
  %v4380 = vld [vmem:[%s4329 + $0x8] sm:$0xf]
  %v4381 = vld [vmem:[%s4329 + $0xc] sm:$0x1]
  %v4382 = vld [vmem:[%s4329 + $0x10] sm:$0xf]
  %v4383 = vld [vmem:[%s4329 + $0x14] sm:$0x1]
  %v4384 = vld [vmem:[%s4329 + $0x18] sm:$0xf]
  %v4385 = vld [vmem:[%s4329 + $0x1c] sm:$0x1]
  %v4386 = vld [vmem:[%s4329 + $0x20] sm:$0xf]
  %v4387 = vld [vmem:[%s4329 + $0x24] sm:$0x1]
  %v4388 = vld [vmem:[%s4329 + $0x28] sm:$0xf]
  %v4389 = vld [vmem:[%s4329 + $0x2c] sm:$0x1]
  %v4390 = vld [vmem:[%s4329 + $0x30] sm:$0xf]
  %v4391 = vld [vmem:[%s4329 + $0x34] sm:$0x1]
  %v4392 = vld [vmem:[%s4329 + $0x38] sm:$0xf]
  %v4393 = vld [vmem:[%s4329 + $0x3c] sm:$0x1]
  %v4395 = vshrl.u32 %v4378, 16
  %v4397 = vrot.slane %v4395, 4
  %v4398 = vshll.u32 %v4378, 16
  %v4400 = vrot.slane %v4398, 5
  %v4401 = vor.u32 %v4397, %v4400
  %v4402 = vrot.slane %v4401, 4
  %v4404 = vshll.u32 %v4379, 16
  %v4406 = vrot.slane %v4404, 5
  %v4407 = vsel %vm61, %v4402, %v4406
  %v4409 = vshrl.u32 %v4380, 16
  %v4411 = vrot.slane %v4409, 4
  %v4412 = vshll.u32 %v4380, 16
  %v4414 = vrot.slane %v4412, 5
  %v4415 = vor.u32 %v4411, %v4414
  %v4416 = vrot.slane %v4415, 4
  %v4418 = vshll.u32 %v4381, 16
  %v4420 = vrot.slane %v4418, 5
  %v4421 = vsel %vm61, %v4416, %v4420
  %v4423 = vshrl.u32 %v4382, 16
  %v4425 = vrot.slane %v4423, 4
  %v4426 = vshll.u32 %v4382, 16
  %v4428 = vrot.slane %v4426, 5
  %v4429 = vor.u32 %v4425, %v4428
  %v4430 = vrot.slane %v4429, 4
  %v4432 = vshll.u32 %v4383, 16
  %v4434 = vrot.slane %v4432, 5
  %v4435 = vsel %vm61, %v4430, %v4434
  %v4437 = vshrl.u32 %v4384, 16
  %v4439 = vrot.slane %v4437, 4
  %v4440 = vshll.u32 %v4384, 16
  %v4442 = vrot.slane %v4440, 5
  %v4443 = vor.u32 %v4439, %v4442
  %v4444 = vrot.slane %v4443, 4
  %v4446 = vshll.u32 %v4385, 16
  %v4448 = vrot.slane %v4446, 5
  %v4449 = vsel %vm61, %v4444, %v4448
  %v4451 = vshrl.u32 %v4386, 16
  %v4453 = vrot.slane %v4451, 4
  %v4454 = vshll.u32 %v4386, 16
  %v4456 = vrot.slane %v4454, 5
  %v4457 = vor.u32 %v4453, %v4456
  %v4458 = vrot.slane %v4457, 4
  %v4460 = vshll.u32 %v4387, 16
  %v4462 = vrot.slane %v4460, 5
  %v4463 = vsel %vm61, %v4458, %v4462
  %v4465 = vshrl.u32 %v4388, 16
  %v4467 = vrot.slane %v4465, 4
  %v4468 = vshll.u32 %v4388, 16
  %v4470 = vrot.slane %v4468, 5
  %v4471 = vor.u32 %v4467, %v4470
  %v4472 = vrot.slane %v4471, 4
  %v4474 = vshll.u32 %v4389, 16
  %v4476 = vrot.slane %v4474, 5
  %v4477 = vsel %vm61, %v4472, %v4476
  %v4479 = vshrl.u32 %v4390, 16
  %v4481 = vrot.slane %v4479, 4
  %v4482 = vshll.u32 %v4390, 16
  %v4484 = vrot.slane %v4482, 5
  %v4485 = vor.u32 %v4481, %v4484
  %v4486 = vrot.slane %v4485, 4
  %v4488 = vshll.u32 %v4391, 16
  %v4490 = vrot.slane %v4488, 5
  %v4491 = vsel %vm61, %v4486, %v4490
  %v4493 = vshrl.u32 %v4392, 16
  %v4495 = vrot.slane %v4493, 4
  %v4496 = vshll.u32 %v4392, 16
  %v4498 = vrot.slane %v4496, 5
  %v4499 = vor.u32 %v4495, %v4498
  %v4500 = vrot.slane %v4499, 4
  %v4502 = vshll.u32 %v4393, 16
  %v4504 = vrot.slane %v4502, 5
  %v4505 = vsel %vm61, %v4500, %v4504
  %4506 = vrot.lane.b32.xlu0 %v4407, 96
  %v4507 = vpop.permute.xlu0 %4506
  %4508 = vrot.lane.b32.xlu0 %v4421, 96
  %v4509 = vpop.permute.xlu0 %4508
  %4510 = vrot.lane.b32.xlu0 %v4435, 96
  %v4511 = vpop.permute.xlu0 %4510
  %4512 = vrot.lane.b32.xlu0 %v4449, 96
  %v4513 = vpop.permute.xlu0 %4512
  %4514 = vrot.lane.b32.xlu0 %v4463, 96
  %v4515 = vpop.permute.xlu0 %4514
  %4516 = vrot.lane.b32.xlu0 %v4477, 96
  %v4517 = vpop.permute.xlu0 %4516
  %4518 = vrot.lane.b32.xlu0 %v4491, 96
  %v4519 = vpop.permute.xlu0 %4518
  %4520 = vrot.lane.b32.xlu0 %v4505, 96
  %v4521 = vpop.permute.xlu0 %4520
  %4530 = vst.msk [vmem:[%s3776 + $0x4] sm:$0xf] %vm3230, %v4507
  %4531 = vst.msk [vmem:[%s3776 + $0x10] sm:$0xf] %vm3230, %v4509
  %4532 = vst.msk [vmem:[%s3776 + $0x1c] sm:$0xf] %vm3230, %v4511
  %4533 = vst.msk [vmem:[%s3776 + $0x28] sm:$0xf] %vm3230, %v4513
  %4534 = vst.msk [vmem:[%s3776 + $0x34] sm:$0xf] %vm3230, %v4515
  %4535 = vst.msk [vmem:[%s3776 + $0x40] sm:$0xf] %vm3230, %v4517
  %4536 = vst.msk [vmem:[%s3776 + $0x4c] sm:$0xf] %vm3230, %v4519
  %4537 = vst.msk [vmem:[%s3776 + $0x58] sm:$0xf] %vm3230, %v4521
  %v4538 = vld [vmem:[%s4329] sm:$0xe]
  %v4539 = vld [vmem:[%s4329 + $0x4] sm:$0x1]
  %v4540 = vld [vmem:[%s4329 + $0x8] sm:$0xe]
  %v4541 = vld [vmem:[%s4329 + $0xc] sm:$0x1]
  %v4542 = vld [vmem:[%s4329 + $0x10] sm:$0xe]
  %v4543 = vld [vmem:[%s4329 + $0x14] sm:$0x1]
  %v4544 = vld [vmem:[%s4329 + $0x18] sm:$0xe]
  %v4545 = vld [vmem:[%s4329 + $0x1c] sm:$0x1]
  %v4546 = vld [vmem:[%s4329 + $0x20] sm:$0xe]
  %v4547 = vld [vmem:[%s4329 + $0x24] sm:$0x1]
  %v4548 = vld [vmem:[%s4329 + $0x28] sm:$0xe]
  %v4549 = vld [vmem:[%s4329 + $0x2c] sm:$0x1]
  %v4550 = vld [vmem:[%s4329 + $0x30] sm:$0xe]
  %v4551 = vld [vmem:[%s4329 + $0x34] sm:$0x1]
  %v4552 = vld [vmem:[%s4329 + $0x38] sm:$0xe]
  %v4553 = vld [vmem:[%s4329 + $0x3c] sm:$0x1]
  %v4570 = vrot.slane %v4538, 5
  %v4571 = vrot.slane %v4570, 4
  %v4572 = vrot.slane %v4539, 5
  %v4573 = vsel %vm3124, %v4571, %v4572
  %v4574 = vrot.slane %v4540, 5
  %v4575 = vrot.slane %v4574, 4
  %v4576 = vrot.slane %v4541, 5
  %v4577 = vsel %vm3124, %v4575, %v4576
  %v4578 = vrot.slane %v4542, 5
  %v4579 = vrot.slane %v4578, 4
  %v4580 = vrot.slane %v4543, 5
  %v4581 = vsel %vm3124, %v4579, %v4580
  %v4582 = vrot.slane %v4544, 5
  %v4583 = vrot.slane %v4582, 4
  %v4584 = vrot.slane %v4545, 5
  %v4585 = vsel %vm3124, %v4583, %v4584
  %v4586 = vrot.slane %v4546, 5
  %v4587 = vrot.slane %v4586, 4
  %v4588 = vrot.slane %v4547, 5
  %v4589 = vsel %vm3124, %v4587, %v4588
  %v4590 = vrot.slane %v4548, 5
  %v4591 = vrot.slane %v4590, 4
  %v4592 = vrot.slane %v4549, 5
  %v4593 = vsel %vm3124, %v4591, %v4592
  %v4594 = vrot.slane %v4550, 5
  %v4595 = vrot.slane %v4594, 4
  %v4596 = vrot.slane %v4551, 5
  %v4597 = vsel %vm3124, %v4595, %v4596
  %v4598 = vrot.slane %v4552, 5
  %v4599 = vrot.slane %v4598, 4
  %v4600 = vrot.slane %v4553, 5
  %v4601 = vsel %vm3124, %v4599, %v4600
  %4610 = vst.msk [vmem:[%s3776 + $0x8] sm:$0xf] %vm2640, %v4573
  %4611 = vst.msk [vmem:[%s3776 + $0x14] sm:$0xf] %vm2640, %v4577
  %4612 = vst.msk [vmem:[%s3776 + $0x20] sm:$0xf] %vm2640, %v4581
  %4613 = vst.msk [vmem:[%s3776 + $0x2c] sm:$0xf] %vm2640, %v4585
  %4614 = vst.msk [vmem:[%s3776 + $0x38] sm:$0xf] %vm2640, %v4589
  %4615 = vst.msk [vmem:[%s3776 + $0x44] sm:$0xf] %vm2640, %v4593
  %4616 = vst.msk [vmem:[%s3776 + $0x50] sm:$0xf] %vm2640, %v4597
  %4617 = vst.msk [vmem:[%s3776 + $0x5c] sm:$0xf] %vm2640, %v4601
  %v4618 = vld [vmem:[#allocation4] sm:$0xff]
  %v4619 = vld [vmem:[#allocation4 + $0x8] sm:$0xf]
  %v4620 = vld [vmem:[#allocation4 + $0xc] sm:$0xff]
  %v4621 = vld [vmem:[#allocation4 + $0x14] sm:$0xf]
  %v4622 = vld [vmem:[#allocation4 + $0x18] sm:$0xff]
  %v4623 = vld [vmem:[#allocation4 + $0x20] sm:$0xf]
  %v4624 = vld [vmem:[#allocation4 + $0x24] sm:$0xff]
  %v4625 = vld [vmem:[#allocation4 + $0x2c] sm:$0xf]
  %v4626 = vld [vmem:[#allocation4 + $0x30] sm:$0xff]
  %v4627 = vld [vmem:[#allocation4 + $0x38] sm:$0xf]
  %v4628 = vld [vmem:[#allocation4 + $0x3c] sm:$0xff]
  %v4629 = vld [vmem:[#allocation4 + $0x44] sm:$0xf]
  %v4630 = vld [vmem:[#allocation4 + $0x48] sm:$0xff]
  %v4631 = vld [vmem:[#allocation4 + $0x50] sm:$0xf]
  %v4632 = vld [vmem:[#allocation4 + $0x54] sm:$0xff]
  %v4633 = vld [vmem:[#allocation4 + $0x5c] sm:$0xf]
  %v4634 = vld [vmem:[#allocation4 + $0x60] sm:$0xff]
  %v4635 = vld [vmem:[#allocation4 + $0x68] sm:$0xf]
  %v4636 = vld [vmem:[#allocation4 + $0x6c] sm:$0xff]
  %v4637 = vld [vmem:[#allocation4 + $0x74] sm:$0xf]
  %v4638 = vld [vmem:[#allocation4 + $0x78] sm:$0xff]
  %v4639 = vld [vmem:[#allocation4 + $0x80] sm:$0xf]
  %v4640 = vld [vmem:[#allocation4 + $0x84] sm:$0xff]
  %v4641 = vld [vmem:[#allocation4 + $0x8c] sm:$0xf]
  %v4642 = vld [vmem:[#allocation4 + $0x90] sm:$0xff]
  %v4643 = vld [vmem:[#allocation4 + $0x98] sm:$0xf]
  %v4644 = vld [vmem:[#allocation4 + $0x9c] sm:$0xff]
  %v4645 = vld [vmem:[#allocation4 + $0xa4] sm:$0xf]
  %v4646 = vld [vmem:[#allocation4 + $0xa8] sm:$0xff]
  %v4647 = vld [vmem:[#allocation4 + $0xb0] sm:$0xf]
  %v4648 = vld [vmem:[#allocation4 + $0xb4] sm:$0xff]
  %v4649 = vld [vmem:[#allocation4 + $0xbc] sm:$0xf]
  %v4650 = vld [vmem:[%s2] sm:$0xf]
  %v4651 = vld [vmem:[%s2 + $0x4] sm:$0xf]
  %v4652 = vld [vmem:[%s2 + $0x8] sm:$0xf]
  %v4653 = vld [vmem:[%s2 + $0xc] sm:$0xf]
  %v4654 = vld [vmem:[%s2 + $0x10] sm:$0xf]
  %v4655 = vld [vmem:[%s2 + $0x14] sm:$0xf]
  %v4656 = vld [vmem:[%s2 + $0x18] sm:$0xf]
  %v4657 = vld [vmem:[%s2 + $0x1c] sm:$0xf]
  %v4658 = vld [vmem:[%s2 + $0x20] sm:$0xf]
  %v4659 = vld [vmem:[%s2 + $0x24] sm:$0xf]
  %v4660 = vld [vmem:[%s2 + $0x28] sm:$0xf]
  %v4661 = vld [vmem:[%s2 + $0x2c] sm:$0xf]
  %v4662 = vld [vmem:[%s2 + $0x30] sm:$0xf]
  %v4663 = vld [vmem:[%s2 + $0x34] sm:$0xf]
  %v4664 = vld [vmem:[%s2 + $0x38] sm:$0xf]
  %v4665 = vld [vmem:[%s2 + $0x3c] sm:$0xf]
  %v4666 = vld [vmem:[%s2 + $0x40] sm:$0xf]
  %v4667 = vld [vmem:[%s2 + $0x44] sm:$0xf]
  %v4668 = vld [vmem:[%s2 + $0x48] sm:$0xf]
  %v4669 = vld [vmem:[%s2 + $0x4c] sm:$0xf]
  %v4670 = vld [vmem:[%s2 + $0x50] sm:$0xf]
  %v4671 = vld [vmem:[%s2 + $0x54] sm:$0xf]
  %v4672 = vld [vmem:[%s2 + $0x58] sm:$0xf]
  %v4673 = vld [vmem:[%s2 + $0x5c] sm:$0xf]
  %v4674 = vld [vmem:[%s2 + $0x60] sm:$0xf]
  %v4675 = vld [vmem:[%s2 + $0x64] sm:$0xf]
  %v4676 = vld [vmem:[%s2 + $0x68] sm:$0xf]
  %v4677 = vld [vmem:[%s2 + $0x6c] sm:$0xf]
  %v4678 = vld [vmem:[%s2 + $0x70] sm:$0xf]
  %v4679 = vld [vmem:[%s2 + $0x74] sm:$0xf]
  %v4680 = vld [vmem:[%s2 + $0x78] sm:$0xf]
  %v4681 = vld [vmem:[%s2 + $0x7c] sm:$0xf]
  %v4682 = vld [vmem:[%s2 + $0x80] sm:$0xf]
  %v4683 = vld [vmem:[%s2 + $0x84] sm:$0xf]
  %v4684 = vld [vmem:[%s2 + $0x88] sm:$0xf]
  %v4685 = vld [vmem:[%s2 + $0x8c] sm:$0xf]
  %v4686 = vld [vmem:[#allocation2] sm:$0xf]
  %v4687 = vld [vmem:[#allocation2 + $0x8] sm:$0xf]
  %v4688 = vld [vmem:[#allocation2 + $0x10] sm:$0xf]
  %v4689 = vld [vmem:[#allocation2 + $0x18] sm:$0xf]
  %v4690 = vld [vmem:[#allocation2 + $0x20] sm:$0xf]
  %v4691 = vld [vmem:[#allocation2 + $0x28] sm:$0xf]
  %v4692 = vld [vmem:[#allocation2 + $0x30] sm:$0xf]
  %v4693 = vld [vmem:[#allocation2 + $0x38] sm:$0xf]
  %v4694 = vld [vmem:[#allocation2 + $0x40] sm:$0xf]
  %v4695 = vld [vmem:[#allocation2 + $0x48] sm:$0xf]
  %v4696 = vld [vmem:[#allocation2 + $0x50] sm:$0xf]
  %v4697 = vld [vmem:[#allocation2 + $0x58] sm:$0xf]
  %v4698 = vld [vmem:[#allocation2 + $0x60] sm:$0xf]
  %v4699 = vld [vmem:[#allocation2 + $0x68] sm:$0xf]
  %v4700 = vld [vmem:[#allocation2 + $0x70] sm:$0xf]
  %v4701 = vld [vmem:[#allocation2 + $0x78] sm:$0xf]
  %v4702 = vld [vmem:[%s3] sm:$0xf]
  %v4703 = vld [vmem:[%s3 + $0x4] sm:$0xf]
  %v4720 = vunpack.c.l.b16 %v4686
  %v4721 = vunpack.c.l.b16 %v4687
  %v4722 = vunpack.c.l.b16 %v4688
  %v4723 = vunpack.c.l.b16 %v4689
  %v4724 = vunpack.c.l.b16 %v4690
  %v4725 = vunpack.c.l.b16 %v4691
  %v4726 = vunpack.c.l.b16 %v4692
  %v4727 = vunpack.c.l.b16 %v4693
  %v4728 = vunpack.c.l.b16 %v4694
  %v4729 = vunpack.c.l.b16 %v4695
  %v4730 = vunpack.c.l.b16 %v4696
  %v4731 = vunpack.c.l.b16 %v4697
  %v4732 = vunpack.c.l.b16 %v4698
  %v4733 = vunpack.c.l.b16 %v4699
  %v4734 = vunpack.c.l.b16 %v4700
  %v4735 = vunpack.c.l.b16 %v4701
  %v4736 = vpack.c.b16 %v4721, %v4720
  %v4737 = vpack.c.b16 %v4723, %v4722
  %v4738 = vpack.c.b16 %v4725, %v4724
  %v4739 = vpack.c.b16 %v4727, %v4726
  %v4740 = vpack.c.b16 %v4729, %v4728
  %v4741 = vpack.c.b16 %v4731, %v4730
  %v4742 = vpack.c.b16 %v4733, %v4732
  %v4743 = vpack.c.b16 %v4735, %v4734
  %4744 = vrot.lane.b32.xlu0 %v4736, 64
  %v4745 = vpop.permute.xlu0 %4744
  %4746 = vrot.lane.b32.xlu0 %v4737, 64
  %v4747 = vpop.permute.xlu0 %4746
  %4748 = vrot.lane.b32.xlu0 %v4738, 64
  %v4749 = vpop.permute.xlu0 %4748
  %4750 = vrot.lane.b32.xlu0 %v4739, 64
  %v4751 = vpop.permute.xlu0 %4750
  %4752 = vrot.lane.b32.xlu0 %v4740, 64
  %v4753 = vpop.permute.xlu0 %4752
  %4754 = vrot.lane.b32.xlu0 %v4741, 64
  %v4755 = vpop.permute.xlu0 %4754
  %4756 = vrot.lane.b32.xlu0 %v4742, 64
  %v4757 = vpop.permute.xlu0 %4756
  %4758 = vrot.lane.b32.xlu0 %v4743, 64
  %v4759 = vpop.permute.xlu0 %4758
  %v4762 = vunpack.c.l.b16 %v4702
  %v4763 = vunpack.c.l.b16 %v4703
  %v4764 = vpack.c.b16 %v4763, %v4762
  %v4767 = vsel %vm2320, %v4745, 0
  %v4770 = vsel %vm2320, %v4747, 0
  %v4773 = vsel %vm2320, %v4749, 0
  %v4776 = vsel %vm2320, %v4751, 0
  %v4779 = vsel %vm2320, %v4753, 0
  %v4782 = vsel %vm2320, %v4755, 0
  %v4785 = vsel %vm2320, %v4757, 0
  %v4788 = vsel %vm2320, %v4759, 0
  %4790 = vmatpush.bf16.msra.mxu0 0
  %4791 = vmatpush.bf16.msra.mxu0 0
  %4792 = vmatpush.bf16.msra.mxu0 0
  %4793 = vmatpush.bf16.msra.mxu0 0
  %4794 = vmatpush.bf16.msra.mxu0 0
  %4795 = vmatpush.bf16.msra.mxu0 0
  %4796 = vmatpush.bf16.msra.mxu0 0
  %4797 = vmatpush.bf16.msra.mxu0 %v4764
  %4798 = vmatmul.bf16.gmra.mxu0 %v4767
  %v4799 = vpop.f32.mrf.mxu0
  %v4800 = vadd.f32 0.0, %v4799
  %v4801 = vpop.f32.mrf.mxu0
  %v4802 = vadd.f32 0.0, %v4801
  %4803 = vmatmul.bf16.gmra.mxu0 %v4770
  %v4804 = vpop.f32.mrf.mxu0
  %v4805 = vadd.f32 0.0, %v4804
  %v4806 = vpop.f32.mrf.mxu0
  %v4807 = vadd.f32 0.0, %v4806
  %4808 = vmatmul.bf16.gmra.mxu0 %v4773
  %v4809 = vpop.f32.mrf.mxu0
  %v4810 = vadd.f32 0.0, %v4809
  %v4811 = vpop.f32.mrf.mxu0
  %v4812 = vadd.f32 0.0, %v4811
  %4813 = vmatmul.bf16.gmra.mxu0 %v4776
  %v4814 = vpop.f32.mrf.mxu0
  %v4815 = vadd.f32 0.0, %v4814
  %v4816 = vpop.f32.mrf.mxu0
  %v4817 = vadd.f32 0.0, %v4816
  %4818 = vmatmul.bf16.gmra.mxu0 %v4779
  %v4819 = vpop.f32.mrf.mxu0
  %v4820 = vadd.f32 0.0, %v4819
  %v4821 = vpop.f32.mrf.mxu0
  %v4822 = vadd.f32 0.0, %v4821
  %4823 = vmatmul.bf16.gmra.mxu0 %v4782
  %v4824 = vpop.f32.mrf.mxu0
  %v4825 = vadd.f32 0.0, %v4824
  %v4826 = vpop.f32.mrf.mxu0
  %v4827 = vadd.f32 0.0, %v4826
  %4828 = vmatmul.bf16.gmra.mxu0 %v4785
  %v4829 = vpop.f32.mrf.mxu0
  %v4830 = vadd.f32 0.0, %v4829
  %v4831 = vpop.f32.mrf.mxu0
  %v4832 = vadd.f32 0.0, %v4831
  %4833 = vmatmul.bf16.gmra.mxu0 %v4788
  %v4834 = vpop.f32.mrf.mxu0
  %v4835 = vadd.f32 0.0, %v4834
  %v4836 = vpop.f32.mrf.mxu0
  %v4837 = vadd.f32 0.0, %v4836
  %4838 = vdwg.mxu0
  %v4871 = vunpack.c.l.b16 %v4618
  %v4872 = vunpack.c.h.b16 %v4618
  %v4873 = vunpack.c.l.b16 %v4619
  %v4874 = vunpack.c.l.b16 %v4620
  %v4875 = vunpack.c.h.b16 %v4620
  %v4876 = vunpack.c.l.b16 %v4621
  %v4877 = vunpack.c.l.b16 %v4622
  %v4878 = vunpack.c.h.b16 %v4622
  %v4879 = vunpack.c.l.b16 %v4623
  %v4880 = vunpack.c.l.b16 %v4624
  %v4881 = vunpack.c.h.b16 %v4624
  %v4882 = vunpack.c.l.b16 %v4625
  %v4883 = vunpack.c.l.b16 %v4626
  %v4884 = vunpack.c.h.b16 %v4626
  %v4885 = vunpack.c.l.b16 %v4627
  %v4886 = vunpack.c.l.b16 %v4628
  %v4887 = vunpack.c.h.b16 %v4628
  %v4888 = vunpack.c.l.b16 %v4629
  %v4889 = vunpack.c.l.b16 %v4630
  %v4890 = vunpack.c.h.b16 %v4630
  %v4891 = vunpack.c.l.b16 %v4631
  %v4892 = vunpack.c.l.b16 %v4632
  %v4893 = vunpack.c.h.b16 %v4632
  %v4894 = vunpack.c.l.b16 %v4633
  %v4895 = vunpack.c.l.b16 %v4634
  %v4896 = vunpack.c.h.b16 %v4634
  %v4897 = vunpack.c.l.b16 %v4635
  %v4898 = vunpack.c.l.b16 %v4636
  %v4899 = vunpack.c.h.b16 %v4636
  %v4900 = vunpack.c.l.b16 %v4637
  %v4901 = vunpack.c.l.b16 %v4638
  %v4902 = vunpack.c.h.b16 %v4638
  %v4903 = vunpack.c.l.b16 %v4639
  %v4904 = vunpack.c.l.b16 %v4640
  %v4905 = vunpack.c.h.b16 %v4640
  %v4906 = vunpack.c.l.b16 %v4641
  %v4907 = vunpack.c.l.b16 %v4642
  %v4908 = vunpack.c.h.b16 %v4642
  %v4909 = vunpack.c.l.b16 %v4643
  %v4910 = vunpack.c.l.b16 %v4644
  %v4911 = vunpack.c.h.b16 %v4644
  %v4912 = vunpack.c.l.b16 %v4645
  %v4913 = vunpack.c.l.b16 %v4646
  %v4914 = vunpack.c.h.b16 %v4646
  %v4915 = vunpack.c.l.b16 %v4647
  %v4916 = vunpack.c.l.b16 %v4648
  %v4917 = vunpack.c.h.b16 %v4648
  %v4918 = vunpack.c.l.b16 %v4649
  %v4919 = vpack.c.b16 %v4874, %v4871
  %v4920 = vpack.c.b16 %v4875, %v4872
  %v4921 = vpack.c.b16 %v4876, %v4873
  %v4922 = vpack.c.b16 %v4880, %v4877
  %v4923 = vpack.c.b16 %v4881, %v4878
  %v4924 = vpack.c.b16 %v4882, %v4879
  %v4925 = vpack.c.b16 %v4886, %v4883
  %v4926 = vpack.c.b16 %v4887, %v4884
  %v4927 = vpack.c.b16 %v4888, %v4885
  %v4928 = vpack.c.b16 %v4892, %v4889
  %v4929 = vpack.c.b16 %v4893, %v4890
  %v4930 = vpack.c.b16 %v4894, %v4891
  %v4931 = vpack.c.b16 %v4898, %v4895
  %v4932 = vpack.c.b16 %v4899, %v4896
  %v4933 = vpack.c.b16 %v4900, %v4897
  %v4934 = vpack.c.b16 %v4904, %v4901
  %v4935 = vpack.c.b16 %v4905, %v4902
  %v4936 = vpack.c.b16 %v4906, %v4903
  %v4937 = vpack.c.b16 %v4910, %v4907
  %v4938 = vpack.c.b16 %v4911, %v4908
  %v4939 = vpack.c.b16 %v4912, %v4909
  %v4940 = vpack.c.b16 %v4916, %v4913
  %v4941 = vpack.c.b16 %v4917, %v4914
  %v4942 = vpack.c.b16 %v4918, %v4915
  %v4995 = vunpack.c.l.b16 %v4650
  %v4996 = vunpack.c.l.b16 %v4651
  %v4997 = vunpack.c.l.b16 %v4652
  %v4998 = vunpack.c.l.b16 %v4653
  %v4999 = vunpack.c.l.b16 %v4654
  %v5000 = vunpack.c.l.b16 %v4655
  %v5001 = vunpack.c.l.b16 %v4656
  %v5002 = vunpack.c.l.b16 %v4657
  %v5003 = vunpack.c.l.b16 %v4658
  %v5004 = vunpack.c.l.b16 %v4659
  %v5005 = vunpack.c.l.b16 %v4660
  %v5006 = vunpack.c.l.b16 %v4661
  %v5007 = vunpack.c.l.b16 %v4662
  %v5008 = vunpack.c.l.b16 %v4663
  %v5009 = vunpack.c.l.b16 %v4664
  %v5010 = vunpack.c.l.b16 %v4665
  %v5011 = vunpack.c.l.b16 %v4666
  %v5012 = vunpack.c.l.b16 %v4667
  %v5013 = vunpack.c.l.b16 %v4668
  %v5014 = vunpack.c.l.b16 %v4669
  %v5015 = vunpack.c.l.b16 %v4670
  %v5016 = vunpack.c.l.b16 %v4671
  %v5017 = vunpack.c.l.b16 %v4672
  %v5018 = vunpack.c.l.b16 %v4673
  %v5019 = vunpack.c.l.b16 %v4674
  %v5020 = vunpack.c.l.b16 %v4675
  %v5021 = vunpack.c.l.b16 %v4676
  %v5022 = vunpack.c.l.b16 %v4677
  %v5023 = vunpack.c.l.b16 %v4678
  %v5024 = vunpack.c.l.b16 %v4679
  %v5025 = vunpack.c.l.b16 %v4680
  %v5026 = vunpack.c.l.b16 %v4681
  %v5027 = vunpack.c.l.b16 %v4682
  %v5028 = vunpack.c.l.b16 %v4683
  %v5029 = vunpack.c.l.b16 %v4684
  %v5030 = vunpack.c.l.b16 %v4685
  %v5031 = vpack.c.b16 %v4996, %v4995
  %v5032 = vpack.c.b16 %v4998, %v4997
  %v5033 = vpack.c.b16 %v5000, %v4999
  %v5034 = vpack.c.b16 %v5002, %v5001
  %v5035 = vpack.c.b16 %v5004, %v5003
  %v5036 = vpack.c.b16 %v5006, %v5005
  %v5037 = vpack.c.b16 %v5008, %v5007
  %v5038 = vpack.c.b16 %v5010, %v5009
  %v5039 = vpack.c.b16 %v5012, %v5011
  %v5040 = vpack.c.b16 %v5014, %v5013
  %v5041 = vpack.c.b16 %v5016, %v5015
  %v5042 = vpack.c.b16 %v5018, %v5017
  %v5043 = vpack.c.b16 %v5020, %v5019
  %v5044 = vpack.c.b16 %v5022, %v5021
  %v5045 = vpack.c.b16 %v5024, %v5023
  %v5046 = vpack.c.b16 %v5026, %v5025
  %v5047 = vpack.c.b16 %v5028, %v5027
  %v5048 = vpack.c.b16 %v5030, %v5029
  %vm5067 = vcmask 261120
  %v5069 = vsel %vm5067, %v4921, 0
  %v5072 = vsel %vm5067, %v4924, 0
  %v5075 = vsel %vm5067, %v4927, 0
  %v5078 = vsel %vm5067, %v4930, 0
  %v5081 = vsel %vm5067, %v4933, 0
  %v5084 = vsel %vm5067, %v4936, 0
  %v5087 = vsel %vm5067, %v4939, 0
  %v5090 = vsel %vm5067, %v4942, 0
  %5092 = vmatpush.bf16.msra.mxu0 %v5038
  %5093 = vmatpush.bf16.msra.mxu0 %v5037
  %5094 = vmatpush.bf16.msra.mxu0 %v5036
  %5095 = vmatpush.bf16.msra.mxu0 %v5035
  %5096 = vmatpush.bf16.msra.mxu0 %v5034
  %5097 = vmatpush.bf16.msra.mxu0 %v5033
  %5098 = vmatpush.bf16.msra.mxu0 %v5032
  %5099 = vmatpush.bf16.msra.mxu0 %v5031
  %5100 = vmatmul.bf16.gmra.mxu0 %v4919
  %v5101 = vpop.f32.mrf.mxu0
  %v5102 = vadd.f32 %v4800, %v5101
  %v5103 = vpop.f32.mrf.mxu0
  %v5104 = vadd.f32 %v4802, %v5103
  %5105 = vmatmul.bf16.gmra.mxu0 %v4922
  %v5106 = vpop.f32.mrf.mxu0
  %v5107 = vadd.f32 %v4805, %v5106
  %v5108 = vpop.f32.mrf.mxu0
  %v5109 = vadd.f32 %v4807, %v5108
  %5110 = vmatmul.bf16.gmra.mxu0 %v4925
  %v5111 = vpop.f32.mrf.mxu0
  %v5112 = vadd.f32 %v4810, %v5111
  %v5113 = vpop.f32.mrf.mxu0
  %v5114 = vadd.f32 %v4812, %v5113
  %5115 = vmatmul.bf16.gmra.mxu0 %v4928
  %v5116 = vpop.f32.mrf.mxu0
  %v5117 = vadd.f32 %v4815, %v5116
  %v5118 = vpop.f32.mrf.mxu0
  %v5119 = vadd.f32 %v4817, %v5118
  %5120 = vmatmul.bf16.gmra.mxu0 %v4931
  %v5121 = vpop.f32.mrf.mxu0
  %v5122 = vadd.f32 %v4820, %v5121
  %v5123 = vpop.f32.mrf.mxu0
  %v5124 = vadd.f32 %v4822, %v5123
  %5125 = vmatmul.bf16.gmra.mxu0 %v4934
  %v5126 = vpop.f32.mrf.mxu0
  %v5127 = vadd.f32 %v4825, %v5126
  %v5128 = vpop.f32.mrf.mxu0
  %v5129 = vadd.f32 %v4827, %v5128
  %5130 = vmatmul.bf16.gmra.mxu0 %v4937
  %v5131 = vpop.f32.mrf.mxu0
  %v5132 = vadd.f32 %v4830, %v5131
  %v5133 = vpop.f32.mrf.mxu0
  %v5134 = vadd.f32 %v4832, %v5133
  %5135 = vmatmul.bf16.gmra.mxu0 %v4940
  %v5136 = vpop.f32.mrf.mxu0
  %v5137 = vadd.f32 %v4835, %v5136
  %v5138 = vpop.f32.mrf.mxu0
  %v5139 = vadd.f32 %v4837, %v5138
  %5140 = vdwg.mxu0
  %5141 = vmatpush.bf16.msra.mxu0 %v5046
  %5142 = vmatpush.bf16.msra.mxu0 %v5045
  %5143 = vmatpush.bf16.msra.mxu0 %v5044
  %5144 = vmatpush.bf16.msra.mxu0 %v5043
  %5145 = vmatpush.bf16.msra.mxu0 %v5042
  %5146 = vmatpush.bf16.msra.mxu0 %v5041
  %5147 = vmatpush.bf16.msra.mxu0 %v5040
  %5148 = vmatpush.bf16.msra.mxu0 %v5039
  %5149 = vmatmul.bf16.gmra.mxu0 %v4920
  %v5150 = vpop.f32.mrf.mxu0
  %v5151 = vadd.f32 %v5102, %v5150
  %v5152 = vpop.f32.mrf.mxu0
  %v5153 = vadd.f32 %v5104, %v5152
  %5154 = vmatmul.bf16.gmra.mxu0 %v4923
  %v5155 = vpop.f32.mrf.mxu0
  %v5156 = vadd.f32 %v5107, %v5155
  %v5157 = vpop.f32.mrf.mxu0
  %v5158 = vadd.f32 %v5109, %v5157
  %5159 = vmatmul.bf16.gmra.mxu0 %v4926
  %v5160 = vpop.f32.mrf.mxu0
  %v5161 = vadd.f32 %v5112, %v5160
  %v5162 = vpop.f32.mrf.mxu0
  %v5163 = vadd.f32 %v5114, %v5162
  %5164 = vmatmul.bf16.gmra.mxu0 %v4929
  %v5165 = vpop.f32.mrf.mxu0
  %v5166 = vadd.f32 %v5117, %v5165
  %v5167 = vpop.f32.mrf.mxu0
  %v5168 = vadd.f32 %v5119, %v5167
  %5169 = vmatmul.bf16.gmra.mxu0 %v4932
  %v5170 = vpop.f32.mrf.mxu0
  %v5171 = vadd.f32 %v5122, %v5170
  %v5172 = vpop.f32.mrf.mxu0
  %v5173 = vadd.f32 %v5124, %v5172
  %5174 = vmatmul.bf16.gmra.mxu0 %v4935
  %v5175 = vpop.f32.mrf.mxu0
  %v5176 = vadd.f32 %v5127, %v5175
  %v5177 = vpop.f32.mrf.mxu0
  %v5178 = vadd.f32 %v5129, %v5177
  %5179 = vmatmul.bf16.gmra.mxu0 %v4938
  %v5180 = vpop.f32.mrf.mxu0
  %v5181 = vadd.f32 %v5132, %v5180
  %v5182 = vpop.f32.mrf.mxu0
  %v5183 = vadd.f32 %v5134, %v5182
  %5184 = vmatmul.bf16.gmra.mxu0 %v4941
  %v5185 = vpop.f32.mrf.mxu0
  %v5186 = vadd.f32 %v5137, %v5185
  %v5187 = vpop.f32.mrf.mxu0
  %v5188 = vadd.f32 %v5139, %v5187
  %5189 = vdwg.mxu0
  %5190 = vmatpush.bf16.msra.mxu0 0
  %5191 = vmatpush.bf16.msra.mxu0 0
  %5192 = vmatpush.bf16.msra.mxu0 0
  %5193 = vmatpush.bf16.msra.mxu0 0
  %5194 = vmatpush.bf16.msra.mxu0 0
  %5195 = vmatpush.bf16.msra.mxu0 0
  %5196 = vmatpush.bf16.msra.mxu0 %v5048
  %5197 = vmatpush.bf16.msra.mxu0 %v5047
  %5198 = vmatmul.bf16.gmra.mxu0 %v5069
  %v5199 = vpop.f32.mrf.mxu0
  %v5200 = vadd.f32 %v5151, %v5199
  %v5201 = vpop.f32.mrf.mxu0
  %v5202 = vadd.f32 %v5153, %v5201
  %5203 = vmatmul.bf16.gmra.mxu0 %v5072
  %v5204 = vpop.f32.mrf.mxu0
  %v5205 = vadd.f32 %v5156, %v5204
  %v5206 = vpop.f32.mrf.mxu0
  %v5207 = vadd.f32 %v5158, %v5206
  %5208 = vmatmul.bf16.gmra.mxu0 %v5075
  %v5209 = vpop.f32.mrf.mxu0
  %v5210 = vadd.f32 %v5161, %v5209
  %v5211 = vpop.f32.mrf.mxu0
  %v5212 = vadd.f32 %v5163, %v5211
  %5213 = vmatmul.bf16.gmra.mxu0 %v5078
  %v5214 = vpop.f32.mrf.mxu0
  %v5215 = vadd.f32 %v5166, %v5214
  %v5216 = vpop.f32.mrf.mxu0
  %v5217 = vadd.f32 %v5168, %v5216
  %5218 = vmatmul.bf16.gmra.mxu0 %v5081
  %v5219 = vpop.f32.mrf.mxu0
  %v5220 = vadd.f32 %v5171, %v5219
  %v5221 = vpop.f32.mrf.mxu0
  %v5222 = vadd.f32 %v5173, %v5221
  %5223 = vmatmul.bf16.gmra.mxu0 %v5084
  %v5224 = vpop.f32.mrf.mxu0
  %v5225 = vadd.f32 %v5176, %v5224
  %v5226 = vpop.f32.mrf.mxu0
  %v5227 = vadd.f32 %v5178, %v5226
  %5228 = vmatmul.bf16.gmra.mxu0 %v5087
  %v5229 = vpop.f32.mrf.mxu0
  %v5230 = vadd.f32 %v5181, %v5229
  %v5231 = vpop.f32.mrf.mxu0
  %v5232 = vadd.f32 %v5183, %v5231
  %5233 = vmatmul.bf16.gmra.mxu0 %v5090
  %v5234 = vpop.f32.mrf.mxu0
  %v5235 = vadd.f32 %v5186, %v5234
  %v5236 = vpop.f32.mrf.mxu0
  %v5237 = vadd.f32 %v5188, %v5236
  %5238 = vdwg.mxu0
  %5239 = vst.msk [vmem:[%s6] sm:$0xff] %vm5067, %v5200
  %5240 = vst.msk [vmem:[%s6 + $0x8] sm:$0xff] %vm5067, %v5202
  %5241 = vst.msk [vmem:[%s6 + $0x10] sm:$0xff] %vm5067, %v5205
  %5242 = vst.msk [vmem:[%s6 + $0x18] sm:$0xff] %vm5067, %v5207
  %5243 = vst.msk [vmem:[%s6 + $0x20] sm:$0xff] %vm5067, %v5210
  %5244 = vst.msk [vmem:[%s6 + $0x28] sm:$0xff] %vm5067, %v5212
  %5245 = vst.msk [vmem:[%s6 + $0x30] sm:$0xff] %vm5067, %v5215
  %5246 = vst.msk [vmem:[%s6 + $0x38] sm:$0xff] %vm5067, %v5217
  %5247 = vst.msk [vmem:[%s6 + $0x40] sm:$0xff] %vm5067, %v5220
  %5248 = vst.msk [vmem:[%s6 + $0x48] sm:$0xff] %vm5067, %v5222
  %5249 = vst.msk [vmem:[%s6 + $0x50] sm:$0xff] %vm5067, %v5225
  %5250 = vst.msk [vmem:[%s6 + $0x58] sm:$0xff] %vm5067, %v5227
  %5251 = vst.msk [vmem:[%s6 + $0x60] sm:$0xff] %vm5067, %v5230
  %5252 = vst.msk [vmem:[%s6 + $0x68] sm:$0xff] %vm5067, %v5232
  %5253 = vst.msk [vmem:[%s6 + $0x70] sm:$0xff] %vm5067, %v5235
  %5254 = vst.msk [vmem:[%s6 + $0x78] sm:$0xff] %vm5067, %v5237
  // Predicated region
  $region26: #{_lambda_.2} parent=0 // pred_check
    _
  $region27: #{_lambda_.2} parent=0 // pred_check_branch
    %5256 = sbr.rel (0) target = $region29
  $region28: #{_lambda_.2} parent=0 // pred_region
    _
  $region29: #{_lambda_.2} parent=0 // pred_fallthru
    _
  // Predicated region
  $region30: #{_lambda_.2} parent=0 // pred_check
    _
  $region31: #{_lambda_.2} parent=0 // pred_check_branch
    %5258 = sbr.rel (0) target = $region33
  $region32: #{_lambda_.2} parent=0 // pred_region
    _
  $region33: #{_lambda_.2} parent=0 // pred_fallthru
    _

// kernel: _lambda_.3
$region0: #{_lambda_.3}
  #allocation0 [shape = 'u32[]', space=smem, size = 0x4, offset = 0x4, fixed_abs, tag = 'smem constant byte address 0x4 - core index']
  #allocation1 [shape = 'u32[72,128]{1,0:T(1,128)}', space=vmem, size = 0x9000, scoped, tag = 'internal scratch']
  #allocation2 [shape = 'bf16[20,10,32]{2,1,0:T(8,128)(2,1)}', space=vmem, size = 0x14000, scoped, tag = 'scratch operand']
  #allocation3 [shape = 'bf16[16,8,288]{2,1,0:T(8,128)(2,1)}', space=vmem, size = 0x18000, scoped, tag = 'scratch operand']
  #allocation4 [shape = 'bf16[20,10,32]{2,1,0:T(8,128)(2,1)}', space=vmem, size = 0x14000, scoped, tag = 'scratch operand']
  #allocation5 [shape = 'bf16[16,8,288]{2,1,0:T(8,128)(2,1)}', space=vmem, size = 0x18000, scoped, tag = 'scratch operand']
  %s0 = inlined_call_operand.vmem [shape: f32[16,8,32], index: 0, kind: input, shape index: {}]
  %s1 = inlined_call_operand.vmem [shape: bf16[288,32], index: 1, kind: input, shape index: {}]
  %s2 = inlined_call_operand.vmem [shape: bf16[288,32], index: 2, kind: input, shape index: {}]
  %s3 = inlined_call_operand.vmem [shape: f32[1,32], index: 3, kind: input, shape index: {}]
  %s4 = inlined_call_operand.vmem [shape: f32[1,32], index: 4, kind: input, shape index: {}]
  %s5 = inlined_call_operand.vmem [shape: f32[1,32], index: 5, kind: input, shape index: {}]
  %s6 = inlined_call_operand.vmem [shape: f32[1,32], index: 6, kind: input, shape index: {}]
  %s7 = inlined_call_operand.hbm [shape: f32[16,8,32], index: 7, kind: output, shape index: {}]
  %s8 = sld [smem:[#allocation0]]
  $region38: #{_lambda_.3} parent=0
    _
  %s10 = ssub.s32 1, %s8
  %s11 = scalar_select 0, %s10, %s8
  $region1: #{_lambda_.3} parent=0
    #allocation6 [shape = 'u8[65536]{0}', space=vmem, size = 0x10000, scoped, tag = 'output window, operand 0, single buffered']
    #allocation7 [shape = 's32[1]{0}', space=sflag, size = 0x4, scoped, tag = 'scoped memory for _lambda_.3']
    %12 = vsyncpa [#allocation7], 0
    // Predicated region
    $region2: #{_lambda_.3} parent=1 // pred_check
      _
    $region3: #{_lambda_.3} parent=1 // pred_check_branch
      %14 = sbr.rel (0) target = $region5
    $region4: #{_lambda_.3} parent=1 // pred_region
      _
    $region5: #{_lambda_.3} parent=1 // pred_fallthru
      _
    // Predicated region
    $region6: #{_lambda_.3} parent=1 // pred_check
      _
    $region7: #{_lambda_.3} parent=1 // pred_check_branch
      %16 = sbr.rel (0) target = $region9
    $region8: #{_lambda_.3} parent=1 // pred_region
      _
    $region9: #{_lambda_.3} parent=1 // pred_fallthru
      _
    // Predicated region
    $region10: #{_lambda_.3} parent=1 // pred_check
      _
    $region11: #{_lambda_.3} parent=1 // pred_check_branch
      %18 = sbr.rel (0) target = $region13
    $region12: #{_lambda_.3} parent=1 // pred_region
      _
    $region13: #{_lambda_.3} parent=1 // pred_fallthru
      _
    // Predicated region
    $region14: #{_lambda_.3} parent=1 // pred_check
      _
    $region15: #{_lambda_.3} parent=1 // pred_check_branch
      %20 = sbr.rel (0) target = $region17
    $region16: #{_lambda_.3} parent=1 // pred_region
      _
    $region17: #{_lambda_.3} parent=1 // pred_fallthru
      _
    // Predicated region
    $region18: #{_lambda_.3} parent=1 // pred_check
      _
    $region19: #{_lambda_.3} parent=1 // pred_check_branch
      %22 = sbr.rel (0) target = $region21
    $region20: #{_lambda_.3} parent=1 // pred_region
      _
    $region21: #{_lambda_.3} parent=1 // pred_fallthru
      _
    // Predicated region
    $region22: #{_lambda_.3} parent=1 // pred_check
      _
    $region23: #{_lambda_.3} parent=1 // pred_check_branch
      %24 = sbr.rel (0) target = $region25
    $region24: #{_lambda_.3} parent=1 // pred_region
      _
    $region25: #{_lambda_.3} parent=1 // pred_fallthru
      _
    // Predicated region
    $region26: #{_lambda_.3} parent=1 // pred_check
      _
    $region27: #{_lambda_.3} parent=1 // pred_check_branch
      %26 = sbr.rel (0) target = $region29
    $region28: #{_lambda_.3} parent=1 // pred_region
      _
    $region29: #{_lambda_.3} parent=1 // pred_fallthru
      _
    %vm28 = vcmask 253952
    %vm29 = vsmask.f32 256
    %vm30 = vmand %vm28, %vm29
    %v31 = vld [vmem:[#allocation2] sm:$0x1]
    %v32 = vsel %vm30, 0, %v31
    %33 = vst [vmem:[#allocation2] sm:$0x1] %v32
    %v34 = vld [vmem:[#allocation2 + $0x8] sm:$0x1]
    %v35 = vsel %vm30, 0, %v34
    %36 = vst [vmem:[#allocation2 + $0x8] sm:$0x1] %v35
    %v37 = vld [vmem:[#allocation2 + $0x10] sm:$0x1]
    %v38 = vsel %vm30, 0, %v37
    %39 = vst [vmem:[#allocation2 + $0x10] sm:$0x1] %v38
    %v40 = vld [vmem:[#allocation2 + $0x18] sm:$0x1]
    %v41 = vsel %vm30, 0, %v40
    %42 = vst [vmem:[#allocation2 + $0x18] sm:$0x1] %v41
    %v43 = vld [vmem:[#allocation2 + $0x20] sm:$0x1]
    %v44 = vsel %vm30, 0, %v43
    %45 = vst [vmem:[#allocation2 + $0x20] sm:$0x1] %v44
    %v46 = vld [vmem:[#allocation2 + $0x28] sm:$0x1]
    %v47 = vsel %vm30, 0, %v46
    %48 = vst [vmem:[#allocation2 + $0x28] sm:$0x1] %v47
    %v49 = vld [vmem:[#allocation2 + $0x30] sm:$0x1]
    %v50 = vsel %vm30, 0, %v49
    %51 = vst [vmem:[#allocation2 + $0x30] sm:$0x1] %v50
    %v52 = vld [vmem:[#allocation2 + $0x38] sm:$0x1]
    %v53 = vsel %vm30, 0, %v52
    %54 = vst [vmem:[#allocation2 + $0x38] sm:$0x1] %v53
    %v55 = vld [vmem:[#allocation2 + $0x40] sm:$0x1]
    %v56 = vsel %vm30, 0, %v55
    %57 = vst [vmem:[#allocation2 + $0x40] sm:$0x1] %v56
    %v58 = vld [vmem:[#allocation2 + $0x48] sm:$0x1]
    %v59 = vsel %vm30, 0, %v58
    %60 = vst [vmem:[#allocation2 + $0x48] sm:$0x1] %v59
    %v61 = vld [vmem:[#allocation2 + $0x50] sm:$0x1]
    %v62 = vsel %vm30, 0, %v61
    %63 = vst [vmem:[#allocation2 + $0x50] sm:$0x1] %v62
    %v64 = vld [vmem:[#allocation2 + $0x58] sm:$0x1]
    %v65 = vsel %vm30, 0, %v64
    %66 = vst [vmem:[#allocation2 + $0x58] sm:$0x1] %v65
    %v67 = vld [vmem:[#allocation2 + $0x60] sm:$0x1]
    %v68 = vsel %vm30, 0, %v67
    %69 = vst [vmem:[#allocation2 + $0x60] sm:$0x1] %v68
    %v70 = vld [vmem:[#allocation2 + $0x68] sm:$0x1]
    %v71 = vsel %vm30, 0, %v70
    %72 = vst [vmem:[#allocation2 + $0x68] sm:$0x1] %v71
    %v73 = vld [vmem:[#allocation2 + $0x70] sm:$0x1]
    %v74 = vsel %vm30, 0, %v73
    %75 = vst [vmem:[#allocation2 + $0x70] sm:$0x1] %v74
    %v76 = vld [vmem:[#allocation2 + $0x78] sm:$0x1]
    %v77 = vsel %vm30, 0, %v76
    %78 = vst [vmem:[#allocation2 + $0x78] sm:$0x1] %v77
    %v79 = vld [vmem:[#allocation2 + $0x80] sm:$0x1]
    %v80 = vsel %vm30, 0, %v79
    %81 = vst [vmem:[#allocation2 + $0x80] sm:$0x1] %v80
    %v82 = vld [vmem:[#allocation2 + $0x88] sm:$0x1]
    %v83 = vsel %vm30, 0, %v82
    %84 = vst [vmem:[#allocation2 + $0x88] sm:$0x1] %v83
    %v85 = vld [vmem:[#allocation2 + $0x90] sm:$0x1]
    %v86 = vsel %vm30, 0, %v85
    %87 = vst [vmem:[#allocation2 + $0x90] sm:$0x1] %v86
    %v88 = vld [vmem:[#allocation2 + $0x98] sm:$0x1]
    %v89 = vsel %vm30, 0, %v88
    %90 = vst [vmem:[#allocation2 + $0x98] sm:$0x1] %v89
    %vm91 = vsmask.f32 7938
    %vm92 = vmand %vm28, %vm91
    %v93 = vld [vmem:[#allocation2 + $0x4] sm:$0x1]
    %v94 = vsel %vm92, 0, %v93
    %95 = vst [vmem:[#allocation2 + $0x4] sm:$0x1] %v94
    %v96 = vld [vmem:[#allocation2 + $0xc] sm:$0x1]
    %v97 = vsel %vm92, 0, %v96
    %98 = vst [vmem:[#allocation2 + $0xc] sm:$0x1] %v97
    %v99 = vld [vmem:[#allocation2 + $0x14] sm:$0x1]
    %v100 = vsel %vm92, 0, %v99
    %101 = vst [vmem:[#allocation2 + $0x14] sm:$0x1] %v100
    %v102 = vld [vmem:[#allocation2 + $0x1c] sm:$0x1]
    %v103 = vsel %vm92, 0, %v102
    %104 = vst [vmem:[#allocation2 + $0x1c] sm:$0x1] %v103
    %v105 = vld [vmem:[#allocation2 + $0x24] sm:$0x1]
    %v106 = vsel %vm92, 0, %v105
    %107 = vst [vmem:[#allocation2 + $0x24] sm:$0x1] %v106
    %v108 = vld [vmem:[#allocation2 + $0x2c] sm:$0x1]
    %v109 = vsel %vm92, 0, %v108
    %110 = vst [vmem:[#allocation2 + $0x2c] sm:$0x1] %v109
    %v111 = vld [vmem:[#allocation2 + $0x34] sm:$0x1]
    %v112 = vsel %vm92, 0, %v111
    %113 = vst [vmem:[#allocation2 + $0x34] sm:$0x1] %v112
    %v114 = vld [vmem:[#allocation2 + $0x3c] sm:$0x1]
    %v115 = vsel %vm92, 0, %v114
    %116 = vst [vmem:[#allocation2 + $0x3c] sm:$0x1] %v115
    %v117 = vld [vmem:[#allocation2 + $0x44] sm:$0x1]
    %v118 = vsel %vm92, 0, %v117
    %119 = vst [vmem:[#allocation2 + $0x44] sm:$0x1] %v118
    %v120 = vld [vmem:[#allocation2 + $0x4c] sm:$0x1]
    %v121 = vsel %vm92, 0, %v120
    %122 = vst [vmem:[#allocation2 + $0x4c] sm:$0x1] %v121
    %v123 = vld [vmem:[#allocation2 + $0x54] sm:$0x1]
    %v124 = vsel %vm92, 0, %v123
    %125 = vst [vmem:[#allocation2 + $0x54] sm:$0x1] %v124
    %v126 = vld [vmem:[#allocation2 + $0x5c] sm:$0x1]
    %v127 = vsel %vm92, 0, %v126
    %128 = vst [vmem:[#allocation2 + $0x5c] sm:$0x1] %v127
    %v129 = vld [vmem:[#allocation2 + $0x64] sm:$0x1]
    %v130 = vsel %vm92, 0, %v129
    %131 = vst [vmem:[#allocation2 + $0x64] sm:$0x1] %v130
    %v132 = vld [vmem:[#allocation2 + $0x6c] sm:$0x1]
    %v133 = vsel %vm92, 0, %v132
    %134 = vst [vmem:[#allocation2 + $0x6c] sm:$0x1] %v133
    %v135 = vld [vmem:[#allocation2 + $0x74] sm:$0x1]
    %v136 = vsel %vm92, 0, %v135
    %137 = vst [vmem:[#allocation2 + $0x74] sm:$0x1] %v136
    %v138 = vld [vmem:[#allocation2 + $0x7c] sm:$0x1]
    %v139 = vsel %vm92, 0, %v138
    %140 = vst [vmem:[#allocation2 + $0x7c] sm:$0x1] %v139
    %v141 = vld [vmem:[#allocation2 + $0x84] sm:$0x1]
    %v142 = vsel %vm92, 0, %v141
    %143 = vst [vmem:[#allocation2 + $0x84] sm:$0x1] %v142
    %v144 = vld [vmem:[#allocation2 + $0x8c] sm:$0x1]
    %v145 = vsel %vm92, 0, %v144
    %146 = vst [vmem:[#allocation2 + $0x8c] sm:$0x1] %v145
    %v147 = vld [vmem:[#allocation2 + $0x94] sm:$0x1]
    %v148 = vsel %vm92, 0, %v147
    %149 = vst [vmem:[#allocation2 + $0x94] sm:$0x1] %v148
    %v150 = vld [vmem:[#allocation2 + $0x9c] sm:$0x1]
    %v151 = vsel %vm92, 0, %v150
    %152 = vst [vmem:[#allocation2 + $0x9c] sm:$0x1] %v151
    %vm153 = vcmask 257024
    %154 = vst.msk [vmem:[#allocation2] sm:$0xf] %vm153, 0
    %vm155 = vcmask 253952
    %156 = vst.msk [vmem:[#allocation2 + $0x4] sm:$0x1] %vm155, 0
    %s157 = scalar_lea.vmem [#allocation2], 72
    %158 = vst.msk [vmem:[%s157] sm:$0xf] %vm153, 0
    %159 = vst.msk [vmem:[%s157 + $0x4] sm:$0x1] %vm155, 0
    %v160 = vld [vmem:[%s0] sm:$0xff]
    %v161 = vld [vmem:[%s0 + $0x8] sm:$0xff]
    %v162 = vld [vmem:[%s0 + $0x10] sm:$0xff]
    %v163 = vld [vmem:[%s0 + $0x18] sm:$0xff]
    %v164 = vld [vmem:[%s0 + $0x20] sm:$0xff]
    %v165 = vld [vmem:[%s0 + $0x28] sm:$0xff]
    %v166 = vld [vmem:[%s0 + $0x30] sm:$0xff]
    %v167 = vld [vmem:[%s0 + $0x38] sm:$0xff]
    %v168 = vld [vmem:[%s3] sm:$0x1]
    %v170 = vperm.slane %v168, 0
    %v172 = vmul.f32 %v160, %v170
    %v173 = vmul.f32 %v161, %v170
    %v174 = vmul.f32 %v162, %v170
    %v175 = vmul.f32 %v163, %v170
    %v176 = vmul.f32 %v164, %v170
    %v177 = vmul.f32 %v165, %v170
    %v178 = vmul.f32 %v166, %v170
    %v179 = vmul.f32 %v167, %v170
    %v180 = vld [vmem:[%s4] sm:$0x1]
    %v182 = vperm.slane %v180, 0
    %v184 = vadd.f32 %v172, %v182
    %v185 = vadd.f32 %v173, %v182
    %v186 = vadd.f32 %v174, %v182
    %v187 = vadd.f32 %v175, %v182
    %v188 = vadd.f32 %v176, %v182
    %v189 = vadd.f32 %v177, %v182
    %v190 = vadd.f32 %v178, %v182
    %v191 = vadd.f32 %v179, %v182
    %v192 = vmax.f32 %v184, 0.0
    %v193 = vmax.f32 %v185, 0.0
    %v194 = vmax.f32 %v186, 0.0
    %v195 = vmax.f32 %v187, 0.0
    %v196 = vmax.f32 %v188, 0.0
    %v197 = vmax.f32 %v189, 0.0
    %v198 = vmax.f32 %v190, 0.0
    %v199 = vmax.f32 %v191, 0.0
    %v200 = vpack.c.bf16 %v192, %v192
    %v201 = vpack.c.bf16 %v193, %v193
    %v202 = vpack.c.bf16 %v194, %v194
    %v203 = vpack.c.bf16 %v195, %v195
    %v204 = vpack.c.bf16 %v196, %v196
    %v205 = vpack.c.bf16 %v197, %v197
    %v206 = vpack.c.bf16 %v198, %v198
    %v207 = vpack.c.bf16 %v199, %v199
    %v209 = vshrl.u32 %v200, 16
    %v211 = vrot.slane %v209, 7
    %v212 = vshll.u32 %v200, 16
    %v214 = vor.u32 %v211, %v212
    %v215 = vrot.slane %v211, 4
    %v217 = vshrl.u32 %v201, 16
    %v219 = vrot.slane %v217, 7
    %v220 = vshll.u32 %v201, 16
    %v222 = vor.u32 %v219, %v220
    %v223 = vrot.slane %v219, 4
    %v225 = vshrl.u32 %v202, 16
    %v227 = vrot.slane %v225, 7
    %v228 = vshll.u32 %v202, 16
    %v230 = vor.u32 %v227, %v228
    %v231 = vrot.slane %v227, 4
    %v233 = vshrl.u32 %v203, 16
    %v235 = vrot.slane %v233, 7
    %v236 = vshll.u32 %v203, 16
    %v238 = vor.u32 %v235, %v236
    %v239 = vrot.slane %v235, 4
    %v241 = vshrl.u32 %v204, 16
    %v243 = vrot.slane %v241, 7
    %v244 = vshll.u32 %v204, 16
    %v246 = vor.u32 %v243, %v244
    %v247 = vrot.slane %v243, 4
    %v249 = vshrl.u32 %v205, 16
    %v251 = vrot.slane %v249, 7
    %v252 = vshll.u32 %v205, 16
    %v254 = vor.u32 %v251, %v252
    %v255 = vrot.slane %v251, 4
    %v257 = vshrl.u32 %v206, 16
    %v259 = vrot.slane %v257, 7
    %v260 = vshll.u32 %v206, 16
    %v262 = vor.u32 %v259, %v260
    %v263 = vrot.slane %v259, 4
    %v265 = vshrl.u32 %v207, 16
    %v267 = vrot.slane %v265, 7
    %v268 = vshll.u32 %v207, 16
    %v270 = vor.u32 %v267, %v268
    %v271 = vrot.slane %v267, 4
    %s288 = scalar_lea.vmem [#allocation2], 8
    %vm289 = vcmask 257024
    %vm290 = vmand %vm289, %vm91
    %v291 = vld [vmem:[%s288] sm:$0xf]
    %v292 = vsel %vm290, %v214, %v291
    %293 = vst [vmem:[%s288] sm:$0xf] %v292
    %v294 = vld [vmem:[%s288 + $0x4] sm:$0x1]
    %v295 = vsel %vm30, %v215, %v294
    %296 = vst [vmem:[%s288 + $0x4] sm:$0x1] %v295
    %v297 = vld [vmem:[%s288 + $0x8] sm:$0xf]
    %v298 = vsel %vm290, %v222, %v297
    %299 = vst [vmem:[%s288 + $0x8] sm:$0xf] %v298
    %v300 = vld [vmem:[%s288 + $0xc] sm:$0x1]
    %v301 = vsel %vm30, %v223, %v300
    %302 = vst [vmem:[%s288 + $0xc] sm:$0x1] %v301
    %v303 = vld [vmem:[%s288 + $0x10] sm:$0xf]
    %v304 = vsel %vm290, %v230, %v303
    %305 = vst [vmem:[%s288 + $0x10] sm:$0xf] %v304
    %v306 = vld [vmem:[%s288 + $0x14] sm:$0x1]
    %v307 = vsel %vm30, %v231, %v306
    %308 = vst [vmem:[%s288 + $0x14] sm:$0x1] %v307
    %v309 = vld [vmem:[%s288 + $0x18] sm:$0xf]
    %v310 = vsel %vm290, %v238, %v309
    %311 = vst [vmem:[%s288 + $0x18] sm:$0xf] %v310
    %v312 = vld [vmem:[%s288 + $0x1c] sm:$0x1]
    %v313 = vsel %vm30, %v239, %v312
    %314 = vst [vmem:[%s288 + $0x1c] sm:$0x1] %v313
    %v315 = vld [vmem:[%s288 + $0x20] sm:$0xf]
    %v316 = vsel %vm290, %v246, %v315
    %317 = vst [vmem:[%s288 + $0x20] sm:$0xf] %v316
    %v318 = vld [vmem:[%s288 + $0x24] sm:$0x1]
    %v319 = vsel %vm30, %v247, %v318
    %320 = vst [vmem:[%s288 + $0x24] sm:$0x1] %v319
    %v321 = vld [vmem:[%s288 + $0x28] sm:$0xf]
    %v322 = vsel %vm290, %v254, %v321
    %323 = vst [vmem:[%s288 + $0x28] sm:$0xf] %v322
    %v324 = vld [vmem:[%s288 + $0x2c] sm:$0x1]
    %v325 = vsel %vm30, %v255, %v324
    %326 = vst [vmem:[%s288 + $0x2c] sm:$0x1] %v325
    %v327 = vld [vmem:[%s288 + $0x30] sm:$0xf]
    %v328 = vsel %vm290, %v262, %v327
    %329 = vst [vmem:[%s288 + $0x30] sm:$0xf] %v328
    %v330 = vld [vmem:[%s288 + $0x34] sm:$0x1]
    %v331 = vsel %vm30, %v263, %v330
    %332 = vst [vmem:[%s288 + $0x34] sm:$0x1] %v331
    %v333 = vld [vmem:[%s288 + $0x38] sm:$0xf]
    %v334 = vsel %vm290, %v270, %v333
    %335 = vst [vmem:[%s288 + $0x38] sm:$0xf] %v334
    %v336 = vld [vmem:[%s288 + $0x3c] sm:$0x1]
    %v337 = vsel %vm30, %v271, %v336
    %338 = vst [vmem:[%s288 + $0x3c] sm:$0x1] %v337
    %s339 = scalar_lea.vmem [#allocation2], 80
    %340 = vst.msk [vmem:[%s339] sm:$0xf] %vm153, 0
    %341 = vst.msk [vmem:[%s339 + $0x4] sm:$0x1] %vm155, 0
    %s342 = scalar_lea.vmem [#allocation2], 152
    %343 = vst.msk [vmem:[%s342] sm:$0xf] %vm153, 0
    %344 = vst.msk [vmem:[%s342 + $0x4] sm:$0x1] %vm155, 0
    %s345 = scalar_lea.vmem %s0, 64
    %v346 = vld [vmem:[%s345] sm:$0xff]
    %v347 = vld [vmem:[%s345 + $0x8] sm:$0xff]
    %v348 = vld [vmem:[%s345 + $0x10] sm:$0xff]
    %v349 = vld [vmem:[%s345 + $0x18] sm:$0xff]
    %v350 = vld [vmem:[%s345 + $0x20] sm:$0xff]
    %v351 = vld [vmem:[%s345 + $0x28] sm:$0xff]
    %v352 = vld [vmem:[%s345 + $0x30] sm:$0xff]
    %v353 = vld [vmem:[%s345 + $0x38] sm:$0xff]
    %v354 = vld [vmem:[%s3] sm:$0x1]
    %v356 = vperm.slane %v354, 0
    %v358 = vmul.f32 %v346, %v356
    %v359 = vmul.f32 %v347, %v356
    %v360 = vmul.f32 %v348, %v356
    %v361 = vmul.f32 %v349, %v356
    %v362 = vmul.f32 %v350, %v356
    %v363 = vmul.f32 %v351, %v356
    %v364 = vmul.f32 %v352, %v356
    %v365 = vmul.f32 %v353, %v356
    %v366 = vld [vmem:[%s4] sm:$0x1]
    %v368 = vperm.slane %v366, 0
    %v370 = vadd.f32 %v358, %v368
    %v371 = vadd.f32 %v359, %v368
    %v372 = vadd.f32 %v360, %v368
    %v373 = vadd.f32 %v361, %v368
    %v374 = vadd.f32 %v362, %v368
    %v375 = vadd.f32 %v363, %v368
    %v376 = vadd.f32 %v364, %v368
    %v377 = vadd.f32 %v365, %v368
    %v378 = vmax.f32 %v370, 0.0
    %v379 = vmax.f32 %v371, 0.0
    %v380 = vmax.f32 %v372, 0.0
    %v381 = vmax.f32 %v373, 0.0
    %v382 = vmax.f32 %v374, 0.0
    %v383 = vmax.f32 %v375, 0.0
    %v384 = vmax.f32 %v376, 0.0
    %v385 = vmax.f32 %v377, 0.0
    %v386 = vpack.c.bf16 %v378, %v378
    %v387 = vpack.c.bf16 %v379, %v379
    %v388 = vpack.c.bf16 %v380, %v380
    %v389 = vpack.c.bf16 %v381, %v381
    %v390 = vpack.c.bf16 %v382, %v382
    %v391 = vpack.c.bf16 %v383, %v383
    %v392 = vpack.c.bf16 %v384, %v384
    %v393 = vpack.c.bf16 %v385, %v385
    %v395 = vshrl.u32 %v386, 16
    %v397 = vrot.slane %v395, 7
    %v398 = vshll.u32 %v386, 16
    %v400 = vor.u32 %v397, %v398
    %v401 = vrot.slane %v397, 4
    %v403 = vshrl.u32 %v387, 16
    %v405 = vrot.slane %v403, 7
    %v406 = vshll.u32 %v387, 16
    %v408 = vor.u32 %v405, %v406
    %v409 = vrot.slane %v405, 4
    %v411 = vshrl.u32 %v388, 16
    %v413 = vrot.slane %v411, 7
    %v414 = vshll.u32 %v388, 16
    %v416 = vor.u32 %v413, %v414
    %v417 = vrot.slane %v413, 4
    %v419 = vshrl.u32 %v389, 16
    %v421 = vrot.slane %v419, 7
    %v422 = vshll.u32 %v389, 16
    %v424 = vor.u32 %v421, %v422
    %v425 = vrot.slane %v421, 4
    %v427 = vshrl.u32 %v390, 16
    %v429 = vrot.slane %v427, 7
    %v430 = vshll.u32 %v390, 16
    %v432 = vor.u32 %v429, %v430
    %v433 = vrot.slane %v429, 4
    %v435 = vshrl.u32 %v391, 16
    %v437 = vrot.slane %v435, 7
    %v438 = vshll.u32 %v391, 16
    %v440 = vor.u32 %v437, %v438
    %v441 = vrot.slane %v437, 4
    %v443 = vshrl.u32 %v392, 16
    %v445 = vrot.slane %v443, 7
    %v446 = vshll.u32 %v392, 16
    %v448 = vor.u32 %v445, %v446
    %v449 = vrot.slane %v445, 4
    %v451 = vshrl.u32 %v393, 16
    %v453 = vrot.slane %v451, 7
    %v454 = vshll.u32 %v393, 16
    %v456 = vor.u32 %v453, %v454
    %v457 = vrot.slane %v453, 4
    %s474 = scalar_lea.vmem [#allocation2], 88
    %v475 = vld [vmem:[%s474] sm:$0xf]
    %v476 = vsel %vm290, %v400, %v475
    %477 = vst [vmem:[%s474] sm:$0xf] %v476
    %v478 = vld [vmem:[%s474 + $0x4] sm:$0x1]
    %v479 = vsel %vm30, %v401, %v478
    %480 = vst [vmem:[%s474 + $0x4] sm:$0x1] %v479
    %v481 = vld [vmem:[%s474 + $0x8] sm:$0xf]
    %v482 = vsel %vm290, %v408, %v481
    %483 = vst [vmem:[%s474 + $0x8] sm:$0xf] %v482
    %v484 = vld [vmem:[%s474 + $0xc] sm:$0x1]
    %v485 = vsel %vm30, %v409, %v484
    %486 = vst [vmem:[%s474 + $0xc] sm:$0x1] %v485
    %v487 = vld [vmem:[%s474 + $0x10] sm:$0xf]
    %v488 = vsel %vm290, %v416, %v487
    %489 = vst [vmem:[%s474 + $0x10] sm:$0xf] %v488
    %v490 = vld [vmem:[%s474 + $0x14] sm:$0x1]
    %v491 = vsel %vm30, %v417, %v490
    %492 = vst [vmem:[%s474 + $0x14] sm:$0x1] %v491
    %v493 = vld [vmem:[%s474 + $0x18] sm:$0xf]
    %v494 = vsel %vm290, %v424, %v493
    %495 = vst [vmem:[%s474 + $0x18] sm:$0xf] %v494
    %v496 = vld [vmem:[%s474 + $0x1c] sm:$0x1]
    %v497 = vsel %vm30, %v425, %v496
    %498 = vst [vmem:[%s474 + $0x1c] sm:$0x1] %v497
    %v499 = vld [vmem:[%s474 + $0x20] sm:$0xf]
    %v500 = vsel %vm290, %v432, %v499
    %501 = vst [vmem:[%s474 + $0x20] sm:$0xf] %v500
    %v502 = vld [vmem:[%s474 + $0x24] sm:$0x1]
    %v503 = vsel %vm30, %v433, %v502
    %504 = vst [vmem:[%s474 + $0x24] sm:$0x1] %v503
    %v505 = vld [vmem:[%s474 + $0x28] sm:$0xf]
    %v506 = vsel %vm290, %v440, %v505
    %507 = vst [vmem:[%s474 + $0x28] sm:$0xf] %v506
    %v508 = vld [vmem:[%s474 + $0x2c] sm:$0x1]
    %v509 = vsel %vm30, %v441, %v508
    %510 = vst [vmem:[%s474 + $0x2c] sm:$0x1] %v509
    %v511 = vld [vmem:[%s474 + $0x30] sm:$0xf]
    %v512 = vsel %vm290, %v448, %v511
    %513 = vst [vmem:[%s474 + $0x30] sm:$0xf] %v512
    %v514 = vld [vmem:[%s474 + $0x34] sm:$0x1]
    %v515 = vsel %vm30, %v449, %v514
    %516 = vst [vmem:[%s474 + $0x34] sm:$0x1] %v515
    %v517 = vld [vmem:[%s474 + $0x38] sm:$0xf]
    %v518 = vsel %vm290, %v456, %v517
    %519 = vst [vmem:[%s474 + $0x38] sm:$0xf] %v518
    %v520 = vld [vmem:[%s474 + $0x3c] sm:$0x1]
    %v521 = vsel %vm30, %v457, %v520
    %522 = vst [vmem:[%s474 + $0x3c] sm:$0x1] %v521
    %v523 = vld [vmem:[#allocation2] sm:$0xf]
    %v524 = vld [vmem:[#allocation2 + $0x8] sm:$0xf]
    %v525 = vld [vmem:[#allocation2 + $0x10] sm:$0xf]
    %v526 = vld [vmem:[#allocation2 + $0x18] sm:$0xf]
    %v527 = vld [vmem:[#allocation2 + $0x20] sm:$0xf]
    %v528 = vld [vmem:[#allocation2 + $0x28] sm:$0xf]
    %v529 = vld [vmem:[#allocation2 + $0x30] sm:$0xf]
    %v530 = vld [vmem:[#allocation2 + $0x38] sm:$0xf]
    %531 = vst.msk [vmem:[#allocation3] sm:$0xf] %vm153, %v523
    %532 = vst.msk [vmem:[#allocation3 + $0xc] sm:$0xf] %vm153, %v524
    %533 = vst.msk [vmem:[#allocation3 + $0x18] sm:$0xf] %vm153, %v525
    %534 = vst.msk [vmem:[#allocation3 + $0x24] sm:$0xf] %vm153, %v526
    %535 = vst.msk [vmem:[#allocation3 + $0x30] sm:$0xf] %vm153, %v527
    %536 = vst.msk [vmem:[#allocation3 + $0x3c] sm:$0xf] %vm153, %v528
    %537 = vst.msk [vmem:[#allocation3 + $0x48] sm:$0xf] %vm153, %v529
    %538 = vst.msk [vmem:[#allocation3 + $0x54] sm:$0xf] %vm153, %v530
    %v539 = vld [vmem:[#allocation2] sm:$0xf]
    %v540 = vld [vmem:[#allocation2 + $0x4] sm:$0x1]
    %v541 = vld [vmem:[#allocation2 + $0x8] sm:$0xf]
    %v542 = vld [vmem:[#allocation2 + $0xc] sm:$0x1]
    %v543 = vld [vmem:[#allocation2 + $0x10] sm:$0xf]
    %v544 = vld [vmem:[#allocation2 + $0x14] sm:$0x1]
    %v545 = vld [vmem:[#allocation2 + $0x18] sm:$0xf]
    %v546 = vld [vmem:[#allocation2 + $0x1c] sm:$0x1]
    %v547 = vld [vmem:[#allocation2 + $0x20] sm:$0xf]
    %v548 = vld [vmem:[#allocation2 + $0x24] sm:$0x1]
    %v549 = vld [vmem:[#allocation2 + $0x28] sm:$0xf]
    %v550 = vld [vmem:[#allocation2 + $0x2c] sm:$0x1]
    %v551 = vld [vmem:[#allocation2 + $0x30] sm:$0xf]
    %v552 = vld [vmem:[#allocation2 + $0x34] sm:$0x1]
    %v553 = vld [vmem:[#allocation2 + $0x38] sm:$0xf]
    %v554 = vld [vmem:[#allocation2 + $0x3c] sm:$0x1]
    %vm555 = vsmask.f32 3328
    %vm556 = vsmask.f32 7440
    %vm557 = vmor %vm555, %vm556
    %v559 = vshrl.u32 %v539, 16
    %v561 = vrot.slane %v559, 4
    %v562 = vshll.u32 %v539, 16
    %v564 = vrot.slane %v562, 5
    %v565 = vor.u32 %v561, %v564
    %v566 = vrot.slane %v565, 4
    %v568 = vshll.u32 %v540, 16
    %v570 = vrot.slane %v568, 5
    %v571 = vsel %vm557, %v566, %v570
    %v573 = vshrl.u32 %v541, 16
    %v575 = vrot.slane %v573, 4
    %v576 = vshll.u32 %v541, 16
    %v578 = vrot.slane %v576, 5
    %v579 = vor.u32 %v575, %v578
    %v580 = vrot.slane %v579, 4
    %v582 = vshll.u32 %v542, 16
    %v584 = vrot.slane %v582, 5
    %v585 = vsel %vm557, %v580, %v584
    %v587 = vshrl.u32 %v543, 16
    %v589 = vrot.slane %v587, 4
    %v590 = vshll.u32 %v543, 16
    %v592 = vrot.slane %v590, 5
    %v593 = vor.u32 %v589, %v592
    %v594 = vrot.slane %v593, 4
    %v596 = vshll.u32 %v544, 16
    %v598 = vrot.slane %v596, 5
    %v599 = vsel %vm557, %v594, %v598
    %v601 = vshrl.u32 %v545, 16
    %v603 = vrot.slane %v601, 4
    %v604 = vshll.u32 %v545, 16
    %v606 = vrot.slane %v604, 5
    %v607 = vor.u32 %v603, %v606
    %v608 = vrot.slane %v607, 4
    %v610 = vshll.u32 %v546, 16
    %v612 = vrot.slane %v610, 5
    %v613 = vsel %vm557, %v608, %v612
    %v615 = vshrl.u32 %v547, 16
    %v617 = vrot.slane %v615, 4
    %v618 = vshll.u32 %v547, 16
    %v620 = vrot.slane %v618, 5
    %v621 = vor.u32 %v617, %v620
    %v622 = vrot.slane %v621, 4
    %v624 = vshll.u32 %v548, 16
    %v626 = vrot.slane %v624, 5
    %v627 = vsel %vm557, %v622, %v626
    %v629 = vshrl.u32 %v549, 16
    %v631 = vrot.slane %v629, 4
    %v632 = vshll.u32 %v549, 16
    %v634 = vrot.slane %v632, 5
    %v635 = vor.u32 %v631, %v634
    %v636 = vrot.slane %v635, 4
    %v638 = vshll.u32 %v550, 16
    %v640 = vrot.slane %v638, 5
    %v641 = vsel %vm557, %v636, %v640
    %v643 = vshrl.u32 %v551, 16
    %v645 = vrot.slane %v643, 4
    %v646 = vshll.u32 %v551, 16
    %v648 = vrot.slane %v646, 5
    %v649 = vor.u32 %v645, %v648
    %v650 = vrot.slane %v649, 4
    %v652 = vshll.u32 %v552, 16
    %v654 = vrot.slane %v652, 5
    %v655 = vsel %vm557, %v650, %v654
    %v657 = vshrl.u32 %v553, 16
    %v659 = vrot.slane %v657, 4
    %v660 = vshll.u32 %v553, 16
    %v662 = vrot.slane %v660, 5
    %v663 = vor.u32 %v659, %v662
    %v664 = vrot.slane %v663, 4
    %v666 = vshll.u32 %v554, 16
    %v668 = vrot.slane %v666, 5
    %v669 = vsel %vm557, %v664, %v668
    %670 = vrot.lane.b32.xlu0 %v571, 32
    %v671 = vpop.permute.xlu0 %670
    %672 = vrot.lane.b32.xlu0 %v585, 32
    %v673 = vpop.permute.xlu0 %672
    %674 = vrot.lane.b32.xlu0 %v599, 32
    %v675 = vpop.permute.xlu0 %674
    %676 = vrot.lane.b32.xlu0 %v613, 32
    %v677 = vpop.permute.xlu0 %676
    %678 = vrot.lane.b32.xlu0 %v627, 32
    %v679 = vpop.permute.xlu0 %678
    %680 = vrot.lane.b32.xlu0 %v641, 32
    %v681 = vpop.permute.xlu0 %680
    %682 = vrot.lane.b32.xlu0 %v655, 32
    %v683 = vpop.permute.xlu0 %682
    %684 = vrot.lane.b32.xlu0 %v669, 32
    %v685 = vpop.permute.xlu0 %684
    %vm694 = vcmask 519424
    %695 = vst.msk [vmem:[#allocation3] sm:$0xf] %vm694, %v671
    %696 = vst.msk [vmem:[#allocation3 + $0xc] sm:$0xf] %vm694, %v673
    %697 = vst.msk [vmem:[#allocation3 + $0x18] sm:$0xf] %vm694, %v675
    %698 = vst.msk [vmem:[#allocation3 + $0x24] sm:$0xf] %vm694, %v677
    %699 = vst.msk [vmem:[#allocation3 + $0x30] sm:$0xf] %vm694, %v679
    %700 = vst.msk [vmem:[#allocation3 + $0x3c] sm:$0xf] %vm694, %v681
    %701 = vst.msk [vmem:[#allocation3 + $0x48] sm:$0xf] %vm694, %v683
    %702 = vst.msk [vmem:[#allocation3 + $0x54] sm:$0xf] %vm694, %v685
    %v703 = vld [vmem:[#allocation2] sm:$0xe]
    %v704 = vld [vmem:[#allocation2 + $0x4] sm:$0x1]
    %v705 = vld [vmem:[#allocation2 + $0x8] sm:$0xe]
    %v706 = vld [vmem:[#allocation2 + $0xc] sm:$0x1]
    %v707 = vld [vmem:[#allocation2 + $0x10] sm:$0xe]
    %v708 = vld [vmem:[#allocation2 + $0x14] sm:$0x1]
    %v709 = vld [vmem:[#allocation2 + $0x18] sm:$0xe]
    %v710 = vld [vmem:[#allocation2 + $0x1c] sm:$0x1]
    %v711 = vld [vmem:[#allocation2 + $0x20] sm:$0xe]
    %v712 = vld [vmem:[#allocation2 + $0x24] sm:$0x1]
    %v713 = vld [vmem:[#allocation2 + $0x28] sm:$0xe]
    %v714 = vld [vmem:[#allocation2 + $0x2c] sm:$0x1]
    %v715 = vld [vmem:[#allocation2 + $0x30] sm:$0xe]
    %v716 = vld [vmem:[#allocation2 + $0x34] sm:$0x1]
    %v717 = vld [vmem:[#allocation2 + $0x38] sm:$0xe]
    %v718 = vld [vmem:[#allocation2 + $0x3c] sm:$0x1]
    %vm735 = vcmask 1042432
    %vm736 = vcmask 1046532
    %vm737 = vmor %vm735, %vm736
    %v738 = vrot.slane %v703, 5
    %v739 = vrot.slane %v738, 4
    %v740 = vrot.slane %v704, 5
    %v741 = vsel %vm737, %v739, %v740
    %v742 = vrot.slane %v705, 5
    %v743 = vrot.slane %v742, 4
    %v744 = vrot.slane %v706, 5
    %v745 = vsel %vm737, %v743, %v744
    %v746 = vrot.slane %v707, 5
    %v747 = vrot.slane %v746, 4
    %v748 = vrot.slane %v708, 5
    %v749 = vsel %vm737, %v747, %v748
    %v750 = vrot.slane %v709, 5
    %v751 = vrot.slane %v750, 4
    %v752 = vrot.slane %v710, 5
    %v753 = vsel %vm737, %v751, %v752
    %v754 = vrot.slane %v711, 5
    %v755 = vrot.slane %v754, 4
    %v756 = vrot.slane %v712, 5
    %v757 = vsel %vm737, %v755, %v756
    %v758 = vrot.slane %v713, 5
    %v759 = vrot.slane %v758, 4
    %v760 = vrot.slane %v714, 5
    %v761 = vsel %vm737, %v759, %v760
    %v762 = vrot.slane %v715, 5
    %v763 = vrot.slane %v762, 4
    %v764 = vrot.slane %v716, 5
    %v765 = vsel %vm737, %v763, %v764
    %v766 = vrot.slane %v717, 5
    %v767 = vrot.slane %v766, 4
    %v768 = vrot.slane %v718, 5
    %v769 = vsel %vm737, %v767, %v768
    %770 = vrot.lane.b32.xlu0 %v741, 64
    %v771 = vpop.permute.xlu0 %770
    %772 = vrot.lane.b32.xlu0 %v745, 64
    %v773 = vpop.permute.xlu0 %772
    %774 = vrot.lane.b32.xlu0 %v749, 64
    %v775 = vpop.permute.xlu0 %774
    %776 = vrot.lane.b32.xlu0 %v753, 64
    %v777 = vpop.permute.xlu0 %776
    %778 = vrot.lane.b32.xlu0 %v757, 64
    %v779 = vpop.permute.xlu0 %778
    %780 = vrot.lane.b32.xlu0 %v761, 64
    %v781 = vpop.permute.xlu0 %780
    %782 = vrot.lane.b32.xlu0 %v765, 64
    %v783 = vpop.permute.xlu0 %782
    %784 = vrot.lane.b32.xlu0 %v769, 64
    %v785 = vpop.permute.xlu0 %784
    %vm794 = vcmask 781824
    %795 = vst.msk [vmem:[#allocation3] sm:$0xf] %vm794, %v771
    %796 = vst.msk [vmem:[#allocation3 + $0xc] sm:$0xf] %vm794, %v773
    %797 = vst.msk [vmem:[#allocation3 + $0x18] sm:$0xf] %vm794, %v775
    %798 = vst.msk [vmem:[#allocation3 + $0x24] sm:$0xf] %vm794, %v777
    %799 = vst.msk [vmem:[#allocation3 + $0x30] sm:$0xf] %vm794, %v779
    %800 = vst.msk [vmem:[#allocation3 + $0x3c] sm:$0xf] %vm794, %v781
    %801 = vst.msk [vmem:[#allocation3 + $0x48] sm:$0xf] %vm794, %v783
    %802 = vst.msk [vmem:[#allocation3 + $0x54] sm:$0xf] %vm794, %v785
    %v803 = vld [vmem:[%s288] sm:$0xf]
    %v804 = vld [vmem:[%s288 + $0x8] sm:$0xf]
    %v805 = vld [vmem:[%s288 + $0x10] sm:$0xf]
    %v806 = vld [vmem:[%s288 + $0x18] sm:$0xf]
    %v807 = vld [vmem:[%s288 + $0x20] sm:$0xf]
    %v808 = vld [vmem:[%s288 + $0x28] sm:$0xf]
    %v809 = vld [vmem:[%s288 + $0x30] sm:$0xf]
    %v810 = vld [vmem:[%s288 + $0x38] sm:$0xf]
    %819 = vrot.lane.b32.xlu0 %v803, 96
    %v820 = vpop.permute.xlu0 %819
    %821 = vrot.lane.b32.xlu0 %v804, 96
    %v822 = vpop.permute.xlu0 %821
    %823 = vrot.lane.b32.xlu0 %v805, 96
    %v824 = vpop.permute.xlu0 %823
    %825 = vrot.lane.b32.xlu0 %v806, 96
    %v826 = vpop.permute.xlu0 %825
    %827 = vrot.lane.b32.xlu0 %v807, 96
    %v828 = vpop.permute.xlu0 %827
    %829 = vrot.lane.b32.xlu0 %v808, 96
    %v830 = vpop.permute.xlu0 %829
    %831 = vrot.lane.b32.xlu0 %v809, 96
    %v832 = vpop.permute.xlu0 %831
    %833 = vrot.lane.b32.xlu0 %v810, 96
    %v834 = vpop.permute.xlu0 %833
    %vm843 = vcmask 1044224
    %844 = vst.msk [vmem:[#allocation3] sm:$0xf] %vm843, %v820
    %845 = vst.msk [vmem:[#allocation3 + $0xc] sm:$0xf] %vm843, %v822
    %846 = vst.msk [vmem:[#allocation3 + $0x18] sm:$0xf] %vm843, %v824
    %847 = vst.msk [vmem:[#allocation3 + $0x24] sm:$0xf] %vm843, %v826
    %848 = vst.msk [vmem:[#allocation3 + $0x30] sm:$0xf] %vm843, %v828
    %849 = vst.msk [vmem:[#allocation3 + $0x3c] sm:$0xf] %vm843, %v830
    %850 = vst.msk [vmem:[#allocation3 + $0x48] sm:$0xf] %vm843, %v832
    %851 = vst.msk [vmem:[#allocation3 + $0x54] sm:$0xf] %vm843, %v834
    %v852 = vld [vmem:[%s288] sm:$0xf]
    %v853 = vld [vmem:[%s288 + $0x4] sm:$0x1]
    %v854 = vld [vmem:[%s288 + $0x8] sm:$0xf]
    %v855 = vld [vmem:[%s288 + $0xc] sm:$0x1]
    %v856 = vld [vmem:[%s288 + $0x10] sm:$0xf]
    %v857 = vld [vmem:[%s288 + $0x14] sm:$0x1]
    %v858 = vld [vmem:[%s288 + $0x18] sm:$0xf]
    %v859 = vld [vmem:[%s288 + $0x1c] sm:$0x1]
    %v860 = vld [vmem:[%s288 + $0x20] sm:$0xf]
    %v861 = vld [vmem:[%s288 + $0x24] sm:$0x1]
    %v862 = vld [vmem:[%s288 + $0x28] sm:$0xf]
    %v863 = vld [vmem:[%s288 + $0x2c] sm:$0x1]
    %v864 = vld [vmem:[%s288 + $0x30] sm:$0xf]
    %v865 = vld [vmem:[%s288 + $0x34] sm:$0x1]
    %v866 = vld [vmem:[%s288 + $0x38] sm:$0xf]
    %v867 = vld [vmem:[%s288 + $0x3c] sm:$0x1]
    %v869 = vshrl.u32 %v852, 16
    %v871 = vrot.slane %v869, 4
    %v872 = vshll.u32 %v852, 16
    %v874 = vrot.slane %v872, 5
    %v875 = vor.u32 %v871, %v874
    %v876 = vrot.slane %v875, 4
    %v878 = vshll.u32 %v853, 16
    %v880 = vrot.slane %v878, 5
    %v881 = vsel %vm557, %v876, %v880
    %v883 = vshrl.u32 %v854, 16
    %v885 = vrot.slane %v883, 4
    %v886 = vshll.u32 %v854, 16
    %v888 = vrot.slane %v886, 5
    %v889 = vor.u32 %v885, %v888
    %v890 = vrot.slane %v889, 4
    %v892 = vshll.u32 %v855, 16
    %v894 = vrot.slane %v892, 5
    %v895 = vsel %vm557, %v890, %v894
    %v897 = vshrl.u32 %v856, 16
    %v899 = vrot.slane %v897, 4
    %v900 = vshll.u32 %v856, 16
    %v902 = vrot.slane %v900, 5
    %v903 = vor.u32 %v899, %v902
    %v904 = vrot.slane %v903, 4
    %v906 = vshll.u32 %v857, 16
    %v908 = vrot.slane %v906, 5
    %v909 = vsel %vm557, %v904, %v908
    %v911 = vshrl.u32 %v858, 16
    %v913 = vrot.slane %v911, 4
    %v914 = vshll.u32 %v858, 16
    %v916 = vrot.slane %v914, 5
    %v917 = vor.u32 %v913, %v916
    %v918 = vrot.slane %v917, 4
    %v920 = vshll.u32 %v859, 16
    %v922 = vrot.slane %v920, 5
    %v923 = vsel %vm557, %v918, %v922
    %v925 = vshrl.u32 %v860, 16
    %v927 = vrot.slane %v925, 4
    %v928 = vshll.u32 %v860, 16
    %v930 = vrot.slane %v928, 5
    %v931 = vor.u32 %v927, %v930
    %v932 = vrot.slane %v931, 4
    %v934 = vshll.u32 %v861, 16
    %v936 = vrot.slane %v934, 5
    %v937 = vsel %vm557, %v932, %v936
    %v939 = vshrl.u32 %v862, 16
    %v941 = vrot.slane %v939, 4
    %v942 = vshll.u32 %v862, 16
    %v944 = vrot.slane %v942, 5
    %v945 = vor.u32 %v941, %v944
    %v946 = vrot.slane %v945, 4
    %v948 = vshll.u32 %v863, 16
    %v950 = vrot.slane %v948, 5
    %v951 = vsel %vm557, %v946, %v950
    %v953 = vshrl.u32 %v864, 16
    %v955 = vrot.slane %v953, 4
    %v956 = vshll.u32 %v864, 16
    %v958 = vrot.slane %v956, 5
    %v959 = vor.u32 %v955, %v958
    %v960 = vrot.slane %v959, 4
    %v962 = vshll.u32 %v865, 16
    %v964 = vrot.slane %v962, 5
    %v965 = vsel %vm557, %v960, %v964
    %v967 = vshrl.u32 %v866, 16
    %v969 = vrot.slane %v967, 4
    %v970 = vshll.u32 %v866, 16
    %v972 = vrot.slane %v970, 5
    %v973 = vor.u32 %v969, %v972
    %v974 = vrot.slane %v973, 4
    %v976 = vshll.u32 %v867, 16
    %v978 = vrot.slane %v976, 5
    %v979 = vsel %vm557, %v974, %v978
    %988 = vst.msk [vmem:[#allocation3 + $0x4] sm:$0xf] %vm153, %v881
    %989 = vst.msk [vmem:[#allocation3 + $0x10] sm:$0xf] %vm153, %v895
    %990 = vst.msk [vmem:[#allocation3 + $0x1c] sm:$0xf] %vm153, %v909
    %991 = vst.msk [vmem:[#allocation3 + $0x28] sm:$0xf] %vm153, %v923
    %992 = vst.msk [vmem:[#allocation3 + $0x34] sm:$0xf] %vm153, %v937
    %993 = vst.msk [vmem:[#allocation3 + $0x40] sm:$0xf] %vm153, %v951
    %994 = vst.msk [vmem:[#allocation3 + $0x4c] sm:$0xf] %vm153, %v965
    %995 = vst.msk [vmem:[#allocation3 + $0x58] sm:$0xf] %vm153, %v979
    %v996 = vld [vmem:[%s288] sm:$0xe]
    %v997 = vld [vmem:[%s288 + $0x4] sm:$0x1]
    %v998 = vld [vmem:[%s288 + $0x8] sm:$0xe]
    %v999 = vld [vmem:[%s288 + $0xc] sm:$0x1]
    %v1000 = vld [vmem:[%s288 + $0x10] sm:$0xe]
    %v1001 = vld [vmem:[%s288 + $0x14] sm:$0x1]
    %v1002 = vld [vmem:[%s288 + $0x18] sm:$0xe]
    %v1003 = vld [vmem:[%s288 + $0x1c] sm:$0x1]
    %v1004 = vld [vmem:[%s288 + $0x20] sm:$0xe]
    %v1005 = vld [vmem:[%s288 + $0x24] sm:$0x1]
    %v1006 = vld [vmem:[%s288 + $0x28] sm:$0xe]
    %v1007 = vld [vmem:[%s288 + $0x2c] sm:$0x1]
    %v1008 = vld [vmem:[%s288 + $0x30] sm:$0xe]
    %v1009 = vld [vmem:[%s288 + $0x34] sm:$0x1]
    %v1010 = vld [vmem:[%s288 + $0x38] sm:$0xe]
    %v1011 = vld [vmem:[%s288 + $0x3c] sm:$0x1]
    %v1028 = vrot.slane %v996, 5
    %v1029 = vrot.slane %v1028, 4
    %v1030 = vrot.slane %v997, 5
    %v1031 = vsel %vm737, %v1029, %v1030
    %v1032 = vrot.slane %v998, 5
    %v1033 = vrot.slane %v1032, 4
    %v1034 = vrot.slane %v999, 5
    %v1035 = vsel %vm737, %v1033, %v1034
    %v1036 = vrot.slane %v1000, 5
    %v1037 = vrot.slane %v1036, 4
    %v1038 = vrot.slane %v1001, 5
    %v1039 = vsel %vm737, %v1037, %v1038
    %v1040 = vrot.slane %v1002, 5
    %v1041 = vrot.slane %v1040, 4
    %v1042 = vrot.slane %v1003, 5
    %v1043 = vsel %vm737, %v1041, %v1042
    %v1044 = vrot.slane %v1004, 5
    %v1045 = vrot.slane %v1044, 4
    %v1046 = vrot.slane %v1005, 5
    %v1047 = vsel %vm737, %v1045, %v1046
    %v1048 = vrot.slane %v1006, 5
    %v1049 = vrot.slane %v1048, 4
    %v1050 = vrot.slane %v1007, 5
    %v1051 = vsel %vm737, %v1049, %v1050
    %v1052 = vrot.slane %v1008, 5
    %v1053 = vrot.slane %v1052, 4
    %v1054 = vrot.slane %v1009, 5
    %v1055 = vsel %vm737, %v1053, %v1054
    %v1056 = vrot.slane %v1010, 5
    %v1057 = vrot.slane %v1056, 4
    %v1058 = vrot.slane %v1011, 5
    %v1059 = vsel %vm737, %v1057, %v1058
    %1060 = vrot.lane.b32.xlu0 %v1031, 32
    %v1061 = vpop.permute.xlu0 %1060
    %1062 = vrot.lane.b32.xlu0 %v1035, 32
    %v1063 = vpop.permute.xlu0 %1062
    %1064 = vrot.lane.b32.xlu0 %v1039, 32
    %v1065 = vpop.permute.xlu0 %1064
    %1066 = vrot.lane.b32.xlu0 %v1043, 32
    %v1067 = vpop.permute.xlu0 %1066
    %1068 = vrot.lane.b32.xlu0 %v1047, 32
    %v1069 = vpop.permute.xlu0 %1068
    %1070 = vrot.lane.b32.xlu0 %v1051, 32
    %v1071 = vpop.permute.xlu0 %1070
    %1072 = vrot.lane.b32.xlu0 %v1055, 32
    %v1073 = vpop.permute.xlu0 %1072
    %1074 = vrot.lane.b32.xlu0 %v1059, 32
    %v1075 = vpop.permute.xlu0 %1074
    %1084 = vst.msk [vmem:[#allocation3 + $0x4] sm:$0xf] %vm694, %v1061
    %1085 = vst.msk [vmem:[#allocation3 + $0x10] sm:$0xf] %vm694, %v1063
    %1086 = vst.msk [vmem:[#allocation3 + $0x1c] sm:$0xf] %vm694, %v1065
    %1087 = vst.msk [vmem:[#allocation3 + $0x28] sm:$0xf] %vm694, %v1067
    %1088 = vst.msk [vmem:[#allocation3 + $0x34] sm:$0xf] %vm694, %v1069
    %1089 = vst.msk [vmem:[#allocation3 + $0x40] sm:$0xf] %vm694, %v1071
    %1090 = vst.msk [vmem:[#allocation3 + $0x4c] sm:$0xf] %vm694, %v1073
    %1091 = vst.msk [vmem:[#allocation3 + $0x58] sm:$0xf] %vm694, %v1075
    %s1092 = scalar_lea.vmem [#allocation2], 16
    %v1093 = vld [vmem:[%s1092] sm:$0xf]
    %v1094 = vld [vmem:[%s1092 + $0x8] sm:$0xf]
    %v1095 = vld [vmem:[%s1092 + $0x10] sm:$0xf]
    %v1096 = vld [vmem:[%s1092 + $0x18] sm:$0xf]
    %v1097 = vld [vmem:[%s1092 + $0x20] sm:$0xf]
    %v1098 = vld [vmem:[%s1092 + $0x28] sm:$0xf]
    %v1099 = vld [vmem:[%s1092 + $0x30] sm:$0xf]
    %v1100 = vld [vmem:[%s1092 + $0x38] sm:$0xf]
    %1109 = vrot.lane.b32.xlu0 %v1093, 64
    %v1110 = vpop.permute.xlu0 %1109
    %1111 = vrot.lane.b32.xlu0 %v1094, 64
    %v1112 = vpop.permute.xlu0 %1111
    %1113 = vrot.lane.b32.xlu0 %v1095, 64
    %v1114 = vpop.permute.xlu0 %1113
    %1115 = vrot.lane.b32.xlu0 %v1096, 64
    %v1116 = vpop.permute.xlu0 %1115
    %1117 = vrot.lane.b32.xlu0 %v1097, 64
    %v1118 = vpop.permute.xlu0 %1117
    %1119 = vrot.lane.b32.xlu0 %v1098, 64
    %v1120 = vpop.permute.xlu0 %1119
    %1121 = vrot.lane.b32.xlu0 %v1099, 64
    %v1122 = vpop.permute.xlu0 %1121
    %1123 = vrot.lane.b32.xlu0 %v1100, 64
    %v1124 = vpop.permute.xlu0 %1123
    %1133 = vst.msk [vmem:[#allocation3 + $0x4] sm:$0xf] %vm794, %v1110
    %1134 = vst.msk [vmem:[#allocation3 + $0x10] sm:$0xf] %vm794, %v1112
    %1135 = vst.msk [vmem:[#allocation3 + $0x1c] sm:$0xf] %vm794, %v1114
    %1136 = vst.msk [vmem:[#allocation3 + $0x28] sm:$0xf] %vm794, %v1116
    %1137 = vst.msk [vmem:[#allocation3 + $0x34] sm:$0xf] %vm794, %v1118
    %1138 = vst.msk [vmem:[#allocation3 + $0x40] sm:$0xf] %vm794, %v1120
    %1139 = vst.msk [vmem:[#allocation3 + $0x4c] sm:$0xf] %vm794, %v1122
    %1140 = vst.msk [vmem:[#allocation3 + $0x58] sm:$0xf] %vm794, %v1124
    %v1141 = vld [vmem:[%s1092] sm:$0xf]
    %v1142 = vld [vmem:[%s1092 + $0x4] sm:$0x1]
    %v1143 = vld [vmem:[%s1092 + $0x8] sm:$0xf]
    %v1144 = vld [vmem:[%s1092 + $0xc] sm:$0x1]
    %v1145 = vld [vmem:[%s1092 + $0x10] sm:$0xf]
    %v1146 = vld [vmem:[%s1092 + $0x14] sm:$0x1]
    %v1147 = vld [vmem:[%s1092 + $0x18] sm:$0xf]
    %v1148 = vld [vmem:[%s1092 + $0x1c] sm:$0x1]
    %v1149 = vld [vmem:[%s1092 + $0x20] sm:$0xf]
    %v1150 = vld [vmem:[%s1092 + $0x24] sm:$0x1]
    %v1151 = vld [vmem:[%s1092 + $0x28] sm:$0xf]
    %v1152 = vld [vmem:[%s1092 + $0x2c] sm:$0x1]
    %v1153 = vld [vmem:[%s1092 + $0x30] sm:$0xf]
    %v1154 = vld [vmem:[%s1092 + $0x34] sm:$0x1]
    %v1155 = vld [vmem:[%s1092 + $0x38] sm:$0xf]
    %v1156 = vld [vmem:[%s1092 + $0x3c] sm:$0x1]
    %v1158 = vshrl.u32 %v1141, 16
    %v1160 = vrot.slane %v1158, 4
    %v1161 = vshll.u32 %v1141, 16
    %v1163 = vrot.slane %v1161, 5
    %v1164 = vor.u32 %v1160, %v1163
    %v1165 = vrot.slane %v1164, 4
    %v1167 = vshll.u32 %v1142, 16
    %v1169 = vrot.slane %v1167, 5
    %v1170 = vsel %vm557, %v1165, %v1169
    %v1172 = vshrl.u32 %v1143, 16
    %v1174 = vrot.slane %v1172, 4
    %v1175 = vshll.u32 %v1143, 16
    %v1177 = vrot.slane %v1175, 5
    %v1178 = vor.u32 %v1174, %v1177
    %v1179 = vrot.slane %v1178, 4
    %v1181 = vshll.u32 %v1144, 16
    %v1183 = vrot.slane %v1181, 5
    %v1184 = vsel %vm557, %v1179, %v1183
    %v1186 = vshrl.u32 %v1145, 16
    %v1188 = vrot.slane %v1186, 4
    %v1189 = vshll.u32 %v1145, 16
    %v1191 = vrot.slane %v1189, 5
    %v1192 = vor.u32 %v1188, %v1191
    %v1193 = vrot.slane %v1192, 4
    %v1195 = vshll.u32 %v1146, 16
    %v1197 = vrot.slane %v1195, 5
    %v1198 = vsel %vm557, %v1193, %v1197
    %v1200 = vshrl.u32 %v1147, 16
    %v1202 = vrot.slane %v1200, 4
    %v1203 = vshll.u32 %v1147, 16
    %v1205 = vrot.slane %v1203, 5
    %v1206 = vor.u32 %v1202, %v1205
    %v1207 = vrot.slane %v1206, 4
    %v1209 = vshll.u32 %v1148, 16
    %v1211 = vrot.slane %v1209, 5
    %v1212 = vsel %vm557, %v1207, %v1211
    %v1214 = vshrl.u32 %v1149, 16
    %v1216 = vrot.slane %v1214, 4
    %v1217 = vshll.u32 %v1149, 16
    %v1219 = vrot.slane %v1217, 5
    %v1220 = vor.u32 %v1216, %v1219
    %v1221 = vrot.slane %v1220, 4
    %v1223 = vshll.u32 %v1150, 16
    %v1225 = vrot.slane %v1223, 5
    %v1226 = vsel %vm557, %v1221, %v1225
    %v1228 = vshrl.u32 %v1151, 16
    %v1230 = vrot.slane %v1228, 4
    %v1231 = vshll.u32 %v1151, 16
    %v1233 = vrot.slane %v1231, 5
    %v1234 = vor.u32 %v1230, %v1233
    %v1235 = vrot.slane %v1234, 4
    %v1237 = vshll.u32 %v1152, 16
    %v1239 = vrot.slane %v1237, 5
    %v1240 = vsel %vm557, %v1235, %v1239
    %v1242 = vshrl.u32 %v1153, 16
    %v1244 = vrot.slane %v1242, 4
    %v1245 = vshll.u32 %v1153, 16
    %v1247 = vrot.slane %v1245, 5
    %v1248 = vor.u32 %v1244, %v1247
    %v1249 = vrot.slane %v1248, 4
    %v1251 = vshll.u32 %v1154, 16
    %v1253 = vrot.slane %v1251, 5
    %v1254 = vsel %vm557, %v1249, %v1253
    %v1256 = vshrl.u32 %v1155, 16
    %v1258 = vrot.slane %v1256, 4
    %v1259 = vshll.u32 %v1155, 16
    %v1261 = vrot.slane %v1259, 5
    %v1262 = vor.u32 %v1258, %v1261
    %v1263 = vrot.slane %v1262, 4
    %v1265 = vshll.u32 %v1156, 16
    %v1267 = vrot.slane %v1265, 5
    %v1268 = vsel %vm557, %v1263, %v1267
    %1269 = vrot.lane.b32.xlu0 %v1170, 96
    %v1270 = vpop.permute.xlu0 %1269
    %1271 = vrot.lane.b32.xlu0 %v1184, 96
    %v1272 = vpop.permute.xlu0 %1271
    %1273 = vrot.lane.b32.xlu0 %v1198, 96
    %v1274 = vpop.permute.xlu0 %1273
    %1275 = vrot.lane.b32.xlu0 %v1212, 96
    %v1276 = vpop.permute.xlu0 %1275
    %1277 = vrot.lane.b32.xlu0 %v1226, 96
    %v1278 = vpop.permute.xlu0 %1277
    %1279 = vrot.lane.b32.xlu0 %v1240, 96
    %v1280 = vpop.permute.xlu0 %1279
    %1281 = vrot.lane.b32.xlu0 %v1254, 96
    %v1282 = vpop.permute.xlu0 %1281
    %1283 = vrot.lane.b32.xlu0 %v1268, 96
    %v1284 = vpop.permute.xlu0 %1283
    %1293 = vst.msk [vmem:[#allocation3 + $0x4] sm:$0xf] %vm843, %v1270
    %1294 = vst.msk [vmem:[#allocation3 + $0x10] sm:$0xf] %vm843, %v1272
    %1295 = vst.msk [vmem:[#allocation3 + $0x1c] sm:$0xf] %vm843, %v1274
    %1296 = vst.msk [vmem:[#allocation3 + $0x28] sm:$0xf] %vm843, %v1276
    %1297 = vst.msk [vmem:[#allocation3 + $0x34] sm:$0xf] %vm843, %v1278
    %1298 = vst.msk [vmem:[#allocation3 + $0x40] sm:$0xf] %vm843, %v1280
    %1299 = vst.msk [vmem:[#allocation3 + $0x4c] sm:$0xf] %vm843, %v1282
    %1300 = vst.msk [vmem:[#allocation3 + $0x58] sm:$0xf] %vm843, %v1284
    %v1301 = vld [vmem:[%s1092] sm:$0xe]
    %v1302 = vld [vmem:[%s1092 + $0x4] sm:$0x1]
    %v1303 = vld [vmem:[%s1092 + $0x8] sm:$0xe]
    %v1304 = vld [vmem:[%s1092 + $0xc] sm:$0x1]
    %v1305 = vld [vmem:[%s1092 + $0x10] sm:$0xe]
    %v1306 = vld [vmem:[%s1092 + $0x14] sm:$0x1]
    %v1307 = vld [vmem:[%s1092 + $0x18] sm:$0xe]
    %v1308 = vld [vmem:[%s1092 + $0x1c] sm:$0x1]
    %v1309 = vld [vmem:[%s1092 + $0x20] sm:$0xe]
    %v1310 = vld [vmem:[%s1092 + $0x24] sm:$0x1]
    %v1311 = vld [vmem:[%s1092 + $0x28] sm:$0xe]
    %v1312 = vld [vmem:[%s1092 + $0x2c] sm:$0x1]
    %v1313 = vld [vmem:[%s1092 + $0x30] sm:$0xe]
    %v1314 = vld [vmem:[%s1092 + $0x34] sm:$0x1]
    %v1315 = vld [vmem:[%s1092 + $0x38] sm:$0xe]
    %v1316 = vld [vmem:[%s1092 + $0x3c] sm:$0x1]
    %v1333 = vrot.slane %v1301, 5
    %v1334 = vrot.slane %v1333, 4
    %v1335 = vrot.slane %v1302, 5
    %v1336 = vsel %vm737, %v1334, %v1335
    %v1337 = vrot.slane %v1303, 5
    %v1338 = vrot.slane %v1337, 4
    %v1339 = vrot.slane %v1304, 5
    %v1340 = vsel %vm737, %v1338, %v1339
    %v1341 = vrot.slane %v1305, 5
    %v1342 = vrot.slane %v1341, 4
    %v1343 = vrot.slane %v1306, 5
    %v1344 = vsel %vm737, %v1342, %v1343
    %v1345 = vrot.slane %v1307, 5
    %v1346 = vrot.slane %v1345, 4
    %v1347 = vrot.slane %v1308, 5
    %v1348 = vsel %vm737, %v1346, %v1347
    %v1349 = vrot.slane %v1309, 5
    %v1350 = vrot.slane %v1349, 4
    %v1351 = vrot.slane %v1310, 5
    %v1352 = vsel %vm737, %v1350, %v1351
    %v1353 = vrot.slane %v1311, 5
    %v1354 = vrot.slane %v1353, 4
    %v1355 = vrot.slane %v1312, 5
    %v1356 = vsel %vm737, %v1354, %v1355
    %v1357 = vrot.slane %v1313, 5
    %v1358 = vrot.slane %v1357, 4
    %v1359 = vrot.slane %v1314, 5
    %v1360 = vsel %vm737, %v1358, %v1359
    %v1361 = vrot.slane %v1315, 5
    %v1362 = vrot.slane %v1361, 4
    %v1363 = vrot.slane %v1316, 5
    %v1364 = vsel %vm737, %v1362, %v1363
    %1373 = vst.msk [vmem:[#allocation3 + $0x8] sm:$0xf] %vm153, %v1336
    %1374 = vst.msk [vmem:[#allocation3 + $0x14] sm:$0xf] %vm153, %v1340
    %1375 = vst.msk [vmem:[#allocation3 + $0x20] sm:$0xf] %vm153, %v1344
    %1376 = vst.msk [vmem:[#allocation3 + $0x2c] sm:$0xf] %vm153, %v1348
    %1377 = vst.msk [vmem:[#allocation3 + $0x38] sm:$0xf] %vm153, %v1352
    %1378 = vst.msk [vmem:[#allocation3 + $0x44] sm:$0xf] %vm153, %v1356
    %1379 = vst.msk [vmem:[#allocation3 + $0x50] sm:$0xf] %vm153, %v1360
    %1380 = vst.msk [vmem:[#allocation3 + $0x5c] sm:$0xf] %vm153, %v1364
    %v1381 = vld [vmem:[%s339] sm:$0xf]
    %v1382 = vld [vmem:[%s339 + $0x8] sm:$0xf]
    %v1383 = vld [vmem:[%s339 + $0x10] sm:$0xf]
    %v1384 = vld [vmem:[%s339 + $0x18] sm:$0xf]
    %v1385 = vld [vmem:[%s339 + $0x20] sm:$0xf]
    %v1386 = vld [vmem:[%s339 + $0x28] sm:$0xf]
    %v1387 = vld [vmem:[%s339 + $0x30] sm:$0xf]
    %v1388 = vld [vmem:[%s339 + $0x38] sm:$0xf]
    %s1389 = scalar_lea.vmem [#allocation3], 96
    %1390 = vst.msk [vmem:[%s1389] sm:$0xf] %vm153, %v1381
    %1391 = vst.msk [vmem:[%s1389 + $0xc] sm:$0xf] %vm153, %v1382
    %1392 = vst.msk [vmem:[%s1389 + $0x18] sm:$0xf] %vm153, %v1383
    %1393 = vst.msk [vmem:[%s1389 + $0x24] sm:$0xf] %vm153, %v1384
    %1394 = vst.msk [vmem:[%s1389 + $0x30] sm:$0xf] %vm153, %v1385
    %1395 = vst.msk [vmem:[%s1389 + $0x3c] sm:$0xf] %vm153, %v1386
    %1396 = vst.msk [vmem:[%s1389 + $0x48] sm:$0xf] %vm153, %v1387
    %1397 = vst.msk [vmem:[%s1389 + $0x54] sm:$0xf] %vm153, %v1388
    %v1398 = vld [vmem:[%s339] sm:$0xf]
    %v1399 = vld [vmem:[%s339 + $0x4] sm:$0x1]
    %v1400 = vld [vmem:[%s339 + $0x8] sm:$0xf]
    %v1401 = vld [vmem:[%s339 + $0xc] sm:$0x1]
    %v1402 = vld [vmem:[%s339 + $0x10] sm:$0xf]
    %v1403 = vld [vmem:[%s339 + $0x14] sm:$0x1]
    %v1404 = vld [vmem:[%s339 + $0x18] sm:$0xf]
    %v1405 = vld [vmem:[%s339 + $0x1c] sm:$0x1]
    %v1406 = vld [vmem:[%s339 + $0x20] sm:$0xf]
    %v1407 = vld [vmem:[%s339 + $0x24] sm:$0x1]
    %v1408 = vld [vmem:[%s339 + $0x28] sm:$0xf]
    %v1409 = vld [vmem:[%s339 + $0x2c] sm:$0x1]
    %v1410 = vld [vmem:[%s339 + $0x30] sm:$0xf]
    %v1411 = vld [vmem:[%s339 + $0x34] sm:$0x1]
    %v1412 = vld [vmem:[%s339 + $0x38] sm:$0xf]
    %v1413 = vld [vmem:[%s339 + $0x3c] sm:$0x1]
    %v1415 = vshrl.u32 %v1398, 16
    %v1417 = vrot.slane %v1415, 4
    %v1418 = vshll.u32 %v1398, 16
    %v1420 = vrot.slane %v1418, 5
    %v1421 = vor.u32 %v1417, %v1420
    %v1422 = vrot.slane %v1421, 4
    %v1424 = vshll.u32 %v1399, 16
    %v1426 = vrot.slane %v1424, 5
    %v1427 = vsel %vm557, %v1422, %v1426
    %v1429 = vshrl.u32 %v1400, 16
    %v1431 = vrot.slane %v1429, 4
    %v1432 = vshll.u32 %v1400, 16
    %v1434 = vrot.slane %v1432, 5
    %v1435 = vor.u32 %v1431, %v1434
    %v1436 = vrot.slane %v1435, 4
    %v1438 = vshll.u32 %v1401, 16
    %v1440 = vrot.slane %v1438, 5
    %v1441 = vsel %vm557, %v1436, %v1440
    %v1443 = vshrl.u32 %v1402, 16
    %v1445 = vrot.slane %v1443, 4
    %v1446 = vshll.u32 %v1402, 16
    %v1448 = vrot.slane %v1446, 5
    %v1449 = vor.u32 %v1445, %v1448
    %v1450 = vrot.slane %v1449, 4
    %v1452 = vshll.u32 %v1403, 16
    %v1454 = vrot.slane %v1452, 5
    %v1455 = vsel %vm557, %v1450, %v1454
    %v1457 = vshrl.u32 %v1404, 16
    %v1459 = vrot.slane %v1457, 4
    %v1460 = vshll.u32 %v1404, 16
    %v1462 = vrot.slane %v1460, 5
    %v1463 = vor.u32 %v1459, %v1462
    %v1464 = vrot.slane %v1463, 4
    %v1466 = vshll.u32 %v1405, 16
    %v1468 = vrot.slane %v1466, 5
    %v1469 = vsel %vm557, %v1464, %v1468
    %v1471 = vshrl.u32 %v1406, 16
    %v1473 = vrot.slane %v1471, 4
    %v1474 = vshll.u32 %v1406, 16
    %v1476 = vrot.slane %v1474, 5
    %v1477 = vor.u32 %v1473, %v1476
    %v1478 = vrot.slane %v1477, 4
    %v1480 = vshll.u32 %v1407, 16
    %v1482 = vrot.slane %v1480, 5
    %v1483 = vsel %vm557, %v1478, %v1482
    %v1485 = vshrl.u32 %v1408, 16
    %v1487 = vrot.slane %v1485, 4
    %v1488 = vshll.u32 %v1408, 16
    %v1490 = vrot.slane %v1488, 5
    %v1491 = vor.u32 %v1487, %v1490
    %v1492 = vrot.slane %v1491, 4
    %v1494 = vshll.u32 %v1409, 16
    %v1496 = vrot.slane %v1494, 5
    %v1497 = vsel %vm557, %v1492, %v1496
    %v1499 = vshrl.u32 %v1410, 16
    %v1501 = vrot.slane %v1499, 4
    %v1502 = vshll.u32 %v1410, 16
    %v1504 = vrot.slane %v1502, 5
    %v1505 = vor.u32 %v1501, %v1504
    %v1506 = vrot.slane %v1505, 4
    %v1508 = vshll.u32 %v1411, 16
    %v1510 = vrot.slane %v1508, 5
    %v1511 = vsel %vm557, %v1506, %v1510
    %v1513 = vshrl.u32 %v1412, 16
    %v1515 = vrot.slane %v1513, 4
    %v1516 = vshll.u32 %v1412, 16
    %v1518 = vrot.slane %v1516, 5
    %v1519 = vor.u32 %v1515, %v1518
    %v1520 = vrot.slane %v1519, 4
    %v1522 = vshll.u32 %v1413, 16
    %v1524 = vrot.slane %v1522, 5
    %v1525 = vsel %vm557, %v1520, %v1524
    %1526 = vrot.lane.b32.xlu0 %v1427, 32
    %v1527 = vpop.permute.xlu0 %1526
    %1528 = vrot.lane.b32.xlu0 %v1441, 32
    %v1529 = vpop.permute.xlu0 %1528
    %1530 = vrot.lane.b32.xlu0 %v1455, 32
    %v1531 = vpop.permute.xlu0 %1530
    %1532 = vrot.lane.b32.xlu0 %v1469, 32
    %v1533 = vpop.permute.xlu0 %1532
    %1534 = vrot.lane.b32.xlu0 %v1483, 32
    %v1535 = vpop.permute.xlu0 %1534
    %1536 = vrot.lane.b32.xlu0 %v1497, 32
    %v1537 = vpop.permute.xlu0 %1536
    %1538 = vrot.lane.b32.xlu0 %v1511, 32
    %v1539 = vpop.permute.xlu0 %1538
    %1540 = vrot.lane.b32.xlu0 %v1525, 32
    %v1541 = vpop.permute.xlu0 %1540
    %1550 = vst.msk [vmem:[%s1389] sm:$0xf] %vm694, %v1527
    %1551 = vst.msk [vmem:[%s1389 + $0xc] sm:$0xf] %vm694, %v1529
    %1552 = vst.msk [vmem:[%s1389 + $0x18] sm:$0xf] %vm694, %v1531
    %1553 = vst.msk [vmem:[%s1389 + $0x24] sm:$0xf] %vm694, %v1533
    %1554 = vst.msk [vmem:[%s1389 + $0x30] sm:$0xf] %vm694, %v1535
    %1555 = vst.msk [vmem:[%s1389 + $0x3c] sm:$0xf] %vm694, %v1537
    %1556 = vst.msk [vmem:[%s1389 + $0x48] sm:$0xf] %vm694, %v1539
    %1557 = vst.msk [vmem:[%s1389 + $0x54] sm:$0xf] %vm694, %v1541
    %v1558 = vld [vmem:[%s339] sm:$0xe]
    %v1559 = vld [vmem:[%s339 + $0x4] sm:$0x1]
    %v1560 = vld [vmem:[%s339 + $0x8] sm:$0xe]
    %v1561 = vld [vmem:[%s339 + $0xc] sm:$0x1]
    %v1562 = vld [vmem:[%s339 + $0x10] sm:$0xe]
    %v1563 = vld [vmem:[%s339 + $0x14] sm:$0x1]
    %v1564 = vld [vmem:[%s339 + $0x18] sm:$0xe]
    %v1565 = vld [vmem:[%s339 + $0x1c] sm:$0x1]
    %v1566 = vld [vmem:[%s339 + $0x20] sm:$0xe]
    %v1567 = vld [vmem:[%s339 + $0x24] sm:$0x1]
    %v1568 = vld [vmem:[%s339 + $0x28] sm:$0xe]
    %v1569 = vld [vmem:[%s339 + $0x2c] sm:$0x1]
    %v1570 = vld [vmem:[%s339 + $0x30] sm:$0xe]
    %v1571 = vld [vmem:[%s339 + $0x34] sm:$0x1]
    %v1572 = vld [vmem:[%s339 + $0x38] sm:$0xe]
    %v1573 = vld [vmem:[%s339 + $0x3c] sm:$0x1]
    %v1590 = vrot.slane %v1558, 5
    %v1591 = vrot.slane %v1590, 4
    %v1592 = vrot.slane %v1559, 5
    %v1593 = vsel %vm737, %v1591, %v1592
    %v1594 = vrot.slane %v1560, 5
    %v1595 = vrot.slane %v1594, 4
    %v1596 = vrot.slane %v1561, 5
    %v1597 = vsel %vm737, %v1595, %v1596
    %v1598 = vrot.slane %v1562, 5
    %v1599 = vrot.slane %v1598, 4
    %v1600 = vrot.slane %v1563, 5
    %v1601 = vsel %vm737, %v1599, %v1600
    %v1602 = vrot.slane %v1564, 5
    %v1603 = vrot.slane %v1602, 4
    %v1604 = vrot.slane %v1565, 5
    %v1605 = vsel %vm737, %v1603, %v1604
    %v1606 = vrot.slane %v1566, 5
    %v1607 = vrot.slane %v1606, 4
    %v1608 = vrot.slane %v1567, 5
    %v1609 = vsel %vm737, %v1607, %v1608
    %v1610 = vrot.slane %v1568, 5
    %v1611 = vrot.slane %v1610, 4
    %v1612 = vrot.slane %v1569, 5
    %v1613 = vsel %vm737, %v1611, %v1612
    %v1614 = vrot.slane %v1570, 5
    %v1615 = vrot.slane %v1614, 4
    %v1616 = vrot.slane %v1571, 5
    %v1617 = vsel %vm737, %v1615, %v1616
    %v1618 = vrot.slane %v1572, 5
    %v1619 = vrot.slane %v1618, 4
    %v1620 = vrot.slane %v1573, 5
    %v1621 = vsel %vm737, %v1619, %v1620
    %1622 = vrot.lane.b32.xlu0 %v1593, 64
    %v1623 = vpop.permute.xlu0 %1622
    %1624 = vrot.lane.b32.xlu0 %v1597, 64
    %v1625 = vpop.permute.xlu0 %1624
    %1626 = vrot.lane.b32.xlu0 %v1601, 64
    %v1627 = vpop.permute.xlu0 %1626
    %1628 = vrot.lane.b32.xlu0 %v1605, 64
    %v1629 = vpop.permute.xlu0 %1628
    %1630 = vrot.lane.b32.xlu0 %v1609, 64
    %v1631 = vpop.permute.xlu0 %1630
    %1632 = vrot.lane.b32.xlu0 %v1613, 64
    %v1633 = vpop.permute.xlu0 %1632
    %1634 = vrot.lane.b32.xlu0 %v1617, 64
    %v1635 = vpop.permute.xlu0 %1634
    %1636 = vrot.lane.b32.xlu0 %v1621, 64
    %v1637 = vpop.permute.xlu0 %1636
    %1646 = vst.msk [vmem:[%s1389] sm:$0xf] %vm794, %v1623
    %1647 = vst.msk [vmem:[%s1389 + $0xc] sm:$0xf] %vm794, %v1625
    %1648 = vst.msk [vmem:[%s1389 + $0x18] sm:$0xf] %vm794, %v1627
    %1649 = vst.msk [vmem:[%s1389 + $0x24] sm:$0xf] %vm794, %v1629
    %1650 = vst.msk [vmem:[%s1389 + $0x30] sm:$0xf] %vm794, %v1631
    %1651 = vst.msk [vmem:[%s1389 + $0x3c] sm:$0xf] %vm794, %v1633
    %1652 = vst.msk [vmem:[%s1389 + $0x48] sm:$0xf] %vm794, %v1635
    %1653 = vst.msk [vmem:[%s1389 + $0x54] sm:$0xf] %vm794, %v1637
    %v1654 = vld [vmem:[%s474] sm:$0xf]
    %v1655 = vld [vmem:[%s474 + $0x8] sm:$0xf]
    %v1656 = vld [vmem:[%s474 + $0x10] sm:$0xf]
    %v1657 = vld [vmem:[%s474 + $0x18] sm:$0xf]
    %v1658 = vld [vmem:[%s474 + $0x20] sm:$0xf]
    %v1659 = vld [vmem:[%s474 + $0x28] sm:$0xf]
    %v1660 = vld [vmem:[%s474 + $0x30] sm:$0xf]
    %v1661 = vld [vmem:[%s474 + $0x38] sm:$0xf]
    %1670 = vrot.lane.b32.xlu0 %v1654, 96
    %v1671 = vpop.permute.xlu0 %1670
    %1672 = vrot.lane.b32.xlu0 %v1655, 96
    %v1673 = vpop.permute.xlu0 %1672
    %1674 = vrot.lane.b32.xlu0 %v1656, 96
    %v1675 = vpop.permute.xlu0 %1674
    %1676 = vrot.lane.b32.xlu0 %v1657, 96
    %v1677 = vpop.permute.xlu0 %1676
    %1678 = vrot.lane.b32.xlu0 %v1658, 96
    %v1679 = vpop.permute.xlu0 %1678
    %1680 = vrot.lane.b32.xlu0 %v1659, 96
    %v1681 = vpop.permute.xlu0 %1680
    %1682 = vrot.lane.b32.xlu0 %v1660, 96
    %v1683 = vpop.permute.xlu0 %1682
    %1684 = vrot.lane.b32.xlu0 %v1661, 96
    %v1685 = vpop.permute.xlu0 %1684
    %1694 = vst.msk [vmem:[%s1389] sm:$0xf] %vm843, %v1671
    %1695 = vst.msk [vmem:[%s1389 + $0xc] sm:$0xf] %vm843, %v1673
    %1696 = vst.msk [vmem:[%s1389 + $0x18] sm:$0xf] %vm843, %v1675
    %1697 = vst.msk [vmem:[%s1389 + $0x24] sm:$0xf] %vm843, %v1677
    %1698 = vst.msk [vmem:[%s1389 + $0x30] sm:$0xf] %vm843, %v1679
    %1699 = vst.msk [vmem:[%s1389 + $0x3c] sm:$0xf] %vm843, %v1681
    %1700 = vst.msk [vmem:[%s1389 + $0x48] sm:$0xf] %vm843, %v1683
    %1701 = vst.msk [vmem:[%s1389 + $0x54] sm:$0xf] %vm843, %v1685
    %v1702 = vld [vmem:[%s474] sm:$0xf]
    %v1703 = vld [vmem:[%s474 + $0x4] sm:$0x1]
    %v1704 = vld [vmem:[%s474 + $0x8] sm:$0xf]
    %v1705 = vld [vmem:[%s474 + $0xc] sm:$0x1]
    %v1706 = vld [vmem:[%s474 + $0x10] sm:$0xf]
    %v1707 = vld [vmem:[%s474 + $0x14] sm:$0x1]
    %v1708 = vld [vmem:[%s474 + $0x18] sm:$0xf]
    %v1709 = vld [vmem:[%s474 + $0x1c] sm:$0x1]
    %v1710 = vld [vmem:[%s474 + $0x20] sm:$0xf]
    %v1711 = vld [vmem:[%s474 + $0x24] sm:$0x1]
    %v1712 = vld [vmem:[%s474 + $0x28] sm:$0xf]
    %v1713 = vld [vmem:[%s474 + $0x2c] sm:$0x1]
    %v1714 = vld [vmem:[%s474 + $0x30] sm:$0xf]
    %v1715 = vld [vmem:[%s474 + $0x34] sm:$0x1]
    %v1716 = vld [vmem:[%s474 + $0x38] sm:$0xf]
    %v1717 = vld [vmem:[%s474 + $0x3c] sm:$0x1]
    %v1719 = vshrl.u32 %v1702, 16
    %v1721 = vrot.slane %v1719, 4
    %v1722 = vshll.u32 %v1702, 16
    %v1724 = vrot.slane %v1722, 5
    %v1725 = vor.u32 %v1721, %v1724
    %v1726 = vrot.slane %v1725, 4
    %v1728 = vshll.u32 %v1703, 16
    %v1730 = vrot.slane %v1728, 5
    %v1731 = vsel %vm557, %v1726, %v1730
    %v1733 = vshrl.u32 %v1704, 16
    %v1735 = vrot.slane %v1733, 4
    %v1736 = vshll.u32 %v1704, 16
    %v1738 = vrot.slane %v1736, 5
    %v1739 = vor.u32 %v1735, %v1738
    %v1740 = vrot.slane %v1739, 4
    %v1742 = vshll.u32 %v1705, 16
    %v1744 = vrot.slane %v1742, 5
    %v1745 = vsel %vm557, %v1740, %v1744
    %v1747 = vshrl.u32 %v1706, 16
    %v1749 = vrot.slane %v1747, 4
    %v1750 = vshll.u32 %v1706, 16
    %v1752 = vrot.slane %v1750, 5
    %v1753 = vor.u32 %v1749, %v1752
    %v1754 = vrot.slane %v1753, 4
    %v1756 = vshll.u32 %v1707, 16
    %v1758 = vrot.slane %v1756, 5
    %v1759 = vsel %vm557, %v1754, %v1758
    %v1761 = vshrl.u32 %v1708, 16
    %v1763 = vrot.slane %v1761, 4
    %v1764 = vshll.u32 %v1708, 16
    %v1766 = vrot.slane %v1764, 5
    %v1767 = vor.u32 %v1763, %v1766
    %v1768 = vrot.slane %v1767, 4
    %v1770 = vshll.u32 %v1709, 16
    %v1772 = vrot.slane %v1770, 5
    %v1773 = vsel %vm557, %v1768, %v1772
    %v1775 = vshrl.u32 %v1710, 16
    %v1777 = vrot.slane %v1775, 4
    %v1778 = vshll.u32 %v1710, 16
    %v1780 = vrot.slane %v1778, 5
    %v1781 = vor.u32 %v1777, %v1780
    %v1782 = vrot.slane %v1781, 4
    %v1784 = vshll.u32 %v1711, 16
    %v1786 = vrot.slane %v1784, 5
    %v1787 = vsel %vm557, %v1782, %v1786
    %v1789 = vshrl.u32 %v1712, 16
    %v1791 = vrot.slane %v1789, 4
    %v1792 = vshll.u32 %v1712, 16
    %v1794 = vrot.slane %v1792, 5
    %v1795 = vor.u32 %v1791, %v1794
    %v1796 = vrot.slane %v1795, 4
    %v1798 = vshll.u32 %v1713, 16
    %v1800 = vrot.slane %v1798, 5
    %v1801 = vsel %vm557, %v1796, %v1800
    %v1803 = vshrl.u32 %v1714, 16
    %v1805 = vrot.slane %v1803, 4
    %v1806 = vshll.u32 %v1714, 16
    %v1808 = vrot.slane %v1806, 5
    %v1809 = vor.u32 %v1805, %v1808
    %v1810 = vrot.slane %v1809, 4
    %v1812 = vshll.u32 %v1715, 16
    %v1814 = vrot.slane %v1812, 5
    %v1815 = vsel %vm557, %v1810, %v1814
    %v1817 = vshrl.u32 %v1716, 16
    %v1819 = vrot.slane %v1817, 4
    %v1820 = vshll.u32 %v1716, 16
    %v1822 = vrot.slane %v1820, 5
    %v1823 = vor.u32 %v1819, %v1822
    %v1824 = vrot.slane %v1823, 4
    %v1826 = vshll.u32 %v1717, 16
    %v1828 = vrot.slane %v1826, 5
    %v1829 = vsel %vm557, %v1824, %v1828
    %1838 = vst.msk [vmem:[%s1389 + $0x4] sm:$0xf] %vm153, %v1731
    %1839 = vst.msk [vmem:[%s1389 + $0x10] sm:$0xf] %vm153, %v1745
    %1840 = vst.msk [vmem:[%s1389 + $0x1c] sm:$0xf] %vm153, %v1759
    %1841 = vst.msk [vmem:[%s1389 + $0x28] sm:$0xf] %vm153, %v1773
    %1842 = vst.msk [vmem:[%s1389 + $0x34] sm:$0xf] %vm153, %v1787
    %1843 = vst.msk [vmem:[%s1389 + $0x40] sm:$0xf] %vm153, %v1801
    %1844 = vst.msk [vmem:[%s1389 + $0x4c] sm:$0xf] %vm153, %v1815
    %1845 = vst.msk [vmem:[%s1389 + $0x58] sm:$0xf] %vm153, %v1829
    %v1846 = vld [vmem:[%s474] sm:$0xe]
    %v1847 = vld [vmem:[%s474 + $0x4] sm:$0x1]
    %v1848 = vld [vmem:[%s474 + $0x8] sm:$0xe]
    %v1849 = vld [vmem:[%s474 + $0xc] sm:$0x1]
    %v1850 = vld [vmem:[%s474 + $0x10] sm:$0xe]
    %v1851 = vld [vmem:[%s474 + $0x14] sm:$0x1]
    %v1852 = vld [vmem:[%s474 + $0x18] sm:$0xe]
    %v1853 = vld [vmem:[%s474 + $0x1c] sm:$0x1]
    %v1854 = vld [vmem:[%s474 + $0x20] sm:$0xe]
    %v1855 = vld [vmem:[%s474 + $0x24] sm:$0x1]
    %v1856 = vld [vmem:[%s474 + $0x28] sm:$0xe]
    %v1857 = vld [vmem:[%s474 + $0x2c] sm:$0x1]
    %v1858 = vld [vmem:[%s474 + $0x30] sm:$0xe]
    %v1859 = vld [vmem:[%s474 + $0x34] sm:$0x1]
    %v1860 = vld [vmem:[%s474 + $0x38] sm:$0xe]
    %v1861 = vld [vmem:[%s474 + $0x3c] sm:$0x1]
    %v1878 = vrot.slane %v1846, 5
    %v1879 = vrot.slane %v1878, 4
    %v1880 = vrot.slane %v1847, 5
    %v1881 = vsel %vm737, %v1879, %v1880
    %v1882 = vrot.slane %v1848, 5
    %v1883 = vrot.slane %v1882, 4
    %v1884 = vrot.slane %v1849, 5
    %v1885 = vsel %vm737, %v1883, %v1884
    %v1886 = vrot.slane %v1850, 5
    %v1887 = vrot.slane %v1886, 4
    %v1888 = vrot.slane %v1851, 5
    %v1889 = vsel %vm737, %v1887, %v1888
    %v1890 = vrot.slane %v1852, 5
    %v1891 = vrot.slane %v1890, 4
    %v1892 = vrot.slane %v1853, 5
    %v1893 = vsel %vm737, %v1891, %v1892
    %v1894 = vrot.slane %v1854, 5
    %v1895 = vrot.slane %v1894, 4
    %v1896 = vrot.slane %v1855, 5
    %v1897 = vsel %vm737, %v1895, %v1896
    %v1898 = vrot.slane %v1856, 5
    %v1899 = vrot.slane %v1898, 4
    %v1900 = vrot.slane %v1857, 5
    %v1901 = vsel %vm737, %v1899, %v1900
    %v1902 = vrot.slane %v1858, 5
    %v1903 = vrot.slane %v1902, 4
    %v1904 = vrot.slane %v1859, 5
    %v1905 = vsel %vm737, %v1903, %v1904
    %v1906 = vrot.slane %v1860, 5
    %v1907 = vrot.slane %v1906, 4
    %v1908 = vrot.slane %v1861, 5
    %v1909 = vsel %vm737, %v1907, %v1908
    %1910 = vrot.lane.b32.xlu0 %v1881, 32
    %v1911 = vpop.permute.xlu0 %1910
    %1912 = vrot.lane.b32.xlu0 %v1885, 32
    %v1913 = vpop.permute.xlu0 %1912
    %1914 = vrot.lane.b32.xlu0 %v1889, 32
    %v1915 = vpop.permute.xlu0 %1914
    %1916 = vrot.lane.b32.xlu0 %v1893, 32
    %v1917 = vpop.permute.xlu0 %1916
    %1918 = vrot.lane.b32.xlu0 %v1897, 32
    %v1919 = vpop.permute.xlu0 %1918
    %1920 = vrot.lane.b32.xlu0 %v1901, 32
    %v1921 = vpop.permute.xlu0 %1920
    %1922 = vrot.lane.b32.xlu0 %v1905, 32
    %v1923 = vpop.permute.xlu0 %1922
    %1924 = vrot.lane.b32.xlu0 %v1909, 32
    %v1925 = vpop.permute.xlu0 %1924
    %1934 = vst.msk [vmem:[%s1389 + $0x4] sm:$0xf] %vm694, %v1911
    %1935 = vst.msk [vmem:[%s1389 + $0x10] sm:$0xf] %vm694, %v1913
    %1936 = vst.msk [vmem:[%s1389 + $0x1c] sm:$0xf] %vm694, %v1915
    %1937 = vst.msk [vmem:[%s1389 + $0x28] sm:$0xf] %vm694, %v1917
    %1938 = vst.msk [vmem:[%s1389 + $0x34] sm:$0xf] %vm694, %v1919
    %1939 = vst.msk [vmem:[%s1389 + $0x40] sm:$0xf] %vm694, %v1921
    %1940 = vst.msk [vmem:[%s1389 + $0x4c] sm:$0xf] %vm694, %v1923
    %1941 = vst.msk [vmem:[%s1389 + $0x58] sm:$0xf] %vm694, %v1925
    %s1942 = scalar_lea.vmem [#allocation2], 96
    %v1943 = vld [vmem:[%s1942] sm:$0xf]
    %v1944 = vld [vmem:[%s1942 + $0x8] sm:$0xf]
    %v1945 = vld [vmem:[%s1942 + $0x10] sm:$0xf]
    %v1946 = vld [vmem:[%s1942 + $0x18] sm:$0xf]
    %v1947 = vld [vmem:[%s1942 + $0x20] sm:$0xf]
    %v1948 = vld [vmem:[%s1942 + $0x28] sm:$0xf]
    %v1949 = vld [vmem:[%s1942 + $0x30] sm:$0xf]
    %v1950 = vld [vmem:[%s1942 + $0x38] sm:$0xf]
    %1959 = vrot.lane.b32.xlu0 %v1943, 64
    %v1960 = vpop.permute.xlu0 %1959
    %1961 = vrot.lane.b32.xlu0 %v1944, 64
    %v1962 = vpop.permute.xlu0 %1961
    %1963 = vrot.lane.b32.xlu0 %v1945, 64
    %v1964 = vpop.permute.xlu0 %1963
    %1965 = vrot.lane.b32.xlu0 %v1946, 64
    %v1966 = vpop.permute.xlu0 %1965
    %1967 = vrot.lane.b32.xlu0 %v1947, 64
    %v1968 = vpop.permute.xlu0 %1967
    %1969 = vrot.lane.b32.xlu0 %v1948, 64
    %v1970 = vpop.permute.xlu0 %1969
    %1971 = vrot.lane.b32.xlu0 %v1949, 64
    %v1972 = vpop.permute.xlu0 %1971
    %1973 = vrot.lane.b32.xlu0 %v1950, 64
    %v1974 = vpop.permute.xlu0 %1973
    %1983 = vst.msk [vmem:[%s1389 + $0x4] sm:$0xf] %vm794, %v1960
    %1984 = vst.msk [vmem:[%s1389 + $0x10] sm:$0xf] %vm794, %v1962
    %1985 = vst.msk [vmem:[%s1389 + $0x1c] sm:$0xf] %vm794, %v1964
    %1986 = vst.msk [vmem:[%s1389 + $0x28] sm:$0xf] %vm794, %v1966
    %1987 = vst.msk [vmem:[%s1389 + $0x34] sm:$0xf] %vm794, %v1968
    %1988 = vst.msk [vmem:[%s1389 + $0x40] sm:$0xf] %vm794, %v1970
    %1989 = vst.msk [vmem:[%s1389 + $0x4c] sm:$0xf] %vm794, %v1972
    %1990 = vst.msk [vmem:[%s1389 + $0x58] sm:$0xf] %vm794, %v1974
    %v1991 = vld [vmem:[%s1942] sm:$0xf]
    %v1992 = vld [vmem:[%s1942 + $0x4] sm:$0x1]
    %v1993 = vld [vmem:[%s1942 + $0x8] sm:$0xf]
    %v1994 = vld [vmem:[%s1942 + $0xc] sm:$0x1]
    %v1995 = vld [vmem:[%s1942 + $0x10] sm:$0xf]
    %v1996 = vld [vmem:[%s1942 + $0x14] sm:$0x1]
    %v1997 = vld [vmem:[%s1942 + $0x18] sm:$0xf]
    %v1998 = vld [vmem:[%s1942 + $0x1c] sm:$0x1]
    %v1999 = vld [vmem:[%s1942 + $0x20] sm:$0xf]
    %v2000 = vld [vmem:[%s1942 + $0x24] sm:$0x1]
    %v2001 = vld [vmem:[%s1942 + $0x28] sm:$0xf]
    %v2002 = vld [vmem:[%s1942 + $0x2c] sm:$0x1]
    %v2003 = vld [vmem:[%s1942 + $0x30] sm:$0xf]
    %v2004 = vld [vmem:[%s1942 + $0x34] sm:$0x1]
    %v2005 = vld [vmem:[%s1942 + $0x38] sm:$0xf]
    %v2006 = vld [vmem:[%s1942 + $0x3c] sm:$0x1]
    %v2008 = vshrl.u32 %v1991, 16
    %v2010 = vrot.slane %v2008, 4
    %v2011 = vshll.u32 %v1991, 16
    %v2013 = vrot.slane %v2011, 5
    %v2014 = vor.u32 %v2010, %v2013
    %v2015 = vrot.slane %v2014, 4
    %v2017 = vshll.u32 %v1992, 16
    %v2019 = vrot.slane %v2017, 5
    %v2020 = vsel %vm557, %v2015, %v2019
    %v2022 = vshrl.u32 %v1993, 16
    %v2024 = vrot.slane %v2022, 4
    %v2025 = vshll.u32 %v1993, 16
    %v2027 = vrot.slane %v2025, 5
    %v2028 = vor.u32 %v2024, %v2027
    %v2029 = vrot.slane %v2028, 4
    %v2031 = vshll.u32 %v1994, 16
    %v2033 = vrot.slane %v2031, 5
    %v2034 = vsel %vm557, %v2029, %v2033
    %v2036 = vshrl.u32 %v1995, 16
    %v2038 = vrot.slane %v2036, 4
    %v2039 = vshll.u32 %v1995, 16
    %v2041 = vrot.slane %v2039, 5
    %v2042 = vor.u32 %v2038, %v2041
    %v2043 = vrot.slane %v2042, 4
    %v2045 = vshll.u32 %v1996, 16
    %v2047 = vrot.slane %v2045, 5
    %v2048 = vsel %vm557, %v2043, %v2047
    %v2050 = vshrl.u32 %v1997, 16
    %v2052 = vrot.slane %v2050, 4
    %v2053 = vshll.u32 %v1997, 16
    %v2055 = vrot.slane %v2053, 5
    %v2056 = vor.u32 %v2052, %v2055
    %v2057 = vrot.slane %v2056, 4
    %v2059 = vshll.u32 %v1998, 16
    %v2061 = vrot.slane %v2059, 5
    %v2062 = vsel %vm557, %v2057, %v2061
    %v2064 = vshrl.u32 %v1999, 16
    %v2066 = vrot.slane %v2064, 4
    %v2067 = vshll.u32 %v1999, 16
    %v2069 = vrot.slane %v2067, 5
    %v2070 = vor.u32 %v2066, %v2069
    %v2071 = vrot.slane %v2070, 4
    %v2073 = vshll.u32 %v2000, 16
    %v2075 = vrot.slane %v2073, 5
    %v2076 = vsel %vm557, %v2071, %v2075
    %v2078 = vshrl.u32 %v2001, 16
    %v2080 = vrot.slane %v2078, 4
    %v2081 = vshll.u32 %v2001, 16
    %v2083 = vrot.slane %v2081, 5
    %v2084 = vor.u32 %v2080, %v2083
    %v2085 = vrot.slane %v2084, 4
    %v2087 = vshll.u32 %v2002, 16
    %v2089 = vrot.slane %v2087, 5
    %v2090 = vsel %vm557, %v2085, %v2089
    %v2092 = vshrl.u32 %v2003, 16
    %v2094 = vrot.slane %v2092, 4
    %v2095 = vshll.u32 %v2003, 16
    %v2097 = vrot.slane %v2095, 5
    %v2098 = vor.u32 %v2094, %v2097
    %v2099 = vrot.slane %v2098, 4
    %v2101 = vshll.u32 %v2004, 16
    %v2103 = vrot.slane %v2101, 5
    %v2104 = vsel %vm557, %v2099, %v2103
    %v2106 = vshrl.u32 %v2005, 16
    %v2108 = vrot.slane %v2106, 4
    %v2109 = vshll.u32 %v2005, 16
    %v2111 = vrot.slane %v2109, 5
    %v2112 = vor.u32 %v2108, %v2111
    %v2113 = vrot.slane %v2112, 4
    %v2115 = vshll.u32 %v2006, 16
    %v2117 = vrot.slane %v2115, 5
    %v2118 = vsel %vm557, %v2113, %v2117
    %2119 = vrot.lane.b32.xlu0 %v2020, 96
    %v2120 = vpop.permute.xlu0 %2119
    %2121 = vrot.lane.b32.xlu0 %v2034, 96
    %v2122 = vpop.permute.xlu0 %2121
    %2123 = vrot.lane.b32.xlu0 %v2048, 96
    %v2124 = vpop.permute.xlu0 %2123
    %2125 = vrot.lane.b32.xlu0 %v2062, 96
    %v2126 = vpop.permute.xlu0 %2125
    %2127 = vrot.lane.b32.xlu0 %v2076, 96
    %v2128 = vpop.permute.xlu0 %2127
    %2129 = vrot.lane.b32.xlu0 %v2090, 96
    %v2130 = vpop.permute.xlu0 %2129
    %2131 = vrot.lane.b32.xlu0 %v2104, 96
    %v2132 = vpop.permute.xlu0 %2131
    %2133 = vrot.lane.b32.xlu0 %v2118, 96
    %v2134 = vpop.permute.xlu0 %2133
    %2143 = vst.msk [vmem:[%s1389 + $0x4] sm:$0xf] %vm843, %v2120
    %2144 = vst.msk [vmem:[%s1389 + $0x10] sm:$0xf] %vm843, %v2122
    %2145 = vst.msk [vmem:[%s1389 + $0x1c] sm:$0xf] %vm843, %v2124
    %2146 = vst.msk [vmem:[%s1389 + $0x28] sm:$0xf] %vm843, %v2126
    %2147 = vst.msk [vmem:[%s1389 + $0x34] sm:$0xf] %vm843, %v2128
    %2148 = vst.msk [vmem:[%s1389 + $0x40] sm:$0xf] %vm843, %v2130
    %2149 = vst.msk [vmem:[%s1389 + $0x4c] sm:$0xf] %vm843, %v2132
    %2150 = vst.msk [vmem:[%s1389 + $0x58] sm:$0xf] %vm843, %v2134
    %v2151 = vld [vmem:[%s1942] sm:$0xe]
    %v2152 = vld [vmem:[%s1942 + $0x4] sm:$0x1]
    %v2153 = vld [vmem:[%s1942 + $0x8] sm:$0xe]
    %v2154 = vld [vmem:[%s1942 + $0xc] sm:$0x1]
    %v2155 = vld [vmem:[%s1942 + $0x10] sm:$0xe]
    %v2156 = vld [vmem:[%s1942 + $0x14] sm:$0x1]
    %v2157 = vld [vmem:[%s1942 + $0x18] sm:$0xe]
    %v2158 = vld [vmem:[%s1942 + $0x1c] sm:$0x1]
    %v2159 = vld [vmem:[%s1942 + $0x20] sm:$0xe]
    %v2160 = vld [vmem:[%s1942 + $0x24] sm:$0x1]
    %v2161 = vld [vmem:[%s1942 + $0x28] sm:$0xe]
    %v2162 = vld [vmem:[%s1942 + $0x2c] sm:$0x1]
    %v2163 = vld [vmem:[%s1942 + $0x30] sm:$0xe]
    %v2164 = vld [vmem:[%s1942 + $0x34] sm:$0x1]
    %v2165 = vld [vmem:[%s1942 + $0x38] sm:$0xe]
    %v2166 = vld [vmem:[%s1942 + $0x3c] sm:$0x1]
    %v2183 = vrot.slane %v2151, 5
    %v2184 = vrot.slane %v2183, 4
    %v2185 = vrot.slane %v2152, 5
    %v2186 = vsel %vm737, %v2184, %v2185
    %v2187 = vrot.slane %v2153, 5
    %v2188 = vrot.slane %v2187, 4
    %v2189 = vrot.slane %v2154, 5
    %v2190 = vsel %vm737, %v2188, %v2189
    %v2191 = vrot.slane %v2155, 5
    %v2192 = vrot.slane %v2191, 4
    %v2193 = vrot.slane %v2156, 5
    %v2194 = vsel %vm737, %v2192, %v2193
    %v2195 = vrot.slane %v2157, 5
    %v2196 = vrot.slane %v2195, 4
    %v2197 = vrot.slane %v2158, 5
    %v2198 = vsel %vm737, %v2196, %v2197
    %v2199 = vrot.slane %v2159, 5
    %v2200 = vrot.slane %v2199, 4
    %v2201 = vrot.slane %v2160, 5
    %v2202 = vsel %vm737, %v2200, %v2201
    %v2203 = vrot.slane %v2161, 5
    %v2204 = vrot.slane %v2203, 4
    %v2205 = vrot.slane %v2162, 5
    %v2206 = vsel %vm737, %v2204, %v2205
    %v2207 = vrot.slane %v2163, 5
    %v2208 = vrot.slane %v2207, 4
    %v2209 = vrot.slane %v2164, 5
    %v2210 = vsel %vm737, %v2208, %v2209
    %v2211 = vrot.slane %v2165, 5
    %v2212 = vrot.slane %v2211, 4
    %v2213 = vrot.slane %v2166, 5
    %v2214 = vsel %vm737, %v2212, %v2213
    %2223 = vst.msk [vmem:[%s1389 + $0x8] sm:$0xf] %vm153, %v2186
    %2224 = vst.msk [vmem:[%s1389 + $0x14] sm:$0xf] %vm153, %v2190
    %2225 = vst.msk [vmem:[%s1389 + $0x20] sm:$0xf] %vm153, %v2194
    %2226 = vst.msk [vmem:[%s1389 + $0x2c] sm:$0xf] %vm153, %v2198
    %2227 = vst.msk [vmem:[%s1389 + $0x38] sm:$0xf] %vm153, %v2202
    %2228 = vst.msk [vmem:[%s1389 + $0x44] sm:$0xf] %vm153, %v2206
    %2229 = vst.msk [vmem:[%s1389 + $0x50] sm:$0xf] %vm153, %v2210
    %2230 = vst.msk [vmem:[%s1389 + $0x5c] sm:$0xf] %vm153, %v2214
    %v2231 = vld [vmem:[#allocation3] sm:$0xff]
    %v2232 = vld [vmem:[#allocation3 + $0x8] sm:$0xf]
    %v2233 = vld [vmem:[#allocation3 + $0xc] sm:$0xff]
    %v2234 = vld [vmem:[#allocation3 + $0x14] sm:$0xf]
    %v2235 = vld [vmem:[#allocation3 + $0x18] sm:$0xff]
    %v2236 = vld [vmem:[#allocation3 + $0x20] sm:$0xf]
    %v2237 = vld [vmem:[#allocation3 + $0x24] sm:$0xff]
    %v2238 = vld [vmem:[#allocation3 + $0x2c] sm:$0xf]
    %v2239 = vld [vmem:[#allocation3 + $0x30] sm:$0xff]
    %v2240 = vld [vmem:[#allocation3 + $0x38] sm:$0xf]
    %v2241 = vld [vmem:[#allocation3 + $0x3c] sm:$0xff]
    %v2242 = vld [vmem:[#allocation3 + $0x44] sm:$0xf]
    %v2243 = vld [vmem:[#allocation3 + $0x48] sm:$0xff]
    %v2244 = vld [vmem:[#allocation3 + $0x50] sm:$0xf]
    %v2245 = vld [vmem:[#allocation3 + $0x54] sm:$0xff]
    %v2246 = vld [vmem:[#allocation3 + $0x5c] sm:$0xf]
    %v2247 = vld [vmem:[#allocation3 + $0x60] sm:$0xff]
    %v2248 = vld [vmem:[#allocation3 + $0x68] sm:$0xf]
    %v2249 = vld [vmem:[#allocation3 + $0x6c] sm:$0xff]
    %v2250 = vld [vmem:[#allocation3 + $0x74] sm:$0xf]
    %v2251 = vld [vmem:[#allocation3 + $0x78] sm:$0xff]
    %v2252 = vld [vmem:[#allocation3 + $0x80] sm:$0xf]
    %v2253 = vld [vmem:[#allocation3 + $0x84] sm:$0xff]
    %v2254 = vld [vmem:[#allocation3 + $0x8c] sm:$0xf]
    %v2255 = vld [vmem:[#allocation3 + $0x90] sm:$0xff]
    %v2256 = vld [vmem:[#allocation3 + $0x98] sm:$0xf]
    %v2257 = vld [vmem:[#allocation3 + $0x9c] sm:$0xff]
    %v2258 = vld [vmem:[#allocation3 + $0xa4] sm:$0xf]
    %v2259 = vld [vmem:[#allocation3 + $0xa8] sm:$0xff]
    %v2260 = vld [vmem:[#allocation3 + $0xb0] sm:$0xf]
    %v2261 = vld [vmem:[#allocation3 + $0xb4] sm:$0xff]
    %v2262 = vld [vmem:[#allocation3 + $0xbc] sm:$0xf]
    %v2263 = vld [vmem:[%s1] sm:$0xf]
    %v2264 = vld [vmem:[%s1 + $0x4] sm:$0xf]
    %v2265 = vld [vmem:[%s1 + $0x8] sm:$0xf]
    %v2266 = vld [vmem:[%s1 + $0xc] sm:$0xf]
    %v2267 = vld [vmem:[%s1 + $0x10] sm:$0xf]
    %v2268 = vld [vmem:[%s1 + $0x14] sm:$0xf]
    %v2269 = vld [vmem:[%s1 + $0x18] sm:$0xf]
    %v2270 = vld [vmem:[%s1 + $0x1c] sm:$0xf]
    %v2271 = vld [vmem:[%s1 + $0x20] sm:$0xf]
    %v2272 = vld [vmem:[%s1 + $0x24] sm:$0xf]
    %v2273 = vld [vmem:[%s1 + $0x28] sm:$0xf]
    %v2274 = vld [vmem:[%s1 + $0x2c] sm:$0xf]
    %v2275 = vld [vmem:[%s1 + $0x30] sm:$0xf]
    %v2276 = vld [vmem:[%s1 + $0x34] sm:$0xf]
    %v2277 = vld [vmem:[%s1 + $0x38] sm:$0xf]
    %v2278 = vld [vmem:[%s1 + $0x3c] sm:$0xf]
    %v2279 = vld [vmem:[%s1 + $0x40] sm:$0xf]
    %v2280 = vld [vmem:[%s1 + $0x44] sm:$0xf]
    %v2281 = vld [vmem:[%s1 + $0x48] sm:$0xf]
    %v2282 = vld [vmem:[%s1 + $0x4c] sm:$0xf]
    %v2283 = vld [vmem:[%s1 + $0x50] sm:$0xf]
    %v2284 = vld [vmem:[%s1 + $0x54] sm:$0xf]
    %v2285 = vld [vmem:[%s1 + $0x58] sm:$0xf]
    %v2286 = vld [vmem:[%s1 + $0x5c] sm:$0xf]
    %v2287 = vld [vmem:[%s1 + $0x60] sm:$0xf]
    %v2288 = vld [vmem:[%s1 + $0x64] sm:$0xf]
    %v2289 = vld [vmem:[%s1 + $0x68] sm:$0xf]
    %v2290 = vld [vmem:[%s1 + $0x6c] sm:$0xf]
    %v2291 = vld [vmem:[%s1 + $0x70] sm:$0xf]
    %v2292 = vld [vmem:[%s1 + $0x74] sm:$0xf]
    %v2293 = vld [vmem:[%s1 + $0x78] sm:$0xf]
    %v2294 = vld [vmem:[%s1 + $0x7c] sm:$0xf]
    %v2295 = vld [vmem:[%s1 + $0x80] sm:$0xf]
    %v2296 = vld [vmem:[%s1 + $0x84] sm:$0xf]
    %v2297 = vld [vmem:[%s1 + $0x88] sm:$0xf]
    %v2298 = vld [vmem:[%s1 + $0x8c] sm:$0xf]
    %v2331 = vunpack.c.l.b16 %v2231
    %v2332 = vunpack.c.h.b16 %v2231
    %v2333 = vunpack.c.l.b16 %v2232
    %v2334 = vunpack.c.l.b16 %v2233
    %v2335 = vunpack.c.h.b16 %v2233
    %v2336 = vunpack.c.l.b16 %v2234
    %v2337 = vunpack.c.l.b16 %v2235
    %v2338 = vunpack.c.h.b16 %v2235
    %v2339 = vunpack.c.l.b16 %v2236
    %v2340 = vunpack.c.l.b16 %v2237
    %v2341 = vunpack.c.h.b16 %v2237
    %v2342 = vunpack.c.l.b16 %v2238
    %v2343 = vunpack.c.l.b16 %v2239
    %v2344 = vunpack.c.h.b16 %v2239
    %v2345 = vunpack.c.l.b16 %v2240
    %v2346 = vunpack.c.l.b16 %v2241
    %v2347 = vunpack.c.h.b16 %v2241
    %v2348 = vunpack.c.l.b16 %v2242
    %v2349 = vunpack.c.l.b16 %v2243
    %v2350 = vunpack.c.h.b16 %v2243
    %v2351 = vunpack.c.l.b16 %v2244
    %v2352 = vunpack.c.l.b16 %v2245
    %v2353 = vunpack.c.h.b16 %v2245
    %v2354 = vunpack.c.l.b16 %v2246
    %v2355 = vunpack.c.l.b16 %v2247
    %v2356 = vunpack.c.h.b16 %v2247
    %v2357 = vunpack.c.l.b16 %v2248
    %v2358 = vunpack.c.l.b16 %v2249
    %v2359 = vunpack.c.h.b16 %v2249
    %v2360 = vunpack.c.l.b16 %v2250
    %v2361 = vunpack.c.l.b16 %v2251
    %v2362 = vunpack.c.h.b16 %v2251
    %v2363 = vunpack.c.l.b16 %v2252
    %v2364 = vunpack.c.l.b16 %v2253
    %v2365 = vunpack.c.h.b16 %v2253
    %v2366 = vunpack.c.l.b16 %v2254
    %v2367 = vunpack.c.l.b16 %v2255
    %v2368 = vunpack.c.h.b16 %v2255
    %v2369 = vunpack.c.l.b16 %v2256
    %v2370 = vunpack.c.l.b16 %v2257
    %v2371 = vunpack.c.h.b16 %v2257
    %v2372 = vunpack.c.l.b16 %v2258
    %v2373 = vunpack.c.l.b16 %v2259
    %v2374 = vunpack.c.h.b16 %v2259
    %v2375 = vunpack.c.l.b16 %v2260
    %v2376 = vunpack.c.l.b16 %v2261
    %v2377 = vunpack.c.h.b16 %v2261
    %v2378 = vunpack.c.l.b16 %v2262
    %v2379 = vpack.c.b16 %v2334, %v2331
    %v2380 = vpack.c.b16 %v2335, %v2332
    %v2381 = vpack.c.b16 %v2336, %v2333
    %v2382 = vpack.c.b16 %v2340, %v2337
    %v2383 = vpack.c.b16 %v2341, %v2338
    %v2384 = vpack.c.b16 %v2342, %v2339
    %v2385 = vpack.c.b16 %v2346, %v2343
    %v2386 = vpack.c.b16 %v2347, %v2344
    %v2387 = vpack.c.b16 %v2348, %v2345
    %v2388 = vpack.c.b16 %v2352, %v2349
    %v2389 = vpack.c.b16 %v2353, %v2350
    %v2390 = vpack.c.b16 %v2354, %v2351
    %v2391 = vpack.c.b16 %v2358, %v2355
    %v2392 = vpack.c.b16 %v2359, %v2356
    %v2393 = vpack.c.b16 %v2360, %v2357
    %v2394 = vpack.c.b16 %v2364, %v2361
    %v2395 = vpack.c.b16 %v2365, %v2362
    %v2396 = vpack.c.b16 %v2366, %v2363
    %v2397 = vpack.c.b16 %v2370, %v2367
    %v2398 = vpack.c.b16 %v2371, %v2368
    %v2399 = vpack.c.b16 %v2372, %v2369
    %v2400 = vpack.c.b16 %v2376, %v2373
    %v2401 = vpack.c.b16 %v2377, %v2374
    %v2402 = vpack.c.b16 %v2378, %v2375
    %v2455 = vunpack.c.l.b16 %v2263
    %v2456 = vunpack.c.l.b16 %v2264
    %v2457 = vunpack.c.l.b16 %v2265
    %v2458 = vunpack.c.l.b16 %v2266
    %v2459 = vunpack.c.l.b16 %v2267
    %v2460 = vunpack.c.l.b16 %v2268
    %v2461 = vunpack.c.l.b16 %v2269
    %v2462 = vunpack.c.l.b16 %v2270
    %v2463 = vunpack.c.l.b16 %v2271
    %v2464 = vunpack.c.l.b16 %v2272
    %v2465 = vunpack.c.l.b16 %v2273
    %v2466 = vunpack.c.l.b16 %v2274
    %v2467 = vunpack.c.l.b16 %v2275
    %v2468 = vunpack.c.l.b16 %v2276
    %v2469 = vunpack.c.l.b16 %v2277
    %v2470 = vunpack.c.l.b16 %v2278
    %v2471 = vunpack.c.l.b16 %v2279
    %v2472 = vunpack.c.l.b16 %v2280
    %v2473 = vunpack.c.l.b16 %v2281
    %v2474 = vunpack.c.l.b16 %v2282
    %v2475 = vunpack.c.l.b16 %v2283
    %v2476 = vunpack.c.l.b16 %v2284
    %v2477 = vunpack.c.l.b16 %v2285
    %v2478 = vunpack.c.l.b16 %v2286
    %v2479 = vunpack.c.l.b16 %v2287
    %v2480 = vunpack.c.l.b16 %v2288
    %v2481 = vunpack.c.l.b16 %v2289
    %v2482 = vunpack.c.l.b16 %v2290
    %v2483 = vunpack.c.l.b16 %v2291
    %v2484 = vunpack.c.l.b16 %v2292
    %v2485 = vunpack.c.l.b16 %v2293
    %v2486 = vunpack.c.l.b16 %v2294
    %v2487 = vunpack.c.l.b16 %v2295
    %v2488 = vunpack.c.l.b16 %v2296
    %v2489 = vunpack.c.l.b16 %v2297
    %v2490 = vunpack.c.l.b16 %v2298
    %v2491 = vpack.c.b16 %v2456, %v2455
    %v2492 = vpack.c.b16 %v2458, %v2457
    %v2493 = vpack.c.b16 %v2460, %v2459
    %v2494 = vpack.c.b16 %v2462, %v2461
    %v2495 = vpack.c.b16 %v2464, %v2463
    %v2496 = vpack.c.b16 %v2466, %v2465
    %v2497 = vpack.c.b16 %v2468, %v2467
    %v2498 = vpack.c.b16 %v2470, %v2469
    %v2499 = vpack.c.b16 %v2472, %v2471
    %v2500 = vpack.c.b16 %v2474, %v2473
    %v2501 = vpack.c.b16 %v2476, %v2475
    %v2502 = vpack.c.b16 %v2478, %v2477
    %v2503 = vpack.c.b16 %v2480, %v2479
    %v2504 = vpack.c.b16 %v2482, %v2481
    %v2505 = vpack.c.b16 %v2484, %v2483
    %v2506 = vpack.c.b16 %v2486, %v2485
    %v2507 = vpack.c.b16 %v2488, %v2487
    %v2508 = vpack.c.b16 %v2490, %v2489
    %vm2527 = vcmask 261120
    %v2529 = vsel %vm2527, %v2381, 0
    %v2532 = vsel %vm2527, %v2384, 0
    %v2535 = vsel %vm2527, %v2387, 0
    %v2538 = vsel %vm2527, %v2390, 0
    %v2541 = vsel %vm2527, %v2393, 0
    %v2544 = vsel %vm2527, %v2396, 0
    %v2547 = vsel %vm2527, %v2399, 0
    %v2550 = vsel %vm2527, %v2402, 0
    %2552 = vmatpush.bf16.msra.mxu0 %v2498
    %2553 = vmatpush.bf16.msra.mxu0 %v2497
    %2554 = vmatpush.bf16.msra.mxu0 %v2496
    %2555 = vmatpush.bf16.msra.mxu0 %v2495
    %2556 = vmatpush.bf16.msra.mxu0 %v2494
    %2557 = vmatpush.bf16.msra.mxu0 %v2493
    %2558 = vmatpush.bf16.msra.mxu0 %v2492
    %2559 = vmatpush.bf16.msra.mxu0 %v2491
    %2560 = vmatmul.bf16.gmra.mxu0 %v2379
    %v2561 = vpop.f32.mrf.mxu0
    %v2562 = vadd.f32 0.0, %v2561
    %v2563 = vpop.f32.mrf.mxu0
    %v2564 = vadd.f32 0.0, %v2563
    %2565 = vmatmul.bf16.gmra.mxu0 %v2382
    %v2566 = vpop.f32.mrf.mxu0
    %v2567 = vadd.f32 0.0, %v2566
    %v2568 = vpop.f32.mrf.mxu0
    %v2569 = vadd.f32 0.0, %v2568
    %2570 = vmatmul.bf16.gmra.mxu0 %v2385
    %v2571 = vpop.f32.mrf.mxu0
    %v2572 = vadd.f32 0.0, %v2571
    %v2573 = vpop.f32.mrf.mxu0
    %v2574 = vadd.f32 0.0, %v2573
    %2575 = vmatmul.bf16.gmra.mxu0 %v2388
    %v2576 = vpop.f32.mrf.mxu0
    %v2577 = vadd.f32 0.0, %v2576
    %v2578 = vpop.f32.mrf.mxu0
    %v2579 = vadd.f32 0.0, %v2578
    %2580 = vmatmul.bf16.gmra.mxu0 %v2391
    %v2581 = vpop.f32.mrf.mxu0
    %v2582 = vadd.f32 0.0, %v2581
    %v2583 = vpop.f32.mrf.mxu0
    %v2584 = vadd.f32 0.0, %v2583
    %2585 = vmatmul.bf16.gmra.mxu0 %v2394
    %v2586 = vpop.f32.mrf.mxu0
    %v2587 = vadd.f32 0.0, %v2586
    %v2588 = vpop.f32.mrf.mxu0
    %v2589 = vadd.f32 0.0, %v2588
    %2590 = vmatmul.bf16.gmra.mxu0 %v2397
    %v2591 = vpop.f32.mrf.mxu0
    %v2592 = vadd.f32 0.0, %v2591
    %v2593 = vpop.f32.mrf.mxu0
    %v2594 = vadd.f32 0.0, %v2593
    %2595 = vmatmul.bf16.gmra.mxu0 %v2400
    %v2596 = vpop.f32.mrf.mxu0
    %v2597 = vadd.f32 0.0, %v2596
    %v2598 = vpop.f32.mrf.mxu0
    %v2599 = vadd.f32 0.0, %v2598
    %2600 = vdwg.mxu0
    %2601 = vmatpush.bf16.msra.mxu0 %v2506
    %2602 = vmatpush.bf16.msra.mxu0 %v2505
    %2603 = vmatpush.bf16.msra.mxu0 %v2504
    %2604 = vmatpush.bf16.msra.mxu0 %v2503
    %2605 = vmatpush.bf16.msra.mxu0 %v2502
    %2606 = vmatpush.bf16.msra.mxu0 %v2501
    %2607 = vmatpush.bf16.msra.mxu0 %v2500
    %2608 = vmatpush.bf16.msra.mxu0 %v2499
    %2609 = vmatmul.bf16.gmra.mxu0 %v2380
    %v2610 = vpop.f32.mrf.mxu0
    %v2611 = vadd.f32 %v2562, %v2610
    %v2612 = vpop.f32.mrf.mxu0
    %v2613 = vadd.f32 %v2564, %v2612
    %2614 = vmatmul.bf16.gmra.mxu0 %v2383
    %v2615 = vpop.f32.mrf.mxu0
    %v2616 = vadd.f32 %v2567, %v2615
    %v2617 = vpop.f32.mrf.mxu0
    %v2618 = vadd.f32 %v2569, %v2617
    %2619 = vmatmul.bf16.gmra.mxu0 %v2386
    %v2620 = vpop.f32.mrf.mxu0
    %v2621 = vadd.f32 %v2572, %v2620
    %v2622 = vpop.f32.mrf.mxu0
    %v2623 = vadd.f32 %v2574, %v2622
    %2624 = vmatmul.bf16.gmra.mxu0 %v2389
    %v2625 = vpop.f32.mrf.mxu0
    %v2626 = vadd.f32 %v2577, %v2625
    %v2627 = vpop.f32.mrf.mxu0
    %v2628 = vadd.f32 %v2579, %v2627
    %2629 = vmatmul.bf16.gmra.mxu0 %v2392
    %v2630 = vpop.f32.mrf.mxu0
    %v2631 = vadd.f32 %v2582, %v2630
    %v2632 = vpop.f32.mrf.mxu0
    %v2633 = vadd.f32 %v2584, %v2632
    %2634 = vmatmul.bf16.gmra.mxu0 %v2395
    %v2635 = vpop.f32.mrf.mxu0
    %v2636 = vadd.f32 %v2587, %v2635
    %v2637 = vpop.f32.mrf.mxu0
    %v2638 = vadd.f32 %v2589, %v2637
    %2639 = vmatmul.bf16.gmra.mxu0 %v2398
    %v2640 = vpop.f32.mrf.mxu0
    %v2641 = vadd.f32 %v2592, %v2640
    %v2642 = vpop.f32.mrf.mxu0
    %v2643 = vadd.f32 %v2594, %v2642
    %2644 = vmatmul.bf16.gmra.mxu0 %v2401
    %v2645 = vpop.f32.mrf.mxu0
    %v2646 = vadd.f32 %v2597, %v2645
    %v2647 = vpop.f32.mrf.mxu0
    %v2648 = vadd.f32 %v2599, %v2647
    %2649 = vdwg.mxu0
    %2650 = vmatpush.bf16.msra.mxu0 0
    %2651 = vmatpush.bf16.msra.mxu0 0
    %2652 = vmatpush.bf16.msra.mxu0 0
    %2653 = vmatpush.bf16.msra.mxu0 0
    %2654 = vmatpush.bf16.msra.mxu0 0
    %2655 = vmatpush.bf16.msra.mxu0 0
    %2656 = vmatpush.bf16.msra.mxu0 %v2508
    %2657 = vmatpush.bf16.msra.mxu0 %v2507
    %2658 = vmatmul.bf16.gmra.mxu0 %v2529
    %v2659 = vpop.f32.mrf.mxu0
    %v2660 = vadd.f32 %v2611, %v2659
    %v2661 = vpop.f32.mrf.mxu0
    %v2662 = vadd.f32 %v2613, %v2661
    %2663 = vmatmul.bf16.gmra.mxu0 %v2532
    %v2664 = vpop.f32.mrf.mxu0
    %v2665 = vadd.f32 %v2616, %v2664
    %v2666 = vpop.f32.mrf.mxu0
    %v2667 = vadd.f32 %v2618, %v2666
    %2668 = vmatmul.bf16.gmra.mxu0 %v2535
    %v2669 = vpop.f32.mrf.mxu0
    %v2670 = vadd.f32 %v2621, %v2669
    %v2671 = vpop.f32.mrf.mxu0
    %v2672 = vadd.f32 %v2623, %v2671
    %2673 = vmatmul.bf16.gmra.mxu0 %v2538
    %v2674 = vpop.f32.mrf.mxu0
    %v2675 = vadd.f32 %v2626, %v2674
    %v2676 = vpop.f32.mrf.mxu0
    %v2677 = vadd.f32 %v2628, %v2676
    %2678 = vmatmul.bf16.gmra.mxu0 %v2541
    %v2679 = vpop.f32.mrf.mxu0
    %v2680 = vadd.f32 %v2631, %v2679
    %v2681 = vpop.f32.mrf.mxu0
    %v2682 = vadd.f32 %v2633, %v2681
    %2683 = vmatmul.bf16.gmra.mxu0 %v2544
    %v2684 = vpop.f32.mrf.mxu0
    %v2685 = vadd.f32 %v2636, %v2684
    %v2686 = vpop.f32.mrf.mxu0
    %v2687 = vadd.f32 %v2638, %v2686
    %2688 = vmatmul.bf16.gmra.mxu0 %v2547
    %v2689 = vpop.f32.mrf.mxu0
    %v2690 = vadd.f32 %v2641, %v2689
    %v2691 = vpop.f32.mrf.mxu0
    %v2692 = vadd.f32 %v2643, %v2691
    %2693 = vmatmul.bf16.gmra.mxu0 %v2550
    %v2694 = vpop.f32.mrf.mxu0
    %v2695 = vadd.f32 %v2646, %v2694
    %v2696 = vpop.f32.mrf.mxu0
    %v2697 = vadd.f32 %v2648, %v2696
    %2698 = vdwg.mxu0
    %v2699 = vld [vmem:[%s5] sm:$0x1]
    %v2701 = vperm.slane %v2699, 0
    %v2703 = vmul.f32 %v2660, %v2701
    %v2704 = vmul.f32 %v2662, %v2701
    %v2705 = vmul.f32 %v2665, %v2701
    %v2706 = vmul.f32 %v2667, %v2701
    %v2707 = vmul.f32 %v2670, %v2701
    %v2708 = vmul.f32 %v2672, %v2701
    %v2709 = vmul.f32 %v2675, %v2701
    %v2710 = vmul.f32 %v2677, %v2701
    %v2711 = vmul.f32 %v2680, %v2701
    %v2712 = vmul.f32 %v2682, %v2701
    %v2713 = vmul.f32 %v2685, %v2701
    %v2714 = vmul.f32 %v2687, %v2701
    %v2715 = vmul.f32 %v2690, %v2701
    %v2716 = vmul.f32 %v2692, %v2701
    %v2717 = vmul.f32 %v2695, %v2701
    %v2718 = vmul.f32 %v2697, %v2701
    %v2719 = vld [vmem:[%s6] sm:$0x1]
    %v2721 = vperm.slane %v2719, 0
    %v2723 = vadd.f32 %v2703, %v2721
    %v2724 = vadd.f32 %v2704, %v2721
    %v2725 = vadd.f32 %v2705, %v2721
    %v2726 = vadd.f32 %v2706, %v2721
    %v2727 = vadd.f32 %v2707, %v2721
    %v2728 = vadd.f32 %v2708, %v2721
    %v2729 = vadd.f32 %v2709, %v2721
    %v2730 = vadd.f32 %v2710, %v2721
    %v2731 = vadd.f32 %v2711, %v2721
    %v2732 = vadd.f32 %v2712, %v2721
    %v2733 = vadd.f32 %v2713, %v2721
    %v2734 = vadd.f32 %v2714, %v2721
    %v2735 = vadd.f32 %v2715, %v2721
    %v2736 = vadd.f32 %v2716, %v2721
    %v2737 = vadd.f32 %v2717, %v2721
    %v2738 = vadd.f32 %v2718, %v2721
    %v2739 = vmax.f32 %v2723, 0.0
    %v2740 = vmax.f32 %v2724, 0.0
    %v2741 = vmax.f32 %v2725, 0.0
    %v2742 = vmax.f32 %v2726, 0.0
    %v2743 = vmax.f32 %v2727, 0.0
    %v2744 = vmax.f32 %v2728, 0.0
    %v2745 = vmax.f32 %v2729, 0.0
    %v2746 = vmax.f32 %v2730, 0.0
    %v2747 = vmax.f32 %v2731, 0.0
    %v2748 = vmax.f32 %v2732, 0.0
    %v2749 = vmax.f32 %v2733, 0.0
    %v2750 = vmax.f32 %v2734, 0.0
    %v2751 = vmax.f32 %v2735, 0.0
    %v2752 = vmax.f32 %v2736, 0.0
    %v2753 = vmax.f32 %v2737, 0.0
    %v2754 = vmax.f32 %v2738, 0.0
    %v2755 = vpack.c.bf16 %v2739, %v2739
    %v2756 = vpack.c.bf16 %v2740, %v2740
    %v2757 = vpack.c.bf16 %v2741, %v2741
    %v2758 = vpack.c.bf16 %v2742, %v2742
    %v2759 = vpack.c.bf16 %v2743, %v2743
    %v2760 = vpack.c.bf16 %v2744, %v2744
    %v2761 = vpack.c.bf16 %v2745, %v2745
    %v2762 = vpack.c.bf16 %v2746, %v2746
    %v2763 = vpack.c.bf16 %v2747, %v2747
    %v2764 = vpack.c.bf16 %v2748, %v2748
    %v2765 = vpack.c.bf16 %v2749, %v2749
    %v2766 = vpack.c.bf16 %v2750, %v2750
    %v2767 = vpack.c.bf16 %v2751, %v2751
    %v2768 = vpack.c.bf16 %v2752, %v2752
    %v2769 = vpack.c.bf16 %v2753, %v2753
    %v2770 = vpack.c.bf16 %v2754, %v2754
    %v2771 = vld [vmem:[#allocation4] sm:$0x1]
    %v2772 = vsel %vm30, 0, %v2771
    %2773 = vst [vmem:[#allocation4] sm:$0x1] %v2772
    %v2774 = vld [vmem:[#allocation4 + $0x8] sm:$0x1]
    %v2775 = vsel %vm30, 0, %v2774
    %2776 = vst [vmem:[#allocation4 + $0x8] sm:$0x1] %v2775
    %v2777 = vld [vmem:[#allocation4 + $0x10] sm:$0x1]
    %v2778 = vsel %vm30, 0, %v2777
    %2779 = vst [vmem:[#allocation4 + $0x10] sm:$0x1] %v2778
    %v2780 = vld [vmem:[#allocation4 + $0x18] sm:$0x1]
    %v2781 = vsel %vm30, 0, %v2780
    %2782 = vst [vmem:[#allocation4 + $0x18] sm:$0x1] %v2781
    %v2783 = vld [vmem:[#allocation4 + $0x20] sm:$0x1]
    %v2784 = vsel %vm30, 0, %v2783
    %2785 = vst [vmem:[#allocation4 + $0x20] sm:$0x1] %v2784
    %v2786 = vld [vmem:[#allocation4 + $0x28] sm:$0x1]
    %v2787 = vsel %vm30, 0, %v2786
    %2788 = vst [vmem:[#allocation4 + $0x28] sm:$0x1] %v2787
    %v2789 = vld [vmem:[#allocation4 + $0x30] sm:$0x1]
    %v2790 = vsel %vm30, 0, %v2789
    %2791 = vst [vmem:[#allocation4 + $0x30] sm:$0x1] %v2790
    %v2792 = vld [vmem:[#allocation4 + $0x38] sm:$0x1]
    %v2793 = vsel %vm30, 0, %v2792
    %2794 = vst [vmem:[#allocation4 + $0x38] sm:$0x1] %v2793
    %v2795 = vld [vmem:[#allocation4 + $0x40] sm:$0x1]
    %v2796 = vsel %vm30, 0, %v2795
    %2797 = vst [vmem:[#allocation4 + $0x40] sm:$0x1] %v2796
    %v2798 = vld [vmem:[#allocation4 + $0x48] sm:$0x1]
    %v2799 = vsel %vm30, 0, %v2798
    %2800 = vst [vmem:[#allocation4 + $0x48] sm:$0x1] %v2799
    %v2801 = vld [vmem:[#allocation4 + $0x50] sm:$0x1]
    %v2802 = vsel %vm30, 0, %v2801
    %2803 = vst [vmem:[#allocation4 + $0x50] sm:$0x1] %v2802
    %v2804 = vld [vmem:[#allocation4 + $0x58] sm:$0x1]
    %v2805 = vsel %vm30, 0, %v2804
    %2806 = vst [vmem:[#allocation4 + $0x58] sm:$0x1] %v2805
    %v2807 = vld [vmem:[#allocation4 + $0x60] sm:$0x1]
    %v2808 = vsel %vm30, 0, %v2807
    %2809 = vst [vmem:[#allocation4 + $0x60] sm:$0x1] %v2808
    %v2810 = vld [vmem:[#allocation4 + $0x68] sm:$0x1]
    %v2811 = vsel %vm30, 0, %v2810
    %2812 = vst [vmem:[#allocation4 + $0x68] sm:$0x1] %v2811
    %v2813 = vld [vmem:[#allocation4 + $0x70] sm:$0x1]
    %v2814 = vsel %vm30, 0, %v2813
    %2815 = vst [vmem:[#allocation4 + $0x70] sm:$0x1] %v2814
    %v2816 = vld [vmem:[#allocation4 + $0x78] sm:$0x1]
    %v2817 = vsel %vm30, 0, %v2816
    %2818 = vst [vmem:[#allocation4 + $0x78] sm:$0x1] %v2817
    %v2819 = vld [vmem:[#allocation4 + $0x80] sm:$0x1]
    %v2820 = vsel %vm30, 0, %v2819
    %2821 = vst [vmem:[#allocation4 + $0x80] sm:$0x1] %v2820
    %v2822 = vld [vmem:[#allocation4 + $0x88] sm:$0x1]
    %v2823 = vsel %vm30, 0, %v2822
    %2824 = vst [vmem:[#allocation4 + $0x88] sm:$0x1] %v2823
    %v2825 = vld [vmem:[#allocation4 + $0x90] sm:$0x1]
    %v2826 = vsel %vm30, 0, %v2825
    %2827 = vst [vmem:[#allocation4 + $0x90] sm:$0x1] %v2826
    %v2828 = vld [vmem:[#allocation4 + $0x98] sm:$0x1]
    %v2829 = vsel %vm30, 0, %v2828
    %2830 = vst [vmem:[#allocation4 + $0x98] sm:$0x1] %v2829
    %v2831 = vld [vmem:[#allocation4 + $0x4] sm:$0x1]
    %v2832 = vsel %vm92, 0, %v2831
    %2833 = vst [vmem:[#allocation4 + $0x4] sm:$0x1] %v2832
    %v2834 = vld [vmem:[#allocation4 + $0xc] sm:$0x1]
    %v2835 = vsel %vm92, 0, %v2834
    %2836 = vst [vmem:[#allocation4 + $0xc] sm:$0x1] %v2835
    %v2837 = vld [vmem:[#allocation4 + $0x14] sm:$0x1]
    %v2838 = vsel %vm92, 0, %v2837
    %2839 = vst [vmem:[#allocation4 + $0x14] sm:$0x1] %v2838
    %v2840 = vld [vmem:[#allocation4 + $0x1c] sm:$0x1]
    %v2841 = vsel %vm92, 0, %v2840
    %2842 = vst [vmem:[#allocation4 + $0x1c] sm:$0x1] %v2841
    %v2843 = vld [vmem:[#allocation4 + $0x24] sm:$0x1]
    %v2844 = vsel %vm92, 0, %v2843
    %2845 = vst [vmem:[#allocation4 + $0x24] sm:$0x1] %v2844
    %v2846 = vld [vmem:[#allocation4 + $0x2c] sm:$0x1]
    %v2847 = vsel %vm92, 0, %v2846
    %2848 = vst [vmem:[#allocation4 + $0x2c] sm:$0x1] %v2847
    %v2849 = vld [vmem:[#allocation4 + $0x34] sm:$0x1]
    %v2850 = vsel %vm92, 0, %v2849
    %2851 = vst [vmem:[#allocation4 + $0x34] sm:$0x1] %v2850
    %v2852 = vld [vmem:[#allocation4 + $0x3c] sm:$0x1]
    %v2853 = vsel %vm92, 0, %v2852
    %2854 = vst [vmem:[#allocation4 + $0x3c] sm:$0x1] %v2853
    %v2855 = vld [vmem:[#allocation4 + $0x44] sm:$0x1]
    %v2856 = vsel %vm92, 0, %v2855
    %2857 = vst [vmem:[#allocation4 + $0x44] sm:$0x1] %v2856
    %v2858 = vld [vmem:[#allocation4 + $0x4c] sm:$0x1]
    %v2859 = vsel %vm92, 0, %v2858
    %2860 = vst [vmem:[#allocation4 + $0x4c] sm:$0x1] %v2859
    %v2861 = vld [vmem:[#allocation4 + $0x54] sm:$0x1]
    %v2862 = vsel %vm92, 0, %v2861
    %2863 = vst [vmem:[#allocation4 + $0x54] sm:$0x1] %v2862
    %v2864 = vld [vmem:[#allocation4 + $0x5c] sm:$0x1]
    %v2865 = vsel %vm92, 0, %v2864
    %2866 = vst [vmem:[#allocation4 + $0x5c] sm:$0x1] %v2865
    %v2867 = vld [vmem:[#allocation4 + $0x64] sm:$0x1]
    %v2868 = vsel %vm92, 0, %v2867
    %2869 = vst [vmem:[#allocation4 + $0x64] sm:$0x1] %v2868
    %v2870 = vld [vmem:[#allocation4 + $0x6c] sm:$0x1]
    %v2871 = vsel %vm92, 0, %v2870
    %2872 = vst [vmem:[#allocation4 + $0x6c] sm:$0x1] %v2871
    %v2873 = vld [vmem:[#allocation4 + $0x74] sm:$0x1]
    %v2874 = vsel %vm92, 0, %v2873
    %2875 = vst [vmem:[#allocation4 + $0x74] sm:$0x1] %v2874
    %v2876 = vld [vmem:[#allocation4 + $0x7c] sm:$0x1]
    %v2877 = vsel %vm92, 0, %v2876
    %2878 = vst [vmem:[#allocation4 + $0x7c] sm:$0x1] %v2877
    %v2879 = vld [vmem:[#allocation4 + $0x84] sm:$0x1]
    %v2880 = vsel %vm92, 0, %v2879
    %2881 = vst [vmem:[#allocation4 + $0x84] sm:$0x1] %v2880
    %v2882 = vld [vmem:[#allocation4 + $0x8c] sm:$0x1]
    %v2883 = vsel %vm92, 0, %v2882
    %2884 = vst [vmem:[#allocation4 + $0x8c] sm:$0x1] %v2883
    %v2885 = vld [vmem:[#allocation4 + $0x94] sm:$0x1]
    %v2886 = vsel %vm92, 0, %v2885
    %2887 = vst [vmem:[#allocation4 + $0x94] sm:$0x1] %v2886
    %v2888 = vld [vmem:[#allocation4 + $0x9c] sm:$0x1]
    %v2889 = vsel %vm92, 0, %v2888
    %2890 = vst [vmem:[#allocation4 + $0x9c] sm:$0x1] %v2889
    %2891 = vst.msk [vmem:[#allocation4] sm:$0xf] %vm153, 0
    %2892 = vst.msk [vmem:[#allocation4 + $0x4] sm:$0x1] %vm155, 0
    %s2893 = scalar_lea.vmem [#allocation4], 72
    %2894 = vst.msk [vmem:[%s2893] sm:$0xf] %vm153, 0
    %2895 = vst.msk [vmem:[%s2893 + $0x4] sm:$0x1] %vm155, 0
    %v2897 = vshrl.u32 %v2755, 16
    %v2899 = vrot.slane %v2897, 7
    %v2900 = vshll.u32 %v2755, 16
    %v2902 = vor.u32 %v2899, %v2900
    %v2903 = vrot.slane %v2899, 4
    %v2905 = vshrl.u32 %v2756, 16
    %v2907 = vrot.slane %v2905, 7
    %v2908 = vshll.u32 %v2756, 16
    %v2910 = vor.u32 %v2907, %v2908
    %v2911 = vrot.slane %v2907, 4
    %v2913 = vshrl.u32 %v2757, 16
    %v2915 = vrot.slane %v2913, 7
    %v2916 = vshll.u32 %v2757, 16
    %v2918 = vor.u32 %v2915, %v2916
    %v2919 = vrot.slane %v2915, 4
    %v2921 = vshrl.u32 %v2758, 16
    %v2923 = vrot.slane %v2921, 7
    %v2924 = vshll.u32 %v2758, 16
    %v2926 = vor.u32 %v2923, %v2924
    %v2927 = vrot.slane %v2923, 4
    %v2929 = vshrl.u32 %v2759, 16
    %v2931 = vrot.slane %v2929, 7
    %v2932 = vshll.u32 %v2759, 16
    %v2934 = vor.u32 %v2931, %v2932
    %v2935 = vrot.slane %v2931, 4
    %v2937 = vshrl.u32 %v2760, 16
    %v2939 = vrot.slane %v2937, 7
    %v2940 = vshll.u32 %v2760, 16
    %v2942 = vor.u32 %v2939, %v2940
    %v2943 = vrot.slane %v2939, 4
    %v2945 = vshrl.u32 %v2761, 16
    %v2947 = vrot.slane %v2945, 7
    %v2948 = vshll.u32 %v2761, 16
    %v2950 = vor.u32 %v2947, %v2948
    %v2951 = vrot.slane %v2947, 4
    %v2953 = vshrl.u32 %v2762, 16
    %v2955 = vrot.slane %v2953, 7
    %v2956 = vshll.u32 %v2762, 16
    %v2958 = vor.u32 %v2955, %v2956
    %v2959 = vrot.slane %v2955, 4
    %s2976 = scalar_lea.vmem [#allocation4], 8
    %v2977 = vld [vmem:[%s2976] sm:$0xf]
    %v2978 = vsel %vm290, %v2902, %v2977
    %2979 = vst [vmem:[%s2976] sm:$0xf] %v2978
    %v2980 = vld [vmem:[%s2976 + $0x4] sm:$0x1]
    %v2981 = vsel %vm30, %v2903, %v2980
    %2982 = vst [vmem:[%s2976 + $0x4] sm:$0x1] %v2981
    %v2983 = vld [vmem:[%s2976 + $0x8] sm:$0xf]
    %v2984 = vsel %vm290, %v2910, %v2983
    %2985 = vst [vmem:[%s2976 + $0x8] sm:$0xf] %v2984
    %v2986 = vld [vmem:[%s2976 + $0xc] sm:$0x1]
    %v2987 = vsel %vm30, %v2911, %v2986
    %2988 = vst [vmem:[%s2976 + $0xc] sm:$0x1] %v2987
    %v2989 = vld [vmem:[%s2976 + $0x10] sm:$0xf]
    %v2990 = vsel %vm290, %v2918, %v2989
    %2991 = vst [vmem:[%s2976 + $0x10] sm:$0xf] %v2990
    %v2992 = vld [vmem:[%s2976 + $0x14] sm:$0x1]
    %v2993 = vsel %vm30, %v2919, %v2992
    %2994 = vst [vmem:[%s2976 + $0x14] sm:$0x1] %v2993
    %v2995 = vld [vmem:[%s2976 + $0x18] sm:$0xf]
    %v2996 = vsel %vm290, %v2926, %v2995
    %2997 = vst [vmem:[%s2976 + $0x18] sm:$0xf] %v2996
    %v2998 = vld [vmem:[%s2976 + $0x1c] sm:$0x1]
    %v2999 = vsel %vm30, %v2927, %v2998
    %3000 = vst [vmem:[%s2976 + $0x1c] sm:$0x1] %v2999
    %v3001 = vld [vmem:[%s2976 + $0x20] sm:$0xf]
    %v3002 = vsel %vm290, %v2934, %v3001
    %3003 = vst [vmem:[%s2976 + $0x20] sm:$0xf] %v3002
    %v3004 = vld [vmem:[%s2976 + $0x24] sm:$0x1]
    %v3005 = vsel %vm30, %v2935, %v3004
    %3006 = vst [vmem:[%s2976 + $0x24] sm:$0x1] %v3005
    %v3007 = vld [vmem:[%s2976 + $0x28] sm:$0xf]
    %v3008 = vsel %vm290, %v2942, %v3007
    %3009 = vst [vmem:[%s2976 + $0x28] sm:$0xf] %v3008
    %v3010 = vld [vmem:[%s2976 + $0x2c] sm:$0x1]
    %v3011 = vsel %vm30, %v2943, %v3010
    %3012 = vst [vmem:[%s2976 + $0x2c] sm:$0x1] %v3011
    %v3013 = vld [vmem:[%s2976 + $0x30] sm:$0xf]
    %v3014 = vsel %vm290, %v2950, %v3013
    %3015 = vst [vmem:[%s2976 + $0x30] sm:$0xf] %v3014
    %v3016 = vld [vmem:[%s2976 + $0x34] sm:$0x1]
    %v3017 = vsel %vm30, %v2951, %v3016
    %3018 = vst [vmem:[%s2976 + $0x34] sm:$0x1] %v3017
    %v3019 = vld [vmem:[%s2976 + $0x38] sm:$0xf]
    %v3020 = vsel %vm290, %v2958, %v3019
    %3021 = vst [vmem:[%s2976 + $0x38] sm:$0xf] %v3020
    %v3022 = vld [vmem:[%s2976 + $0x3c] sm:$0x1]
    %v3023 = vsel %vm30, %v2959, %v3022
    %3024 = vst [vmem:[%s2976 + $0x3c] sm:$0x1] %v3023
    %s3025 = scalar_lea.vmem [#allocation4], 80
    %3026 = vst.msk [vmem:[%s3025] sm:$0xf] %vm153, 0
    %3027 = vst.msk [vmem:[%s3025 + $0x4] sm:$0x1] %vm155, 0
    %s3028 = scalar_lea.vmem [#allocation4], 152
    %3029 = vst.msk [vmem:[%s3028] sm:$0xf] %vm153, 0
    %3030 = vst.msk [vmem:[%s3028 + $0x4] sm:$0x1] %vm155, 0
    %v3032 = vshrl.u32 %v2763, 16
    %v3034 = vrot.slane %v3032, 7
    %v3035 = vshll.u32 %v2763, 16
    %v3037 = vor.u32 %v3034, %v3035
    %v3038 = vrot.slane %v3034, 4
    %v3040 = vshrl.u32 %v2764, 16
    %v3042 = vrot.slane %v3040, 7
    %v3043 = vshll.u32 %v2764, 16
    %v3045 = vor.u32 %v3042, %v3043
    %v3046 = vrot.slane %v3042, 4
    %v3048 = vshrl.u32 %v2765, 16
    %v3050 = vrot.slane %v3048, 7
    %v3051 = vshll.u32 %v2765, 16
    %v3053 = vor.u32 %v3050, %v3051
    %v3054 = vrot.slane %v3050, 4
    %v3056 = vshrl.u32 %v2766, 16
    %v3058 = vrot.slane %v3056, 7
    %v3059 = vshll.u32 %v2766, 16
    %v3061 = vor.u32 %v3058, %v3059
    %v3062 = vrot.slane %v3058, 4
    %v3064 = vshrl.u32 %v2767, 16
    %v3066 = vrot.slane %v3064, 7
    %v3067 = vshll.u32 %v2767, 16
    %v3069 = vor.u32 %v3066, %v3067
    %v3070 = vrot.slane %v3066, 4
    %v3072 = vshrl.u32 %v2768, 16
    %v3074 = vrot.slane %v3072, 7
    %v3075 = vshll.u32 %v2768, 16
    %v3077 = vor.u32 %v3074, %v3075
    %v3078 = vrot.slane %v3074, 4
    %v3080 = vshrl.u32 %v2769, 16
    %v3082 = vrot.slane %v3080, 7
    %v3083 = vshll.u32 %v2769, 16
    %v3085 = vor.u32 %v3082, %v3083
    %v3086 = vrot.slane %v3082, 4
    %v3088 = vshrl.u32 %v2770, 16
    %v3090 = vrot.slane %v3088, 7
    %v3091 = vshll.u32 %v2770, 16
    %v3093 = vor.u32 %v3090, %v3091
    %v3094 = vrot.slane %v3090, 4
    %s3111 = scalar_lea.vmem [#allocation4], 88
    %v3112 = vld [vmem:[%s3111] sm:$0xf]
    %v3113 = vsel %vm290, %v3037, %v3112
    %3114 = vst [vmem:[%s3111] sm:$0xf] %v3113
    %v3115 = vld [vmem:[%s3111 + $0x4] sm:$0x1]
    %v3116 = vsel %vm30, %v3038, %v3115
    %3117 = vst [vmem:[%s3111 + $0x4] sm:$0x1] %v3116
    %v3118 = vld [vmem:[%s3111 + $0x8] sm:$0xf]
    %v3119 = vsel %vm290, %v3045, %v3118
    %3120 = vst [vmem:[%s3111 + $0x8] sm:$0xf] %v3119
    %v3121 = vld [vmem:[%s3111 + $0xc] sm:$0x1]
    %v3122 = vsel %vm30, %v3046, %v3121
    %3123 = vst [vmem:[%s3111 + $0xc] sm:$0x1] %v3122
    %v3124 = vld [vmem:[%s3111 + $0x10] sm:$0xf]
    %v3125 = vsel %vm290, %v3053, %v3124
    %3126 = vst [vmem:[%s3111 + $0x10] sm:$0xf] %v3125
    %v3127 = vld [vmem:[%s3111 + $0x14] sm:$0x1]
    %v3128 = vsel %vm30, %v3054, %v3127
    %3129 = vst [vmem:[%s3111 + $0x14] sm:$0x1] %v3128
    %v3130 = vld [vmem:[%s3111 + $0x18] sm:$0xf]
    %v3131 = vsel %vm290, %v3061, %v3130
    %3132 = vst [vmem:[%s3111 + $0x18] sm:$0xf] %v3131
    %v3133 = vld [vmem:[%s3111 + $0x1c] sm:$0x1]
    %v3134 = vsel %vm30, %v3062, %v3133
    %3135 = vst [vmem:[%s3111 + $0x1c] sm:$0x1] %v3134
    %v3136 = vld [vmem:[%s3111 + $0x20] sm:$0xf]
    %v3137 = vsel %vm290, %v3069, %v3136
    %3138 = vst [vmem:[%s3111 + $0x20] sm:$0xf] %v3137
    %v3139 = vld [vmem:[%s3111 + $0x24] sm:$0x1]
    %v3140 = vsel %vm30, %v3070, %v3139
    %3141 = vst [vmem:[%s3111 + $0x24] sm:$0x1] %v3140
    %v3142 = vld [vmem:[%s3111 + $0x28] sm:$0xf]
    %v3143 = vsel %vm290, %v3077, %v3142
    %3144 = vst [vmem:[%s3111 + $0x28] sm:$0xf] %v3143
    %v3145 = vld [vmem:[%s3111 + $0x2c] sm:$0x1]
    %v3146 = vsel %vm30, %v3078, %v3145
    %3147 = vst [vmem:[%s3111 + $0x2c] sm:$0x1] %v3146
    %v3148 = vld [vmem:[%s3111 + $0x30] sm:$0xf]
    %v3149 = vsel %vm290, %v3085, %v3148
    %3150 = vst [vmem:[%s3111 + $0x30] sm:$0xf] %v3149
    %v3151 = vld [vmem:[%s3111 + $0x34] sm:$0x1]
    %v3152 = vsel %vm30, %v3086, %v3151
    %3153 = vst [vmem:[%s3111 + $0x34] sm:$0x1] %v3152
    %v3154 = vld [vmem:[%s3111 + $0x38] sm:$0xf]
    %v3155 = vsel %vm290, %v3093, %v3154
    %3156 = vst [vmem:[%s3111 + $0x38] sm:$0xf] %v3155
    %v3157 = vld [vmem:[%s3111 + $0x3c] sm:$0x1]
    %v3158 = vsel %vm30, %v3094, %v3157
    %3159 = vst [vmem:[%s3111 + $0x3c] sm:$0x1] %v3158
    %v3160 = vld [vmem:[#allocation4] sm:$0xf]
    %v3161 = vld [vmem:[#allocation4 + $0x8] sm:$0xf]
    %v3162 = vld [vmem:[#allocation4 + $0x10] sm:$0xf]
    %v3163 = vld [vmem:[#allocation4 + $0x18] sm:$0xf]
    %v3164 = vld [vmem:[#allocation4 + $0x20] sm:$0xf]
    %v3165 = vld [vmem:[#allocation4 + $0x28] sm:$0xf]
    %v3166 = vld [vmem:[#allocation4 + $0x30] sm:$0xf]
    %v3167 = vld [vmem:[#allocation4 + $0x38] sm:$0xf]
    %3168 = vst.msk [vmem:[#allocation5] sm:$0xf] %vm153, %v3160
    %3169 = vst.msk [vmem:[#allocation5 + $0xc] sm:$0xf] %vm153, %v3161
    %3170 = vst.msk [vmem:[#allocation5 + $0x18] sm:$0xf] %vm153, %v3162
    %3171 = vst.msk [vmem:[#allocation5 + $0x24] sm:$0xf] %vm153, %v3163
    %3172 = vst.msk [vmem:[#allocation5 + $0x30] sm:$0xf] %vm153, %v3164
    %3173 = vst.msk [vmem:[#allocation5 + $0x3c] sm:$0xf] %vm153, %v3165
    %3174 = vst.msk [vmem:[#allocation5 + $0x48] sm:$0xf] %vm153, %v3166
    %3175 = vst.msk [vmem:[#allocation5 + $0x54] sm:$0xf] %vm153, %v3167
    %v3176 = vld [vmem:[#allocation4] sm:$0xf]
    %v3177 = vld [vmem:[#allocation4 + $0x4] sm:$0x1]
    %v3178 = vld [vmem:[#allocation4 + $0x8] sm:$0xf]
    %v3179 = vld [vmem:[#allocation4 + $0xc] sm:$0x1]
    %v3180 = vld [vmem:[#allocation4 + $0x10] sm:$0xf]
    %v3181 = vld [vmem:[#allocation4 + $0x14] sm:$0x1]
    %v3182 = vld [vmem:[#allocation4 + $0x18] sm:$0xf]
    %v3183 = vld [vmem:[#allocation4 + $0x1c] sm:$0x1]
    %v3184 = vld [vmem:[#allocation4 + $0x20] sm:$0xf]
    %v3185 = vld [vmem:[#allocation4 + $0x24] sm:$0x1]
    %v3186 = vld [vmem:[#allocation4 + $0x28] sm:$0xf]
    %v3187 = vld [vmem:[#allocation4 + $0x2c] sm:$0x1]
    %v3188 = vld [vmem:[#allocation4 + $0x30] sm:$0xf]
    %v3189 = vld [vmem:[#allocation4 + $0x34] sm:$0x1]
    %v3190 = vld [vmem:[#allocation4 + $0x38] sm:$0xf]
    %v3191 = vld [vmem:[#allocation4 + $0x3c] sm:$0x1]
    %v3193 = vshrl.u32 %v3176, 16
    %v3195 = vrot.slane %v3193, 4
    %v3196 = vshll.u32 %v3176, 16
    %v3198 = vrot.slane %v3196, 5
    %v3199 = vor.u32 %v3195, %v3198
    %v3200 = vrot.slane %v3199, 4
    %v3202 = vshll.u32 %v3177, 16
    %v3204 = vrot.slane %v3202, 5
    %v3205 = vsel %vm557, %v3200, %v3204
    %v3207 = vshrl.u32 %v3178, 16
    %v3209 = vrot.slane %v3207, 4
    %v3210 = vshll.u32 %v3178, 16
    %v3212 = vrot.slane %v3210, 5
    %v3213 = vor.u32 %v3209, %v3212
    %v3214 = vrot.slane %v3213, 4
    %v3216 = vshll.u32 %v3179, 16
    %v3218 = vrot.slane %v3216, 5
    %v3219 = vsel %vm557, %v3214, %v3218
    %v3221 = vshrl.u32 %v3180, 16
    %v3223 = vrot.slane %v3221, 4
    %v3224 = vshll.u32 %v3180, 16
    %v3226 = vrot.slane %v3224, 5
    %v3227 = vor.u32 %v3223, %v3226
    %v3228 = vrot.slane %v3227, 4
    %v3230 = vshll.u32 %v3181, 16
    %v3232 = vrot.slane %v3230, 5
    %v3233 = vsel %vm557, %v3228, %v3232
    %v3235 = vshrl.u32 %v3182, 16
    %v3237 = vrot.slane %v3235, 4
    %v3238 = vshll.u32 %v3182, 16
    %v3240 = vrot.slane %v3238, 5
    %v3241 = vor.u32 %v3237, %v3240
    %v3242 = vrot.slane %v3241, 4
    %v3244 = vshll.u32 %v3183, 16
    %v3246 = vrot.slane %v3244, 5
    %v3247 = vsel %vm557, %v3242, %v3246
    %v3249 = vshrl.u32 %v3184, 16
    %v3251 = vrot.slane %v3249, 4
    %v3252 = vshll.u32 %v3184, 16
    %v3254 = vrot.slane %v3252, 5
    %v3255 = vor.u32 %v3251, %v3254
    %v3256 = vrot.slane %v3255, 4
    %v3258 = vshll.u32 %v3185, 16
    %v3260 = vrot.slane %v3258, 5
    %v3261 = vsel %vm557, %v3256, %v3260
    %v3263 = vshrl.u32 %v3186, 16
    %v3265 = vrot.slane %v3263, 4
    %v3266 = vshll.u32 %v3186, 16
    %v3268 = vrot.slane %v3266, 5
    %v3269 = vor.u32 %v3265, %v3268
    %v3270 = vrot.slane %v3269, 4
    %v3272 = vshll.u32 %v3187, 16
    %v3274 = vrot.slane %v3272, 5
    %v3275 = vsel %vm557, %v3270, %v3274
    %v3277 = vshrl.u32 %v3188, 16
    %v3279 = vrot.slane %v3277, 4
    %v3280 = vshll.u32 %v3188, 16
    %v3282 = vrot.slane %v3280, 5
    %v3283 = vor.u32 %v3279, %v3282
    %v3284 = vrot.slane %v3283, 4
    %v3286 = vshll.u32 %v3189, 16
    %v3288 = vrot.slane %v3286, 5
    %v3289 = vsel %vm557, %v3284, %v3288
    %v3291 = vshrl.u32 %v3190, 16
    %v3293 = vrot.slane %v3291, 4
    %v3294 = vshll.u32 %v3190, 16
    %v3296 = vrot.slane %v3294, 5
    %v3297 = vor.u32 %v3293, %v3296
    %v3298 = vrot.slane %v3297, 4
    %v3300 = vshll.u32 %v3191, 16
    %v3302 = vrot.slane %v3300, 5
    %v3303 = vsel %vm557, %v3298, %v3302
    %3304 = vrot.lane.b32.xlu0 %v3205, 32
    %v3305 = vpop.permute.xlu0 %3304
    %3306 = vrot.lane.b32.xlu0 %v3219, 32
    %v3307 = vpop.permute.xlu0 %3306
    %3308 = vrot.lane.b32.xlu0 %v3233, 32
    %v3309 = vpop.permute.xlu0 %3308
    %3310 = vrot.lane.b32.xlu0 %v3247, 32
    %v3311 = vpop.permute.xlu0 %3310
    %3312 = vrot.lane.b32.xlu0 %v3261, 32
    %v3313 = vpop.permute.xlu0 %3312
    %3314 = vrot.lane.b32.xlu0 %v3275, 32
    %v3315 = vpop.permute.xlu0 %3314
    %3316 = vrot.lane.b32.xlu0 %v3289, 32
    %v3317 = vpop.permute.xlu0 %3316
    %3318 = vrot.lane.b32.xlu0 %v3303, 32
    %v3319 = vpop.permute.xlu0 %3318
    %3328 = vst.msk [vmem:[#allocation5] sm:$0xf] %vm694, %v3305
    %3329 = vst.msk [vmem:[#allocation5 + $0xc] sm:$0xf] %vm694, %v3307
    %3330 = vst.msk [vmem:[#allocation5 + $0x18] sm:$0xf] %vm694, %v3309
    %3331 = vst.msk [vmem:[#allocation5 + $0x24] sm:$0xf] %vm694, %v3311
    %3332 = vst.msk [vmem:[#allocation5 + $0x30] sm:$0xf] %vm694, %v3313
    %3333 = vst.msk [vmem:[#allocation5 + $0x3c] sm:$0xf] %vm694, %v3315
    %3334 = vst.msk [vmem:[#allocation5 + $0x48] sm:$0xf] %vm694, %v3317
    %3335 = vst.msk [vmem:[#allocation5 + $0x54] sm:$0xf] %vm694, %v3319
    %v3336 = vld [vmem:[#allocation4] sm:$0xe]
    %v3337 = vld [vmem:[#allocation4 + $0x4] sm:$0x1]
    %v3338 = vld [vmem:[#allocation4 + $0x8] sm:$0xe]
    %v3339 = vld [vmem:[#allocation4 + $0xc] sm:$0x1]
    %v3340 = vld [vmem:[#allocation4 + $0x10] sm:$0xe]
    %v3341 = vld [vmem:[#allocation4 + $0x14] sm:$0x1]
    %v3342 = vld [vmem:[#allocation4 + $0x18] sm:$0xe]
    %v3343 = vld [vmem:[#allocation4 + $0x1c] sm:$0x1]
    %v3344 = vld [vmem:[#allocation4 + $0x20] sm:$0xe]
    %v3345 = vld [vmem:[#allocation4 + $0x24] sm:$0x1]
    %v3346 = vld [vmem:[#allocation4 + $0x28] sm:$0xe]
    %v3347 = vld [vmem:[#allocation4 + $0x2c] sm:$0x1]
    %v3348 = vld [vmem:[#allocation4 + $0x30] sm:$0xe]
    %v3349 = vld [vmem:[#allocation4 + $0x34] sm:$0x1]
    %v3350 = vld [vmem:[#allocation4 + $0x38] sm:$0xe]
    %v3351 = vld [vmem:[#allocation4 + $0x3c] sm:$0x1]
    %v3368 = vrot.slane %v3336, 5
    %v3369 = vrot.slane %v3368, 4
    %v3370 = vrot.slane %v3337, 5
    %v3371 = vsel %vm737, %v3369, %v3370
    %v3372 = vrot.slane %v3338, 5
    %v3373 = vrot.slane %v3372, 4
    %v3374 = vrot.slane %v3339, 5
    %v3375 = vsel %vm737, %v3373, %v3374
    %v3376 = vrot.slane %v3340, 5
    %v3377 = vrot.slane %v3376, 4
    %v3378 = vrot.slane %v3341, 5
    %v3379 = vsel %vm737, %v3377, %v3378
    %v3380 = vrot.slane %v3342, 5
    %v3381 = vrot.slane %v3380, 4
    %v3382 = vrot.slane %v3343, 5
    %v3383 = vsel %vm737, %v3381, %v3382
    %v3384 = vrot.slane %v3344, 5
    %v3385 = vrot.slane %v3384, 4
    %v3386 = vrot.slane %v3345, 5
    %v3387 = vsel %vm737, %v3385, %v3386
    %v3388 = vrot.slane %v3346, 5
    %v3389 = vrot.slane %v3388, 4
    %v3390 = vrot.slane %v3347, 5
    %v3391 = vsel %vm737, %v3389, %v3390
    %v3392 = vrot.slane %v3348, 5
    %v3393 = vrot.slane %v3392, 4
    %v3394 = vrot.slane %v3349, 5
    %v3395 = vsel %vm737, %v3393, %v3394
    %v3396 = vrot.slane %v3350, 5
    %v3397 = vrot.slane %v3396, 4
    %v3398 = vrot.slane %v3351, 5
    %v3399 = vsel %vm737, %v3397, %v3398
    %3400 = vrot.lane.b32.xlu0 %v3371, 64
    %v3401 = vpop.permute.xlu0 %3400
    %3402 = vrot.lane.b32.xlu0 %v3375, 64
    %v3403 = vpop.permute.xlu0 %3402
    %3404 = vrot.lane.b32.xlu0 %v3379, 64
    %v3405 = vpop.permute.xlu0 %3404
    %3406 = vrot.lane.b32.xlu0 %v3383, 64
    %v3407 = vpop.permute.xlu0 %3406
    %3408 = vrot.lane.b32.xlu0 %v3387, 64
    %v3409 = vpop.permute.xlu0 %3408
    %3410 = vrot.lane.b32.xlu0 %v3391, 64
    %v3411 = vpop.permute.xlu0 %3410
    %3412 = vrot.lane.b32.xlu0 %v3395, 64
    %v3413 = vpop.permute.xlu0 %3412
    %3414 = vrot.lane.b32.xlu0 %v3399, 64
    %v3415 = vpop.permute.xlu0 %3414
    %3424 = vst.msk [vmem:[#allocation5] sm:$0xf] %vm794, %v3401
    %3425 = vst.msk [vmem:[#allocation5 + $0xc] sm:$0xf] %vm794, %v3403
    %3426 = vst.msk [vmem:[#allocation5 + $0x18] sm:$0xf] %vm794, %v3405
    %3427 = vst.msk [vmem:[#allocation5 + $0x24] sm:$0xf] %vm794, %v3407
    %3428 = vst.msk [vmem:[#allocation5 + $0x30] sm:$0xf] %vm794, %v3409
    %3429 = vst.msk [vmem:[#allocation5 + $0x3c] sm:$0xf] %vm794, %v3411
    %3430 = vst.msk [vmem:[#allocation5 + $0x48] sm:$0xf] %vm794, %v3413
    %3431 = vst.msk [vmem:[#allocation5 + $0x54] sm:$0xf] %vm794, %v3415
    %v3432 = vld [vmem:[%s2976] sm:$0xf]
    %v3433 = vld [vmem:[%s2976 + $0x8] sm:$0xf]
    %v3434 = vld [vmem:[%s2976 + $0x10] sm:$0xf]
    %v3435 = vld [vmem:[%s2976 + $0x18] sm:$0xf]
    %v3436 = vld [vmem:[%s2976 + $0x20] sm:$0xf]
    %v3437 = vld [vmem:[%s2976 + $0x28] sm:$0xf]
    %v3438 = vld [vmem:[%s2976 + $0x30] sm:$0xf]
    %v3439 = vld [vmem:[%s2976 + $0x38] sm:$0xf]
    %3448 = vrot.lane.b32.xlu0 %v3432, 96
    %v3449 = vpop.permute.xlu0 %3448
    %3450 = vrot.lane.b32.xlu0 %v3433, 96
    %v3451 = vpop.permute.xlu0 %3450
    %3452 = vrot.lane.b32.xlu0 %v3434, 96
    %v3453 = vpop.permute.xlu0 %3452
    %3454 = vrot.lane.b32.xlu0 %v3435, 96
    %v3455 = vpop.permute.xlu0 %3454
    %3456 = vrot.lane.b32.xlu0 %v3436, 96
    %v3457 = vpop.permute.xlu0 %3456
    %3458 = vrot.lane.b32.xlu0 %v3437, 96
    %v3459 = vpop.permute.xlu0 %3458
    %3460 = vrot.lane.b32.xlu0 %v3438, 96
    %v3461 = vpop.permute.xlu0 %3460
    %3462 = vrot.lane.b32.xlu0 %v3439, 96
    %v3463 = vpop.permute.xlu0 %3462
    %3472 = vst.msk [vmem:[#allocation5] sm:$0xf] %vm843, %v3449
    %3473 = vst.msk [vmem:[#allocation5 + $0xc] sm:$0xf] %vm843, %v3451
    %3474 = vst.msk [vmem:[#allocation5 + $0x18] sm:$0xf] %vm843, %v3453
    %3475 = vst.msk [vmem:[#allocation5 + $0x24] sm:$0xf] %vm843, %v3455
    %3476 = vst.msk [vmem:[#allocation5 + $0x30] sm:$0xf] %vm843, %v3457
    %3477 = vst.msk [vmem:[#allocation5 + $0x3c] sm:$0xf] %vm843, %v3459
    %3478 = vst.msk [vmem:[#allocation5 + $0x48] sm:$0xf] %vm843, %v3461
    %3479 = vst.msk [vmem:[#allocation5 + $0x54] sm:$0xf] %vm843, %v3463
    %v3480 = vld [vmem:[%s2976] sm:$0xf]
    %v3481 = vld [vmem:[%s2976 + $0x4] sm:$0x1]
    %v3482 = vld [vmem:[%s2976 + $0x8] sm:$0xf]
    %v3483 = vld [vmem:[%s2976 + $0xc] sm:$0x1]
    %v3484 = vld [vmem:[%s2976 + $0x10] sm:$0xf]
    %v3485 = vld [vmem:[%s2976 + $0x14] sm:$0x1]
    %v3486 = vld [vmem:[%s2976 + $0x18] sm:$0xf]
    %v3487 = vld [vmem:[%s2976 + $0x1c] sm:$0x1]
    %v3488 = vld [vmem:[%s2976 + $0x20] sm:$0xf]
    %v3489 = vld [vmem:[%s2976 + $0x24] sm:$0x1]
    %v3490 = vld [vmem:[%s2976 + $0x28] sm:$0xf]
    %v3491 = vld [vmem:[%s2976 + $0x2c] sm:$0x1]
    %v3492 = vld [vmem:[%s2976 + $0x30] sm:$0xf]
    %v3493 = vld [vmem:[%s2976 + $0x34] sm:$0x1]
    %v3494 = vld [vmem:[%s2976 + $0x38] sm:$0xf]
    %v3495 = vld [vmem:[%s2976 + $0x3c] sm:$0x1]
    %v3497 = vshrl.u32 %v3480, 16
    %v3499 = vrot.slane %v3497, 4
    %v3500 = vshll.u32 %v3480, 16
    %v3502 = vrot.slane %v3500, 5
    %v3503 = vor.u32 %v3499, %v3502
    %v3504 = vrot.slane %v3503, 4
    %v3506 = vshll.u32 %v3481, 16
    %v3508 = vrot.slane %v3506, 5
    %v3509 = vsel %vm557, %v3504, %v3508
    %v3511 = vshrl.u32 %v3482, 16
    %v3513 = vrot.slane %v3511, 4
    %v3514 = vshll.u32 %v3482, 16
    %v3516 = vrot.slane %v3514, 5
    %v3517 = vor.u32 %v3513, %v3516
    %v3518 = vrot.slane %v3517, 4
    %v3520 = vshll.u32 %v3483, 16
    %v3522 = vrot.slane %v3520, 5
    %v3523 = vsel %vm557, %v3518, %v3522
    %v3525 = vshrl.u32 %v3484, 16
    %v3527 = vrot.slane %v3525, 4
    %v3528 = vshll.u32 %v3484, 16
    %v3530 = vrot.slane %v3528, 5
    %v3531 = vor.u32 %v3527, %v3530
    %v3532 = vrot.slane %v3531, 4
    %v3534 = vshll.u32 %v3485, 16
    %v3536 = vrot.slane %v3534, 5
    %v3537 = vsel %vm557, %v3532, %v3536
    %v3539 = vshrl.u32 %v3486, 16
    %v3541 = vrot.slane %v3539, 4
    %v3542 = vshll.u32 %v3486, 16
    %v3544 = vrot.slane %v3542, 5
    %v3545 = vor.u32 %v3541, %v3544
    %v3546 = vrot.slane %v3545, 4
    %v3548 = vshll.u32 %v3487, 16
    %v3550 = vrot.slane %v3548, 5
    %v3551 = vsel %vm557, %v3546, %v3550
    %v3553 = vshrl.u32 %v3488, 16
    %v3555 = vrot.slane %v3553, 4
    %v3556 = vshll.u32 %v3488, 16
    %v3558 = vrot.slane %v3556, 5
    %v3559 = vor.u32 %v3555, %v3558
    %v3560 = vrot.slane %v3559, 4
    %v3562 = vshll.u32 %v3489, 16
    %v3564 = vrot.slane %v3562, 5
    %v3565 = vsel %vm557, %v3560, %v3564
    %v3567 = vshrl.u32 %v3490, 16
    %v3569 = vrot.slane %v3567, 4
    %v3570 = vshll.u32 %v3490, 16
    %v3572 = vrot.slane %v3570, 5
    %v3573 = vor.u32 %v3569, %v3572
    %v3574 = vrot.slane %v3573, 4
    %v3576 = vshll.u32 %v3491, 16
    %v3578 = vrot.slane %v3576, 5
    %v3579 = vsel %vm557, %v3574, %v3578
    %v3581 = vshrl.u32 %v3492, 16
    %v3583 = vrot.slane %v3581, 4
    %v3584 = vshll.u32 %v3492, 16
    %v3586 = vrot.slane %v3584, 5
    %v3587 = vor.u32 %v3583, %v3586
    %v3588 = vrot.slane %v3587, 4
    %v3590 = vshll.u32 %v3493, 16
    %v3592 = vrot.slane %v3590, 5
    %v3593 = vsel %vm557, %v3588, %v3592
    %v3595 = vshrl.u32 %v3494, 16
    %v3597 = vrot.slane %v3595, 4
    %v3598 = vshll.u32 %v3494, 16
    %v3600 = vrot.slane %v3598, 5
    %v3601 = vor.u32 %v3597, %v3600
    %v3602 = vrot.slane %v3601, 4
    %v3604 = vshll.u32 %v3495, 16
    %v3606 = vrot.slane %v3604, 5
    %v3607 = vsel %vm557, %v3602, %v3606
    %3616 = vst.msk [vmem:[#allocation5 + $0x4] sm:$0xf] %vm153, %v3509
    %3617 = vst.msk [vmem:[#allocation5 + $0x10] sm:$0xf] %vm153, %v3523
    %3618 = vst.msk [vmem:[#allocation5 + $0x1c] sm:$0xf] %vm153, %v3537
    %3619 = vst.msk [vmem:[#allocation5 + $0x28] sm:$0xf] %vm153, %v3551
    %3620 = vst.msk [vmem:[#allocation5 + $0x34] sm:$0xf] %vm153, %v3565
    %3621 = vst.msk [vmem:[#allocation5 + $0x40] sm:$0xf] %vm153, %v3579
    %3622 = vst.msk [vmem:[#allocation5 + $0x4c] sm:$0xf] %vm153, %v3593
    %3623 = vst.msk [vmem:[#allocation5 + $0x58] sm:$0xf] %vm153, %v3607
    %v3624 = vld [vmem:[%s2976] sm:$0xe]
    %v3625 = vld [vmem:[%s2976 + $0x4] sm:$0x1]
    %v3626 = vld [vmem:[%s2976 + $0x8] sm:$0xe]
    %v3627 = vld [vmem:[%s2976 + $0xc] sm:$0x1]
    %v3628 = vld [vmem:[%s2976 + $0x10] sm:$0xe]
    %v3629 = vld [vmem:[%s2976 + $0x14] sm:$0x1]
    %v3630 = vld [vmem:[%s2976 + $0x18] sm:$0xe]
    %v3631 = vld [vmem:[%s2976 + $0x1c] sm:$0x1]
    %v3632 = vld [vmem:[%s2976 + $0x20] sm:$0xe]
    %v3633 = vld [vmem:[%s2976 + $0x24] sm:$0x1]
    %v3634 = vld [vmem:[%s2976 + $0x28] sm:$0xe]
    %v3635 = vld [vmem:[%s2976 + $0x2c] sm:$0x1]
    %v3636 = vld [vmem:[%s2976 + $0x30] sm:$0xe]
    %v3637 = vld [vmem:[%s2976 + $0x34] sm:$0x1]
    %v3638 = vld [vmem:[%s2976 + $0x38] sm:$0xe]
    %v3639 = vld [vmem:[%s2976 + $0x3c] sm:$0x1]
    %v3656 = vrot.slane %v3624, 5
    %v3657 = vrot.slane %v3656, 4
    %v3658 = vrot.slane %v3625, 5
    %v3659 = vsel %vm737, %v3657, %v3658
    %v3660 = vrot.slane %v3626, 5
    %v3661 = vrot.slane %v3660, 4
    %v3662 = vrot.slane %v3627, 5
    %v3663 = vsel %vm737, %v3661, %v3662
    %v3664 = vrot.slane %v3628, 5
    %v3665 = vrot.slane %v3664, 4
    %v3666 = vrot.slane %v3629, 5
    %v3667 = vsel %vm737, %v3665, %v3666
    %v3668 = vrot.slane %v3630, 5
    %v3669 = vrot.slane %v3668, 4
    %v3670 = vrot.slane %v3631, 5
    %v3671 = vsel %vm737, %v3669, %v3670
    %v3672 = vrot.slane %v3632, 5
    %v3673 = vrot.slane %v3672, 4
    %v3674 = vrot.slane %v3633, 5
    %v3675 = vsel %vm737, %v3673, %v3674
    %v3676 = vrot.slane %v3634, 5
    %v3677 = vrot.slane %v3676, 4
    %v3678 = vrot.slane %v3635, 5
    %v3679 = vsel %vm737, %v3677, %v3678
    %v3680 = vrot.slane %v3636, 5
    %v3681 = vrot.slane %v3680, 4
    %v3682 = vrot.slane %v3637, 5
    %v3683 = vsel %vm737, %v3681, %v3682
    %v3684 = vrot.slane %v3638, 5
    %v3685 = vrot.slane %v3684, 4
    %v3686 = vrot.slane %v3639, 5
    %v3687 = vsel %vm737, %v3685, %v3686
    %3688 = vrot.lane.b32.xlu0 %v3659, 32
    %v3689 = vpop.permute.xlu0 %3688
    %3690 = vrot.lane.b32.xlu0 %v3663, 32
    %v3691 = vpop.permute.xlu0 %3690
    %3692 = vrot.lane.b32.xlu0 %v3667, 32
    %v3693 = vpop.permute.xlu0 %3692
    %3694 = vrot.lane.b32.xlu0 %v3671, 32
    %v3695 = vpop.permute.xlu0 %3694
    %3696 = vrot.lane.b32.xlu0 %v3675, 32
    %v3697 = vpop.permute.xlu0 %3696
    %3698 = vrot.lane.b32.xlu0 %v3679, 32
    %v3699 = vpop.permute.xlu0 %3698
    %3700 = vrot.lane.b32.xlu0 %v3683, 32
    %v3701 = vpop.permute.xlu0 %3700
    %3702 = vrot.lane.b32.xlu0 %v3687, 32
    %v3703 = vpop.permute.xlu0 %3702
    %3712 = vst.msk [vmem:[#allocation5 + $0x4] sm:$0xf] %vm694, %v3689
    %3713 = vst.msk [vmem:[#allocation5 + $0x10] sm:$0xf] %vm694, %v3691
    %3714 = vst.msk [vmem:[#allocation5 + $0x1c] sm:$0xf] %vm694, %v3693
    %3715 = vst.msk [vmem:[#allocation5 + $0x28] sm:$0xf] %vm694, %v3695
    %3716 = vst.msk [vmem:[#allocation5 + $0x34] sm:$0xf] %vm694, %v3697
    %3717 = vst.msk [vmem:[#allocation5 + $0x40] sm:$0xf] %vm694, %v3699
    %3718 = vst.msk [vmem:[#allocation5 + $0x4c] sm:$0xf] %vm694, %v3701
    %3719 = vst.msk [vmem:[#allocation5 + $0x58] sm:$0xf] %vm694, %v3703
    %s3720 = scalar_lea.vmem [#allocation4], 16
    %v3721 = vld [vmem:[%s3720] sm:$0xf]
    %v3722 = vld [vmem:[%s3720 + $0x8] sm:$0xf]
    %v3723 = vld [vmem:[%s3720 + $0x10] sm:$0xf]
    %v3724 = vld [vmem:[%s3720 + $0x18] sm:$0xf]
    %v3725 = vld [vmem:[%s3720 + $0x20] sm:$0xf]
    %v3726 = vld [vmem:[%s3720 + $0x28] sm:$0xf]
    %v3727 = vld [vmem:[%s3720 + $0x30] sm:$0xf]
    %v3728 = vld [vmem:[%s3720 + $0x38] sm:$0xf]
    %3737 = vrot.lane.b32.xlu0 %v3721, 64
    %v3738 = vpop.permute.xlu0 %3737
    %3739 = vrot.lane.b32.xlu0 %v3722, 64
    %v3740 = vpop.permute.xlu0 %3739
    %3741 = vrot.lane.b32.xlu0 %v3723, 64
    %v3742 = vpop.permute.xlu0 %3741
    %3743 = vrot.lane.b32.xlu0 %v3724, 64
    %v3744 = vpop.permute.xlu0 %3743
    %3745 = vrot.lane.b32.xlu0 %v3725, 64
    %v3746 = vpop.permute.xlu0 %3745
    %3747 = vrot.lane.b32.xlu0 %v3726, 64
    %v3748 = vpop.permute.xlu0 %3747
    %3749 = vrot.lane.b32.xlu0 %v3727, 64
    %v3750 = vpop.permute.xlu0 %3749
    %3751 = vrot.lane.b32.xlu0 %v3728, 64
    %v3752 = vpop.permute.xlu0 %3751
    %3761 = vst.msk [vmem:[#allocation5 + $0x4] sm:$0xf] %vm794, %v3738
    %3762 = vst.msk [vmem:[#allocation5 + $0x10] sm:$0xf] %vm794, %v3740
    %3763 = vst.msk [vmem:[#allocation5 + $0x1c] sm:$0xf] %vm794, %v3742
    %3764 = vst.msk [vmem:[#allocation5 + $0x28] sm:$0xf] %vm794, %v3744
    %3765 = vst.msk [vmem:[#allocation5 + $0x34] sm:$0xf] %vm794, %v3746
    %3766 = vst.msk [vmem:[#allocation5 + $0x40] sm:$0xf] %vm794, %v3748
    %3767 = vst.msk [vmem:[#allocation5 + $0x4c] sm:$0xf] %vm794, %v3750
    %3768 = vst.msk [vmem:[#allocation5 + $0x58] sm:$0xf] %vm794, %v3752
    %v3769 = vld [vmem:[%s3720] sm:$0xf]
    %v3770 = vld [vmem:[%s3720 + $0x4] sm:$0x1]
    %v3771 = vld [vmem:[%s3720 + $0x8] sm:$0xf]
    %v3772 = vld [vmem:[%s3720 + $0xc] sm:$0x1]
    %v3773 = vld [vmem:[%s3720 + $0x10] sm:$0xf]
    %v3774 = vld [vmem:[%s3720 + $0x14] sm:$0x1]
    %v3775 = vld [vmem:[%s3720 + $0x18] sm:$0xf]
    %v3776 = vld [vmem:[%s3720 + $0x1c] sm:$0x1]
    %v3777 = vld [vmem:[%s3720 + $0x20] sm:$0xf]
    %v3778 = vld [vmem:[%s3720 + $0x24] sm:$0x1]
    %v3779 = vld [vmem:[%s3720 + $0x28] sm:$0xf]
    %v3780 = vld [vmem:[%s3720 + $0x2c] sm:$0x1]
    %v3781 = vld [vmem:[%s3720 + $0x30] sm:$0xf]
    %v3782 = vld [vmem:[%s3720 + $0x34] sm:$0x1]
    %v3783 = vld [vmem:[%s3720 + $0x38] sm:$0xf]
    %v3784 = vld [vmem:[%s3720 + $0x3c] sm:$0x1]
    %v3786 = vshrl.u32 %v3769, 16
    %v3788 = vrot.slane %v3786, 4
    %v3789 = vshll.u32 %v3769, 16
    %v3791 = vrot.slane %v3789, 5
    %v3792 = vor.u32 %v3788, %v3791
    %v3793 = vrot.slane %v3792, 4
    %v3795 = vshll.u32 %v3770, 16
    %v3797 = vrot.slane %v3795, 5
    %v3798 = vsel %vm557, %v3793, %v3797
    %v3800 = vshrl.u32 %v3771, 16
    %v3802 = vrot.slane %v3800, 4
    %v3803 = vshll.u32 %v3771, 16
    %v3805 = vrot.slane %v3803, 5
    %v3806 = vor.u32 %v3802, %v3805
    %v3807 = vrot.slane %v3806, 4
    %v3809 = vshll.u32 %v3772, 16
    %v3811 = vrot.slane %v3809, 5
    %v3812 = vsel %vm557, %v3807, %v3811
    %v3814 = vshrl.u32 %v3773, 16
    %v3816 = vrot.slane %v3814, 4
    %v3817 = vshll.u32 %v3773, 16
    %v3819 = vrot.slane %v3817, 5
    %v3820 = vor.u32 %v3816, %v3819
    %v3821 = vrot.slane %v3820, 4
    %v3823 = vshll.u32 %v3774, 16
    %v3825 = vrot.slane %v3823, 5
    %v3826 = vsel %vm557, %v3821, %v3825
    %v3828 = vshrl.u32 %v3775, 16
    %v3830 = vrot.slane %v3828, 4
    %v3831 = vshll.u32 %v3775, 16
    %v3833 = vrot.slane %v3831, 5
    %v3834 = vor.u32 %v3830, %v3833
    %v3835 = vrot.slane %v3834, 4
    %v3837 = vshll.u32 %v3776, 16
    %v3839 = vrot.slane %v3837, 5
    %v3840 = vsel %vm557, %v3835, %v3839
    %v3842 = vshrl.u32 %v3777, 16
    %v3844 = vrot.slane %v3842, 4
    %v3845 = vshll.u32 %v3777, 16
    %v3847 = vrot.slane %v3845, 5
    %v3848 = vor.u32 %v3844, %v3847
    %v3849 = vrot.slane %v3848, 4
    %v3851 = vshll.u32 %v3778, 16
    %v3853 = vrot.slane %v3851, 5
    %v3854 = vsel %vm557, %v3849, %v3853
    %v3856 = vshrl.u32 %v3779, 16
    %v3858 = vrot.slane %v3856, 4
    %v3859 = vshll.u32 %v3779, 16
    %v3861 = vrot.slane %v3859, 5
    %v3862 = vor.u32 %v3858, %v3861
    %v3863 = vrot.slane %v3862, 4
    %v3865 = vshll.u32 %v3780, 16
    %v3867 = vrot.slane %v3865, 5
    %v3868 = vsel %vm557, %v3863, %v3867
    %v3870 = vshrl.u32 %v3781, 16
    %v3872 = vrot.slane %v3870, 4
    %v3873 = vshll.u32 %v3781, 16
    %v3875 = vrot.slane %v3873, 5
    %v3876 = vor.u32 %v3872, %v3875
    %v3877 = vrot.slane %v3876, 4
    %v3879 = vshll.u32 %v3782, 16
    %v3881 = vrot.slane %v3879, 5
    %v3882 = vsel %vm557, %v3877, %v3881
    %v3884 = vshrl.u32 %v3783, 16
    %v3886 = vrot.slane %v3884, 4
    %v3887 = vshll.u32 %v3783, 16
    %v3889 = vrot.slane %v3887, 5
    %v3890 = vor.u32 %v3886, %v3889
    %v3891 = vrot.slane %v3890, 4
    %v3893 = vshll.u32 %v3784, 16
    %v3895 = vrot.slane %v3893, 5
    %v3896 = vsel %vm557, %v3891, %v3895
    %3897 = vrot.lane.b32.xlu0 %v3798, 96
    %v3898 = vpop.permute.xlu0 %3897
    %3899 = vrot.lane.b32.xlu0 %v3812, 96
    %v3900 = vpop.permute.xlu0 %3899
    %3901 = vrot.lane.b32.xlu0 %v3826, 96
    %v3902 = vpop.permute.xlu0 %3901
    %3903 = vrot.lane.b32.xlu0 %v3840, 96
    %v3904 = vpop.permute.xlu0 %3903
    %3905 = vrot.lane.b32.xlu0 %v3854, 96
    %v3906 = vpop.permute.xlu0 %3905
    %3907 = vrot.lane.b32.xlu0 %v3868, 96
    %v3908 = vpop.permute.xlu0 %3907
    %3909 = vrot.lane.b32.xlu0 %v3882, 96
    %v3910 = vpop.permute.xlu0 %3909
    %3911 = vrot.lane.b32.xlu0 %v3896, 96
    %v3912 = vpop.permute.xlu0 %3911
    %3921 = vst.msk [vmem:[#allocation5 + $0x4] sm:$0xf] %vm843, %v3898
    %3922 = vst.msk [vmem:[#allocation5 + $0x10] sm:$0xf] %vm843, %v3900
    %3923 = vst.msk [vmem:[#allocation5 + $0x1c] sm:$0xf] %vm843, %v3902
    %3924 = vst.msk [vmem:[#allocation5 + $0x28] sm:$0xf] %vm843, %v3904
    %3925 = vst.msk [vmem:[#allocation5 + $0x34] sm:$0xf] %vm843, %v3906
    %3926 = vst.msk [vmem:[#allocation5 + $0x40] sm:$0xf] %vm843, %v3908
    %3927 = vst.msk [vmem:[#allocation5 + $0x4c] sm:$0xf] %vm843, %v3910
    %3928 = vst.msk [vmem:[#allocation5 + $0x58] sm:$0xf] %vm843, %v3912
    %v3929 = vld [vmem:[%s3720] sm:$0xe]
    %v3930 = vld [vmem:[%s3720 + $0x4] sm:$0x1]
    %v3931 = vld [vmem:[%s3720 + $0x8] sm:$0xe]
    %v3932 = vld [vmem:[%s3720 + $0xc] sm:$0x1]
    %v3933 = vld [vmem:[%s3720 + $0x10] sm:$0xe]
    %v3934 = vld [vmem:[%s3720 + $0x14] sm:$0x1]
    %v3935 = vld [vmem:[%s3720 + $0x18] sm:$0xe]
    %v3936 = vld [vmem:[%s3720 + $0x1c] sm:$0x1]
    %v3937 = vld [vmem:[%s3720 + $0x20] sm:$0xe]
    %v3938 = vld [vmem:[%s3720 + $0x24] sm:$0x1]
    %v3939 = vld [vmem:[%s3720 + $0x28] sm:$0xe]
    %v3940 = vld [vmem:[%s3720 + $0x2c] sm:$0x1]
    %v3941 = vld [vmem:[%s3720 + $0x30] sm:$0xe]
    %v3942 = vld [vmem:[%s3720 + $0x34] sm:$0x1]
    %v3943 = vld [vmem:[%s3720 + $0x38] sm:$0xe]
    %v3944 = vld [vmem:[%s3720 + $0x3c] sm:$0x1]
    %v3961 = vrot.slane %v3929, 5
    %v3962 = vrot.slane %v3961, 4
    %v3963 = vrot.slane %v3930, 5
    %v3964 = vsel %vm737, %v3962, %v3963
    %v3965 = vrot.slane %v3931, 5
    %v3966 = vrot.slane %v3965, 4
    %v3967 = vrot.slane %v3932, 5
    %v3968 = vsel %vm737, %v3966, %v3967
    %v3969 = vrot.slane %v3933, 5
    %v3970 = vrot.slane %v3969, 4
    %v3971 = vrot.slane %v3934, 5
    %v3972 = vsel %vm737, %v3970, %v3971
    %v3973 = vrot.slane %v3935, 5
    %v3974 = vrot.slane %v3973, 4
    %v3975 = vrot.slane %v3936, 5
    %v3976 = vsel %vm737, %v3974, %v3975
    %v3977 = vrot.slane %v3937, 5
    %v3978 = vrot.slane %v3977, 4
    %v3979 = vrot.slane %v3938, 5
    %v3980 = vsel %vm737, %v3978, %v3979
    %v3981 = vrot.slane %v3939, 5
    %v3982 = vrot.slane %v3981, 4
    %v3983 = vrot.slane %v3940, 5
    %v3984 = vsel %vm737, %v3982, %v3983
    %v3985 = vrot.slane %v3941, 5
    %v3986 = vrot.slane %v3985, 4
    %v3987 = vrot.slane %v3942, 5
    %v3988 = vsel %vm737, %v3986, %v3987
    %v3989 = vrot.slane %v3943, 5
    %v3990 = vrot.slane %v3989, 4
    %v3991 = vrot.slane %v3944, 5
    %v3992 = vsel %vm737, %v3990, %v3991
    %4001 = vst.msk [vmem:[#allocation5 + $0x8] sm:$0xf] %vm153, %v3964
    %4002 = vst.msk [vmem:[#allocation5 + $0x14] sm:$0xf] %vm153, %v3968
    %4003 = vst.msk [vmem:[#allocation5 + $0x20] sm:$0xf] %vm153, %v3972
    %4004 = vst.msk [vmem:[#allocation5 + $0x2c] sm:$0xf] %vm153, %v3976
    %4005 = vst.msk [vmem:[#allocation5 + $0x38] sm:$0xf] %vm153, %v3980
    %4006 = vst.msk [vmem:[#allocation5 + $0x44] sm:$0xf] %vm153, %v3984
    %4007 = vst.msk [vmem:[#allocation5 + $0x50] sm:$0xf] %vm153, %v3988
    %4008 = vst.msk [vmem:[#allocation5 + $0x5c] sm:$0xf] %vm153, %v3992
    %v4009 = vld [vmem:[%s3025] sm:$0xf]
    %v4010 = vld [vmem:[%s3025 + $0x8] sm:$0xf]
    %v4011 = vld [vmem:[%s3025 + $0x10] sm:$0xf]
    %v4012 = vld [vmem:[%s3025 + $0x18] sm:$0xf]
    %v4013 = vld [vmem:[%s3025 + $0x20] sm:$0xf]
    %v4014 = vld [vmem:[%s3025 + $0x28] sm:$0xf]
    %v4015 = vld [vmem:[%s3025 + $0x30] sm:$0xf]
    %v4016 = vld [vmem:[%s3025 + $0x38] sm:$0xf]
    %s4017 = scalar_lea.vmem [#allocation5], 96
    %4018 = vst.msk [vmem:[%s4017] sm:$0xf] %vm153, %v4009
    %4019 = vst.msk [vmem:[%s4017 + $0xc] sm:$0xf] %vm153, %v4010
    %4020 = vst.msk [vmem:[%s4017 + $0x18] sm:$0xf] %vm153, %v4011
    %4021 = vst.msk [vmem:[%s4017 + $0x24] sm:$0xf] %vm153, %v4012
    %4022 = vst.msk [vmem:[%s4017 + $0x30] sm:$0xf] %vm153, %v4013
    %4023 = vst.msk [vmem:[%s4017 + $0x3c] sm:$0xf] %vm153, %v4014
    %4024 = vst.msk [vmem:[%s4017 + $0x48] sm:$0xf] %vm153, %v4015
    %4025 = vst.msk [vmem:[%s4017 + $0x54] sm:$0xf] %vm153, %v4016
    %v4026 = vld [vmem:[%s3025] sm:$0xf]
    %v4027 = vld [vmem:[%s3025 + $0x4] sm:$0x1]
    %v4028 = vld [vmem:[%s3025 + $0x8] sm:$0xf]
    %v4029 = vld [vmem:[%s3025 + $0xc] sm:$0x1]
    %v4030 = vld [vmem:[%s3025 + $0x10] sm:$0xf]
    %v4031 = vld [vmem:[%s3025 + $0x14] sm:$0x1]
    %v4032 = vld [vmem:[%s3025 + $0x18] sm:$0xf]
    %v4033 = vld [vmem:[%s3025 + $0x1c] sm:$0x1]
    %v4034 = vld [vmem:[%s3025 + $0x20] sm:$0xf]
    %v4035 = vld [vmem:[%s3025 + $0x24] sm:$0x1]
    %v4036 = vld [vmem:[%s3025 + $0x28] sm:$0xf]
    %v4037 = vld [vmem:[%s3025 + $0x2c] sm:$0x1]
    %v4038 = vld [vmem:[%s3025 + $0x30] sm:$0xf]
    %v4039 = vld [vmem:[%s3025 + $0x34] sm:$0x1]
    %v4040 = vld [vmem:[%s3025 + $0x38] sm:$0xf]
    %v4041 = vld [vmem:[%s3025 + $0x3c] sm:$0x1]
    %v4043 = vshrl.u32 %v4026, 16
    %v4045 = vrot.slane %v4043, 4
    %v4046 = vshll.u32 %v4026, 16
    %v4048 = vrot.slane %v4046, 5
    %v4049 = vor.u32 %v4045, %v4048
    %v4050 = vrot.slane %v4049, 4
    %v4052 = vshll.u32 %v4027, 16
    %v4054 = vrot.slane %v4052, 5
    %v4055 = vsel %vm557, %v4050, %v4054
    %v4057 = vshrl.u32 %v4028, 16
    %v4059 = vrot.slane %v4057, 4
    %v4060 = vshll.u32 %v4028, 16
    %v4062 = vrot.slane %v4060, 5
    %v4063 = vor.u32 %v4059, %v4062
    %v4064 = vrot.slane %v4063, 4
    %v4066 = vshll.u32 %v4029, 16
    %v4068 = vrot.slane %v4066, 5
    %v4069 = vsel %vm557, %v4064, %v4068
    %v4071 = vshrl.u32 %v4030, 16
    %v4073 = vrot.slane %v4071, 4
    %v4074 = vshll.u32 %v4030, 16
    %v4076 = vrot.slane %v4074, 5
    %v4077 = vor.u32 %v4073, %v4076
    %v4078 = vrot.slane %v4077, 4
    %v4080 = vshll.u32 %v4031, 16
    %v4082 = vrot.slane %v4080, 5
    %v4083 = vsel %vm557, %v4078, %v4082
    %v4085 = vshrl.u32 %v4032, 16
    %v4087 = vrot.slane %v4085, 4
    %v4088 = vshll.u32 %v4032, 16
    %v4090 = vrot.slane %v4088, 5
    %v4091 = vor.u32 %v4087, %v4090
    %v4092 = vrot.slane %v4091, 4
    %v4094 = vshll.u32 %v4033, 16
    %v4096 = vrot.slane %v4094, 5
    %v4097 = vsel %vm557, %v4092, %v4096
    %v4099 = vshrl.u32 %v4034, 16
    %v4101 = vrot.slane %v4099, 4
    %v4102 = vshll.u32 %v4034, 16
    %v4104 = vrot.slane %v4102, 5
    %v4105 = vor.u32 %v4101, %v4104
    %v4106 = vrot.slane %v4105, 4
    %v4108 = vshll.u32 %v4035, 16
    %v4110 = vrot.slane %v4108, 5
    %v4111 = vsel %vm557, %v4106, %v4110
    %v4113 = vshrl.u32 %v4036, 16
    %v4115 = vrot.slane %v4113, 4
    %v4116 = vshll.u32 %v4036, 16
    %v4118 = vrot.slane %v4116, 5
    %v4119 = vor.u32 %v4115, %v4118
    %v4120 = vrot.slane %v4119, 4
    %v4122 = vshll.u32 %v4037, 16
    %v4124 = vrot.slane %v4122, 5
    %v4125 = vsel %vm557, %v4120, %v4124
    %v4127 = vshrl.u32 %v4038, 16
    %v4129 = vrot.slane %v4127, 4
    %v4130 = vshll.u32 %v4038, 16
    %v4132 = vrot.slane %v4130, 5
    %v4133 = vor.u32 %v4129, %v4132
    %v4134 = vrot.slane %v4133, 4
    %v4136 = vshll.u32 %v4039, 16
    %v4138 = vrot.slane %v4136, 5
    %v4139 = vsel %vm557, %v4134, %v4138
    %v4141 = vshrl.u32 %v4040, 16
    %v4143 = vrot.slane %v4141, 4
    %v4144 = vshll.u32 %v4040, 16
    %v4146 = vrot.slane %v4144, 5
    %v4147 = vor.u32 %v4143, %v4146
    %v4148 = vrot.slane %v4147, 4
    %v4150 = vshll.u32 %v4041, 16
    %v4152 = vrot.slane %v4150, 5
    %v4153 = vsel %vm557, %v4148, %v4152
    %4154 = vrot.lane.b32.xlu0 %v4055, 32
    %v4155 = vpop.permute.xlu0 %4154
    %4156 = vrot.lane.b32.xlu0 %v4069, 32
    %v4157 = vpop.permute.xlu0 %4156
    %4158 = vrot.lane.b32.xlu0 %v4083, 32
    %v4159 = vpop.permute.xlu0 %4158
    %4160 = vrot.lane.b32.xlu0 %v4097, 32
    %v4161 = vpop.permute.xlu0 %4160
    %4162 = vrot.lane.b32.xlu0 %v4111, 32
    %v4163 = vpop.permute.xlu0 %4162
    %4164 = vrot.lane.b32.xlu0 %v4125, 32
    %v4165 = vpop.permute.xlu0 %4164
    %4166 = vrot.lane.b32.xlu0 %v4139, 32
    %v4167 = vpop.permute.xlu0 %4166
    %4168 = vrot.lane.b32.xlu0 %v4153, 32
    %v4169 = vpop.permute.xlu0 %4168
    %4178 = vst.msk [vmem:[%s4017] sm:$0xf] %vm694, %v4155
    %4179 = vst.msk [vmem:[%s4017 + $0xc] sm:$0xf] %vm694, %v4157
    %4180 = vst.msk [vmem:[%s4017 + $0x18] sm:$0xf] %vm694, %v4159
    %4181 = vst.msk [vmem:[%s4017 + $0x24] sm:$0xf] %vm694, %v4161
    %4182 = vst.msk [vmem:[%s4017 + $0x30] sm:$0xf] %vm694, %v4163
    %4183 = vst.msk [vmem:[%s4017 + $0x3c] sm:$0xf] %vm694, %v4165
    %4184 = vst.msk [vmem:[%s4017 + $0x48] sm:$0xf] %vm694, %v4167
    %4185 = vst.msk [vmem:[%s4017 + $0x54] sm:$0xf] %vm694, %v4169
    %v4186 = vld [vmem:[%s3025] sm:$0xe]
    %v4187 = vld [vmem:[%s3025 + $0x4] sm:$0x1]
    %v4188 = vld [vmem:[%s3025 + $0x8] sm:$0xe]
    %v4189 = vld [vmem:[%s3025 + $0xc] sm:$0x1]
    %v4190 = vld [vmem:[%s3025 + $0x10] sm:$0xe]
    %v4191 = vld [vmem:[%s3025 + $0x14] sm:$0x1]
    %v4192 = vld [vmem:[%s3025 + $0x18] sm:$0xe]
    %v4193 = vld [vmem:[%s3025 + $0x1c] sm:$0x1]
    %v4194 = vld [vmem:[%s3025 + $0x20] sm:$0xe]
    %v4195 = vld [vmem:[%s3025 + $0x24] sm:$0x1]
    %v4196 = vld [vmem:[%s3025 + $0x28] sm:$0xe]
    %v4197 = vld [vmem:[%s3025 + $0x2c] sm:$0x1]
    %v4198 = vld [vmem:[%s3025 + $0x30] sm:$0xe]
    %v4199 = vld [vmem:[%s3025 + $0x34] sm:$0x1]
    %v4200 = vld [vmem:[%s3025 + $0x38] sm:$0xe]
    %v4201 = vld [vmem:[%s3025 + $0x3c] sm:$0x1]
    %v4218 = vrot.slane %v4186, 5
    %v4219 = vrot.slane %v4218, 4
    %v4220 = vrot.slane %v4187, 5
    %v4221 = vsel %vm737, %v4219, %v4220
    %v4222 = vrot.slane %v4188, 5
    %v4223 = vrot.slane %v4222, 4
    %v4224 = vrot.slane %v4189, 5
    %v4225 = vsel %vm737, %v4223, %v4224
    %v4226 = vrot.slane %v4190, 5
    %v4227 = vrot.slane %v4226, 4
    %v4228 = vrot.slane %v4191, 5
    %v4229 = vsel %vm737, %v4227, %v4228
    %v4230 = vrot.slane %v4192, 5
    %v4231 = vrot.slane %v4230, 4
    %v4232 = vrot.slane %v4193, 5
    %v4233 = vsel %vm737, %v4231, %v4232
    %v4234 = vrot.slane %v4194, 5
    %v4235 = vrot.slane %v4234, 4
    %v4236 = vrot.slane %v4195, 5
    %v4237 = vsel %vm737, %v4235, %v4236
    %v4238 = vrot.slane %v4196, 5
    %v4239 = vrot.slane %v4238, 4
    %v4240 = vrot.slane %v4197, 5
    %v4241 = vsel %vm737, %v4239, %v4240
    %v4242 = vrot.slane %v4198, 5
    %v4243 = vrot.slane %v4242, 4
    %v4244 = vrot.slane %v4199, 5
    %v4245 = vsel %vm737, %v4243, %v4244
    %v4246 = vrot.slane %v4200, 5
    %v4247 = vrot.slane %v4246, 4
    %v4248 = vrot.slane %v4201, 5
    %v4249 = vsel %vm737, %v4247, %v4248
    %4250 = vrot.lane.b32.xlu0 %v4221, 64
    %v4251 = vpop.permute.xlu0 %4250
    %4252 = vrot.lane.b32.xlu0 %v4225, 64
    %v4253 = vpop.permute.xlu0 %4252
    %4254 = vrot.lane.b32.xlu0 %v4229, 64
    %v4255 = vpop.permute.xlu0 %4254
    %4256 = vrot.lane.b32.xlu0 %v4233, 64
    %v4257 = vpop.permute.xlu0 %4256
    %4258 = vrot.lane.b32.xlu0 %v4237, 64
    %v4259 = vpop.permute.xlu0 %4258
    %4260 = vrot.lane.b32.xlu0 %v4241, 64
    %v4261 = vpop.permute.xlu0 %4260
    %4262 = vrot.lane.b32.xlu0 %v4245, 64
    %v4263 = vpop.permute.xlu0 %4262
    %4264 = vrot.lane.b32.xlu0 %v4249, 64
    %v4265 = vpop.permute.xlu0 %4264
    %4274 = vst.msk [vmem:[%s4017] sm:$0xf] %vm794, %v4251
    %4275 = vst.msk [vmem:[%s4017 + $0xc] sm:$0xf] %vm794, %v4253
    %4276 = vst.msk [vmem:[%s4017 + $0x18] sm:$0xf] %vm794, %v4255
    %4277 = vst.msk [vmem:[%s4017 + $0x24] sm:$0xf] %vm794, %v4257
    %4278 = vst.msk [vmem:[%s4017 + $0x30] sm:$0xf] %vm794, %v4259
    %4279 = vst.msk [vmem:[%s4017 + $0x3c] sm:$0xf] %vm794, %v4261
    %4280 = vst.msk [vmem:[%s4017 + $0x48] sm:$0xf] %vm794, %v4263
    %4281 = vst.msk [vmem:[%s4017 + $0x54] sm:$0xf] %vm794, %v4265
    %v4282 = vld [vmem:[%s3111] sm:$0xf]
    %v4283 = vld [vmem:[%s3111 + $0x8] sm:$0xf]
    %v4284 = vld [vmem:[%s3111 + $0x10] sm:$0xf]
    %v4285 = vld [vmem:[%s3111 + $0x18] sm:$0xf]
    %v4286 = vld [vmem:[%s3111 + $0x20] sm:$0xf]
    %v4287 = vld [vmem:[%s3111 + $0x28] sm:$0xf]
    %v4288 = vld [vmem:[%s3111 + $0x30] sm:$0xf]
    %v4289 = vld [vmem:[%s3111 + $0x38] sm:$0xf]
    %4298 = vrot.lane.b32.xlu0 %v4282, 96
    %v4299 = vpop.permute.xlu0 %4298
    %4300 = vrot.lane.b32.xlu0 %v4283, 96
    %v4301 = vpop.permute.xlu0 %4300
    %4302 = vrot.lane.b32.xlu0 %v4284, 96
    %v4303 = vpop.permute.xlu0 %4302
    %4304 = vrot.lane.b32.xlu0 %v4285, 96
    %v4305 = vpop.permute.xlu0 %4304
    %4306 = vrot.lane.b32.xlu0 %v4286, 96
    %v4307 = vpop.permute.xlu0 %4306
    %4308 = vrot.lane.b32.xlu0 %v4287, 96
    %v4309 = vpop.permute.xlu0 %4308
    %4310 = vrot.lane.b32.xlu0 %v4288, 96
    %v4311 = vpop.permute.xlu0 %4310
    %4312 = vrot.lane.b32.xlu0 %v4289, 96
    %v4313 = vpop.permute.xlu0 %4312
    %4322 = vst.msk [vmem:[%s4017] sm:$0xf] %vm843, %v4299
    %4323 = vst.msk [vmem:[%s4017 + $0xc] sm:$0xf] %vm843, %v4301
    %4324 = vst.msk [vmem:[%s4017 + $0x18] sm:$0xf] %vm843, %v4303
    %4325 = vst.msk [vmem:[%s4017 + $0x24] sm:$0xf] %vm843, %v4305
    %4326 = vst.msk [vmem:[%s4017 + $0x30] sm:$0xf] %vm843, %v4307
    %4327 = vst.msk [vmem:[%s4017 + $0x3c] sm:$0xf] %vm843, %v4309
    %4328 = vst.msk [vmem:[%s4017 + $0x48] sm:$0xf] %vm843, %v4311
    %4329 = vst.msk [vmem:[%s4017 + $0x54] sm:$0xf] %vm843, %v4313
    %v4330 = vld [vmem:[%s3111] sm:$0xf]
    %v4331 = vld [vmem:[%s3111 + $0x4] sm:$0x1]
    %v4332 = vld [vmem:[%s3111 + $0x8] sm:$0xf]
    %v4333 = vld [vmem:[%s3111 + $0xc] sm:$0x1]
    %v4334 = vld [vmem:[%s3111 + $0x10] sm:$0xf]
    %v4335 = vld [vmem:[%s3111 + $0x14] sm:$0x1]
    %v4336 = vld [vmem:[%s3111 + $0x18] sm:$0xf]
    %v4337 = vld [vmem:[%s3111 + $0x1c] sm:$0x1]
    %v4338 = vld [vmem:[%s3111 + $0x20] sm:$0xf]
    %v4339 = vld [vmem:[%s3111 + $0x24] sm:$0x1]
    %v4340 = vld [vmem:[%s3111 + $0x28] sm:$0xf]
    %v4341 = vld [vmem:[%s3111 + $0x2c] sm:$0x1]
    %v4342 = vld [vmem:[%s3111 + $0x30] sm:$0xf]
    %v4343 = vld [vmem:[%s3111 + $0x34] sm:$0x1]
    %v4344 = vld [vmem:[%s3111 + $0x38] sm:$0xf]
    %v4345 = vld [vmem:[%s3111 + $0x3c] sm:$0x1]
    %v4347 = vshrl.u32 %v4330, 16
    %v4349 = vrot.slane %v4347, 4
    %v4350 = vshll.u32 %v4330, 16
    %v4352 = vrot.slane %v4350, 5
    %v4353 = vor.u32 %v4349, %v4352
    %v4354 = vrot.slane %v4353, 4
    %v4356 = vshll.u32 %v4331, 16
    %v4358 = vrot.slane %v4356, 5
    %v4359 = vsel %vm557, %v4354, %v4358
    %v4361 = vshrl.u32 %v4332, 16
    %v4363 = vrot.slane %v4361, 4
    %v4364 = vshll.u32 %v4332, 16
    %v4366 = vrot.slane %v4364, 5
    %v4367 = vor.u32 %v4363, %v4366
    %v4368 = vrot.slane %v4367, 4
    %v4370 = vshll.u32 %v4333, 16
    %v4372 = vrot.slane %v4370, 5
    %v4373 = vsel %vm557, %v4368, %v4372
    %v4375 = vshrl.u32 %v4334, 16
    %v4377 = vrot.slane %v4375, 4
    %v4378 = vshll.u32 %v4334, 16
    %v4380 = vrot.slane %v4378, 5
    %v4381 = vor.u32 %v4377, %v4380
    %v4382 = vrot.slane %v4381, 4
    %v4384 = vshll.u32 %v4335, 16
    %v4386 = vrot.slane %v4384, 5
    %v4387 = vsel %vm557, %v4382, %v4386
    %v4389 = vshrl.u32 %v4336, 16
    %v4391 = vrot.slane %v4389, 4
    %v4392 = vshll.u32 %v4336, 16
    %v4394 = vrot.slane %v4392, 5
    %v4395 = vor.u32 %v4391, %v4394
    %v4396 = vrot.slane %v4395, 4
    %v4398 = vshll.u32 %v4337, 16
    %v4400 = vrot.slane %v4398, 5
    %v4401 = vsel %vm557, %v4396, %v4400
    %v4403 = vshrl.u32 %v4338, 16
    %v4405 = vrot.slane %v4403, 4
    %v4406 = vshll.u32 %v4338, 16
    %v4408 = vrot.slane %v4406, 5
    %v4409 = vor.u32 %v4405, %v4408
    %v4410 = vrot.slane %v4409, 4
    %v4412 = vshll.u32 %v4339, 16
    %v4414 = vrot.slane %v4412, 5
    %v4415 = vsel %vm557, %v4410, %v4414
    %v4417 = vshrl.u32 %v4340, 16
    %v4419 = vrot.slane %v4417, 4
    %v4420 = vshll.u32 %v4340, 16
    %v4422 = vrot.slane %v4420, 5
    %v4423 = vor.u32 %v4419, %v4422
    %v4424 = vrot.slane %v4423, 4
    %v4426 = vshll.u32 %v4341, 16
    %v4428 = vrot.slane %v4426, 5
    %v4429 = vsel %vm557, %v4424, %v4428
    %v4431 = vshrl.u32 %v4342, 16
    %v4433 = vrot.slane %v4431, 4
    %v4434 = vshll.u32 %v4342, 16
    %v4436 = vrot.slane %v4434, 5
    %v4437 = vor.u32 %v4433, %v4436
    %v4438 = vrot.slane %v4437, 4
    %v4440 = vshll.u32 %v4343, 16
    %v4442 = vrot.slane %v4440, 5
    %v4443 = vsel %vm557, %v4438, %v4442
    %v4445 = vshrl.u32 %v4344, 16
    %v4447 = vrot.slane %v4445, 4
    %v4448 = vshll.u32 %v4344, 16
    %v4450 = vrot.slane %v4448, 5
    %v4451 = vor.u32 %v4447, %v4450
    %v4452 = vrot.slane %v4451, 4
    %v4454 = vshll.u32 %v4345, 16
    %v4456 = vrot.slane %v4454, 5
    %v4457 = vsel %vm557, %v4452, %v4456
    %4466 = vst.msk [vmem:[%s4017 + $0x4] sm:$0xf] %vm153, %v4359
    %4467 = vst.msk [vmem:[%s4017 + $0x10] sm:$0xf] %vm153, %v4373
    %4468 = vst.msk [vmem:[%s4017 + $0x1c] sm:$0xf] %vm153, %v4387
    %4469 = vst.msk [vmem:[%s4017 + $0x28] sm:$0xf] %vm153, %v4401
    %4470 = vst.msk [vmem:[%s4017 + $0x34] sm:$0xf] %vm153, %v4415
    %4471 = vst.msk [vmem:[%s4017 + $0x40] sm:$0xf] %vm153, %v4429
    %4472 = vst.msk [vmem:[%s4017 + $0x4c] sm:$0xf] %vm153, %v4443
    %4473 = vst.msk [vmem:[%s4017 + $0x58] sm:$0xf] %vm153, %v4457
    %v4474 = vld [vmem:[%s3111] sm:$0xe]
    %v4475 = vld [vmem:[%s3111 + $0x4] sm:$0x1]
    %v4476 = vld [vmem:[%s3111 + $0x8] sm:$0xe]
    %v4477 = vld [vmem:[%s3111 + $0xc] sm:$0x1]
    %v4478 = vld [vmem:[%s3111 + $0x10] sm:$0xe]
    %v4479 = vld [vmem:[%s3111 + $0x14] sm:$0x1]
    %v4480 = vld [vmem:[%s3111 + $0x18] sm:$0xe]
    %v4481 = vld [vmem:[%s3111 + $0x1c] sm:$0x1]
    %v4482 = vld [vmem:[%s3111 + $0x20] sm:$0xe]
    %v4483 = vld [vmem:[%s3111 + $0x24] sm:$0x1]
    %v4484 = vld [vmem:[%s3111 + $0x28] sm:$0xe]
    %v4485 = vld [vmem:[%s3111 + $0x2c] sm:$0x1]
    %v4486 = vld [vmem:[%s3111 + $0x30] sm:$0xe]
    %v4487 = vld [vmem:[%s3111 + $0x34] sm:$0x1]
    %v4488 = vld [vmem:[%s3111 + $0x38] sm:$0xe]
    %v4489 = vld [vmem:[%s3111 + $0x3c] sm:$0x1]
    %v4506 = vrot.slane %v4474, 5
    %v4507 = vrot.slane %v4506, 4
    %v4508 = vrot.slane %v4475, 5
    %v4509 = vsel %vm737, %v4507, %v4508
    %v4510 = vrot.slane %v4476, 5
    %v4511 = vrot.slane %v4510, 4
    %v4512 = vrot.slane %v4477, 5
    %v4513 = vsel %vm737, %v4511, %v4512
    %v4514 = vrot.slane %v4478, 5
    %v4515 = vrot.slane %v4514, 4
    %v4516 = vrot.slane %v4479, 5
    %v4517 = vsel %vm737, %v4515, %v4516
    %v4518 = vrot.slane %v4480, 5
    %v4519 = vrot.slane %v4518, 4
    %v4520 = vrot.slane %v4481, 5
    %v4521 = vsel %vm737, %v4519, %v4520
    %v4522 = vrot.slane %v4482, 5
    %v4523 = vrot.slane %v4522, 4
    %v4524 = vrot.slane %v4483, 5
    %v4525 = vsel %vm737, %v4523, %v4524
    %v4526 = vrot.slane %v4484, 5
    %v4527 = vrot.slane %v4526, 4
    %v4528 = vrot.slane %v4485, 5
    %v4529 = vsel %vm737, %v4527, %v4528
    %v4530 = vrot.slane %v4486, 5
    %v4531 = vrot.slane %v4530, 4
    %v4532 = vrot.slane %v4487, 5
    %v4533 = vsel %vm737, %v4531, %v4532
    %v4534 = vrot.slane %v4488, 5
    %v4535 = vrot.slane %v4534, 4
    %v4536 = vrot.slane %v4489, 5
    %v4537 = vsel %vm737, %v4535, %v4536
    %4538 = vrot.lane.b32.xlu0 %v4509, 32
    %v4539 = vpop.permute.xlu0 %4538
    %4540 = vrot.lane.b32.xlu0 %v4513, 32
    %v4541 = vpop.permute.xlu0 %4540
    %4542 = vrot.lane.b32.xlu0 %v4517, 32
    %v4543 = vpop.permute.xlu0 %4542
    %4544 = vrot.lane.b32.xlu0 %v4521, 32
    %v4545 = vpop.permute.xlu0 %4544
    %4546 = vrot.lane.b32.xlu0 %v4525, 32
    %v4547 = vpop.permute.xlu0 %4546
    %4548 = vrot.lane.b32.xlu0 %v4529, 32
    %v4549 = vpop.permute.xlu0 %4548
    %4550 = vrot.lane.b32.xlu0 %v4533, 32
    %v4551 = vpop.permute.xlu0 %4550
    %4552 = vrot.lane.b32.xlu0 %v4537, 32
    %v4553 = vpop.permute.xlu0 %4552
    %4562 = vst.msk [vmem:[%s4017 + $0x4] sm:$0xf] %vm694, %v4539
    %4563 = vst.msk [vmem:[%s4017 + $0x10] sm:$0xf] %vm694, %v4541
    %4564 = vst.msk [vmem:[%s4017 + $0x1c] sm:$0xf] %vm694, %v4543
    %4565 = vst.msk [vmem:[%s4017 + $0x28] sm:$0xf] %vm694, %v4545
    %4566 = vst.msk [vmem:[%s4017 + $0x34] sm:$0xf] %vm694, %v4547
    %4567 = vst.msk [vmem:[%s4017 + $0x40] sm:$0xf] %vm694, %v4549
    %4568 = vst.msk [vmem:[%s4017 + $0x4c] sm:$0xf] %vm694, %v4551
    %4569 = vst.msk [vmem:[%s4017 + $0x58] sm:$0xf] %vm694, %v4553
    %s4570 = scalar_lea.vmem [#allocation4], 96
    %v4571 = vld [vmem:[%s4570] sm:$0xf]
    %v4572 = vld [vmem:[%s4570 + $0x8] sm:$0xf]
    %v4573 = vld [vmem:[%s4570 + $0x10] sm:$0xf]
    %v4574 = vld [vmem:[%s4570 + $0x18] sm:$0xf]
    %v4575 = vld [vmem:[%s4570 + $0x20] sm:$0xf]
    %v4576 = vld [vmem:[%s4570 + $0x28] sm:$0xf]
    %v4577 = vld [vmem:[%s4570 + $0x30] sm:$0xf]
    %v4578 = vld [vmem:[%s4570 + $0x38] sm:$0xf]
    %4587 = vrot.lane.b32.xlu0 %v4571, 64
    %v4588 = vpop.permute.xlu0 %4587
    %4589 = vrot.lane.b32.xlu0 %v4572, 64
    %v4590 = vpop.permute.xlu0 %4589
    %4591 = vrot.lane.b32.xlu0 %v4573, 64
    %v4592 = vpop.permute.xlu0 %4591
    %4593 = vrot.lane.b32.xlu0 %v4574, 64
    %v4594 = vpop.permute.xlu0 %4593
    %4595 = vrot.lane.b32.xlu0 %v4575, 64
    %v4596 = vpop.permute.xlu0 %4595
    %4597 = vrot.lane.b32.xlu0 %v4576, 64
    %v4598 = vpop.permute.xlu0 %4597
    %4599 = vrot.lane.b32.xlu0 %v4577, 64
    %v4600 = vpop.permute.xlu0 %4599
    %4601 = vrot.lane.b32.xlu0 %v4578, 64
    %v4602 = vpop.permute.xlu0 %4601
    %4611 = vst.msk [vmem:[%s4017 + $0x4] sm:$0xf] %vm794, %v4588
    %4612 = vst.msk [vmem:[%s4017 + $0x10] sm:$0xf] %vm794, %v4590
    %4613 = vst.msk [vmem:[%s4017 + $0x1c] sm:$0xf] %vm794, %v4592
    %4614 = vst.msk [vmem:[%s4017 + $0x28] sm:$0xf] %vm794, %v4594
    %4615 = vst.msk [vmem:[%s4017 + $0x34] sm:$0xf] %vm794, %v4596
    %4616 = vst.msk [vmem:[%s4017 + $0x40] sm:$0xf] %vm794, %v4598
    %4617 = vst.msk [vmem:[%s4017 + $0x4c] sm:$0xf] %vm794, %v4600
    %4618 = vst.msk [vmem:[%s4017 + $0x58] sm:$0xf] %vm794, %v4602
    %v4619 = vld [vmem:[%s4570] sm:$0xf]
    %v4620 = vld [vmem:[%s4570 + $0x4] sm:$0x1]
    %v4621 = vld [vmem:[%s4570 + $0x8] sm:$0xf]
    %v4622 = vld [vmem:[%s4570 + $0xc] sm:$0x1]
    %v4623 = vld [vmem:[%s4570 + $0x10] sm:$0xf]
    %v4624 = vld [vmem:[%s4570 + $0x14] sm:$0x1]
    %v4625 = vld [vmem:[%s4570 + $0x18] sm:$0xf]
    %v4626 = vld [vmem:[%s4570 + $0x1c] sm:$0x1]
    %v4627 = vld [vmem:[%s4570 + $0x20] sm:$0xf]
    %v4628 = vld [vmem:[%s4570 + $0x24] sm:$0x1]
    %v4629 = vld [vmem:[%s4570 + $0x28] sm:$0xf]
    %v4630 = vld [vmem:[%s4570 + $0x2c] sm:$0x1]
    %v4631 = vld [vmem:[%s4570 + $0x30] sm:$0xf]
    %v4632 = vld [vmem:[%s4570 + $0x34] sm:$0x1]
    %v4633 = vld [vmem:[%s4570 + $0x38] sm:$0xf]
    %v4634 = vld [vmem:[%s4570 + $0x3c] sm:$0x1]
    %v4636 = vshrl.u32 %v4619, 16
    %v4638 = vrot.slane %v4636, 4
    %v4639 = vshll.u32 %v4619, 16
    %v4641 = vrot.slane %v4639, 5
    %v4642 = vor.u32 %v4638, %v4641
    %v4643 = vrot.slane %v4642, 4
    %v4645 = vshll.u32 %v4620, 16
    %v4647 = vrot.slane %v4645, 5
    %v4648 = vsel %vm557, %v4643, %v4647
    %v4650 = vshrl.u32 %v4621, 16
    %v4652 = vrot.slane %v4650, 4
    %v4653 = vshll.u32 %v4621, 16
    %v4655 = vrot.slane %v4653, 5
    %v4656 = vor.u32 %v4652, %v4655
    %v4657 = vrot.slane %v4656, 4
    %v4659 = vshll.u32 %v4622, 16
    %v4661 = vrot.slane %v4659, 5
    %v4662 = vsel %vm557, %v4657, %v4661
    %v4664 = vshrl.u32 %v4623, 16
    %v4666 = vrot.slane %v4664, 4
    %v4667 = vshll.u32 %v4623, 16
    %v4669 = vrot.slane %v4667, 5
    %v4670 = vor.u32 %v4666, %v4669
    %v4671 = vrot.slane %v4670, 4
    %v4673 = vshll.u32 %v4624, 16
    %v4675 = vrot.slane %v4673, 5
    %v4676 = vsel %vm557, %v4671, %v4675
    %v4678 = vshrl.u32 %v4625, 16
    %v4680 = vrot.slane %v4678, 4
    %v4681 = vshll.u32 %v4625, 16
    %v4683 = vrot.slane %v4681, 5
    %v4684 = vor.u32 %v4680, %v4683
    %v4685 = vrot.slane %v4684, 4
    %v4687 = vshll.u32 %v4626, 16
    %v4689 = vrot.slane %v4687, 5
    %v4690 = vsel %vm557, %v4685, %v4689
    %v4692 = vshrl.u32 %v4627, 16
    %v4694 = vrot.slane %v4692, 4
    %v4695 = vshll.u32 %v4627, 16
    %v4697 = vrot.slane %v4695, 5
    %v4698 = vor.u32 %v4694, %v4697
    %v4699 = vrot.slane %v4698, 4
    %v4701 = vshll.u32 %v4628, 16
    %v4703 = vrot.slane %v4701, 5
    %v4704 = vsel %vm557, %v4699, %v4703
    %v4706 = vshrl.u32 %v4629, 16
    %v4708 = vrot.slane %v4706, 4
    %v4709 = vshll.u32 %v4629, 16
    %v4711 = vrot.slane %v4709, 5
    %v4712 = vor.u32 %v4708, %v4711
    %v4713 = vrot.slane %v4712, 4
    %v4715 = vshll.u32 %v4630, 16
    %v4717 = vrot.slane %v4715, 5
    %v4718 = vsel %vm557, %v4713, %v4717
    %v4720 = vshrl.u32 %v4631, 16
    %v4722 = vrot.slane %v4720, 4
    %v4723 = vshll.u32 %v4631, 16
    %v4725 = vrot.slane %v4723, 5
    %v4726 = vor.u32 %v4722, %v4725
    %v4727 = vrot.slane %v4726, 4
    %v4729 = vshll.u32 %v4632, 16
    %v4731 = vrot.slane %v4729, 5
    %v4732 = vsel %vm557, %v4727, %v4731
    %v4734 = vshrl.u32 %v4633, 16
    %v4736 = vrot.slane %v4734, 4
    %v4737 = vshll.u32 %v4633, 16
    %v4739 = vrot.slane %v4737, 5
    %v4740 = vor.u32 %v4736, %v4739
    %v4741 = vrot.slane %v4740, 4
    %v4743 = vshll.u32 %v4634, 16
    %v4745 = vrot.slane %v4743, 5
    %v4746 = vsel %vm557, %v4741, %v4745
    %4747 = vrot.lane.b32.xlu0 %v4648, 96
    %v4748 = vpop.permute.xlu0 %4747
    %4749 = vrot.lane.b32.xlu0 %v4662, 96
    %v4750 = vpop.permute.xlu0 %4749
    %4751 = vrot.lane.b32.xlu0 %v4676, 96
    %v4752 = vpop.permute.xlu0 %4751
    %4753 = vrot.lane.b32.xlu0 %v4690, 96
    %v4754 = vpop.permute.xlu0 %4753
    %4755 = vrot.lane.b32.xlu0 %v4704, 96
    %v4756 = vpop.permute.xlu0 %4755
    %4757 = vrot.lane.b32.xlu0 %v4718, 96
    %v4758 = vpop.permute.xlu0 %4757
    %4759 = vrot.lane.b32.xlu0 %v4732, 96
    %v4760 = vpop.permute.xlu0 %4759
    %4761 = vrot.lane.b32.xlu0 %v4746, 96
    %v4762 = vpop.permute.xlu0 %4761
    %4771 = vst.msk [vmem:[%s4017 + $0x4] sm:$0xf] %vm843, %v4748
    %4772 = vst.msk [vmem:[%s4017 + $0x10] sm:$0xf] %vm843, %v4750
    %4773 = vst.msk [vmem:[%s4017 + $0x1c] sm:$0xf] %vm843, %v4752
    %4774 = vst.msk [vmem:[%s4017 + $0x28] sm:$0xf] %vm843, %v4754
    %4775 = vst.msk [vmem:[%s4017 + $0x34] sm:$0xf] %vm843, %v4756
    %4776 = vst.msk [vmem:[%s4017 + $0x40] sm:$0xf] %vm843, %v4758
    %4777 = vst.msk [vmem:[%s4017 + $0x4c] sm:$0xf] %vm843, %v4760
    %4778 = vst.msk [vmem:[%s4017 + $0x58] sm:$0xf] %vm843, %v4762
    %v4779 = vld [vmem:[%s4570] sm:$0xe]
    %v4780 = vld [vmem:[%s4570 + $0x4] sm:$0x1]
    %v4781 = vld [vmem:[%s4570 + $0x8] sm:$0xe]
    %v4782 = vld [vmem:[%s4570 + $0xc] sm:$0x1]
    %v4783 = vld [vmem:[%s4570 + $0x10] sm:$0xe]
    %v4784 = vld [vmem:[%s4570 + $0x14] sm:$0x1]
    %v4785 = vld [vmem:[%s4570 + $0x18] sm:$0xe]
    %v4786 = vld [vmem:[%s4570 + $0x1c] sm:$0x1]
    %v4787 = vld [vmem:[%s4570 + $0x20] sm:$0xe]
    %v4788 = vld [vmem:[%s4570 + $0x24] sm:$0x1]
    %v4789 = vld [vmem:[%s4570 + $0x28] sm:$0xe]
    %v4790 = vld [vmem:[%s4570 + $0x2c] sm:$0x1]
    %v4791 = vld [vmem:[%s4570 + $0x30] sm:$0xe]
    %v4792 = vld [vmem:[%s4570 + $0x34] sm:$0x1]
    %v4793 = vld [vmem:[%s4570 + $0x38] sm:$0xe]
    %v4794 = vld [vmem:[%s4570 + $0x3c] sm:$0x1]
    %v4811 = vrot.slane %v4779, 5
    %v4812 = vrot.slane %v4811, 4
    %v4813 = vrot.slane %v4780, 5
    %v4814 = vsel %vm737, %v4812, %v4813
    %v4815 = vrot.slane %v4781, 5
    %v4816 = vrot.slane %v4815, 4
    %v4817 = vrot.slane %v4782, 5
    %v4818 = vsel %vm737, %v4816, %v4817
    %v4819 = vrot.slane %v4783, 5
    %v4820 = vrot.slane %v4819, 4
    %v4821 = vrot.slane %v4784, 5
    %v4822 = vsel %vm737, %v4820, %v4821
    %v4823 = vrot.slane %v4785, 5
    %v4824 = vrot.slane %v4823, 4
    %v4825 = vrot.slane %v4786, 5
    %v4826 = vsel %vm737, %v4824, %v4825
    %v4827 = vrot.slane %v4787, 5
    %v4828 = vrot.slane %v4827, 4
    %v4829 = vrot.slane %v4788, 5
    %v4830 = vsel %vm737, %v4828, %v4829
    %v4831 = vrot.slane %v4789, 5
    %v4832 = vrot.slane %v4831, 4
    %v4833 = vrot.slane %v4790, 5
    %v4834 = vsel %vm737, %v4832, %v4833
    %v4835 = vrot.slane %v4791, 5
    %v4836 = vrot.slane %v4835, 4
    %v4837 = vrot.slane %v4792, 5
    %v4838 = vsel %vm737, %v4836, %v4837
    %v4839 = vrot.slane %v4793, 5
    %v4840 = vrot.slane %v4839, 4
    %v4841 = vrot.slane %v4794, 5
    %v4842 = vsel %vm737, %v4840, %v4841
    %4851 = vst.msk [vmem:[%s4017 + $0x8] sm:$0xf] %vm153, %v4814
    %4852 = vst.msk [vmem:[%s4017 + $0x14] sm:$0xf] %vm153, %v4818
    %4853 = vst.msk [vmem:[%s4017 + $0x20] sm:$0xf] %vm153, %v4822
    %4854 = vst.msk [vmem:[%s4017 + $0x2c] sm:$0xf] %vm153, %v4826
    %4855 = vst.msk [vmem:[%s4017 + $0x38] sm:$0xf] %vm153, %v4830
    %4856 = vst.msk [vmem:[%s4017 + $0x44] sm:$0xf] %vm153, %v4834
    %4857 = vst.msk [vmem:[%s4017 + $0x50] sm:$0xf] %vm153, %v4838
    %4858 = vst.msk [vmem:[%s4017 + $0x5c] sm:$0xf] %vm153, %v4842
    %v4859 = vld [vmem:[#allocation5] sm:$0xff]
    %v4860 = vld [vmem:[#allocation5 + $0x8] sm:$0xf]
    %v4861 = vld [vmem:[#allocation5 + $0xc] sm:$0xff]
    %v4862 = vld [vmem:[#allocation5 + $0x14] sm:$0xf]
    %v4863 = vld [vmem:[#allocation5 + $0x18] sm:$0xff]
    %v4864 = vld [vmem:[#allocation5 + $0x20] sm:$0xf]
    %v4865 = vld [vmem:[#allocation5 + $0x24] sm:$0xff]
    %v4866 = vld [vmem:[#allocation5 + $0x2c] sm:$0xf]
    %v4867 = vld [vmem:[#allocation5 + $0x30] sm:$0xff]
    %v4868 = vld [vmem:[#allocation5 + $0x38] sm:$0xf]
    %v4869 = vld [vmem:[#allocation5 + $0x3c] sm:$0xff]
    %v4870 = vld [vmem:[#allocation5 + $0x44] sm:$0xf]
    %v4871 = vld [vmem:[#allocation5 + $0x48] sm:$0xff]
    %v4872 = vld [vmem:[#allocation5 + $0x50] sm:$0xf]
    %v4873 = vld [vmem:[#allocation5 + $0x54] sm:$0xff]
    %v4874 = vld [vmem:[#allocation5 + $0x5c] sm:$0xf]
    %v4875 = vld [vmem:[#allocation5 + $0x60] sm:$0xff]
    %v4876 = vld [vmem:[#allocation5 + $0x68] sm:$0xf]
    %v4877 = vld [vmem:[#allocation5 + $0x6c] sm:$0xff]
    %v4878 = vld [vmem:[#allocation5 + $0x74] sm:$0xf]
    %v4879 = vld [vmem:[#allocation5 + $0x78] sm:$0xff]
    %v4880 = vld [vmem:[#allocation5 + $0x80] sm:$0xf]
    %v4881 = vld [vmem:[#allocation5 + $0x84] sm:$0xff]
    %v4882 = vld [vmem:[#allocation5 + $0x8c] sm:$0xf]
    %v4883 = vld [vmem:[#allocation5 + $0x90] sm:$0xff]
    %v4884 = vld [vmem:[#allocation5 + $0x98] sm:$0xf]
    %v4885 = vld [vmem:[#allocation5 + $0x9c] sm:$0xff]
    %v4886 = vld [vmem:[#allocation5 + $0xa4] sm:$0xf]
    %v4887 = vld [vmem:[#allocation5 + $0xa8] sm:$0xff]
    %v4888 = vld [vmem:[#allocation5 + $0xb0] sm:$0xf]
    %v4889 = vld [vmem:[#allocation5 + $0xb4] sm:$0xff]
    %v4890 = vld [vmem:[#allocation5 + $0xbc] sm:$0xf]
    %v4891 = vld [vmem:[%s2] sm:$0xf]
    %v4892 = vld [vmem:[%s2 + $0x4] sm:$0xf]
    %v4893 = vld [vmem:[%s2 + $0x8] sm:$0xf]
    %v4894 = vld [vmem:[%s2 + $0xc] sm:$0xf]
    %v4895 = vld [vmem:[%s2 + $0x10] sm:$0xf]
    %v4896 = vld [vmem:[%s2 + $0x14] sm:$0xf]
    %v4897 = vld [vmem:[%s2 + $0x18] sm:$0xf]
    %v4898 = vld [vmem:[%s2 + $0x1c] sm:$0xf]
    %v4899 = vld [vmem:[%s2 + $0x20] sm:$0xf]
    %v4900 = vld [vmem:[%s2 + $0x24] sm:$0xf]
    %v4901 = vld [vmem:[%s2 + $0x28] sm:$0xf]
    %v4902 = vld [vmem:[%s2 + $0x2c] sm:$0xf]
    %v4903 = vld [vmem:[%s2 + $0x30] sm:$0xf]
    %v4904 = vld [vmem:[%s2 + $0x34] sm:$0xf]
    %v4905 = vld [vmem:[%s2 + $0x38] sm:$0xf]
    %v4906 = vld [vmem:[%s2 + $0x3c] sm:$0xf]
    %v4907 = vld [vmem:[%s2 + $0x40] sm:$0xf]
    %v4908 = vld [vmem:[%s2 + $0x44] sm:$0xf]
    %v4909 = vld [vmem:[%s2 + $0x48] sm:$0xf]
    %v4910 = vld [vmem:[%s2 + $0x4c] sm:$0xf]
    %v4911 = vld [vmem:[%s2 + $0x50] sm:$0xf]
    %v4912 = vld [vmem:[%s2 + $0x54] sm:$0xf]
    %v4913 = vld [vmem:[%s2 + $0x58] sm:$0xf]
    %v4914 = vld [vmem:[%s2 + $0x5c] sm:$0xf]
    %v4915 = vld [vmem:[%s2 + $0x60] sm:$0xf]
    %v4916 = vld [vmem:[%s2 + $0x64] sm:$0xf]
    %v4917 = vld [vmem:[%s2 + $0x68] sm:$0xf]
    %v4918 = vld [vmem:[%s2 + $0x6c] sm:$0xf]
    %v4919 = vld [vmem:[%s2 + $0x70] sm:$0xf]
    %v4920 = vld [vmem:[%s2 + $0x74] sm:$0xf]
    %v4921 = vld [vmem:[%s2 + $0x78] sm:$0xf]
    %v4922 = vld [vmem:[%s2 + $0x7c] sm:$0xf]
    %v4923 = vld [vmem:[%s2 + $0x80] sm:$0xf]
    %v4924 = vld [vmem:[%s2 + $0x84] sm:$0xf]
    %v4925 = vld [vmem:[%s2 + $0x88] sm:$0xf]
    %v4926 = vld [vmem:[%s2 + $0x8c] sm:$0xf]
    %v4927 = vld [vmem:[%s0] sm:$0xff]
    %v4928 = vld [vmem:[%s0 + $0x8] sm:$0xff]
    %v4929 = vld [vmem:[%s0 + $0x10] sm:$0xff]
    %v4930 = vld [vmem:[%s0 + $0x18] sm:$0xff]
    %v4931 = vld [vmem:[%s0 + $0x20] sm:$0xff]
    %v4932 = vld [vmem:[%s0 + $0x28] sm:$0xff]
    %v4933 = vld [vmem:[%s0 + $0x30] sm:$0xff]
    %v4934 = vld [vmem:[%s0 + $0x38] sm:$0xff]
    %v4935 = vld [vmem:[%s0 + $0x40] sm:$0xff]
    %v4936 = vld [vmem:[%s0 + $0x48] sm:$0xff]
    %v4937 = vld [vmem:[%s0 + $0x50] sm:$0xff]
    %v4938 = vld [vmem:[%s0 + $0x58] sm:$0xff]
    %v4939 = vld [vmem:[%s0 + $0x60] sm:$0xff]
    %v4940 = vld [vmem:[%s0 + $0x68] sm:$0xff]
    %v4941 = vld [vmem:[%s0 + $0x70] sm:$0xff]
    %v4942 = vld [vmem:[%s0 + $0x78] sm:$0xff]
    %v4975 = vunpack.c.l.b16 %v4859
    %v4976 = vunpack.c.h.b16 %v4859
    %v4977 = vunpack.c.l.b16 %v4860
    %v4978 = vunpack.c.l.b16 %v4861
    %v4979 = vunpack.c.h.b16 %v4861
    %v4980 = vunpack.c.l.b16 %v4862
    %v4981 = vunpack.c.l.b16 %v4863
    %v4982 = vunpack.c.h.b16 %v4863
    %v4983 = vunpack.c.l.b16 %v4864
    %v4984 = vunpack.c.l.b16 %v4865
    %v4985 = vunpack.c.h.b16 %v4865
    %v4986 = vunpack.c.l.b16 %v4866
    %v4987 = vunpack.c.l.b16 %v4867
    %v4988 = vunpack.c.h.b16 %v4867
    %v4989 = vunpack.c.l.b16 %v4868
    %v4990 = vunpack.c.l.b16 %v4869
    %v4991 = vunpack.c.h.b16 %v4869
    %v4992 = vunpack.c.l.b16 %v4870
    %v4993 = vunpack.c.l.b16 %v4871
    %v4994 = vunpack.c.h.b16 %v4871
    %v4995 = vunpack.c.l.b16 %v4872
    %v4996 = vunpack.c.l.b16 %v4873
    %v4997 = vunpack.c.h.b16 %v4873
    %v4998 = vunpack.c.l.b16 %v4874
    %v4999 = vunpack.c.l.b16 %v4875
    %v5000 = vunpack.c.h.b16 %v4875
    %v5001 = vunpack.c.l.b16 %v4876
    %v5002 = vunpack.c.l.b16 %v4877
    %v5003 = vunpack.c.h.b16 %v4877
    %v5004 = vunpack.c.l.b16 %v4878
    %v5005 = vunpack.c.l.b16 %v4879
    %v5006 = vunpack.c.h.b16 %v4879
    %v5007 = vunpack.c.l.b16 %v4880
    %v5008 = vunpack.c.l.b16 %v4881
    %v5009 = vunpack.c.h.b16 %v4881
    %v5010 = vunpack.c.l.b16 %v4882
    %v5011 = vunpack.c.l.b16 %v4883
    %v5012 = vunpack.c.h.b16 %v4883
    %v5013 = vunpack.c.l.b16 %v4884
    %v5014 = vunpack.c.l.b16 %v4885
    %v5015 = vunpack.c.h.b16 %v4885
    %v5016 = vunpack.c.l.b16 %v4886
    %v5017 = vunpack.c.l.b16 %v4887
    %v5018 = vunpack.c.h.b16 %v4887
    %v5019 = vunpack.c.l.b16 %v4888
    %v5020 = vunpack.c.l.b16 %v4889
    %v5021 = vunpack.c.h.b16 %v4889
    %v5022 = vunpack.c.l.b16 %v4890
    %v5023 = vpack.c.b16 %v4978, %v4975
    %v5024 = vpack.c.b16 %v4979, %v4976
    %v5025 = vpack.c.b16 %v4980, %v4977
    %v5026 = vpack.c.b16 %v4984, %v4981
    %v5027 = vpack.c.b16 %v4985, %v4982
    %v5028 = vpack.c.b16 %v4986, %v4983
    %v5029 = vpack.c.b16 %v4990, %v4987
    %v5030 = vpack.c.b16 %v4991, %v4988
    %v5031 = vpack.c.b16 %v4992, %v4989
    %v5032 = vpack.c.b16 %v4996, %v4993
    %v5033 = vpack.c.b16 %v4997, %v4994
    %v5034 = vpack.c.b16 %v4998, %v4995
    %v5035 = vpack.c.b16 %v5002, %v4999
    %v5036 = vpack.c.b16 %v5003, %v5000
    %v5037 = vpack.c.b16 %v5004, %v5001
    %v5038 = vpack.c.b16 %v5008, %v5005
    %v5039 = vpack.c.b16 %v5009, %v5006
    %v5040 = vpack.c.b16 %v5010, %v5007
    %v5041 = vpack.c.b16 %v5014, %v5011
    %v5042 = vpack.c.b16 %v5015, %v5012
    %v5043 = vpack.c.b16 %v5016, %v5013
    %v5044 = vpack.c.b16 %v5020, %v5017
    %v5045 = vpack.c.b16 %v5021, %v5018
    %v5046 = vpack.c.b16 %v5022, %v5019
    %v5099 = vunpack.c.l.b16 %v4891
    %v5100 = vunpack.c.l.b16 %v4892
    %v5101 = vunpack.c.l.b16 %v4893
    %v5102 = vunpack.c.l.b16 %v4894
    %v5103 = vunpack.c.l.b16 %v4895
    %v5104 = vunpack.c.l.b16 %v4896
    %v5105 = vunpack.c.l.b16 %v4897
    %v5106 = vunpack.c.l.b16 %v4898
    %v5107 = vunpack.c.l.b16 %v4899
    %v5108 = vunpack.c.l.b16 %v4900
    %v5109 = vunpack.c.l.b16 %v4901
    %v5110 = vunpack.c.l.b16 %v4902
    %v5111 = vunpack.c.l.b16 %v4903
    %v5112 = vunpack.c.l.b16 %v4904
    %v5113 = vunpack.c.l.b16 %v4905
    %v5114 = vunpack.c.l.b16 %v4906
    %v5115 = vunpack.c.l.b16 %v4907
    %v5116 = vunpack.c.l.b16 %v4908
    %v5117 = vunpack.c.l.b16 %v4909
    %v5118 = vunpack.c.l.b16 %v4910
    %v5119 = vunpack.c.l.b16 %v4911
    %v5120 = vunpack.c.l.b16 %v4912
    %v5121 = vunpack.c.l.b16 %v4913
    %v5122 = vunpack.c.l.b16 %v4914
    %v5123 = vunpack.c.l.b16 %v4915
    %v5124 = vunpack.c.l.b16 %v4916
    %v5125 = vunpack.c.l.b16 %v4917
    %v5126 = vunpack.c.l.b16 %v4918
    %v5127 = vunpack.c.l.b16 %v4919
    %v5128 = vunpack.c.l.b16 %v4920
    %v5129 = vunpack.c.l.b16 %v4921
    %v5130 = vunpack.c.l.b16 %v4922
    %v5131 = vunpack.c.l.b16 %v4923
    %v5132 = vunpack.c.l.b16 %v4924
    %v5133 = vunpack.c.l.b16 %v4925
    %v5134 = vunpack.c.l.b16 %v4926
    %v5135 = vpack.c.b16 %v5100, %v5099
    %v5136 = vpack.c.b16 %v5102, %v5101
    %v5137 = vpack.c.b16 %v5104, %v5103
    %v5138 = vpack.c.b16 %v5106, %v5105
    %v5139 = vpack.c.b16 %v5108, %v5107
    %v5140 = vpack.c.b16 %v5110, %v5109
    %v5141 = vpack.c.b16 %v5112, %v5111
    %v5142 = vpack.c.b16 %v5114, %v5113
    %v5143 = vpack.c.b16 %v5116, %v5115
    %v5144 = vpack.c.b16 %v5118, %v5117
    %v5145 = vpack.c.b16 %v5120, %v5119
    %v5146 = vpack.c.b16 %v5122, %v5121
    %v5147 = vpack.c.b16 %v5124, %v5123
    %v5148 = vpack.c.b16 %v5126, %v5125
    %v5149 = vpack.c.b16 %v5128, %v5127
    %v5150 = vpack.c.b16 %v5130, %v5129
    %v5151 = vpack.c.b16 %v5132, %v5131
    %v5152 = vpack.c.b16 %v5134, %v5133
    %v5172 = vsel %vm2527, %v5025, 0
    %v5175 = vsel %vm2527, %v5028, 0
    %v5178 = vsel %vm2527, %v5031, 0
    %v5181 = vsel %vm2527, %v5034, 0
    %v5184 = vsel %vm2527, %v5037, 0
    %v5187 = vsel %vm2527, %v5040, 0
    %v5190 = vsel %vm2527, %v5043, 0
    %v5193 = vsel %vm2527, %v5046, 0
    %5195 = vmatpush.bf16.msra.mxu0 %v5142
    %5196 = vmatpush.bf16.msra.mxu0 %v5141
    %5197 = vmatpush.bf16.msra.mxu0 %v5140
    %5198 = vmatpush.bf16.msra.mxu0 %v5139
    %5199 = vmatpush.bf16.msra.mxu0 %v5138
    %5200 = vmatpush.bf16.msra.mxu0 %v5137
    %5201 = vmatpush.bf16.msra.mxu0 %v5136
    %5202 = vmatpush.bf16.msra.mxu0 %v5135
    %5203 = vmatmul.bf16.gmra.mxu0 %v5023
    %v5204 = vpop.f32.mrf.mxu0
    %v5205 = vadd.f32 %v4927, %v5204
    %v5206 = vpop.f32.mrf.mxu0
    %v5207 = vadd.f32 %v4928, %v5206
    %5208 = vmatmul.bf16.gmra.mxu0 %v5026
    %v5209 = vpop.f32.mrf.mxu0
    %v5210 = vadd.f32 %v4929, %v5209
    %v5211 = vpop.f32.mrf.mxu0
    %v5212 = vadd.f32 %v4930, %v5211
    %5213 = vmatmul.bf16.gmra.mxu0 %v5029
    %v5214 = vpop.f32.mrf.mxu0
    %v5215 = vadd.f32 %v4931, %v5214
    %v5216 = vpop.f32.mrf.mxu0
    %v5217 = vadd.f32 %v4932, %v5216
    %5218 = vmatmul.bf16.gmra.mxu0 %v5032
    %v5219 = vpop.f32.mrf.mxu0
    %v5220 = vadd.f32 %v4933, %v5219
    %v5221 = vpop.f32.mrf.mxu0
    %v5222 = vadd.f32 %v4934, %v5221
    %5223 = vmatmul.bf16.gmra.mxu0 %v5035
    %v5224 = vpop.f32.mrf.mxu0
    %v5225 = vadd.f32 %v4935, %v5224
    %v5226 = vpop.f32.mrf.mxu0
    %v5227 = vadd.f32 %v4936, %v5226
    %5228 = vmatmul.bf16.gmra.mxu0 %v5038
    %v5229 = vpop.f32.mrf.mxu0
    %v5230 = vadd.f32 %v4937, %v5229
    %v5231 = vpop.f32.mrf.mxu0
    %v5232 = vadd.f32 %v4938, %v5231
    %5233 = vmatmul.bf16.gmra.mxu0 %v5041
    %v5234 = vpop.f32.mrf.mxu0
    %v5235 = vadd.f32 %v4939, %v5234
    %v5236 = vpop.f32.mrf.mxu0
    %v5237 = vadd.f32 %v4940, %v5236
    %5238 = vmatmul.bf16.gmra.mxu0 %v5044
    %v5239 = vpop.f32.mrf.mxu0
    %v5240 = vadd.f32 %v4941, %v5239
    %v5241 = vpop.f32.mrf.mxu0
    %v5242 = vadd.f32 %v4942, %v5241
    %5243 = vdwg.mxu0
    %5244 = vmatpush.bf16.msra.mxu0 %v5150
    %5245 = vmatpush.bf16.msra.mxu0 %v5149
    %5246 = vmatpush.bf16.msra.mxu0 %v5148
    %5247 = vmatpush.bf16.msra.mxu0 %v5147
    %5248 = vmatpush.bf16.msra.mxu0 %v5146
    %5249 = vmatpush.bf16.msra.mxu0 %v5145
    %5250 = vmatpush.bf16.msra.mxu0 %v5144
    %5251 = vmatpush.bf16.msra.mxu0 %v5143
    %5252 = vmatmul.bf16.gmra.mxu0 %v5024
    %v5253 = vpop.f32.mrf.mxu0
    %v5254 = vadd.f32 %v5205, %v5253
    %v5255 = vpop.f32.mrf.mxu0
    %v5256 = vadd.f32 %v5207, %v5255
    %5257 = vmatmul.bf16.gmra.mxu0 %v5027
    %v5258 = vpop.f32.mrf.mxu0
    %v5259 = vadd.f32 %v5210, %v5258
    %v5260 = vpop.f32.mrf.mxu0
    %v5261 = vadd.f32 %v5212, %v5260
    %5262 = vmatmul.bf16.gmra.mxu0 %v5030
    %v5263 = vpop.f32.mrf.mxu0
    %v5264 = vadd.f32 %v5215, %v5263
    %v5265 = vpop.f32.mrf.mxu0
    %v5266 = vadd.f32 %v5217, %v5265
    %5267 = vmatmul.bf16.gmra.mxu0 %v5033
    %v5268 = vpop.f32.mrf.mxu0
    %v5269 = vadd.f32 %v5220, %v5268
    %v5270 = vpop.f32.mrf.mxu0
    %v5271 = vadd.f32 %v5222, %v5270
    %5272 = vmatmul.bf16.gmra.mxu0 %v5036
    %v5273 = vpop.f32.mrf.mxu0
    %v5274 = vadd.f32 %v5225, %v5273
    %v5275 = vpop.f32.mrf.mxu0
    %v5276 = vadd.f32 %v5227, %v5275
    %5277 = vmatmul.bf16.gmra.mxu0 %v5039
    %v5278 = vpop.f32.mrf.mxu0
    %v5279 = vadd.f32 %v5230, %v5278
    %v5280 = vpop.f32.mrf.mxu0
    %v5281 = vadd.f32 %v5232, %v5280
    %5282 = vmatmul.bf16.gmra.mxu0 %v5042
    %v5283 = vpop.f32.mrf.mxu0
    %v5284 = vadd.f32 %v5235, %v5283
    %v5285 = vpop.f32.mrf.mxu0
    %v5286 = vadd.f32 %v5237, %v5285
    %5287 = vmatmul.bf16.gmra.mxu0 %v5045
    %v5288 = vpop.f32.mrf.mxu0
    %v5289 = vadd.f32 %v5240, %v5288
    %v5290 = vpop.f32.mrf.mxu0
    %v5291 = vadd.f32 %v5242, %v5290
    %5292 = vdwg.mxu0
    %5293 = vmatpush.bf16.msra.mxu0 0
    %5294 = vmatpush.bf16.msra.mxu0 0
    %5295 = vmatpush.bf16.msra.mxu0 0
    %5296 = vmatpush.bf16.msra.mxu0 0
    %5297 = vmatpush.bf16.msra.mxu0 0
    %5298 = vmatpush.bf16.msra.mxu0 0
    %5299 = vmatpush.bf16.msra.mxu0 %v5152
    %5300 = vmatpush.bf16.msra.mxu0 %v5151
    %5301 = vmatmul.bf16.gmra.mxu0 %v5172
    %v5302 = vpop.f32.mrf.mxu0
    %v5303 = vadd.f32 %v5254, %v5302
    %v5304 = vpop.f32.mrf.mxu0
    %v5305 = vadd.f32 %v5256, %v5304
    %5306 = vmatmul.bf16.gmra.mxu0 %v5175
    %v5307 = vpop.f32.mrf.mxu0
    %v5308 = vadd.f32 %v5259, %v5307
    %v5309 = vpop.f32.mrf.mxu0
    %v5310 = vadd.f32 %v5261, %v5309
    %5311 = vmatmul.bf16.gmra.mxu0 %v5178
    %v5312 = vpop.f32.mrf.mxu0
    %v5313 = vadd.f32 %v5264, %v5312
    %v5314 = vpop.f32.mrf.mxu0
    %v5315 = vadd.f32 %v5266, %v5314
    %5316 = vmatmul.bf16.gmra.mxu0 %v5181
    %v5317 = vpop.f32.mrf.mxu0
    %v5318 = vadd.f32 %v5269, %v5317
    %v5319 = vpop.f32.mrf.mxu0
    %v5320 = vadd.f32 %v5271, %v5319
    %5321 = vmatmul.bf16.gmra.mxu0 %v5184
    %v5322 = vpop.f32.mrf.mxu0
    %v5323 = vadd.f32 %v5274, %v5322
    %v5324 = vpop.f32.mrf.mxu0
    %v5325 = vadd.f32 %v5276, %v5324
    %5326 = vmatmul.bf16.gmra.mxu0 %v5187
    %v5327 = vpop.f32.mrf.mxu0
    %v5328 = vadd.f32 %v5279, %v5327
    %v5329 = vpop.f32.mrf.mxu0
    %v5330 = vadd.f32 %v5281, %v5329
    %5331 = vmatmul.bf16.gmra.mxu0 %v5190
    %v5332 = vpop.f32.mrf.mxu0
    %v5333 = vadd.f32 %v5284, %v5332
    %v5334 = vpop.f32.mrf.mxu0
    %v5335 = vadd.f32 %v5286, %v5334
    %5336 = vmatmul.bf16.gmra.mxu0 %v5193
    %v5337 = vpop.f32.mrf.mxu0
    %v5338 = vadd.f32 %v5289, %v5337
    %v5339 = vpop.f32.mrf.mxu0
    %v5340 = vadd.f32 %v5291, %v5339
    %5341 = vdwg.mxu0
    %5342 = vst.msk [vmem:[#allocation6] sm:$0xff] %vm2527, %v5303
    %5343 = vst.msk [vmem:[#allocation6 + $0x8] sm:$0xff] %vm2527, %v5305
    %5344 = vst.msk [vmem:[#allocation6 + $0x10] sm:$0xff] %vm2527, %v5308
    %5345 = vst.msk [vmem:[#allocation6 + $0x18] sm:$0xff] %vm2527, %v5310
    %5346 = vst.msk [vmem:[#allocation6 + $0x20] sm:$0xff] %vm2527, %v5313
    %5347 = vst.msk [vmem:[#allocation6 + $0x28] sm:$0xff] %vm2527, %v5315
    %5348 = vst.msk [vmem:[#allocation6 + $0x30] sm:$0xff] %vm2527, %v5318
    %5349 = vst.msk [vmem:[#allocation6 + $0x38] sm:$0xff] %vm2527, %v5320
    %5350 = vst.msk [vmem:[#allocation6 + $0x40] sm:$0xff] %vm2527, %v5323
    %5351 = vst.msk [vmem:[#allocation6 + $0x48] sm:$0xff] %vm2527, %v5325
    %5352 = vst.msk [vmem:[#allocation6 + $0x50] sm:$0xff] %vm2527, %v5328
    %5353 = vst.msk [vmem:[#allocation6 + $0x58] sm:$0xff] %vm2527, %v5330
    %5354 = vst.msk [vmem:[#allocation6 + $0x60] sm:$0xff] %vm2527, %v5333
    %5355 = vst.msk [vmem:[#allocation6 + $0x68] sm:$0xff] %vm2527, %v5335
    %5356 = vst.msk [vmem:[#allocation6 + $0x70] sm:$0xff] %vm2527, %v5338
    %5357 = vst.msk [vmem:[#allocation6 + $0x78] sm:$0xff] %vm2527, %v5340
    // Predicated region
    $region30: #{_lambda_.3} parent=1 // pred_check
      _
    $region31: #{_lambda_.3} parent=1 // pred_check_branch
      %5359 = sbr.rel (0) target = $region33
    $region32: #{_lambda_.3} parent=1 // pred_region
      %5361 = vsyncadd [#allocation7], 0
      %s5362 = sshll.u32 [#allocation6], 4
      %s5363 = int_to_ptr.vmem [resolvable:$true] %s5362
      %s5364 = sshll.u32 %s7, 4
      %s5365 = int_to_ptr.hbm [resolvable:$true] %s5364
      %5370 = dma.vmem_to_hbm [thread:$0]  %s5363, 2048, %s5365, [#allocation7], 128, 128, 8
    $region33: #{_lambda_.3} parent=1 // pred_fallthru
      _
    // Predicated region
    $region34: #{_lambda_.3} parent=1 // pred_check
      _
    $region35: #{_lambda_.3} parent=1 // pred_check_branch
      %5372 = sbr.rel (0) target = $region37
    $region36: #{_lambda_.3} parent=1 // pred_region
      %5374 = dma.done [#allocation7], 2048
    $region37: #{_lambda_.3} parent=1 // pred_fallthru
      _
    %5375 = vsyncpa [#allocation7], 1

</llo_original>
